<compile_context>
chip_gen: v6e
topology: v6e:2x2x1
jax: 0.10.0
libtpu: 0.0.40
codegen_flags: <defaults>
</compile_context>

<pallas_src>
import functools

import jax
import jax.numpy as jnp
from jax.experimental import pallas as pl
from jax.experimental.pallas import tpu as pltpu


_VMEM_LIMIT = 32 * 1024 * 1024  # scoped-VMEM cap that is safe on v5e / v6e / v7x


# ----------------------------------------------------------------------------
# Kernel 1: fused Conv2d(3x3, stride 2, pad 1) -- in-VMEM tap gather + MXU + bias + act
# ----------------------------------------------------------------------------
def _conv3x3_s2_kernel(z_ref, w_ref, b_ref, o_ref, *, oh, ow, cin, act):
    """One batch image per grid step.

    z_ref : (4, oh+1, ow+1, cin) bf16 -- stride-2 phase split of the input with one
            zero row/col at top/left standing in for the conv's padding=1.
            Phase p = 2*r + c holds x[2*a + r, 2*b + c, :] at spatial (a, b).
    w_ref : (9, cin, cout) bf16, tap-major (kh, kw).
    b_ref : (1, cout) fp32.
    o_ref : (1, oh, ow, cout).
    """
    z = z_ref[...]
    w = w_ref[...]
    cout = w.shape[-1]
    acc = jnp.zeros((oh * ow, cout), jnp.float32)
    for kh in range(3):
        r = 0 if kh == 1 else 1          # input row 2*oh - 1 + kh = 2*a + r
        rs = 0 if kh == 0 else 1         # slice start in the padded phase rows
        for kw in range(3):
            c = 0 if kw == 1 else 1
            cs = 0 if kw == 0 else 1
            tap = z[2 * r + c, rs:rs + oh, cs:cs + ow, :].reshape(oh * ow, cin)
            acc = acc + jnp.dot(tap, w[kh * 3 + kw],
                                preferred_element_type=jnp.float32)
    acc = acc + b_ref[...]               # fp32 epilogue (v5e VPU/EUP have no bf16)
    if act == "relu":
        acc = jnp.maximum(acc, 0.0)
    elif act == "sigmoid":
        acc = 1.0 / (1.0 + jnp.exp(-acc))
    o_ref[...] = acc.reshape(o_ref.shape).astype(o_ref.dtype)


def conv2d_s2_nhwc(x, wp, bias, cout, *, act, out_dtype):
    """Conv2d(k=3, stride=2, padding=1) on an NHWC input via one fused Pallas kernel."""
    x = x.astype(jnp.bfloat16)
    n, h, w, cin = x.shape
    assert h % 2 == 0 and w % 2 == 0, "stride-2 conv expects even spatial dims"
    oh, ow = h // 2, w // 2
    # Volume-preserving stride-2 phase split (space-to-depth); the 3x3 window gather
    # happens inside the kernel from VMEM -> no 9x im2col inflation in HBM.
    ph = x.reshape(n, oh, 2, ow, 2, cin).transpose(0, 2, 4, 1, 3, 5)
    ph = ph.reshape(n * 4, oh, ow, cin)
    zp = jnp.pad(ph, ((0, 0), (1, 0), (1, 0), (0, 0)))      # conv padding=1 (top/left)
    ohp, owp = oh + 1, ow + 1

    out_itemsize = jnp.dtype(out_dtype).itemsize
    flops = 2 * n * oh * ow * (9 * cin) * cout
    bytes_accessed = (zp.size * 2 + wp.size * 2 + bias.size * 4
                      + n * oh * ow * cout * out_itemsize)

    return pl.pallas_call(
        functools.partial(_conv3x3_s2_kernel, oh=oh, ow=ow, cin=cin, act=act),
        out_shape=jax.ShapeDtypeStruct((n, oh, ow, cout), out_dtype),
        grid=(n,),
        in_specs=[
            pl.BlockSpec((4, ohp, owp, cin), lambda i: (i, 0, 0, 0)),  # phases of image i
            pl.BlockSpec((9, cin, cout), lambda i: (0, 0, 0)),         # weight resident
            pl.BlockSpec((1, cout), lambda i: (0, 0)),                 # bias resident
        ],
        out_specs=pl.BlockSpec((1, oh, ow, cout), lambda i: (i, 0, 0, 0)),
        compiler_params=pltpu.CompilerParams(
            dimension_semantics=("parallel",),   # batch images split across TCs (v7x)
            vmem_limit_bytes=_VMEM_LIMIT,
        ),
        cost_estimate=pl.CostEstimate(flops=flops, transcendentals=0,
                                      bytes_accessed=bytes_accessed),
    )(zp, wp, bias)


# ----------------------------------------------------------------------------
# Kernel 2: fused ConvTranspose2d(3x3, s=2, p=1, op=1) as a sub-pixel (4-phase) GEMM
# ----------------------------------------------------------------------------
def _tconv3x3_s2_kernel(y_ref, w_ref, b_ref, o_ref, *, h, w, cin, act):
    """One batch image per grid step.

    y_ref : (1, h+1, w+1, cin) bf16 -- input, zero-padded one row/col at bottom/right.
    w_ref : (4, cin, 4*cout) bf16 -- rows: 2x2 input taps; cols: 2x2 output phases.
    b_ref : (1, 4*cout) fp32 (bias tiled across the 4 output phases).
    o_ref : (1, h, w, 4*cout) -- phase-major output, pixel-shuffled by the caller.
    """
    y = y_ref[...]
    wt = w_ref[...]
    nout = wt.shape[-1]
    acc = jnp.zeros((h * w, nout), jnp.float32)
    for t, (tr, tc) in enumerate(((0, 0), (0, 1), (1, 0), (1, 1))):
        tap = y[0, tr:tr + h, tc:tc + w, :].reshape(h * w, cin)
        acc = acc + jnp.dot(tap, wt[t], preferred_element_type=jnp.float32)
    acc = acc + b_ref[...]
    if act == "relu":
        acc = jnp.maximum(acc, 0.0)
    elif act == "sigmoid":
        acc = 1.0 / (1.0 + jnp.exp(-acc))
    o_ref[...] = acc.reshape(o_ref.shape).astype(o_ref.dtype)


def tconv2d_s2_nhwc(y, wp, bias, cout, *, act, out_dtype):
    """ConvTranspose2d(k=3, stride=2, padding=1, output_padding=1), NHWC, fused kernel."""
    y = y.astype(jnp.bfloat16)
    n, h, w, cin = y.shape
    yp = jnp.pad(y, ((0, 0), (0, 1), (0, 1), (0, 0)))        # far-edge taps read zeros
    hp, wpd = h + 1, w + 1

    out_itemsize = jnp.dtype(out_dtype).itemsize
    flops = 2 * n * h * w * (4 * cin) * (4 * cout)
    trans = n * h * w * 4 * cout if act == "sigmoid" else 0
    bytes_accessed = (yp.size * 2 + wp.size * 2 + bias.size * 4
                      + n * h * w * 4 * cout * out_itemsize)

    out = pl.pallas_call(
        functools.partial(_tconv3x3_s2_kernel, h=h, w=w, cin=cin, act=act),
        out_shape=jax.ShapeDtypeStruct((n, h, w, 4 * cout), out_dtype),
        grid=(n,),
        in_specs=[
            pl.BlockSpec((1, hp, wpd, cin), lambda i: (i, 0, 0, 0)),
            pl.BlockSpec((4, cin, 4 * cout), lambda i: (0, 0, 0)),
            pl.BlockSpec((1, 4 * cout), lambda i: (0, 0)),
        ],
        out_specs=pl.BlockSpec((1, h, w, 4 * cout), lambda i: (i, 0, 0, 0)),
        compiler_params=pltpu.CompilerParams(
            dimension_semantics=("parallel",),
            vmem_limit_bytes=_VMEM_LIMIT,
        ),
        cost_estimate=pl.CostEstimate(flops=flops, transcendentals=trans,
                                      bytes_accessed=bytes_accessed),
    )(yp, wp, bias)
    # Pixel shuffle: interleave the 4 output phases into the 2x-upsampled grid.
    # TODO(synk): fuse this phase interleave into the next layer's in-kernel gather.
    out = out.reshape(n, h, w, 2, 2, cout).transpose(0, 1, 3, 2, 4, 5)
    return out.reshape(n, 2 * h, 2 * w, cout)


# ----------------------------------------------------------------------------
# Parameters + one-time packing into kernel-ready bf16 weights
# ----------------------------------------------------------------------------
def init_params(seed=0):
    key = jax.random.PRNGKey(seed)
    keys = jax.random.split(key, 12)

    def u(k, shape, fan_in):
        bound = 1.0 / float(fan_in) ** 0.5
        return jax.random.uniform(k, shape, jnp.float32, -bound, bound)

    p = {}
    # encoder Conv2d weights: (Cout, Cin, 3, 3)
    p["enc1_w"] = u(keys[0], (32, 3, 3, 3), 3 * 9)
    p["enc1_b"] = u(keys[1], (32,), 3 * 9)
    p["enc2_w"] = u(keys[2], (64, 32, 3, 3), 32 * 9)
    p["enc2_b"] = u(keys[3], (64,), 32 * 9)
    p["enc3_w"] = u(keys[4], (128, 64, 3, 3), 64 * 9)
    p["enc3_b"] = u(keys[5], (128,), 64 * 9)
    # decoder ConvTranspose2d weights: (Cin, Cout, 3, 3); PyTorch fan_in = Cout*k*k
    p["dec1_w"] = u(keys[6], (128, 64, 3, 3), 64 * 9)
    p["dec1_b"] = u(keys[7], (64,), 64 * 9)
    p["dec2_w"] = u(keys[8], (64, 32, 3, 3), 32 * 9)
    p["dec2_b"] = u(keys[9], (32,), 32 * 9)
    p["dec3_w"] = u(keys[10], (32, 3, 3, 3), 3 * 9)
    p["dec3_b"] = u(keys[11], (3,), 3 * 9)
    return p


def _pack_conv(w, b):
    """Conv2d weight (Cout, Cin, 3, 3) -> tap-major (9, Cin, Cout) bf16 + (1, Cout) fp32."""
    cout, cin, kh, kw = w.shape
    wp = w.transpose(2, 3, 1, 0).reshape(kh * kw, cin, cout).astype(jnp.bfloat16)
    return wp, b.astype(jnp.float32)[None, :]


def _pack_tconv(w, b):
    """ConvTranspose2d weight (Cin, Cout, 3, 3) -> sub-pixel (4, Cin, 4*Cout) bf16.

    Input tap (tr, tc) at pixel (h+tr, w+tc) contributes to output phase (dr, dc) of
    pixel (2h+dr, 2w+dc) through kernel element (kh, kw) = (dr-2tr+1, dc-2tc+1);
    out-of-range elements are zero blocks.  Exact PyTorch semantics for
    ConvTranspose2d(k=3, stride=2, padding=1, output_padding=1).
    """
    cin, cout, KH, KW = w.shape
    assert KH == 3 and KW == 3
    taps = []
    for tr in range(2):
        for tc in range(2):
            cols = []
            for dr in range(2):
                for dc in range(2):
                    kh = dr - 2 * tr + 1
                    kw = dc - 2 * tc + 1
                    if 0 <= kh <= 2 and 0 <= kw <= 2:
                        cols.append(w[:, :, kh, kw])
                    else:
                        cols.append(jnp.zeros((cin, cout), w.dtype))
            taps.append(jnp.concatenate(cols, axis=1))        # (Cin, 4*Cout)
    wp = jnp.stack(taps, axis=0).astype(jnp.bfloat16)         # (4, Cin, 4*Cout)
    bias = jnp.tile(b, 4).astype(jnp.float32)[None, :]
    return wp, bias


def prepare_params(params):
    """One-time weight packing so only activations move per forward pass."""
    prepped = {}
    for name in ("enc1", "enc2", "enc3"):
        prepped[name + "_w"], prepped[name + "_b"] = _pack_conv(
            params[name + "_w"], params[name + "_b"])
    for name in ("dec1", "dec2", "dec3"):
        prepped[name + "_w"], prepped[name + "_b"] = _pack_tconv(
            params[name + "_w"], params[name + "_b"])
    return prepped


# ----------------------------------------------------------------------------
# Forward pass (matches DenoisingAutoencoder.forward)
# ----------------------------------------------------------------------------
_ENC = (("enc1", 32), ("enc2", 64), ("enc3", 128))
_DEC = (("dec1", 64), ("dec2", 32), ("dec3", 3))


def forward(prepped, x_nchw):
    x = jnp.transpose(x_nchw, (0, 2, 3, 1))                   # NCHW -> NHWC once
    for name, cout in _ENC:
        x = conv2d_s2_nhwc(x, prepped[name + "_w"], prepped[name + "_b"], cout,
                           act="relu", out_dtype=jnp.bfloat16)
    for idx, (name, cout) in enumerate(_DEC):
        last = idx == len(_DEC) - 1
        x = tconv2d_s2_nhwc(x, prepped[name + "_w"], prepped[name + "_b"], cout,
                            act="sigmoid" if last else "relu",
                            out_dtype=jnp.float32 if last else jnp.bfloat16)
    return jnp.transpose(x, (0, 3, 1, 2))                      # NHWC -> NCHW once


# ----------------------------------------------------------------------------
# Pure-JAX (XLA conv) reference with the same bf16 input rounding, for checking
# ----------------------------------------------------------------------------
def _ref_forward(params, x):
    dn = ("NCHW", "OIHW", "NCHW")

    def bf(v):
        return v.astype(jnp.bfloat16)

    def conv(h, w, b, s, pad):
        y = jax.lax.conv_general_dilated(
            bf(h), bf(w), (s, s), [(pad, pad), (pad, pad)],
            dimension_numbers=dn, preferred_element_type=jnp.float32)
        return y + b[None, :, None, None]

    def convT(h, w, b):
        w_eq = jnp.flip(w, axis=(2, 3)).transpose(1, 0, 2, 3)
        y = jax.lax.conv_general_dilated(
            bf(h), bf(w_eq), (1, 1), [(1, 2), (1, 2)], lhs_dilation=(2, 2),
            dimension_numbers=dn, preferred_element_type=jnp.float32)
        return y + b[None, :, None, None]

    h = jax.nn.relu(conv(x, params["enc1_w"], params["enc1_b"], 2, 1))
    h = jax.nn.relu(conv(h, params["enc2_w"], params["enc2_b"], 2, 1))
    h = jax.nn.relu(conv(h, params["enc3_w"], params["enc3_b"], 2, 1))
    h = jax.nn.relu(convT(h, params["dec1_w"], params["dec1_b"]))
    h = jax.nn.relu(convT(h, params["dec2_w"], params["dec2_b"]))
    h = jax.nn.sigmoid(convT(h, params["dec3_w"], params["dec3_b"]))
    return h


if __name__ == "__main__":
    params = init_params(0)
    prepped = prepare_params(params)
    x = jax.random.normal(jax.random.PRNGKey(0), (2, 3, 16, 16), jnp.float32)

    fwd = jax.jit(forward)
    out = jax.block_until_ready(fwd(prepped, x))
    assert out.shape == (2, 3, 16, 16), out.shape

    ref = jax.block_until_ready(_ref_forward(params, x))
    if not jnp.allclose(out, ref, atol=5e-3, rtol=5e-3):
        err = float(jnp.max(jnp.abs(out - ref)))
        raise AssertionError(f"Pallas output does not match reference (max abs err {err})")

    print("KERNEL_OK")
</pallas_src>

<mosaic_0001>
module attributes {stable_mosaic.version = 11 : i64} {
  func.func @_conv3x3_s2_kernel(%arg0: i32, %arg1: memref<4x9x9x3xbf16, #tpu.memory_space<vmem>>, %arg2: memref<9x3x32xbf16, #tpu.memory_space<vmem>>, %arg3: memref<1x32xf32, #tpu.memory_space<vmem>>, %arg4: memref<1x8x8x32xbf16, #tpu.memory_space<vmem>>) attributes {dimension_semantics = [#tpu.dimension_semantics<parallel>], iteration_bounds = array<i64: 2>, scalar_prefetch = 0 : i64, scratch_operands = 0 : i64, tpu.core_type = #tpu.core_type<tc>, window_params = [{transform_indices = @transform_0, window_bounds = array<i64: 4, 9, 9, 3>}, {pipeline_mode = #tpu.pipeline_mode<synchronous>, transform_indices = @transform_1, window_bounds = array<i64: 9, 3, 32>}, {pipeline_mode = #tpu.pipeline_mode<synchronous>, transform_indices = @transform_2, window_bounds = array<i64: 1, 32>}, {transform_indices = @transform_3, window_bounds = array<i64: 1, 8, 8, 32>}]} {
    %c0 = arith.constant 0 : index
    %c0_0 = arith.constant 0 : index
    %c0_1 = arith.constant 0 : index
    %c0_2 = arith.constant 0 : index
    %0 = vector.load %arg1[%c0, %c0_0, %c0_1, %c0_2] : memref<4x9x9x3xbf16, #tpu.memory_space<vmem>>, vector<4x9x9x3xbf16>
    %c0_3 = arith.constant 0 : index
    %c0_4 = arith.constant 0 : index
    %c0_5 = arith.constant 0 : index
    %1 = vector.load %arg2[%c0_3, %c0_4, %c0_5] : memref<9x3x32xbf16, #tpu.memory_space<vmem>>, vector<9x3x32xbf16>
    %cst = arith.constant 0.000000e+00 : f32
    %2 = vector.broadcast %cst : f32 to vector<64x32xf32>
    %3 = vector.extract_strided_slice %0 {offsets = [3, 0, 0, 0], sizes = [1, 8, 8, 3], strides = [1, 1, 1, 1]} : vector<4x9x9x3xbf16> to vector<1x8x8x3xbf16>
    %4 = vector.shape_cast %3 : vector<1x8x8x3xbf16> to vector<8x8x3xbf16>
    %5 = vector.shape_cast %4 : vector<8x8x3xbf16> to vector<64x3xbf16>
    %6 = vector.extract_strided_slice %1 {offsets = [0, 0, 0], sizes = [1, 3, 32], strides = [1, 1, 1]} : vector<9x3x32xbf16> to vector<1x3x32xbf16>
    %7 = vector.shape_cast %6 : vector<1x3x32xbf16> to vector<3x32xbf16>
    %cst_6 = arith.constant dense<0.000000e+00> : vector<64x32xf32>
    %8 = tpu.matmul %5, %7, %cst_6 {dimension_numbers = #tpu.dot_dimension_numbers<[1], [0], [0], [1], [0, 0, 1, 1], [], []>} : vector<64x3xbf16>, vector<3x32xbf16>, vector<64x32xf32> -> vector<64x32xf32>
    %9 = arith.addf %2, %8 : vector<64x32xf32>
    %10 = vector.extract_strided_slice %0 {offsets = [2, 0, 1, 0], sizes = [1, 8, 8, 3], strides = [1, 1, 1, 1]} : vector<4x9x9x3xbf16> to vector<1x8x8x3xbf16>
    %11 = vector.shape_cast %10 : vector<1x8x8x3xbf16> to vector<8x8x3xbf16>
    %12 = vector.shape_cast %11 : vector<8x8x3xbf16> to vector<64x3xbf16>
    %13 = vector.extract_strided_slice %1 {offsets = [1, 0, 0], sizes = [1, 3, 32], strides = [1, 1, 1]} : vector<9x3x32xbf16> to vector<1x3x32xbf16>
    %14 = vector.shape_cast %13 : vector<1x3x32xbf16> to vector<3x32xbf16>
    %cst_7 = arith.constant dense<0.000000e+00> : vector<64x32xf32>
    %15 = tpu.matmul %12, %14, %cst_7 {dimension_numbers = #tpu.dot_dimension_numbers<[1], [0], [0], [1], [0, 0, 1, 1], [], []>} : vector<64x3xbf16>, vector<3x32xbf16>, vector<64x32xf32> -> vector<64x32xf32>
    %16 = arith.addf %9, %15 : vector<64x32xf32>
    %17 = vector.extract_strided_slice %0 {offsets = [3, 0, 1, 0], sizes = [1, 8, 8, 3], strides = [1, 1, 1, 1]} : vector<4x9x9x3xbf16> to vector<1x8x8x3xbf16>
    %18 = vector.shape_cast %17 : vector<1x8x8x3xbf16> to vector<8x8x3xbf16>
    %19 = vector.shape_cast %18 : vector<8x8x3xbf16> to vector<64x3xbf16>
    %20 = vector.extract_strided_slice %1 {offsets = [2, 0, 0], sizes = [1, 3, 32], strides = [1, 1, 1]} : vector<9x3x32xbf16> to vector<1x3x32xbf16>
    %21 = vector.shape_cast %20 : vector<1x3x32xbf16> to vector<3x32xbf16>
    %cst_8 = arith.constant dense<0.000000e+00> : vector<64x32xf32>
    %22 = tpu.matmul %19, %21, %cst_8 {dimension_numbers = #tpu.dot_dimension_numbers<[1], [0], [0], [1], [0, 0, 1, 1], [], []>} : vector<64x3xbf16>, vector<3x32xbf16>, vector<64x32xf32> -> vector<64x32xf32>
    %23 = arith.addf %16, %22 : vector<64x32xf32>
    %24 = vector.extract_strided_slice %0 {offsets = [1, 1, 0, 0], sizes = [1, 8, 8, 3], strides = [1, 1, 1, 1]} : vector<4x9x9x3xbf16> to vector<1x8x8x3xbf16>
    %25 = vector.shape_cast %24 : vector<1x8x8x3xbf16> to vector<8x8x3xbf16>
    %26 = vector.shape_cast %25 : vector<8x8x3xbf16> to vector<64x3xbf16>
    %27 = vector.extract_strided_slice %1 {offsets = [3, 0, 0], sizes = [1, 3, 32], strides = [1, 1, 1]} : vector<9x3x32xbf16> to vector<1x3x32xbf16>
    %28 = vector.shape_cast %27 : vector<1x3x32xbf16> to vector<3x32xbf16>
    %cst_9 = arith.constant dense<0.000000e+00> : vector<64x32xf32>
    %29 = tpu.matmul %26, %28, %cst_9 {dimension_numbers = #tpu.dot_dimension_numbers<[1], [0], [0], [1], [0, 0, 1, 1], [], []>} : vector<64x3xbf16>, vector<3x32xbf16>, vector<64x32xf32> -> vector<64x32xf32>
    %30 = arith.addf %23, %29 : vector<64x32xf32>
    %31 = vector.extract_strided_slice %0 {offsets = [0, 1, 1, 0], sizes = [1, 8, 8, 3], strides = [1, 1, 1, 1]} : vector<4x9x9x3xbf16> to vector<1x8x8x3xbf16>
    %32 = vector.shape_cast %31 : vector<1x8x8x3xbf16> to vector<8x8x3xbf16>
    %33 = vector.shape_cast %32 : vector<8x8x3xbf16> to vector<64x3xbf16>
    %34 = vector.extract_strided_slice %1 {offsets = [4, 0, 0], sizes = [1, 3, 32], strides = [1, 1, 1]} : vector<9x3x32xbf16> to vector<1x3x32xbf16>
    %35 = vector.shape_cast %34 : vector<1x3x32xbf16> to vector<3x32xbf16>
    %cst_10 = arith.constant dense<0.000000e+00> : vector<64x32xf32>
    %36 = tpu.matmul %33, %35, %cst_10 {dimension_numbers = #tpu.dot_dimension_numbers<[1], [0], [0], [1], [0, 0, 1, 1], [], []>} : vector<64x3xbf16>, vector<3x32xbf16>, vector<64x32xf32> -> vector<64x32xf32>
    %37 = arith.addf %30, %36 : vector<64x32xf32>
    %38 = vector.extract_strided_slice %0 {offsets = [1, 1, 1, 0], sizes = [1, 8, 8, 3], strides = [1, 1, 1, 1]} : vector<4x9x9x3xbf16> to vector<1x8x8x3xbf16>
    %39 = vector.shape_cast %38 : vector<1x8x8x3xbf16> to vector<8x8x3xbf16>
    %40 = vector.shape_cast %39 : vector<8x8x3xbf16> to vector<64x3xbf16>
    %41 = vector.extract_strided_slice %1 {offsets = [5, 0, 0], sizes = [1, 3, 32], strides = [1, 1, 1]} : vector<9x3x32xbf16> to vector<1x3x32xbf16>
    %42 = vector.shape_cast %41 : vector<1x3x32xbf16> to vector<3x32xbf16>
    %cst_11 = arith.constant dense<0.000000e+00> : vector<64x32xf32>
    %43 = tpu.matmul %40, %42, %cst_11 {dimension_numbers = #tpu.dot_dimension_numbers<[1], [0], [0], [1], [0, 0, 1, 1], [], []>} : vector<64x3xbf16>, vector<3x32xbf16>, vector<64x32xf32> -> vector<64x32xf32>
    %44 = arith.addf %37, %43 : vector<64x32xf32>
    %45 = vector.extract_strided_slice %0 {offsets = [3, 1, 0, 0], sizes = [1, 8, 8, 3], strides = [1, 1, 1, 1]} : vector<4x9x9x3xbf16> to vector<1x8x8x3xbf16>
    %46 = vector.shape_cast %45 : vector<1x8x8x3xbf16> to vector<8x8x3xbf16>
    %47 = vector.shape_cast %46 : vector<8x8x3xbf16> to vector<64x3xbf16>
    %48 = vector.extract_strided_slice %1 {offsets = [6, 0, 0], sizes = [1, 3, 32], strides = [1, 1, 1]} : vector<9x3x32xbf16> to vector<1x3x32xbf16>
    %49 = vector.shape_cast %48 : vector<1x3x32xbf16> to vector<3x32xbf16>
    %cst_12 = arith.constant dense<0.000000e+00> : vector<64x32xf32>
    %50 = tpu.matmul %47, %49, %cst_12 {dimension_numbers = #tpu.dot_dimension_numbers<[1], [0], [0], [1], [0, 0, 1, 1], [], []>} : vector<64x3xbf16>, vector<3x32xbf16>, vector<64x32xf32> -> vector<64x32xf32>
    %51 = arith.addf %44, %50 : vector<64x32xf32>
    %52 = vector.extract_strided_slice %0 {offsets = [2, 1, 1, 0], sizes = [1, 8, 8, 3], strides = [1, 1, 1, 1]} : vector<4x9x9x3xbf16> to vector<1x8x8x3xbf16>
    %53 = vector.shape_cast %52 : vector<1x8x8x3xbf16> to vector<8x8x3xbf16>
    %54 = vector.shape_cast %53 : vector<8x8x3xbf16> to vector<64x3xbf16>
    %55 = vector.extract_strided_slice %1 {offsets = [7, 0, 0], sizes = [1, 3, 32], strides = [1, 1, 1]} : vector<9x3x32xbf16> to vector<1x3x32xbf16>
    %56 = vector.shape_cast %55 : vector<1x3x32xbf16> to vector<3x32xbf16>
    %cst_13 = arith.constant dense<0.000000e+00> : vector<64x32xf32>
    %57 = tpu.matmul %54, %56, %cst_13 {dimension_numbers = #tpu.dot_dimension_numbers<[1], [0], [0], [1], [0, 0, 1, 1], [], []>} : vector<64x3xbf16>, vector<3x32xbf16>, vector<64x32xf32> -> vector<64x32xf32>
    %58 = arith.addf %51, %57 : vector<64x32xf32>
    %59 = vector.extract_strided_slice %0 {offsets = [3, 1, 1, 0], sizes = [1, 8, 8, 3], strides = [1, 1, 1, 1]} : vector<4x9x9x3xbf16> to vector<1x8x8x3xbf16>
    %60 = vector.shape_cast %59 : vector<1x8x8x3xbf16> to vector<8x8x3xbf16>
    %61 = vector.shape_cast %60 : vector<8x8x3xbf16> to vector<64x3xbf16>
    %62 = vector.extract_strided_slice %1 {offsets = [8, 0, 0], sizes = [1, 3, 32], strides = [1, 1, 1]} : vector<9x3x32xbf16> to vector<1x3x32xbf16>
    %63 = vector.shape_cast %62 : vector<1x3x32xbf16> to vector<3x32xbf16>
    %cst_14 = arith.constant dense<0.000000e+00> : vector<64x32xf32>
    %64 = tpu.matmul %61, %63, %cst_14 {dimension_numbers = #tpu.dot_dimension_numbers<[1], [0], [0], [1], [0, 0, 1, 1], [], []>} : vector<64x3xbf16>, vector<3x32xbf16>, vector<64x32xf32> -> vector<64x32xf32>
    %65 = arith.addf %58, %64 : vector<64x32xf32>
    %c0_15 = arith.constant 0 : index
    %c0_16 = arith.constant 0 : index
    %66 = vector.load %arg3[%c0_15, %c0_16] : memref<1x32xf32, #tpu.memory_space<vmem>>, vector<1x32xf32>
    %67 = vector.broadcast %66 : vector<1x32xf32> to vector<64x32xf32>
    %68 = arith.addf %65, %67 : vector<64x32xf32>
    %cst_17 = arith.constant 0.000000e+00 : f32
    %69 = vector.broadcast %cst_17 : f32 to vector<64x32xf32>
    %70 = arith.maximumf %68, %69 : vector<64x32xf32>
    %71 = vector.shape_cast %70 : vector<64x32xf32> to vector<1x8x8x32xf32>
    %72 = arith.truncf %71 : vector<1x8x8x32xf32> to vector<1x8x8x32xbf16>
    %c0_18 = arith.constant 0 : index
    %c0_19 = arith.constant 0 : index
    %c0_20 = arith.constant 0 : index
    %c0_21 = arith.constant 0 : index
    %73 = vector.load %arg4[%c0_18, %c0_19, %c0_20, %c0_21] : memref<1x8x8x32xbf16, #tpu.memory_space<vmem>>, vector<1x8x8x32xbf16>
    tpu.vector_store %arg4[%c0_18, %c0_19, %c0_20, %c0_21], %72 {strides = array<i32>} : memref<1x8x8x32xbf16, #tpu.memory_space<vmem>>, vector<1x8x8x32xbf16>,
    return
  }
  func.func @transform_0(%arg0: i32) -> (i32, i32, i32, i32) {
    %c0_i32 = arith.constant 0 : i32
    %c0_i32_0 = arith.constant 0 : i32
    %c0_i32_1 = arith.constant 0 : i32
    %c0_i32_2 = arith.constant 0 : i32
    return %arg0, %c0_i32, %c0_i32_0, %c0_i32_1 : i32, i32, i32, i32
  }
  func.func @transform_1(%arg0: i32) -> (i32, i32, i32) {
    %c0_i32 = arith.constant 0 : i32
    %c0_i32_0 = arith.constant 0 : i32
    %c0_i32_1 = arith.constant 0 : i32
    %c0_i32_2 = arith.constant 0 : i32
    return %c0_i32, %c0_i32_0, %c0_i32_1 : i32, i32, i32
  }
  func.func @transform_2(%arg0: i32) -> (i32, i32) {
    %c0_i32 = arith.constant 0 : i32
    %c0_i32_0 = arith.constant 0 : i32
    %c0_i32_1 = arith.constant 0 : i32
    return %c0_i32, %c0_i32_0 : i32, i32
  }
  func.func @transform_3(%arg0: i32) -> (i32, i32, i32, i32) {
    %c0_i32 = arith.constant 0 : i32
    %c0_i32_0 = arith.constant 0 : i32
    %c0_i32_1 = arith.constant 0 : i32
    %c0_i32_2 = arith.constant 0 : i32
    return %arg0, %c0_i32, %c0_i32_0, %c0_i32_1 : i32, i32, i32, i32
  }
}

module attributes {stable_mosaic.version = 11 : i64} {
  func.func @_conv3x3_s2_kernel(%arg0: i32, %arg1: memref<4x5x5x32xbf16, #tpu.memory_space<vmem>>, %arg2: memref<9x32x64xbf16, #tpu.memory_space<vmem>>, %arg3: memref<1x64xf32, #tpu.memory_space<vmem>>, %arg4: memref<1x4x4x64xbf16, #tpu.memory_space<vmem>>) attributes {dimension_semantics = [#tpu.dimension_semantics<parallel>], iteration_bounds = array<i64: 2>, scalar_prefetch = 0 : i64, scratch_operands = 0 : i64, tpu.core_type = #tpu.core_type<tc>, window_params = [{transform_indices = @transform_0, window_bounds = array<i64: 4, 5, 5, 32>}, {pipeline_mode = #tpu.pipeline_mode<synchronous>, transform_indices = @transform_1, window_bounds = array<i64: 9, 32, 64>}, {pipeline_mode = #tpu.pipeline_mode<synchronous>, transform_indices = @transform_2, window_bounds = array<i64: 1, 64>}, {transform_indices = @transform_3, window_bounds = array<i64: 1, 4, 4, 64>}]} {
    %c0 = arith.constant 0 : index
    %c0_0 = arith.constant 0 : index
    %c0_1 = arith.constant 0 : index
    %c0_2 = arith.constant 0 : index
    %0 = vector.load %arg1[%c0, %c0_0, %c0_1, %c0_2] : memref<4x5x5x32xbf16, #tpu.memory_space<vmem>>, vector<4x5x5x32xbf16>
    %c0_3 = arith.constant 0 : index
    %c0_4 = arith.constant 0 : index
    %c0_5 = arith.constant 0 : index
    %1 = vector.load %arg2[%c0_3, %c0_4, %c0_5] : memref<9x32x64xbf16, #tpu.memory_space<vmem>>, vector<9x32x64xbf16>
    %cst = arith.constant 0.000000e+00 : f32
    %2 = vector.broadcast %cst : f32 to vector<16x64xf32>
    %3 = vector.extract_strided_slice %0 {offsets = [3, 0, 0, 0], sizes = [1, 4, 4, 32], strides = [1, 1, 1, 1]} : vector<4x5x5x32xbf16> to vector<1x4x4x32xbf16>
    %4 = vector.shape_cast %3 : vector<1x4x4x32xbf16> to vector<4x4x32xbf16>
    %5 = vector.shape_cast %4 : vector<4x4x32xbf16> to vector<16x32xbf16>
    %6 = vector.extract_strided_slice %1 {offsets = [0, 0, 0], sizes = [1, 32, 64], strides = [1, 1, 1]} : vector<9x32x64xbf16> to vector<1x32x64xbf16>
    %7 = vector.shape_cast %6 : vector<1x32x64xbf16> to vector<32x64xbf16>
    %cst_6 = arith.constant dense<0.000000e+00> : vector<16x64xf32>
    %8 = tpu.matmul %5, %7, %cst_6 {dimension_numbers = #tpu.dot_dimension_numbers<[1], [0], [0], [1], [0, 0, 1, 1], [], []>} : vector<16x32xbf16>, vector<32x64xbf16>, vector<16x64xf32> -> vector<16x64xf32>
    %9 = arith.addf %2, %8 : vector<16x64xf32>
    %10 = vector.extract_strided_slice %0 {offsets = [2, 0, 1, 0], sizes = [1, 4, 4, 32], strides = [1, 1, 1, 1]} : vector<4x5x5x32xbf16> to vector<1x4x4x32xbf16>
    %11 = vector.shape_cast %10 : vector<1x4x4x32xbf16> to vector<4x4x32xbf16>
    %12 = vector.shape_cast %11 : vector<4x4x32xbf16> to vector<16x32xbf16>
    %13 = vector.extract_strided_slice %1 {offsets = [1, 0, 0], sizes = [1, 32, 64], strides = [1, 1, 1]} : vector<9x32x64xbf16> to vector<1x32x64xbf16>
    %14 = vector.shape_cast %13 : vector<1x32x64xbf16> to vector<32x64xbf16>
    %cst_7 = arith.constant dense<0.000000e+00> : vector<16x64xf32>
    %15 = tpu.matmul %12, %14, %cst_7 {dimension_numbers = #tpu.dot_dimension_numbers<[1], [0], [0], [1], [0, 0, 1, 1], [], []>} : vector<16x32xbf16>, vector<32x64xbf16>, vector<16x64xf32> -> vector<16x64xf32>
    %16 = arith.addf %9, %15 : vector<16x64xf32>
    %17 = vector.extract_strided_slice %0 {offsets = [3, 0, 1, 0], sizes = [1, 4, 4, 32], strides = [1, 1, 1, 1]} : vector<4x5x5x32xbf16> to vector<1x4x4x32xbf16>
    %18 = vector.shape_cast %17 : vector<1x4x4x32xbf16> to vector<4x4x32xbf16>
    %19 = vector.shape_cast %18 : vector<4x4x32xbf16> to vector<16x32xbf16>
    %20 = vector.extract_strided_slice %1 {offsets = [2, 0, 0], sizes = [1, 32, 64], strides = [1, 1, 1]} : vector<9x32x64xbf16> to vector<1x32x64xbf16>
    %21 = vector.shape_cast %20 : vector<1x32x64xbf16> to vector<32x64xbf16>
    %cst_8 = arith.constant dense<0.000000e+00> : vector<16x64xf32>
    %22 = tpu.matmul %19, %21, %cst_8 {dimension_numbers = #tpu.dot_dimension_numbers<[1], [0], [0], [1], [0, 0, 1, 1], [], []>} : vector<16x32xbf16>, vector<32x64xbf16>, vector<16x64xf32> -> vector<16x64xf32>
    %23 = arith.addf %16, %22 : vector<16x64xf32>
    %24 = vector.extract_strided_slice %0 {offsets = [1, 1, 0, 0], sizes = [1, 4, 4, 32], strides = [1, 1, 1, 1]} : vector<4x5x5x32xbf16> to vector<1x4x4x32xbf16>
    %25 = vector.shape_cast %24 : vector<1x4x4x32xbf16> to vector<4x4x32xbf16>
    %26 = vector.shape_cast %25 : vector<4x4x32xbf16> to vector<16x32xbf16>
    %27 = vector.extract_strided_slice %1 {offsets = [3, 0, 0], sizes = [1, 32, 64], strides = [1, 1, 1]} : vector<9x32x64xbf16> to vector<1x32x64xbf16>
    %28 = vector.shape_cast %27 : vector<1x32x64xbf16> to vector<32x64xbf16>
    %cst_9 = arith.constant dense<0.000000e+00> : vector<16x64xf32>
    %29 = tpu.matmul %26, %28, %cst_9 {dimension_numbers = #tpu.dot_dimension_numbers<[1], [0], [0], [1], [0, 0, 1, 1], [], []>} : vector<16x32xbf16>, vector<32x64xbf16>, vector<16x64xf32> -> vector<16x64xf32>
    %30 = arith.addf %23, %29 : vector<16x64xf32>
    %31 = vector.extract_strided_slice %0 {offsets = [0, 1, 1, 0], sizes = [1, 4, 4, 32], strides = [1, 1, 1, 1]} : vector<4x5x5x32xbf16> to vector<1x4x4x32xbf16>
    %32 = vector.shape_cast %31 : vector<1x4x4x32xbf16> to vector<4x4x32xbf16>
    %33 = vector.shape_cast %32 : vector<4x4x32xbf16> to vector<16x32xbf16>
    %34 = vector.extract_strided_slice %1 {offsets = [4, 0, 0], sizes = [1, 32, 64], strides = [1, 1, 1]} : vector<9x32x64xbf16> to vector<1x32x64xbf16>
    %35 = vector.shape_cast %34 : vector<1x32x64xbf16> to vector<32x64xbf16>
    %cst_10 = arith.constant dense<0.000000e+00> : vector<16x64xf32>
    %36 = tpu.matmul %33, %35, %cst_10 {dimension_numbers = #tpu.dot_dimension_numbers<[1], [0], [0], [1], [0, 0, 1, 1], [], []>} : vector<16x32xbf16>, vector<32x64xbf16>, vector<16x64xf32> -> vector<16x64xf32>
    %37 = arith.addf %30, %36 : vector<16x64xf32>
    %38 = vector.extract_strided_slice %0 {offsets = [1, 1, 1, 0], sizes = [1, 4, 4, 32], strides = [1, 1, 1, 1]} : vector<4x5x5x32xbf16> to vector<1x4x4x32xbf16>
    %39 = vector.shape_cast %38 : vector<1x4x4x32xbf16> to vector<4x4x32xbf16>
    %40 = vector.shape_cast %39 : vector<4x4x32xbf16> to vector<16x32xbf16>
    %41 = vector.extract_strided_slice %1 {offsets = [5, 0, 0], sizes = [1, 32, 64], strides = [1, 1, 1]} : vector<9x32x64xbf16> to vector<1x32x64xbf16>
    %42 = vector.shape_cast %41 : vector<1x32x64xbf16> to vector<32x64xbf16>
    %cst_11 = arith.constant dense<0.000000e+00> : vector<16x64xf32>
    %43 = tpu.matmul %40, %42, %cst_11 {dimension_numbers = #tpu.dot_dimension_numbers<[1], [0], [0], [1], [0, 0, 1, 1], [], []>} : vector<16x32xbf16>, vector<32x64xbf16>, vector<16x64xf32> -> vector<16x64xf32>
    %44 = arith.addf %37, %43 : vector<16x64xf32>
    %45 = vector.extract_strided_slice %0 {offsets = [3, 1, 0, 0], sizes = [1, 4, 4, 32], strides = [1, 1, 1, 1]} : vector<4x5x5x32xbf16> to vector<1x4x4x32xbf16>
    %46 = vector.shape_cast %45 : vector<1x4x4x32xbf16> to vector<4x4x32xbf16>
    %47 = vector.shape_cast %46 : vector<4x4x32xbf16> to vector<16x32xbf16>
    %48 = vector.extract_strided_slice %1 {offsets = [6, 0, 0], sizes = [1, 32, 64], strides = [1, 1, 1]} : vector<9x32x64xbf16> to vector<1x32x64xbf16>
    %49 = vector.shape_cast %48 : vector<1x32x64xbf16> to vector<32x64xbf16>
    %cst_12 = arith.constant dense<0.000000e+00> : vector<16x64xf32>
    %50 = tpu.matmul %47, %49, %cst_12 {dimension_numbers = #tpu.dot_dimension_numbers<[1], [0], [0], [1], [0, 0, 1, 1], [], []>} : vector<16x32xbf16>, vector<32x64xbf16>, vector<16x64xf32> -> vector<16x64xf32>
    %51 = arith.addf %44, %50 : vector<16x64xf32>
    %52 = vector.extract_strided_slice %0 {offsets = [2, 1, 1, 0], sizes = [1, 4, 4, 32], strides = [1, 1, 1, 1]} : vector<4x5x5x32xbf16> to vector<1x4x4x32xbf16>
    %53 = vector.shape_cast %52 : vector<1x4x4x32xbf16> to vector<4x4x32xbf16>
    %54 = vector.shape_cast %53 : vector<4x4x32xbf16> to vector<16x32xbf16>
    %55 = vector.extract_strided_slice %1 {offsets = [7, 0, 0], sizes = [1, 32, 64], strides = [1, 1, 1]} : vector<9x32x64xbf16> to vector<1x32x64xbf16>
    %56 = vector.shape_cast %55 : vector<1x32x64xbf16> to vector<32x64xbf16>
    %cst_13 = arith.constant dense<0.000000e+00> : vector<16x64xf32>
    %57 = tpu.matmul %54, %56, %cst_13 {dimension_numbers = #tpu.dot_dimension_numbers<[1], [0], [0], [1], [0, 0, 1, 1], [], []>} : vector<16x32xbf16>, vector<32x64xbf16>, vector<16x64xf32> -> vector<16x64xf32>
    %58 = arith.addf %51, %57 : vector<16x64xf32>
    %59 = vector.extract_strided_slice %0 {offsets = [3, 1, 1, 0], sizes = [1, 4, 4, 32], strides = [1, 1, 1, 1]} : vector<4x5x5x32xbf16> to vector<1x4x4x32xbf16>
    %60 = vector.shape_cast %59 : vector<1x4x4x32xbf16> to vector<4x4x32xbf16>
    %61 = vector.shape_cast %60 : vector<4x4x32xbf16> to vector<16x32xbf16>
    %62 = vector.extract_strided_slice %1 {offsets = [8, 0, 0], sizes = [1, 32, 64], strides = [1, 1, 1]} : vector<9x32x64xbf16> to vector<1x32x64xbf16>
    %63 = vector.shape_cast %62 : vector<1x32x64xbf16> to vector<32x64xbf16>
    %cst_14 = arith.constant dense<0.000000e+00> : vector<16x64xf32>
    %64 = tpu.matmul %61, %63, %cst_14 {dimension_numbers = #tpu.dot_dimension_numbers<[1], [0], [0], [1], [0, 0, 1, 1], [], []>} : vector<16x32xbf16>, vector<32x64xbf16>, vector<16x64xf32> -> vector<16x64xf32>
    %65 = arith.addf %58, %64 : vector<16x64xf32>
    %c0_15 = arith.constant 0 : index
    %c0_16 = arith.constant 0 : index
    %66 = vector.load %arg3[%c0_15, %c0_16] : memref<1x64xf32, #tpu.memory_space<vmem>>, vector<1x64xf32>
    %67 = vector.broadcast %66 : vector<1x64xf32> to vector<16x64xf32>
    %68 = arith.addf %65, %67 : vector<16x64xf32>
    %cst_17 = arith.constant 0.000000e+00 : f32
    %69 = vector.broadcast %cst_17 : f32 to vector<16x64xf32>
    %70 = arith.maximumf %68, %69 : vector<16x64xf32>
    %71 = vector.shape_cast %70 : vector<16x64xf32> to vector<1x4x4x64xf32>
    %72 = arith.truncf %71 : vector<1x4x4x64xf32> to vector<1x4x4x64xbf16>
    %c0_18 = arith.constant 0 : index
    %c0_19 = arith.constant 0 : index
    %c0_20 = arith.constant 0 : index
    %c0_21 = arith.constant 0 : index
    %73 = vector.load %arg4[%c0_18, %c0_19, %c0_20, %c0_21] : memref<1x4x4x64xbf16, #tpu.memory_space<vmem>>, vector<1x4x4x64xbf16>
    tpu.vector_store %arg4[%c0_18, %c0_19, %c0_20, %c0_21], %72 {strides = array<i32>} : memref<1x4x4x64xbf16, #tpu.memory_space<vmem>>, vector<1x4x4x64xbf16>,
    return
  }
  func.func @transform_0(%arg0: i32) -> (i32, i32, i32, i32) {
    %c0_i32 = arith.constant 0 : i32
    %c0_i32_0 = arith.constant 0 : i32
    %c0_i32_1 = arith.constant 0 : i32
    %c0_i32_2 = arith.constant 0 : i32
    return %arg0, %c0_i32, %c0_i32_0, %c0_i32_1 : i32, i32, i32, i32
  }
  func.func @transform_1(%arg0: i32) -> (i32, i32, i32) {
    %c0_i32 = arith.constant 0 : i32
    %c0_i32_0 = arith.constant 0 : i32
    %c0_i32_1 = arith.constant 0 : i32
    %c0_i32_2 = arith.constant 0 : i32
    return %c0_i32, %c0_i32_0, %c0_i32_1 : i32, i32, i32
  }
  func.func @transform_2(%arg0: i32) -> (i32, i32) {
    %c0_i32 = arith.constant 0 : i32
    %c0_i32_0 = arith.constant 0 : i32
    %c0_i32_1 = arith.constant 0 : i32
    return %c0_i32, %c0_i32_0 : i32, i32
  }
  func.func @transform_3(%arg0: i32) -> (i32, i32, i32, i32) {
    %c0_i32 = arith.constant 0 : i32
    %c0_i32_0 = arith.constant 0 : i32
    %c0_i32_1 = arith.constant 0 : i32
    %c0_i32_2 = arith.constant 0 : i32
    return %arg0, %c0_i32, %c0_i32_0, %c0_i32_1 : i32, i32, i32, i32
  }
}

module attributes {stable_mosaic.version = 11 : i64} {
  func.func @_conv3x3_s2_kernel(%arg0: i32, %arg1: memref<4x3x3x64xbf16, #tpu.memory_space<vmem>>, %arg2: memref<9x64x128xbf16, #tpu.memory_space<vmem>>, %arg3: memref<1x128xf32, #tpu.memory_space<vmem>>, %arg4: memref<1x2x2x128xbf16, #tpu.memory_space<vmem>>) attributes {dimension_semantics = [#tpu.dimension_semantics<parallel>], iteration_bounds = array<i64: 2>, scalar_prefetch = 0 : i64, scratch_operands = 0 : i64, tpu.core_type = #tpu.core_type<tc>, window_params = [{transform_indices = @transform_0, window_bounds = array<i64: 4, 3, 3, 64>}, {pipeline_mode = #tpu.pipeline_mode<synchronous>, transform_indices = @transform_1, window_bounds = array<i64: 9, 64, 128>}, {pipeline_mode = #tpu.pipeline_mode<synchronous>, transform_indices = @transform_2, window_bounds = array<i64: 1, 128>}, {transform_indices = @transform_3, window_bounds = array<i64: 1, 2, 2, 128>}]} {
    %c0 = arith.constant 0 : index
    %c0_0 = arith.constant 0 : index
    %c0_1 = arith.constant 0 : index
    %c0_2 = arith.constant 0 : index
    %0 = vector.load %arg1[%c0, %c0_0, %c0_1, %c0_2] : memref<4x3x3x64xbf16, #tpu.memory_space<vmem>>, vector<4x3x3x64xbf16>
    %c0_3 = arith.constant 0 : index
    %c0_4 = arith.constant 0 : index
    %c0_5 = arith.constant 0 : index
    %1 = vector.load %arg2[%c0_3, %c0_4, %c0_5] : memref<9x64x128xbf16, #tpu.memory_space<vmem>>, vector<9x64x128xbf16>
    %cst = arith.constant 0.000000e+00 : f32
    %2 = vector.broadcast %cst : f32 to vector<4x128xf32>
    %3 = vector.extract_strided_slice %0 {offsets = [3, 0, 0, 0], sizes = [1, 2, 2, 64], strides = [1, 1, 1, 1]} : vector<4x3x3x64xbf16> to vector<1x2x2x64xbf16>
    %4 = vector.shape_cast %3 : vector<1x2x2x64xbf16> to vector<2x2x64xbf16>
    %5 = vector.shape_cast %4 : vector<2x2x64xbf16> to vector<4x64xbf16>
    %6 = vector.extract_strided_slice %1 {offsets = [0, 0, 0], sizes = [1, 64, 128], strides = [1, 1, 1]} : vector<9x64x128xbf16> to vector<1x64x128xbf16>
    %7 = vector.shape_cast %6 : vector<1x64x128xbf16> to vector<64x128xbf16>
    %cst_6 = arith.constant dense<0.000000e+00> : vector<4x128xf32>
    %8 = tpu.matmul %5, %7, %cst_6 {dimension_numbers = #tpu.dot_dimension_numbers<[1], [0], [0], [1], [0, 0, 1, 1], [], []>} : vector<4x64xbf16>, vector<64x128xbf16>, vector<4x128xf32> -> vector<4x128xf32>
    %9 = arith.addf %2, %8 : vector<4x128xf32>
    %10 = vector.extract_strided_slice %0 {offsets = [2, 0, 1, 0], sizes = [1, 2, 2, 64], strides = [1, 1, 1, 1]} : vector<4x3x3x64xbf16> to vector<1x2x2x64xbf16>
    %11 = vector.shape_cast %10 : vector<1x2x2x64xbf16> to vector<2x2x64xbf16>
    %12 = vector.shape_cast %11 : vector<2x2x64xbf16> to vector<4x64xbf16>
    %13 = vector.extract_strided_slice %1 {offsets = [1, 0, 0], sizes = [1, 64, 128], strides = [1, 1, 1]} : vector<9x64x128xbf16> to vector<1x64x128xbf16>
    %14 = vector.shape_cast %13 : vector<1x64x128xbf16> to vector<64x128xbf16>
    %cst_7 = arith.constant dense<0.000000e+00> : vector<4x128xf32>
    %15 = tpu.matmul %12, %14, %cst_7 {dimension_numbers = #tpu.dot_dimension_numbers<[1], [0], [0], [1], [0, 0, 1, 1], [], []>} : vector<4x64xbf16>, vector<64x128xbf16>, vector<4x128xf32> -> vector<4x128xf32>
    %16 = arith.addf %9, %15 : vector<4x128xf32>
    %17 = vector.extract_strided_slice %0 {offsets = [3, 0, 1, 0], sizes = [1, 2, 2, 64], strides = [1, 1, 1, 1]} : vector<4x3x3x64xbf16> to vector<1x2x2x64xbf16>
    %18 = vector.shape_cast %17 : vector<1x2x2x64xbf16> to vector<2x2x64xbf16>
    %19 = vector.shape_cast %18 : vector<2x2x64xbf16> to vector<4x64xbf16>
    %20 = vector.extract_strided_slice %1 {offsets = [2, 0, 0], sizes = [1, 64, 128], strides = [1, 1, 1]} : vector<9x64x128xbf16> to vector<1x64x128xbf16>
    %21 = vector.shape_cast %20 : vector<1x64x128xbf16> to vector<64x128xbf16>
    %cst_8 = arith.constant dense<0.000000e+00> : vector<4x128xf32>
    %22 = tpu.matmul %19, %21, %cst_8 {dimension_numbers = #tpu.dot_dimension_numbers<[1], [0], [0], [1], [0, 0, 1, 1], [], []>} : vector<4x64xbf16>, vector<64x128xbf16>, vector<4x128xf32> -> vector<4x128xf32>
    %23 = arith.addf %16, %22 : vector<4x128xf32>
    %24 = vector.extract_strided_slice %0 {offsets = [1, 1, 0, 0], sizes = [1, 2, 2, 64], strides = [1, 1, 1, 1]} : vector<4x3x3x64xbf16> to vector<1x2x2x64xbf16>
    %25 = vector.shape_cast %24 : vector<1x2x2x64xbf16> to vector<2x2x64xbf16>
    %26 = vector.shape_cast %25 : vector<2x2x64xbf16> to vector<4x64xbf16>
    %27 = vector.extract_strided_slice %1 {offsets = [3, 0, 0], sizes = [1, 64, 128], strides = [1, 1, 1]} : vector<9x64x128xbf16> to vector<1x64x128xbf16>
    %28 = vector.shape_cast %27 : vector<1x64x128xbf16> to vector<64x128xbf16>
    %cst_9 = arith.constant dense<0.000000e+00> : vector<4x128xf32>
    %29 = tpu.matmul %26, %28, %cst_9 {dimension_numbers = #tpu.dot_dimension_numbers<[1], [0], [0], [1], [0, 0, 1, 1], [], []>} : vector<4x64xbf16>, vector<64x128xbf16>, vector<4x128xf32> -> vector<4x128xf32>
    %30 = arith.addf %23, %29 : vector<4x128xf32>
    %31 = vector.extract_strided_slice %0 {offsets = [0, 1, 1, 0], sizes = [1, 2, 2, 64], strides = [1, 1, 1, 1]} : vector<4x3x3x64xbf16> to vector<1x2x2x64xbf16>
    %32 = vector.shape_cast %31 : vector<1x2x2x64xbf16> to vector<2x2x64xbf16>
    %33 = vector.shape_cast %32 : vector<2x2x64xbf16> to vector<4x64xbf16>
    %34 = vector.extract_strided_slice %1 {offsets = [4, 0, 0], sizes = [1, 64, 128], strides = [1, 1, 1]} : vector<9x64x128xbf16> to vector<1x64x128xbf16>
    %35 = vector.shape_cast %34 : vector<1x64x128xbf16> to vector<64x128xbf16>
    %cst_10 = arith.constant dense<0.000000e+00> : vector<4x128xf32>
    %36 = tpu.matmul %33, %35, %cst_10 {dimension_numbers = #tpu.dot_dimension_numbers<[1], [0], [0], [1], [0, 0, 1, 1], [], []>} : vector<4x64xbf16>, vector<64x128xbf16>, vector<4x128xf32> -> vector<4x128xf32>
    %37 = arith.addf %30, %36 : vector<4x128xf32>
    %38 = vector.extract_strided_slice %0 {offsets = [1, 1, 1, 0], sizes = [1, 2, 2, 64], strides = [1, 1, 1, 1]} : vector<4x3x3x64xbf16> to vector<1x2x2x64xbf16>
    %39 = vector.shape_cast %38 : vector<1x2x2x64xbf16> to vector<2x2x64xbf16>
    %40 = vector.shape_cast %39 : vector<2x2x64xbf16> to vector<4x64xbf16>
    %41 = vector.extract_strided_slice %1 {offsets = [5, 0, 0], sizes = [1, 64, 128], strides = [1, 1, 1]} : vector<9x64x128xbf16> to vector<1x64x128xbf16>
    %42 = vector.shape_cast %41 : vector<1x64x128xbf16> to vector<64x128xbf16>
    %cst_11 = arith.constant dense<0.000000e+00> : vector<4x128xf32>
    %43 = tpu.matmul %40, %42, %cst_11 {dimension_numbers = #tpu.dot_dimension_numbers<[1], [0], [0], [1], [0, 0, 1, 1], [], []>} : vector<4x64xbf16>, vector<64x128xbf16>, vector<4x128xf32> -> vector<4x128xf32>
    %44 = arith.addf %37, %43 : vector<4x128xf32>
    %45 = vector.extract_strided_slice %0 {offsets = [3, 1, 0, 0], sizes = [1, 2, 2, 64], strides = [1, 1, 1, 1]} : vector<4x3x3x64xbf16> to vector<1x2x2x64xbf16>
    %46 = vector.shape_cast %45 : vector<1x2x2x64xbf16> to vector<2x2x64xbf16>
    %47 = vector.shape_cast %46 : vector<2x2x64xbf16> to vector<4x64xbf16>
    %48 = vector.extract_strided_slice %1 {offsets = [6, 0, 0], sizes = [1, 64, 128], strides = [1, 1, 1]} : vector<9x64x128xbf16> to vector<1x64x128xbf16>
    %49 = vector.shape_cast %48 : vector<1x64x128xbf16> to vector<64x128xbf16>
    %cst_12 = arith.constant dense<0.000000e+00> : vector<4x128xf32>
    %50 = tpu.matmul %47, %49, %cst_12 {dimension_numbers = #tpu.dot_dimension_numbers<[1], [0], [0], [1], [0, 0, 1, 1], [], []>} : vector<4x64xbf16>, vector<64x128xbf16>, vector<4x128xf32> -> vector<4x128xf32>
    %51 = arith.addf %44, %50 : vector<4x128xf32>
    %52 = vector.extract_strided_slice %0 {offsets = [2, 1, 1, 0], sizes = [1, 2, 2, 64], strides = [1, 1, 1, 1]} : vector<4x3x3x64xbf16> to vector<1x2x2x64xbf16>
    %53 = vector.shape_cast %52 : vector<1x2x2x64xbf16> to vector<2x2x64xbf16>
    %54 = vector.shape_cast %53 : vector<2x2x64xbf16> to vector<4x64xbf16>
    %55 = vector.extract_strided_slice %1 {offsets = [7, 0, 0], sizes = [1, 64, 128], strides = [1, 1, 1]} : vector<9x64x128xbf16> to vector<1x64x128xbf16>
    %56 = vector.shape_cast %55 : vector<1x64x128xbf16> to vector<64x128xbf16>
    %cst_13 = arith.constant dense<0.000000e+00> : vector<4x128xf32>
    %57 = tpu.matmul %54, %56, %cst_13 {dimension_numbers = #tpu.dot_dimension_numbers<[1], [0], [0], [1], [0, 0, 1, 1], [], []>} : vector<4x64xbf16>, vector<64x128xbf16>, vector<4x128xf32> -> vector<4x128xf32>
    %58 = arith.addf %51, %57 : vector<4x128xf32>
    %59 = vector.extract_strided_slice %0 {offsets = [3, 1, 1, 0], sizes = [1, 2, 2, 64], strides = [1, 1, 1, 1]} : vector<4x3x3x64xbf16> to vector<1x2x2x64xbf16>
    %60 = vector.shape_cast %59 : vector<1x2x2x64xbf16> to vector<2x2x64xbf16>
    %61 = vector.shape_cast %60 : vector<2x2x64xbf16> to vector<4x64xbf16>
    %62 = vector.extract_strided_slice %1 {offsets = [8, 0, 0], sizes = [1, 64, 128], strides = [1, 1, 1]} : vector<9x64x128xbf16> to vector<1x64x128xbf16>
    %63 = vector.shape_cast %62 : vector<1x64x128xbf16> to vector<64x128xbf16>
    %cst_14 = arith.constant dense<0.000000e+00> : vector<4x128xf32>
    %64 = tpu.matmul %61, %63, %cst_14 {dimension_numbers = #tpu.dot_dimension_numbers<[1], [0], [0], [1], [0, 0, 1, 1], [], []>} : vector<4x64xbf16>, vector<64x128xbf16>, vector<4x128xf32> -> vector<4x128xf32>
    %65 = arith.addf %58, %64 : vector<4x128xf32>
    %c0_15 = arith.constant 0 : index
    %c0_16 = arith.constant 0 : index
    %66 = vector.load %arg3[%c0_15, %c0_16] : memref<1x128xf32, #tpu.memory_space<vmem>>, vector<1x128xf32>
    %67 = vector.broadcast %66 : vector<1x128xf32> to vector<4x128xf32>
    %68 = arith.addf %65, %67 : vector<4x128xf32>
    %cst_17 = arith.constant 0.000000e+00 : f32
    %69 = vector.broadcast %cst_17 : f32 to vector<4x128xf32>
    %70 = arith.maximumf %68, %69 : vector<4x128xf32>
    %71 = vector.shape_cast %70 : vector<4x128xf32> to vector<1x2x2x128xf32>
    %72 = arith.truncf %71 : vector<1x2x2x128xf32> to vector<1x2x2x128xbf16>
    %c0_18 = arith.constant 0 : index
    %c0_19 = arith.constant 0 : index
    %c0_20 = arith.constant 0 : index
    %c0_21 = arith.constant 0 : index
    %73 = vector.load %arg4[%c0_18, %c0_19, %c0_20, %c0_21] : memref<1x2x2x128xbf16, #tpu.memory_space<vmem>>, vector<1x2x2x128xbf16>
    tpu.vector_store %arg4[%c0_18, %c0_19, %c0_20, %c0_21], %72 {strides = array<i32>} : memref<1x2x2x128xbf16, #tpu.memory_space<vmem>>, vector<1x2x2x128xbf16>,
    return
  }
  func.func @transform_0(%arg0: i32) -> (i32, i32, i32, i32) {
    %c0_i32 = arith.constant 0 : i32
    %c0_i32_0 = arith.constant 0 : i32
    %c0_i32_1 = arith.constant 0 : i32
    %c0_i32_2 = arith.constant 0 : i32
    return %arg0, %c0_i32, %c0_i32_0, %c0_i32_1 : i32, i32, i32, i32
  }
  func.func @transform_1(%arg0: i32) -> (i32, i32, i32) {
    %c0_i32 = arith.constant 0 : i32
    %c0_i32_0 = arith.constant 0 : i32
    %c0_i32_1 = arith.constant 0 : i32
    %c0_i32_2 = arith.constant 0 : i32
    return %c0_i32, %c0_i32_0, %c0_i32_1 : i32, i32, i32
  }
  func.func @transform_2(%arg0: i32) -> (i32, i32) {
    %c0_i32 = arith.constant 0 : i32
    %c0_i32_0 = arith.constant 0 : i32
    %c0_i32_1 = arith.constant 0 : i32
    return %c0_i32, %c0_i32_0 : i32, i32
  }
  func.func @transform_3(%arg0: i32) -> (i32, i32, i32, i32) {
    %c0_i32 = arith.constant 0 : i32
    %c0_i32_0 = arith.constant 0 : i32
    %c0_i32_1 = arith.constant 0 : i32
    %c0_i32_2 = arith.constant 0 : i32
    return %arg0, %c0_i32, %c0_i32_0, %c0_i32_1 : i32, i32, i32, i32
  }
}

module attributes {stable_mosaic.version = 11 : i64} {
  func.func @_tconv3x3_s2_kernel(%arg0: i32, %arg1: memref<1x5x5x64xbf16, #tpu.memory_space<vmem>>, %arg2: memref<4x64x128xbf16, #tpu.memory_space<vmem>>, %arg3: memref<1x128xf32, #tpu.memory_space<vmem>>, %arg4: memref<1x4x4x128xbf16, #tpu.memory_space<vmem>>) attributes {dimension_semantics = [#tpu.dimension_semantics<parallel>], iteration_bounds = array<i64: 2>, scalar_prefetch = 0 : i64, scratch_operands = 0 : i64, tpu.core_type = #tpu.core_type<tc>, window_params = [{transform_indices = @transform_0, window_bounds = array<i64: 1, 5, 5, 64>}, {pipeline_mode = #tpu.pipeline_mode<synchronous>, transform_indices = @transform_1, window_bounds = array<i64: 4, 64, 128>}, {pipeline_mode = #tpu.pipeline_mode<synchronous>, transform_indices = @transform_2, window_bounds = array<i64: 1, 128>}, {transform_indices = @transform_3, window_bounds = array<i64: 1, 4, 4, 128>}]} {
    %c0 = arith.constant 0 : index
    %c0_0 = arith.constant 0 : index
    %c0_1 = arith.constant 0 : index
    %c0_2 = arith.constant 0 : index
    %0 = vector.load %arg1[%c0, %c0_0, %c0_1, %c0_2] : memref<1x5x5x64xbf16, #tpu.memory_space<vmem>>, vector<1x5x5x64xbf16>
    %c0_3 = arith.constant 0 : index
    %c0_4 = arith.constant 0 : index
    %c0_5 = arith.constant 0 : index
    %1 = vector.load %arg2[%c0_3, %c0_4, %c0_5] : memref<4x64x128xbf16, #tpu.memory_space<vmem>>, vector<4x64x128xbf16>
    %cst = arith.constant 0.000000e+00 : f32
    %2 = vector.broadcast %cst : f32 to vector<16x128xf32>
    %3 = vector.extract_strided_slice %0 {offsets = [0, 0, 0, 0], sizes = [1, 4, 4, 64], strides = [1, 1, 1, 1]} : vector<1x5x5x64xbf16> to vector<1x4x4x64xbf16>
    %4 = vector.shape_cast %3 : vector<1x4x4x64xbf16> to vector<4x4x64xbf16>
    %5 = vector.shape_cast %4 : vector<4x4x64xbf16> to vector<16x64xbf16>
    %6 = vector.extract_strided_slice %1 {offsets = [0, 0, 0], sizes = [1, 64, 128], strides = [1, 1, 1]} : vector<4x64x128xbf16> to vector<1x64x128xbf16>
    %7 = vector.shape_cast %6 : vector<1x64x128xbf16> to vector<64x128xbf16>
    %cst_6 = arith.constant dense<0.000000e+00> : vector<16x128xf32>
    %8 = tpu.matmul %5, %7, %cst_6 {dimension_numbers = #tpu.dot_dimension_numbers<[1], [0], [0], [1], [0, 0, 1, 1], [], []>} : vector<16x64xbf16>, vector<64x128xbf16>, vector<16x128xf32> -> vector<16x128xf32>
    %9 = arith.addf %2, %8 : vector<16x128xf32>
    %10 = vector.extract_strided_slice %0 {offsets = [0, 0, 1, 0], sizes = [1, 4, 4, 64], strides = [1, 1, 1, 1]} : vector<1x5x5x64xbf16> to vector<1x4x4x64xbf16>
    %11 = vector.shape_cast %10 : vector<1x4x4x64xbf16> to vector<4x4x64xbf16>
    %12 = vector.shape_cast %11 : vector<4x4x64xbf16> to vector<16x64xbf16>
    %13 = vector.extract_strided_slice %1 {offsets = [1, 0, 0], sizes = [1, 64, 128], strides = [1, 1, 1]} : vector<4x64x128xbf16> to vector<1x64x128xbf16>
    %14 = vector.shape_cast %13 : vector<1x64x128xbf16> to vector<64x128xbf16>
    %cst_7 = arith.constant dense<0.000000e+00> : vector<16x128xf32>
    %15 = tpu.matmul %12, %14, %cst_7 {dimension_numbers = #tpu.dot_dimension_numbers<[1], [0], [0], [1], [0, 0, 1, 1], [], []>} : vector<16x64xbf16>, vector<64x128xbf16>, vector<16x128xf32> -> vector<16x128xf32>
    %16 = arith.addf %9, %15 : vector<16x128xf32>
    %17 = vector.extract_strided_slice %0 {offsets = [0, 1, 0, 0], sizes = [1, 4, 4, 64], strides = [1, 1, 1, 1]} : vector<1x5x5x64xbf16> to vector<1x4x4x64xbf16>
    %18 = vector.shape_cast %17 : vector<1x4x4x64xbf16> to vector<4x4x64xbf16>
    %19 = vector.shape_cast %18 : vector<4x4x64xbf16> to vector<16x64xbf16>
    %20 = vector.extract_strided_slice %1 {offsets = [2, 0, 0], sizes = [1, 64, 128], strides = [1, 1, 1]} : vector<4x64x128xbf16> to vector<1x64x128xbf16>
    %21 = vector.shape_cast %20 : vector<1x64x128xbf16> to vector<64x128xbf16>
    %cst_8 = arith.constant dense<0.000000e+00> : vector<16x128xf32>
    %22 = tpu.matmul %19, %21, %cst_8 {dimension_numbers = #tpu.dot_dimension_numbers<[1], [0], [0], [1], [0, 0, 1, 1], [], []>} : vector<16x64xbf16>, vector<64x128xbf16>, vector<16x128xf32> -> vector<16x128xf32>
    %23 = arith.addf %16, %22 : vector<16x128xf32>
    %24 = vector.extract_strided_slice %0 {offsets = [0, 1, 1, 0], sizes = [1, 4, 4, 64], strides = [1, 1, 1, 1]} : vector<1x5x5x64xbf16> to vector<1x4x4x64xbf16>
    %25 = vector.shape_cast %24 : vector<1x4x4x64xbf16> to vector<4x4x64xbf16>
    %26 = vector.shape_cast %25 : vector<4x4x64xbf16> to vector<16x64xbf16>
    %27 = vector.extract_strided_slice %1 {offsets = [3, 0, 0], sizes = [1, 64, 128], strides = [1, 1, 1]} : vector<4x64x128xbf16> to vector<1x64x128xbf16>
    %28 = vector.shape_cast %27 : vector<1x64x128xbf16> to vector<64x128xbf16>
    %cst_9 = arith.constant dense<0.000000e+00> : vector<16x128xf32>
    %29 = tpu.matmul %26, %28, %cst_9 {dimension_numbers = #tpu.dot_dimension_numbers<[1], [0], [0], [1], [0, 0, 1, 1], [], []>} : vector<16x64xbf16>, vector<64x128xbf16>, vector<16x128xf32> -> vector<16x128xf32>
    %30 = arith.addf %23, %29 : vector<16x128xf32>
    %c0_10 = arith.constant 0 : index
    %c0_11 = arith.constant 0 : index
    %31 = vector.load %arg3[%c0_10, %c0_11] : memref<1x128xf32, #tpu.memory_space<vmem>>, vector<1x128xf32>
    %32 = vector.broadcast %31 : vector<1x128xf32> to vector<16x128xf32>
    %33 = arith.addf %30, %32 : vector<16x128xf32>
    %cst_12 = arith.constant 0.000000e+00 : f32
    %34 = vector.broadcast %cst_12 : f32 to vector<16x128xf32>
    %35 = arith.maximumf %33, %34 : vector<16x128xf32>
    %36 = vector.shape_cast %35 : vector<16x128xf32> to vector<1x4x4x128xf32>
    %37 = arith.truncf %36 : vector<1x4x4x128xf32> to vector<1x4x4x128xbf16>
    %c0_13 = arith.constant 0 : index
    %c0_14 = arith.constant 0 : index
    %c0_15 = arith.constant 0 : index
    %c0_16 = arith.constant 0 : index
    %38 = vector.load %arg4[%c0_13, %c0_14, %c0_15, %c0_16] : memref<1x4x4x128xbf16, #tpu.memory_space<vmem>>, vector<1x4x4x128xbf16>
    tpu.vector_store %arg4[%c0_13, %c0_14, %c0_15, %c0_16], %37 {strides = array<i32>} : memref<1x4x4x128xbf16, #tpu.memory_space<vmem>>, vector<1x4x4x128xbf16>,
    return
  }
  func.func @transform_0(%arg0: i32) -> (i32, i32, i32, i32) {
    %c0_i32 = arith.constant 0 : i32
    %c0_i32_0 = arith.constant 0 : i32
    %c0_i32_1 = arith.constant 0 : i32
    %c0_i32_2 = arith.constant 0 : i32
    return %arg0, %c0_i32, %c0_i32_0, %c0_i32_1 : i32, i32, i32, i32
  }
  func.func @transform_1(%arg0: i32) -> (i32, i32, i32) {
    %c0_i32 = arith.constant 0 : i32
    %c0_i32_0 = arith.constant 0 : i32
    %c0_i32_1 = arith.constant 0 : i32
    %c0_i32_2 = arith.constant 0 : i32
    return %c0_i32, %c0_i32_0, %c0_i32_1 : i32, i32, i32
  }
  func.func @transform_2(%arg0: i32) -> (i32, i32) {
    %c0_i32 = arith.constant 0 : i32
    %c0_i32_0 = arith.constant 0 : i32
    %c0_i32_1 = arith.constant 0 : i32
    return %c0_i32, %c0_i32_0 : i32, i32
  }
  func.func @transform_3(%arg0: i32) -> (i32, i32, i32, i32) {
    %c0_i32 = arith.constant 0 : i32
    %c0_i32_0 = arith.constant 0 : i32
    %c0_i32_1 = arith.constant 0 : i32
    %c0_i32_2 = arith.constant 0 : i32
    return %arg0, %c0_i32, %c0_i32_0, %c0_i32_1 : i32, i32, i32, i32
  }
}

module attributes {stable_mosaic.version = 11 : i64} {
  func.func @_tconv3x3_s2_kernel(%arg0: i32, %arg1: memref<1x3x3x128xbf16, #tpu.memory_space<vmem>>, %arg2: memref<4x128x256xbf16, #tpu.memory_space<vmem>>, %arg3: memref<1x256xf32, #tpu.memory_space<vmem>>, %arg4: memref<1x2x2x256xbf16, #tpu.memory_space<vmem>>) attributes {dimension_semantics = [#tpu.dimension_semantics<parallel>], iteration_bounds = array<i64: 2>, scalar_prefetch = 0 : i64, scratch_operands = 0 : i64, tpu.core_type = #tpu.core_type<tc>, window_params = [{transform_indices = @transform_0, window_bounds = array<i64: 1, 3, 3, 128>}, {pipeline_mode = #tpu.pipeline_mode<synchronous>, transform_indices = @transform_1, window_bounds = array<i64: 4, 128, 256>}, {pipeline_mode = #tpu.pipeline_mode<synchronous>, transform_indices = @transform_2, window_bounds = array<i64: 1, 256>}, {transform_indices = @transform_3, window_bounds = array<i64: 1, 2, 2, 256>}]} {
    %c0 = arith.constant 0 : index
    %c0_0 = arith.constant 0 : index
    %c0_1 = arith.constant 0 : index
    %c0_2 = arith.constant 0 : index
    %0 = vector.load %arg1[%c0, %c0_0, %c0_1, %c0_2] : memref<1x3x3x128xbf16, #tpu.memory_space<vmem>>, vector<1x3x3x128xbf16>
    %c0_3 = arith.constant 0 : index
    %c0_4 = arith.constant 0 : index
    %c0_5 = arith.constant 0 : index
    %1 = vector.load %arg2[%c0_3, %c0_4, %c0_5] : memref<4x128x256xbf16, #tpu.memory_space<vmem>>, vector<4x128x256xbf16>
    %cst = arith.constant 0.000000e+00 : f32
    %2 = vector.broadcast %cst : f32 to vector<4x256xf32>
    %3 = vector.extract_strided_slice %0 {offsets = [0, 0, 0, 0], sizes = [1, 2, 2, 128], strides = [1, 1, 1, 1]} : vector<1x3x3x128xbf16> to vector<1x2x2x128xbf16>
    %4 = vector.shape_cast %3 : vector<1x2x2x128xbf16> to vector<2x2x128xbf16>
    %5 = vector.shape_cast %4 : vector<2x2x128xbf16> to vector<4x128xbf16>
    %6 = vector.extract_strided_slice %1 {offsets = [0, 0, 0], sizes = [1, 128, 256], strides = [1, 1, 1]} : vector<4x128x256xbf16> to vector<1x128x256xbf16>
    %7 = vector.shape_cast %6 : vector<1x128x256xbf16> to vector<128x256xbf16>
    %cst_6 = arith.constant dense<0.000000e+00> : vector<4x256xf32>
    %8 = tpu.matmul %5, %7, %cst_6 {dimension_numbers = #tpu.dot_dimension_numbers<[1], [0], [0], [1], [0, 0, 1, 1], [], []>} : vector<4x128xbf16>, vector<128x256xbf16>, vector<4x256xf32> -> vector<4x256xf32>
    %9 = arith.addf %2, %8 : vector<4x256xf32>
    %10 = vector.extract_strided_slice %0 {offsets = [0, 0, 1, 0], sizes = [1, 2, 2, 128], strides = [1, 1, 1, 1]} : vector<1x3x3x128xbf16> to vector<1x2x2x128xbf16>
    %11 = vector.shape_cast %10 : vector<1x2x2x128xbf16> to vector<2x2x128xbf16>
    %12 = vector.shape_cast %11 : vector<2x2x128xbf16> to vector<4x128xbf16>
    %13 = vector.extract_strided_slice %1 {offsets = [1, 0, 0], sizes = [1, 128, 256], strides = [1, 1, 1]} : vector<4x128x256xbf16> to vector<1x128x256xbf16>
    %14 = vector.shape_cast %13 : vector<1x128x256xbf16> to vector<128x256xbf16>
    %cst_7 = arith.constant dense<0.000000e+00> : vector<4x256xf32>
    %15 = tpu.matmul %12, %14, %cst_7 {dimension_numbers = #tpu.dot_dimension_numbers<[1], [0], [0], [1], [0, 0, 1, 1], [], []>} : vector<4x128xbf16>, vector<128x256xbf16>, vector<4x256xf32> -> vector<4x256xf32>
    %16 = arith.addf %9, %15 : vector<4x256xf32>
    %17 = vector.extract_strided_slice %0 {offsets = [0, 1, 0, 0], sizes = [1, 2, 2, 128], strides = [1, 1, 1, 1]} : vector<1x3x3x128xbf16> to vector<1x2x2x128xbf16>
    %18 = vector.shape_cast %17 : vector<1x2x2x128xbf16> to vector<2x2x128xbf16>
    %19 = vector.shape_cast %18 : vector<2x2x128xbf16> to vector<4x128xbf16>
    %20 = vector.extract_strided_slice %1 {offsets = [2, 0, 0], sizes = [1, 128, 256], strides = [1, 1, 1]} : vector<4x128x256xbf16> to vector<1x128x256xbf16>
    %21 = vector.shape_cast %20 : vector<1x128x256xbf16> to vector<128x256xbf16>
    %cst_8 = arith.constant dense<0.000000e+00> : vector<4x256xf32>
    %22 = tpu.matmul %19, %21, %cst_8 {dimension_numbers = #tpu.dot_dimension_numbers<[1], [0], [0], [1], [0, 0, 1, 1], [], []>} : vector<4x128xbf16>, vector<128x256xbf16>, vector<4x256xf32> -> vector<4x256xf32>
    %23 = arith.addf %16, %22 : vector<4x256xf32>
    %24 = vector.extract_strided_slice %0 {offsets = [0, 1, 1, 0], sizes = [1, 2, 2, 128], strides = [1, 1, 1, 1]} : vector<1x3x3x128xbf16> to vector<1x2x2x128xbf16>
    %25 = vector.shape_cast %24 : vector<1x2x2x128xbf16> to vector<2x2x128xbf16>
    %26 = vector.shape_cast %25 : vector<2x2x128xbf16> to vector<4x128xbf16>
    %27 = vector.extract_strided_slice %1 {offsets = [3, 0, 0], sizes = [1, 128, 256], strides = [1, 1, 1]} : vector<4x128x256xbf16> to vector<1x128x256xbf16>
    %28 = vector.shape_cast %27 : vector<1x128x256xbf16> to vector<128x256xbf16>
    %cst_9 = arith.constant dense<0.000000e+00> : vector<4x256xf32>
    %29 = tpu.matmul %26, %28, %cst_9 {dimension_numbers = #tpu.dot_dimension_numbers<[1], [0], [0], [1], [0, 0, 1, 1], [], []>} : vector<4x128xbf16>, vector<128x256xbf16>, vector<4x256xf32> -> vector<4x256xf32>
    %30 = arith.addf %23, %29 : vector<4x256xf32>
    %c0_10 = arith.constant 0 : index
    %c0_11 = arith.constant 0 : index
    %31 = vector.load %arg3[%c0_10, %c0_11] : memref<1x256xf32, #tpu.memory_space<vmem>>, vector<1x256xf32>
    %32 = vector.broadcast %31 : vector<1x256xf32> to vector<4x256xf32>
    %33 = arith.addf %30, %32 : vector<4x256xf32>
    %cst_12 = arith.constant 0.000000e+00 : f32
    %34 = vector.broadcast %cst_12 : f32 to vector<4x256xf32>
    %35 = arith.maximumf %33, %34 : vector<4x256xf32>
    %36 = vector.shape_cast %35 : vector<4x256xf32> to vector<1x2x2x256xf32>
    %37 = arith.truncf %36 : vector<1x2x2x256xf32> to vector<1x2x2x256xbf16>
    %c0_13 = arith.constant 0 : index
    %c0_14 = arith.constant 0 : index
    %c0_15 = arith.constant 0 : index
    %c0_16 = arith.constant 0 : index
    %38 = vector.load %arg4[%c0_13, %c0_14, %c0_15, %c0_16] : memref<1x2x2x256xbf16, #tpu.memory_space<vmem>>, vector<1x2x2x256xbf16>
    tpu.vector_store %arg4[%c0_13, %c0_14, %c0_15, %c0_16], %37 {strides = array<i32>} : memref<1x2x2x256xbf16, #tpu.memory_space<vmem>>, vector<1x2x2x256xbf16>,
    return
  }
  func.func @transform_0(%arg0: i32) -> (i32, i32, i32, i32) {
    %c0_i32 = arith.constant 0 : i32
    %c0_i32_0 = arith.constant 0 : i32
    %c0_i32_1 = arith.constant 0 : i32
    %c0_i32_2 = arith.constant 0 : i32
    return %arg0, %c0_i32, %c0_i32_0, %c0_i32_1 : i32, i32, i32, i32
  }
  func.func @transform_1(%arg0: i32) -> (i32, i32, i32) {
    %c0_i32 = arith.constant 0 : i32
    %c0_i32_0 = arith.constant 0 : i32
    %c0_i32_1 = arith.constant 0 : i32
    %c0_i32_2 = arith.constant 0 : i32
    return %c0_i32, %c0_i32_0, %c0_i32_1 : i32, i32, i32
  }
  func.func @transform_2(%arg0: i32) -> (i32, i32) {
    %c0_i32 = arith.constant 0 : i32
    %c0_i32_0 = arith.constant 0 : i32
    %c0_i32_1 = arith.constant 0 : i32
    return %c0_i32, %c0_i32_0 : i32, i32
  }
  func.func @transform_3(%arg0: i32) -> (i32, i32, i32, i32) {
    %c0_i32 = arith.constant 0 : i32
    %c0_i32_0 = arith.constant 0 : i32
    %c0_i32_1 = arith.constant 0 : i32
    %c0_i32_2 = arith.constant 0 : i32
    return %arg0, %c0_i32, %c0_i32_0, %c0_i32_1 : i32, i32, i32, i32
  }
}

module attributes {stable_mosaic.version = 11 : i64} {
  func.func @_tconv3x3_s2_kernel(%arg0: i32, %arg1: memref<1x9x9x32xbf16, #tpu.memory_space<vmem>>, %arg2: memref<4x32x12xbf16, #tpu.memory_space<vmem>>, %arg3: memref<1x12xf32, #tpu.memory_space<vmem>>, %arg4: memref<1x8x8x12xf32, #tpu.memory_space<vmem>>) attributes {dimension_semantics = [#tpu.dimension_semantics<parallel>], iteration_bounds = array<i64: 2>, scalar_prefetch = 0 : i64, scratch_operands = 0 : i64, tpu.core_type = #tpu.core_type<tc>, window_params = [{transform_indices = @transform_0, window_bounds = array<i64: 1, 9, 9, 32>}, {pipeline_mode = #tpu.pipeline_mode<synchronous>, transform_indices = @transform_1, window_bounds = array<i64: 4, 32, 12>}, {pipeline_mode = #tpu.pipeline_mode<synchronous>, transform_indices = @transform_2, window_bounds = array<i64: 1, 12>}, {transform_indices = @transform_3, window_bounds = array<i64: 1, 8, 8, 12>}]} {
    %c0 = arith.constant 0 : index
    %c0_0 = arith.constant 0 : index
    %c0_1 = arith.constant 0 : index
    %c0_2 = arith.constant 0 : index
    %0 = vector.load %arg1[%c0, %c0_0, %c0_1, %c0_2] : memref<1x9x9x32xbf16, #tpu.memory_space<vmem>>, vector<1x9x9x32xbf16>
    %c0_3 = arith.constant 0 : index
    %c0_4 = arith.constant 0 : index
    %c0_5 = arith.constant 0 : index
    %1 = vector.load %arg2[%c0_3, %c0_4, %c0_5] : memref<4x32x12xbf16, #tpu.memory_space<vmem>>, vector<4x32x12xbf16>
    %cst = arith.constant 0.000000e+00 : f32
    %2 = vector.broadcast %cst : f32 to vector<64x12xf32>
    %3 = vector.extract_strided_slice %0 {offsets = [0, 0, 0, 0], sizes = [1, 8, 8, 32], strides = [1, 1, 1, 1]} : vector<1x9x9x32xbf16> to vector<1x8x8x32xbf16>
    %4 = vector.shape_cast %3 : vector<1x8x8x32xbf16> to vector<8x8x32xbf16>
    %5 = vector.shape_cast %4 : vector<8x8x32xbf16> to vector<64x32xbf16>
    %6 = vector.extract_strided_slice %1 {offsets = [0, 0, 0], sizes = [1, 32, 12], strides = [1, 1, 1]} : vector<4x32x12xbf16> to vector<1x32x12xbf16>
    %7 = vector.shape_cast %6 : vector<1x32x12xbf16> to vector<32x12xbf16>
    %cst_6 = arith.constant dense<0.000000e+00> : vector<64x12xf32>
    %8 = tpu.matmul %5, %7, %cst_6 {dimension_numbers = #tpu.dot_dimension_numbers<[1], [0], [0], [1], [0, 0, 1, 1], [], []>} : vector<64x32xbf16>, vector<32x12xbf16>, vector<64x12xf32> -> vector<64x12xf32>
    %9 = arith.addf %2, %8 : vector<64x12xf32>
    %10 = vector.extract_strided_slice %0 {offsets = [0, 0, 1, 0], sizes = [1, 8, 8, 32], strides = [1, 1, 1, 1]} : vector<1x9x9x32xbf16> to vector<1x8x8x32xbf16>
    %11 = vector.shape_cast %10 : vector<1x8x8x32xbf16> to vector<8x8x32xbf16>
    %12 = vector.shape_cast %11 : vector<8x8x32xbf16> to vector<64x32xbf16>
    %13 = vector.extract_strided_slice %1 {offsets = [1, 0, 0], sizes = [1, 32, 12], strides = [1, 1, 1]} : vector<4x32x12xbf16> to vector<1x32x12xbf16>
    %14 = vector.shape_cast %13 : vector<1x32x12xbf16> to vector<32x12xbf16>
    %cst_7 = arith.constant dense<0.000000e+00> : vector<64x12xf32>
    %15 = tpu.matmul %12, %14, %cst_7 {dimension_numbers = #tpu.dot_dimension_numbers<[1], [0], [0], [1], [0, 0, 1, 1], [], []>} : vector<64x32xbf16>, vector<32x12xbf16>, vector<64x12xf32> -> vector<64x12xf32>
    %16 = arith.addf %9, %15 : vector<64x12xf32>
    %17 = vector.extract_strided_slice %0 {offsets = [0, 1, 0, 0], sizes = [1, 8, 8, 32], strides = [1, 1, 1, 1]} : vector<1x9x9x32xbf16> to vector<1x8x8x32xbf16>
    %18 = vector.shape_cast %17 : vector<1x8x8x32xbf16> to vector<8x8x32xbf16>
    %19 = vector.shape_cast %18 : vector<8x8x32xbf16> to vector<64x32xbf16>
    %20 = vector.extract_strided_slice %1 {offsets = [2, 0, 0], sizes = [1, 32, 12], strides = [1, 1, 1]} : vector<4x32x12xbf16> to vector<1x32x12xbf16>
    %21 = vector.shape_cast %20 : vector<1x32x12xbf16> to vector<32x12xbf16>
    %cst_8 = arith.constant dense<0.000000e+00> : vector<64x12xf32>
    %22 = tpu.matmul %19, %21, %cst_8 {dimension_numbers = #tpu.dot_dimension_numbers<[1], [0], [0], [1], [0, 0, 1, 1], [], []>} : vector<64x32xbf16>, vector<32x12xbf16>, vector<64x12xf32> -> vector<64x12xf32>
    %23 = arith.addf %16, %22 : vector<64x12xf32>
    %24 = vector.extract_strided_slice %0 {offsets = [0, 1, 1, 0], sizes = [1, 8, 8, 32], strides = [1, 1, 1, 1]} : vector<1x9x9x32xbf16> to vector<1x8x8x32xbf16>
    %25 = vector.shape_cast %24 : vector<1x8x8x32xbf16> to vector<8x8x32xbf16>
    %26 = vector.shape_cast %25 : vector<8x8x32xbf16> to vector<64x32xbf16>
    %27 = vector.extract_strided_slice %1 {offsets = [3, 0, 0], sizes = [1, 32, 12], strides = [1, 1, 1]} : vector<4x32x12xbf16> to vector<1x32x12xbf16>
    %28 = vector.shape_cast %27 : vector<1x32x12xbf16> to vector<32x12xbf16>
    %cst_9 = arith.constant dense<0.000000e+00> : vector<64x12xf32>
    %29 = tpu.matmul %26, %28, %cst_9 {dimension_numbers = #tpu.dot_dimension_numbers<[1], [0], [0], [1], [0, 0, 1, 1], [], []>} : vector<64x32xbf16>, vector<32x12xbf16>, vector<64x12xf32> -> vector<64x12xf32>
    %30 = arith.addf %23, %29 : vector<64x12xf32>
    %c0_10 = arith.constant 0 : index
    %c0_11 = arith.constant 0 : index
    %31 = vector.load %arg3[%c0_10, %c0_11] : memref<1x12xf32, #tpu.memory_space<vmem>>, vector<1x12xf32>
    %32 = vector.broadcast %31 : vector<1x12xf32> to vector<64x12xf32>
    %33 = arith.addf %30, %32 : vector<64x12xf32>
    %cst_12 = arith.constant 0.000000e+00 : f32
    %34 = vector.broadcast %cst_12 : f32 to vector<64x12xf32>
    %35 = arith.subf %34, %33 : vector<64x12xf32>
    %36 = math.exp %35 : vector<64x12xf32>
    %cst_13 = arith.constant 1.000000e+00 : f32
    %37 = vector.broadcast %cst_13 : f32 to vector<64x12xf32>
    %38 = arith.addf %37, %36 : vector<64x12xf32>
    %cst_14 = arith.constant 1.000000e+00 : f32
    %39 = vector.broadcast %cst_14 : f32 to vector<64x12xf32>
    %40 = arith.divf %39, %38 : vector<64x12xf32>
    %41 = vector.shape_cast %40 : vector<64x12xf32> to vector<1x8x8x12xf32>
    %c0_15 = arith.constant 0 : index
    %c0_16 = arith.constant 0 : index
    %c0_17 = arith.constant 0 : index
    %c0_18 = arith.constant 0 : index
    %42 = vector.load %arg4[%c0_15, %c0_16, %c0_17, %c0_18] : memref<1x8x8x12xf32, #tpu.memory_space<vmem>>, vector<1x8x8x12xf32>
    tpu.vector_store %arg4[%c0_15, %c0_16, %c0_17, %c0_18], %41 {strides = array<i32>} : memref<1x8x8x12xf32, #tpu.memory_space<vmem>>, vector<1x8x8x12xf32>,
    return
  }
  func.func @transform_0(%arg0: i32) -> (i32, i32, i32, i32) {
    %c0_i32 = arith.constant 0 : i32
    %c0_i32_0 = arith.constant 0 : i32
    %c0_i32_1 = arith.constant 0 : i32
    %c0_i32_2 = arith.constant 0 : i32
    return %arg0, %c0_i32, %c0_i32_0, %c0_i32_1 : i32, i32, i32, i32
  }
  func.func @transform_1(%arg0: i32) -> (i32, i32, i32) {
    %c0_i32 = arith.constant 0 : i32
    %c0_i32_0 = arith.constant 0 : i32
    %c0_i32_1 = arith.constant 0 : i32
    %c0_i32_2 = arith.constant 0 : i32
    return %c0_i32, %c0_i32_0, %c0_i32_1 : i32, i32, i32
  }
  func.func @transform_2(%arg0: i32) -> (i32, i32) {
    %c0_i32 = arith.constant 0 : i32
    %c0_i32_0 = arith.constant 0 : i32
    %c0_i32_1 = arith.constant 0 : i32
    return %c0_i32, %c0_i32_0 : i32, i32
  }
  func.func @transform_3(%arg0: i32) -> (i32, i32, i32, i32) {
    %c0_i32 = arith.constant 0 : i32
    %c0_i32_0 = arith.constant 0 : i32
    %c0_i32_1 = arith.constant 0 : i32
    %c0_i32_2 = arith.constant 0 : i32
    return %arg0, %c0_i32, %c0_i32_0, %c0_i32_1 : i32, i32, i32, i32
  }
}

</mosaic_0001>

<llo_original>
// kernel: forward.7
$region0: #{forward.7}
  #allocation0 [shape = 'u32[]', space=smem, size = 0x4, offset = 0x4, fixed_abs, tag = 'smem constant byte address 0x4 - core index']
  #allocation1 [shape = 'u32[144,128]{1,0:T(1,128)}', space=vmem, size = 0x12000, scoped, tag = 'internal scratch']
  %s0 = inlined_call_operand.vmem [shape: bf16[8,5,5,32], index: 0, kind: input, shape index: {}]
  %s1 = inlined_call_operand.vmem [shape: bf16[9,32,64], index: 1, kind: input, shape index: {}]
  %s2 = inlined_call_operand.vmem [shape: f32[1,64], index: 2, kind: input, shape index: {}]
  %s3 = inlined_call_operand.vmem [shape: bf16[2,4,4,64], index: 3, kind: output, shape index: {}]
  %s4 = sld [smem:[#allocation0]]
  $region45: #{forward.7} parent=0
    _
  %s6 = ssub.s32 1, %s4
  %s7 = scalar_select 0, %s6, %s4
  loop: start=0, step=1, limit=4
  $region2: #{forward.7} parent=0 // loop_pre_header
    _
  $region3: #{forward.7} parent=0 // loop_header
    %s9 = sphi 0, %s13
    %p10 = scmp.ge.s32.totalorder %s9, 4
    %s19 = sphi 0, %s21
    %s22 = sphi 0, %s19
    %s23 = sphi 0, %s22
    %s39 = sphi 0, %s23
    %s43 = sphi 0, %s43
    %s45 = sphi 0, %s43
    %s46 = sphi 0, %s45
    %s60 = sphi 0, %s46
    %s64 = sphi 0, %s64
    %s66 = sphi 0, %s64
    %s67 = sphi 0, %s66
    %s81 = sphi 0, %s67
    %s87 = sphi 0, %s89
    %s90 = sphi 0, %s87
    %s91 = sphi 0, %s90
    %s107 = sphi 0, %s91
  $region4: #{forward.7} parent=0 // loop_header_branch
    %12 = sbr.rel (%p10) target = $region8
  $region5: #{forward.7} parent=0 // loop_body
    %s14 = ssub.s32 %s9, 1
    %s15 = ssub.s32 %s9, 2
    %s16 = sadd.s32 %s9, 1
    %s17 = ssub.s32 %s9, %s16
    %p18 = scmp.eq.s32.totalorder %s17, 0
    %s20 = sadd.s32 %s19, 1
    %s21 = scalar_select %p18, %s19, %s20
    %p24 = pneg %p18
    %p25 = scmp.eq.s32.totalorder %s9, 1
    %p26 = por %p24, %p25
    %p27 = scmp.ne.s32.totalorder %s19, %s22
    %p28 = scmp.eq.s32.totalorder %s9, 0
    %p29 = por %p27, %p28
    %p30 = scmp.ne.s32.totalorder %s19, %s22
    %p31 = scmp.eq.s32.totalorder %s14, 1
    %p32 = por %p30, %p31
    %p33 = scmp.ne.s32.totalorder %s22, %s23
    %p34 = scmp.eq.s32.totalorder %s14, 0
    %p35 = por %p33, %p34
    %p36 = scmp.ne.s32.totalorder %s22, %s23
    %p37 = scmp.eq.s32.totalorder %s15, 1
    %p38 = por %p36, %p37
    %p40 = scmp.ne.s32.totalorder %s23, %s39
    %p41 = scmp.eq.s32.totalorder %s15, 0
    %p42 = por %p40, %p41
    %s44 = sadd.s32 %s43, 1
    %p47 = scmp.eq.s32.totalorder %s9, 1
    %p48 = scmp.ne.s32.totalorder %s43, %s45
    %p49 = scmp.eq.s32.totalorder %s9, 0
    %p50 = por %p48, %p49
    %p51 = scmp.ne.s32.totalorder %s43, %s45
    %p52 = scmp.eq.s32.totalorder %s14, 1
    %p53 = por %p51, %p52
    %p54 = scmp.ne.s32.totalorder %s45, %s46
    %p55 = scmp.eq.s32.totalorder %s14, 0
    %p56 = por %p54, %p55
    %p57 = scmp.ne.s32.totalorder %s45, %s46
    %p58 = scmp.eq.s32.totalorder %s15, 1
    %p59 = por %p57, %p58
    %p61 = scmp.ne.s32.totalorder %s46, %s60
    %p62 = scmp.eq.s32.totalorder %s15, 0
    %p63 = por %p61, %p62
    %s65 = sadd.s32 %s64, 1
    %p68 = scmp.eq.s32.totalorder %s9, 1
    %p69 = scmp.ne.s32.totalorder %s64, %s66
    %p70 = scmp.eq.s32.totalorder %s9, 0
    %p71 = por %p69, %p70
    %p72 = scmp.ne.s32.totalorder %s64, %s66
    %p73 = scmp.eq.s32.totalorder %s14, 1
    %p74 = por %p72, %p73
    %p75 = scmp.ne.s32.totalorder %s66, %s67
    %p76 = scmp.eq.s32.totalorder %s14, 0
    %p77 = por %p75, %p76
    %p78 = scmp.ne.s32.totalorder %s66, %s67
    %p79 = scmp.eq.s32.totalorder %s15, 1
    %p80 = por %p78, %p79
    %p82 = scmp.ne.s32.totalorder %s67, %s81
    %p83 = scmp.eq.s32.totalorder %s15, 0
    %p84 = por %p82, %p83
    %s85 = ssub.s32 %s9, %s16
    %p86 = scmp.eq.s32.totalorder %s85, 0
    %s88 = sadd.s32 %s87, 1
    %s89 = scalar_select %p86, %s87, %s88
    %p92 = pneg %p86
    %p93 = scmp.eq.s32.totalorder %s9, 1
    %p94 = por %p92, %p93
    %p95 = scmp.ne.s32.totalorder %s87, %s90
    %p96 = scmp.eq.s32.totalorder %s9, 0
    %p97 = por %p95, %p96
    %p98 = scmp.ne.s32.totalorder %s87, %s90
    %p99 = scmp.eq.s32.totalorder %s14, 1
    %p100 = por %p98, %p99
    %p101 = scmp.ne.s32.totalorder %s90, %s91
    %p102 = scmp.eq.s32.totalorder %s14, 0
    %p103 = por %p101, %p102
    %p104 = scmp.ne.s32.totalorder %s90, %s91
    %p105 = scmp.eq.s32.totalorder %s15, 1
    %p106 = por %p104, %p105
    %p108 = scmp.ne.s32.totalorder %s91, %s107
    %p109 = scmp.eq.s32.totalorder %s15, 0
    %p110 = por %p108, %p109
    %p111 = scmp.le.s32.totalorder 1, %s9
    %p112 = scmp.lt.s32.totalorder %s9, 3
    %p113 = pnand %p111, %p112
    %p114 = pneg %p113
    // Predicated region
    $region9: #{forward.7} parent=5 // pred_check
      _
    $region10: #{forward.7} parent=5 // pred_check_branch
      %116 = sbr.rel (%p113) target = $region12
    $region11: #{forward.7} parent=5 // pred_region
      %s117 = ssub.s32 %s9, 1
      // Predicated region
      $region13: #{forward.7} parent=11 // pred_check
        %p118 = pneg %p56
      $region14: #{forward.7} parent=11 // pred_check_branch
        %120 = sbr.rel (%p118) target = $region16
      $region15: #{forward.7} parent=11 // pred_region
        _
      $region16: #{forward.7} parent=11 // pred_fallthru
        _
      // Predicated region
      $region17: #{forward.7} parent=11 // pred_check
        %p121 = pneg %p77
      $region18: #{forward.7} parent=11 // pred_check_branch
        %123 = sbr.rel (%p121) target = $region20
      $region19: #{forward.7} parent=11 // pred_region
        _
      $region20: #{forward.7} parent=11 // pred_fallthru
        _
    $region12: #{forward.7} parent=5 // pred_fallthru
      _
    %p124 = scmp.lt.s32.totalorder %s9, 2
    // Predicated region
    $region21: #{forward.7} parent=5 // pred_check
      %p125 = pneg %p124
    $region22: #{forward.7} parent=5 // pred_check_branch
      %127 = sbr.rel (%p125) target = $region24
    $region23: #{forward.7} parent=5 // pred_region
      // Predicated region
      $region25: #{forward.7} parent=23 // pred_check
        %p128 = pneg %p29
      $region26: #{forward.7} parent=23 // pred_check_branch
        %130 = sbr.rel (%p128) target = $region28
      $region27: #{forward.7} parent=23 // pred_region
        %s131 = smul.u32 4, %s9
        %p132 = scmp.lt.s32.totalorder %s131, 7
        %s133 = scalar_select %p132, %s131, 7
        %s134 = smul.addr %s133, 5
        %s135 = smul.addr %s134, 4
        %s136 = scalar_lea.vmem %s0, %s135
        %s137 = smul.u32 4, %s9
      $region28: #{forward.7} parent=23 // pred_fallthru
        _
    $region24: #{forward.7} parent=5 // pred_fallthru
      _
    %p138 = scmp.le.s32.totalorder 1, %s9
    %p139 = scmp.lt.s32.totalorder %s9, 3
    %p140 = pnand %p138, %p139
    %p141 = pneg %p140
    // Predicated region
    $region29: #{forward.7} parent=5 // pred_check
      _
    $region30: #{forward.7} parent=5 // pred_check_branch
      %143 = sbr.rel (%p140) target = $region32
    $region31: #{forward.7} parent=5 // pred_region
      %s144 = ssub.s32 %s9, 1
      %s145 = smul.u32 4, %s14
      %p146 = scmp.lt.s32.totalorder %s145, 7
      %s147 = scalar_select %p146, %s145, 7
      %s148 = smul.addr %s147, 5
      %s149 = smul.addr %s148, 4
      %s150 = scalar_lea.vmem %s0, %s149
      %p151 = pneg %p35
      %p152 = pneg %p32
      %p153 = pneg %p56
      %p154 = pneg %p53
      %p155 = pneg %p77
      %p156 = pneg %p74
      %p157 = pneg %p103
      %p158 = pneg %p100
      %p159 = scmp.lt.s32.totalorder %s14, 1
      %s160 = scalar_select %p159, %s14, 1
      %s161 = smul.addr %s160, 4
      %s162 = smul.addr %s161, 2
      %s163 = scalar_lea.vmem %s3, %s162
      %s164 = smul.u32 4, %s14
      %p165 = scmp.lt.s32.totalorder %s164, 7
      %s166 = scalar_select %p165, %s164, 7
      %s167 = smul.addr %s166, 5
      %s168 = smul.addr %s167, 4
      %s169 = scalar_lea.vmem %s0, %s168
      %s170 = smul.u32 4, %s14
      %p171 = scmp.lt.s32.totalorder %s14, 1
      %s172 = scalar_select %p171, %s14, 1
      %s173 = smul.addr %s172, 4
      %s174 = smul.addr %s173, 2
      %s175 = scalar_lea.vmem %s3, %s174
      %v177 = vld [vmem:[%s169 + $0x4] sm:$0x7]
      %v178 = vld [vmem:[%s169 + $0x8] sm:$0x7]
      %v179 = vld [vmem:[%s169 + $0xc] sm:$0x7]
      %v180 = vld [vmem:[%s169 + $0x10] sm:$0x7]
      %v181 = vld [vmem:[%s169 + $0x18] sm:$0x7]
      %v182 = vld [vmem:[%s169 + $0x1c] sm:$0x7]
      %v183 = vld [vmem:[%s169 + $0x20] sm:$0x7]
      %v184 = vld [vmem:[%s169 + $0x24] sm:$0x7]
      %v185 = vld [vmem:[%s169 + $0x28] sm:$0x7]
      %v186 = vld [vmem:[%s169 + $0x2c] sm:$0x7]
      %v187 = vld [vmem:[%s169 + $0x30] sm:$0x7]
      %v188 = vld [vmem:[%s169 + $0x34] sm:$0x7]
      %v189 = vld [vmem:[%s169 + $0x38] sm:$0x7]
      %v190 = vld [vmem:[%s169 + $0x3c] sm:$0x7]
      %v191 = vld [vmem:[%s169 + $0x40] sm:$0x7]
      %v192 = vld [vmem:[%s169 + $0x44] sm:$0x7]
      %v193 = vld [vmem:[%s169 + $0x48] sm:$0x7]
      %v194 = vld [vmem:[%s169 + $0x4c] sm:$0x7]
      %v195 = vld [vmem:[%s1] sm:$0xf]
      %v196 = vld [vmem:[%s1 + $0x4] sm:$0xf]
      %v197 = vld [vmem:[%s1 + $0x8] sm:$0xf]
      %v198 = vld [vmem:[%s1 + $0xc] sm:$0xf]
      %v199 = vld [vmem:[%s1 + $0x10] sm:$0xf]
      %v200 = vld [vmem:[%s1 + $0x14] sm:$0xf]
      %v201 = vld [vmem:[%s1 + $0x18] sm:$0xf]
      %v202 = vld [vmem:[%s1 + $0x1c] sm:$0xf]
      %v203 = vld [vmem:[%s1 + $0x20] sm:$0xf]
      %v204 = vld [vmem:[%s1 + $0x24] sm:$0xf]
      %v205 = vld [vmem:[%s1 + $0x28] sm:$0xf]
      %v206 = vld [vmem:[%s1 + $0x2c] sm:$0xf]
      %v207 = vld [vmem:[%s1 + $0x30] sm:$0xf]
      %v208 = vld [vmem:[%s1 + $0x34] sm:$0xf]
      %v209 = vld [vmem:[%s1 + $0x38] sm:$0xf]
      %v210 = vld [vmem:[%s1 + $0x3c] sm:$0xf]
      %v211 = vld [vmem:[%s1 + $0x40] sm:$0xf]
      %v212 = vld [vmem:[%s1 + $0x44] sm:$0xf]
      %v213 = vld [vmem:[%s1 + $0x48] sm:$0xf]
      %v214 = vld [vmem:[%s1 + $0x4c] sm:$0xf]
      %v215 = vld [vmem:[%s1 + $0x50] sm:$0xf]
      %v216 = vld [vmem:[%s1 + $0x54] sm:$0xf]
      %v217 = vld [vmem:[%s1 + $0x58] sm:$0xf]
      %v218 = vld [vmem:[%s1 + $0x5c] sm:$0xf]
      %v219 = vld [vmem:[%s1 + $0x60] sm:$0xf]
      %v220 = vld [vmem:[%s1 + $0x64] sm:$0xf]
      %v221 = vld [vmem:[%s1 + $0x68] sm:$0xf]
      %v222 = vld [vmem:[%s1 + $0x6c] sm:$0xf]
      %v223 = vld [vmem:[%s1 + $0x70] sm:$0xf]
      %v224 = vld [vmem:[%s1 + $0x74] sm:$0xf]
      %v225 = vld [vmem:[%s1 + $0x78] sm:$0xf]
      %v226 = vld [vmem:[%s1 + $0x7c] sm:$0xf]
      %v227 = vld [vmem:[%s1 + $0x80] sm:$0xf]
      %v228 = vld [vmem:[%s1 + $0x84] sm:$0xf]
      %v229 = vld [vmem:[%s1 + $0x88] sm:$0xf]
      %v230 = vld [vmem:[%s1 + $0x8c] sm:$0xf]
      %v236 = vunpack.c.l.s4 1983009808
      %v237 = vunpack.c.0.s8 %v236
      %v238 = vlaneseq
      %v239 = vshrl.u32 %v238, 7
      %v240 = vsub.s32 %v237, %v239
      %v241 = vrot.slane %v185, %v240
      %v242 = vcombine.high %v241, %v241
      %v244 = vunpack.c.l.s4 1983009808
      %v245 = vunpack.c.0.s8 %v244
      %v246 = vlaneseq
      %v247 = vshrl.u32 %v246, 7
      %v248 = vsub.s32 %v245, %v247
      %v249 = vrot.slane %v186, %v248
      %v250 = vcombine.high %v249, %v249
      %v252 = vunpack.c.l.s4 1983009808
      %v253 = vunpack.c.0.s8 %v252
      %v254 = vlaneseq
      %v255 = vshrl.u32 %v254, 7
      %v256 = vsub.s32 %v253, %v255
      %v257 = vrot.slane %v187, %v256
      %v258 = vcombine.high %v257, %v257
      %v260 = vunpack.c.l.s4 1983009808
      %v261 = vunpack.c.0.s8 %v260
      %v262 = vlaneseq
      %v263 = vshrl.u32 %v262, 7
      %v264 = vsub.s32 %v261, %v263
      %v265 = vrot.slane %v188, %v264
      %v266 = vcombine.high %v265, %v265
      %vm267 = vsmask.f32 1280
      %vm268 = vsmask.f32 3336
      %vm269 = vmor %vm267, %vm268
      %vm270 = vsmask.f32 5392
      %vm271 = vmor %vm269, %vm270
      %vm272 = vsmask.f32 7448
      %vm273 = vmor %vm271, %vm272
      %v275 = vshrl.u32 %v241, 16
      %v277 = vrot.slane %v275, 6
      %v278 = vshll.u32 %v241, 16
      %v280 = vrot.slane %v278, 7
      %v281 = vor.u32 %v277, %v280
      %v282 = vrot.slane %v281, 2
      %v284 = vshll.u32 %v242, 16
      %v286 = vrot.slane %v284, 7
      %v287 = vsel %vm273, %v282, %v286
      %v289 = vshrl.u32 %v249, 16
      %v291 = vrot.slane %v289, 6
      %v292 = vshll.u32 %v249, 16
      %v294 = vrot.slane %v292, 7
      %v295 = vor.u32 %v291, %v294
      %v296 = vrot.slane %v295, 2
      %v298 = vshll.u32 %v250, 16
      %v300 = vrot.slane %v298, 7
      %v301 = vsel %vm273, %v296, %v300
      %v303 = vshrl.u32 %v257, 16
      %v305 = vrot.slane %v303, 6
      %v306 = vshll.u32 %v257, 16
      %v308 = vrot.slane %v306, 7
      %v309 = vor.u32 %v305, %v308
      %v310 = vrot.slane %v309, 2
      %v312 = vshll.u32 %v258, 16
      %v314 = vrot.slane %v312, 7
      %v315 = vsel %vm273, %v310, %v314
      %v317 = vshrl.u32 %v265, 16
      %v319 = vrot.slane %v317, 6
      %v320 = vshll.u32 %v265, 16
      %v322 = vrot.slane %v320, 7
      %v323 = vor.u32 %v319, %v322
      %v324 = vrot.slane %v323, 2
      %v326 = vshll.u32 %v266, 16
      %v328 = vrot.slane %v326, 7
      %v329 = vsel %vm273, %v324, %v328
      %v330 = vcombine.low %v287, %v301
      %v331 = vcombine.low %v315, %v329
      %v333 = vunpack.c.l.s4 1983009808
      %v334 = vunpack.c.0.s8 %v333
      %v335 = vlaneseq
      %v336 = vshrl.u32 %v335, 7
      %v337 = vsub.s32 %v334, %v336
      %v338 = vrot.slane %v330, %v337
      %v340 = vunpack.c.l.s4 1983009808
      %v341 = vunpack.c.0.s8 %v340
      %v342 = vlaneseq
      %v343 = vshrl.u32 %v342, 7
      %v344 = vsub.s32 %v341, %v343
      %v345 = vrot.slane %v331, %v344
      %v346 = vcombine.low %v338, %v345
      %v351 = vunpack.c.l.b16 %v199
      %v352 = vunpack.c.l.b16 %v200
      %v353 = vunpack.c.l.b16 %v201
      %v354 = vunpack.c.l.b16 %v202
      %v355 = vpack.c.b16 %v352, %v351
      %v356 = vpack.c.b16 %v354, %v353
      %vm359 = vcmask 261120
      %v361 = vsel %vm359, %v346, 0
      %363 = vmatprep.subr.bf16.mxu0 0
      %364 = vmatpush1.bf16.msra.mxu0 0
      %365 = vmatprep.subr.bf16.mxu0 0
      %366 = vmatpush1.bf16.msra.mxu0 0
      %367 = vmatprep.subr.bf16.mxu0 0
      %368 = vmatpush1.bf16.msra.mxu0 0
      %369 = vmatprep.subr.bf16.mxu0 0
      %370 = vmatpush1.bf16.msra.mxu0 0
      %371 = vmatprep.subr.bf16.mxu0 0
      %372 = vmatpush1.bf16.msra.mxu0 0
      %373 = vmatprep.subr.bf16.mxu0 0
      %374 = vmatpush1.bf16.msra.mxu0 0
      %375 = vmatprep.subr.bf16.mxu0 0
      %376 = vmatpush1.bf16.msra.mxu0 %v356
      %377 = vmatprep.subr.bf16.mxu0 0
      %378 = vmatpush1.bf16.msra.mxu0 %v355
      %379 = vmatprep.subr.bf16.mxu0 0
      %380 = vmatpush2.bf16.msra.mxu0 0
      %381 = vmatprep.subr.bf16.mxu0 0
      %382 = vmatpush2.bf16.msra.mxu0 0
      %383 = vmatprep.subr.bf16.mxu0 0
      %384 = vmatpush2.bf16.msra.mxu0 0
      %385 = vmatprep.subr.bf16.mxu0 0
      %386 = vmatpush2.bf16.msra.mxu0 0
      %387 = vmatprep.subr.bf16.mxu0 0
      %388 = vmatpush2.bf16.msra.mxu0 0
      %389 = vmatprep.subr.bf16.mxu0 0
      %390 = vmatpush2.bf16.msra.mxu0 0
      %391 = vmatprep.subr.bf16.mxu0 0
      %392 = vmatpush2.bf16.msra.mxu0 0
      %393 = vmatprep.subr.bf16.mxu0 0
      %394 = vmatpush2.bf16.msra.mxu0 0
      %395 = vmatprep.mubr.bf16.mxu0 0
      %396 = vmatmul.mubr.bf16.gmra.mxu0 %v361
      %v397 = vpop.f32.mrf.mxu0
      %v398 = vadd.f32 0.0, %v397
      %v399 = vpop.f32.mrf.mxu0
      %v400 = vpop.f32.mrf.mxu0
      %v401 = vadd.f32 0.0, %v400
      %v402 = vpop.f32.mrf.mxu0
      %403 = vdwg.mxu0
      %v408 = vcombine.low %v190, %v191
      %v409 = vcombine.low %v192, %v193
      %v411 = vunpack.c.l.s4 1983009808
      %v412 = vunpack.c.0.s8 %v411
      %v413 = vlaneseq
      %v414 = vshrl.u32 %v413, 7
      %v415 = vsub.s32 %v412, %v414
      %v416 = vrot.slane %v408, %v415
      %v418 = vunpack.c.l.s4 1983009808
      %v419 = vunpack.c.0.s8 %v418
      %v420 = vlaneseq
      %v421 = vshrl.u32 %v420, 7
      %v422 = vsub.s32 %v419, %v421
      %v423 = vrot.slane %v409, %v422
      %v424 = vcombine.low %v416, %v423
      %v429 = vunpack.c.l.b16 %v195
      %v430 = vunpack.c.l.b16 %v196
      %v431 = vunpack.c.l.b16 %v197
      %v432 = vunpack.c.l.b16 %v198
      %v433 = vpack.c.b16 %v430, %v429
      %v434 = vpack.c.b16 %v432, %v431
      %v438 = vsel %vm359, %v424, 0
      %440 = vmatprep.subr.bf16.mxu0 0
      %441 = vmatpush1.bf16.msra.mxu0 0
      %442 = vmatprep.subr.bf16.mxu0 0
      %443 = vmatpush1.bf16.msra.mxu0 0
      %444 = vmatprep.subr.bf16.mxu0 0
      %445 = vmatpush1.bf16.msra.mxu0 0
      %446 = vmatprep.subr.bf16.mxu0 0
      %447 = vmatpush1.bf16.msra.mxu0 0
      %448 = vmatprep.subr.bf16.mxu0 0
      %449 = vmatpush1.bf16.msra.mxu0 0
      %450 = vmatprep.subr.bf16.mxu0 0
      %451 = vmatpush1.bf16.msra.mxu0 0
      %452 = vmatprep.subr.bf16.mxu0 0
      %453 = vmatpush1.bf16.msra.mxu0 %v434
      %454 = vmatprep.subr.bf16.mxu0 0
      %455 = vmatpush1.bf16.msra.mxu0 %v433
      %456 = vmatprep.subr.bf16.mxu0 0
      %457 = vmatpush2.bf16.msra.mxu0 0
      %458 = vmatprep.subr.bf16.mxu0 0
      %459 = vmatpush2.bf16.msra.mxu0 0
      %460 = vmatprep.subr.bf16.mxu0 0
      %461 = vmatpush2.bf16.msra.mxu0 0
      %462 = vmatprep.subr.bf16.mxu0 0
      %463 = vmatpush2.bf16.msra.mxu0 0
      %464 = vmatprep.subr.bf16.mxu0 0
      %465 = vmatpush2.bf16.msra.mxu0 0
      %466 = vmatprep.subr.bf16.mxu0 0
      %467 = vmatpush2.bf16.msra.mxu0 0
      %468 = vmatprep.subr.bf16.mxu0 0
      %469 = vmatpush2.bf16.msra.mxu0 0
      %470 = vmatprep.subr.bf16.mxu0 0
      %471 = vmatpush2.bf16.msra.mxu0 0
      %472 = vmatprep.mubr.bf16.mxu0 0
      %473 = vmatmul.mubr.bf16.gmra.mxu0 %v438
      %v474 = vpop.f32.mrf.mxu0
      %v475 = vadd.f32 %v398, %v474
      %v476 = vpop.f32.mrf.mxu0
      %v477 = vpop.f32.mrf.mxu0
      %v478 = vadd.f32 %v401, %v477
      %v479 = vpop.f32.mrf.mxu0
      %480 = vdwg.mxu0
      %v482 = vunpack.c.l.s4 1983009808
      %v483 = vunpack.c.0.s8 %v482
      %v484 = vlaneseq
      %v485 = vshrl.u32 %v484, 7
      %v486 = vsub.s32 %v483, %v485
      %v487 = vrot.slane %v190, %v486
      %v488 = vcombine.high %v487, %v487
      %v490 = vunpack.c.l.s4 1983009808
      %v491 = vunpack.c.0.s8 %v490
      %v492 = vlaneseq
      %v493 = vshrl.u32 %v492, 7
      %v494 = vsub.s32 %v491, %v493
      %v495 = vrot.slane %v191, %v494
      %v496 = vcombine.high %v495, %v495
      %v498 = vunpack.c.l.s4 1983009808
      %v499 = vunpack.c.0.s8 %v498
      %v500 = vlaneseq
      %v501 = vshrl.u32 %v500, 7
      %v502 = vsub.s32 %v499, %v501
      %v503 = vrot.slane %v192, %v502
      %v504 = vcombine.high %v503, %v503
      %v506 = vunpack.c.l.s4 1983009808
      %v507 = vunpack.c.0.s8 %v506
      %v508 = vlaneseq
      %v509 = vshrl.u32 %v508, 7
      %v510 = vsub.s32 %v507, %v509
      %v511 = vrot.slane %v193, %v510
      %v512 = vcombine.high %v511, %v511
      %v514 = vshrl.u32 %v487, 16
      %v516 = vrot.slane %v514, 6
      %v517 = vshll.u32 %v487, 16
      %v519 = vrot.slane %v517, 7
      %v520 = vor.u32 %v516, %v519
      %v521 = vrot.slane %v520, 2
      %v523 = vshll.u32 %v488, 16
      %v525 = vrot.slane %v523, 7
      %v526 = vsel %vm273, %v521, %v525
      %v528 = vshrl.u32 %v495, 16
      %v530 = vrot.slane %v528, 6
      %v531 = vshll.u32 %v495, 16
      %v533 = vrot.slane %v531, 7
      %v534 = vor.u32 %v530, %v533
      %v535 = vrot.slane %v534, 2
      %v537 = vshll.u32 %v496, 16
      %v539 = vrot.slane %v537, 7
      %v540 = vsel %vm273, %v535, %v539
      %v542 = vshrl.u32 %v503, 16
      %v544 = vrot.slane %v542, 6
      %v545 = vshll.u32 %v503, 16
      %v547 = vrot.slane %v545, 7
      %v548 = vor.u32 %v544, %v547
      %v549 = vrot.slane %v548, 2
      %v551 = vshll.u32 %v504, 16
      %v553 = vrot.slane %v551, 7
      %v554 = vsel %vm273, %v549, %v553
      %v556 = vshrl.u32 %v511, 16
      %v558 = vrot.slane %v556, 6
      %v559 = vshll.u32 %v511, 16
      %v561 = vrot.slane %v559, 7
      %v562 = vor.u32 %v558, %v561
      %v563 = vrot.slane %v562, 2
      %v565 = vshll.u32 %v512, 16
      %v567 = vrot.slane %v565, 7
      %v568 = vsel %vm273, %v563, %v567
      %v569 = vcombine.low %v526, %v540
      %v570 = vcombine.low %v554, %v568
      %v572 = vunpack.c.l.s4 1983009808
      %v573 = vunpack.c.0.s8 %v572
      %v574 = vlaneseq
      %v575 = vshrl.u32 %v574, 7
      %v576 = vsub.s32 %v573, %v575
      %v577 = vrot.slane %v569, %v576
      %v579 = vunpack.c.l.s4 1983009808
      %v580 = vunpack.c.0.s8 %v579
      %v581 = vlaneseq
      %v582 = vshrl.u32 %v581, 7
      %v583 = vsub.s32 %v580, %v582
      %v584 = vrot.slane %v570, %v583
      %v585 = vcombine.low %v577, %v584
      %v590 = vunpack.c.l.b16 %v203
      %v591 = vunpack.c.l.b16 %v204
      %v592 = vunpack.c.l.b16 %v205
      %v593 = vunpack.c.l.b16 %v206
      %v594 = vpack.c.b16 %v591, %v590
      %v595 = vpack.c.b16 %v593, %v592
      %v599 = vsel %vm359, %v585, 0
      %601 = vmatprep.subr.bf16.mxu0 0
      %602 = vmatpush1.bf16.msra.mxu0 0
      %603 = vmatprep.subr.bf16.mxu0 0
      %604 = vmatpush1.bf16.msra.mxu0 0
      %605 = vmatprep.subr.bf16.mxu0 0
      %606 = vmatpush1.bf16.msra.mxu0 0
      %607 = vmatprep.subr.bf16.mxu0 0
      %608 = vmatpush1.bf16.msra.mxu0 0
      %609 = vmatprep.subr.bf16.mxu0 0
      %610 = vmatpush1.bf16.msra.mxu0 0
      %611 = vmatprep.subr.bf16.mxu0 0
      %612 = vmatpush1.bf16.msra.mxu0 0
      %613 = vmatprep.subr.bf16.mxu0 0
      %614 = vmatpush1.bf16.msra.mxu0 %v595
      %615 = vmatprep.subr.bf16.mxu0 0
      %616 = vmatpush1.bf16.msra.mxu0 %v594
      %617 = vmatprep.subr.bf16.mxu0 0
      %618 = vmatpush2.bf16.msra.mxu0 0
      %619 = vmatprep.subr.bf16.mxu0 0
      %620 = vmatpush2.bf16.msra.mxu0 0
      %621 = vmatprep.subr.bf16.mxu0 0
      %622 = vmatpush2.bf16.msra.mxu0 0
      %623 = vmatprep.subr.bf16.mxu0 0
      %624 = vmatpush2.bf16.msra.mxu0 0
      %625 = vmatprep.subr.bf16.mxu0 0
      %626 = vmatpush2.bf16.msra.mxu0 0
      %627 = vmatprep.subr.bf16.mxu0 0
      %628 = vmatpush2.bf16.msra.mxu0 0
      %629 = vmatprep.subr.bf16.mxu0 0
      %630 = vmatpush2.bf16.msra.mxu0 0
      %631 = vmatprep.subr.bf16.mxu0 0
      %632 = vmatpush2.bf16.msra.mxu0 0
      %633 = vmatprep.mubr.bf16.mxu0 0
      %634 = vmatmul.mubr.bf16.gmra.mxu0 %v599
      %v635 = vpop.f32.mrf.mxu0
      %v636 = vadd.f32 0.0, %v635
      %v637 = vpop.f32.mrf.mxu0
      %v638 = vpop.f32.mrf.mxu0
      %v639 = vadd.f32 0.0, %v638
      %v640 = vpop.f32.mrf.mxu0
      %641 = vdwg.mxu0
      %v642 = vadd.f32 %v475, %v636
      %v643 = vadd.f32 %v478, %v639
      %v648 = vcombine.low %v181, %v182
      %v649 = vcombine.low %v183, %v184
      %v651 = vunpack.c.l.s4 1983009808
      %v652 = vunpack.c.0.s8 %v651
      %v653 = vlaneseq
      %v654 = vshrl.u32 %v653, 7
      %v655 = vsub.s32 %v652, %v654
      %v656 = vrot.slane %v648, %v655
      %v658 = vunpack.c.l.s4 1983009808
      %v659 = vunpack.c.0.s8 %v658
      %v660 = vlaneseq
      %v661 = vshrl.u32 %v660, 7
      %v662 = vsub.s32 %v659, %v661
      %v663 = vrot.slane %v649, %v662
      %v664 = vcombine.low %v656, %v663
      %v669 = vunpack.c.l.b16 %v207
      %v670 = vunpack.c.l.b16 %v208
      %v671 = vunpack.c.l.b16 %v209
      %v672 = vunpack.c.l.b16 %v210
      %v673 = vpack.c.b16 %v670, %v669
      %v674 = vpack.c.b16 %v672, %v671
      %v678 = vsel %vm359, %v664, 0
      %680 = vmatprep.subr.bf16.mxu0 0
      %681 = vmatpush1.bf16.msra.mxu0 0
      %682 = vmatprep.subr.bf16.mxu0 0
      %683 = vmatpush1.bf16.msra.mxu0 0
      %684 = vmatprep.subr.bf16.mxu0 0
      %685 = vmatpush1.bf16.msra.mxu0 0
      %686 = vmatprep.subr.bf16.mxu0 0
      %687 = vmatpush1.bf16.msra.mxu0 0
      %688 = vmatprep.subr.bf16.mxu0 0
      %689 = vmatpush1.bf16.msra.mxu0 0
      %690 = vmatprep.subr.bf16.mxu0 0
      %691 = vmatpush1.bf16.msra.mxu0 0
      %692 = vmatprep.subr.bf16.mxu0 0
      %693 = vmatpush1.bf16.msra.mxu0 %v674
      %694 = vmatprep.subr.bf16.mxu0 0
      %695 = vmatpush1.bf16.msra.mxu0 %v673
      %696 = vmatprep.subr.bf16.mxu0 0
      %697 = vmatpush2.bf16.msra.mxu0 0
      %698 = vmatprep.subr.bf16.mxu0 0
      %699 = vmatpush2.bf16.msra.mxu0 0
      %700 = vmatprep.subr.bf16.mxu0 0
      %701 = vmatpush2.bf16.msra.mxu0 0
      %702 = vmatprep.subr.bf16.mxu0 0
      %703 = vmatpush2.bf16.msra.mxu0 0
      %704 = vmatprep.subr.bf16.mxu0 0
      %705 = vmatpush2.bf16.msra.mxu0 0
      %706 = vmatprep.subr.bf16.mxu0 0
      %707 = vmatpush2.bf16.msra.mxu0 0
      %708 = vmatprep.subr.bf16.mxu0 0
      %709 = vmatpush2.bf16.msra.mxu0 0
      %710 = vmatprep.subr.bf16.mxu0 0
      %711 = vmatpush2.bf16.msra.mxu0 0
      %712 = vmatprep.mubr.bf16.mxu0 0
      %713 = vmatmul.mubr.bf16.gmra.mxu0 %v678
      %v714 = vpop.f32.mrf.mxu0
      %v715 = vadd.f32 0.0, %v714
      %v716 = vpop.f32.mrf.mxu0
      %v717 = vpop.f32.mrf.mxu0
      %v718 = vadd.f32 0.0, %v717
      %v719 = vpop.f32.mrf.mxu0
      %720 = vdwg.mxu0
      %v721 = vadd.f32 %v642, %v715
      %v722 = vadd.f32 %v643, %v718
      %v728 = vunpack.c.l.s4 1983009808
      %v729 = vunpack.c.0.s8 %v728
      %v730 = vlaneseq
      %v731 = vshrl.u32 %v730, 7
      %v732 = vsub.s32 %v729, %v731
      %v733 = vrot.slane %v177, %v732
      %v734 = vcombine.high %v733, %v733
      %v736 = vunpack.c.l.s4 1983009808
      %v737 = vunpack.c.0.s8 %v736
      %v738 = vlaneseq
      %v739 = vshrl.u32 %v738, 7
      %v740 = vsub.s32 %v737, %v739
      %v741 = vrot.slane %v178, %v740
      %v742 = vcombine.high %v741, %v741
      %v744 = vunpack.c.l.s4 1983009808
      %v745 = vunpack.c.0.s8 %v744
      %v746 = vlaneseq
      %v747 = vshrl.u32 %v746, 7
      %v748 = vsub.s32 %v745, %v747
      %v749 = vrot.slane %v179, %v748
      %v750 = vcombine.high %v749, %v749
      %v752 = vunpack.c.l.s4 1983009808
      %v753 = vunpack.c.0.s8 %v752
      %v754 = vlaneseq
      %v755 = vshrl.u32 %v754, 7
      %v756 = vsub.s32 %v753, %v755
      %v757 = vrot.slane %v180, %v756
      %v758 = vcombine.high %v757, %v757
      %v760 = vshrl.u32 %v733, 16
      %v762 = vrot.slane %v760, 6
      %v763 = vshll.u32 %v733, 16
      %v765 = vrot.slane %v763, 7
      %v766 = vor.u32 %v762, %v765
      %v767 = vrot.slane %v766, 2
      %v769 = vshll.u32 %v734, 16
      %v771 = vrot.slane %v769, 7
      %v772 = vsel %vm273, %v767, %v771
      %v774 = vshrl.u32 %v741, 16
      %v776 = vrot.slane %v774, 6
      %v777 = vshll.u32 %v741, 16
      %v779 = vrot.slane %v777, 7
      %v780 = vor.u32 %v776, %v779
      %v781 = vrot.slane %v780, 2
      %v783 = vshll.u32 %v742, 16
      %v785 = vrot.slane %v783, 7
      %v786 = vsel %vm273, %v781, %v785
      %v788 = vshrl.u32 %v749, 16
      %v790 = vrot.slane %v788, 6
      %v791 = vshll.u32 %v749, 16
      %v793 = vrot.slane %v791, 7
      %v794 = vor.u32 %v790, %v793
      %v795 = vrot.slane %v794, 2
      %v797 = vshll.u32 %v750, 16
      %v799 = vrot.slane %v797, 7
      %v800 = vsel %vm273, %v795, %v799
      %v802 = vshrl.u32 %v757, 16
      %v804 = vrot.slane %v802, 6
      %v805 = vshll.u32 %v757, 16
      %v807 = vrot.slane %v805, 7
      %v808 = vor.u32 %v804, %v807
      %v809 = vrot.slane %v808, 2
      %v811 = vshll.u32 %v758, 16
      %v813 = vrot.slane %v811, 7
      %v814 = vsel %vm273, %v809, %v813
      %v815 = vcombine.low %v772, %v786
      %v816 = vcombine.low %v800, %v814
      %v818 = vunpack.c.l.s4 1983009808
      %v819 = vunpack.c.0.s8 %v818
      %v820 = vlaneseq
      %v821 = vshrl.u32 %v820, 7
      %v822 = vsub.s32 %v819, %v821
      %v823 = vrot.slane %v815, %v822
      %v825 = vunpack.c.l.s4 1983009808
      %v826 = vunpack.c.0.s8 %v825
      %v827 = vlaneseq
      %v828 = vshrl.u32 %v827, 7
      %v829 = vsub.s32 %v826, %v828
      %v830 = vrot.slane %v816, %v829
      %v831 = vcombine.low %v823, %v830
      %v836 = vunpack.c.l.b16 %v211
      %v837 = vunpack.c.l.b16 %v212
      %v838 = vunpack.c.l.b16 %v213
      %v839 = vunpack.c.l.b16 %v214
      %v840 = vpack.c.b16 %v837, %v836
      %v841 = vpack.c.b16 %v839, %v838
      %v845 = vsel %vm359, %v831, 0
      %847 = vmatprep.subr.bf16.mxu0 0
      %848 = vmatpush1.bf16.msra.mxu0 0
      %849 = vmatprep.subr.bf16.mxu0 0
      %850 = vmatpush1.bf16.msra.mxu0 0
      %851 = vmatprep.subr.bf16.mxu0 0
      %852 = vmatpush1.bf16.msra.mxu0 0
      %853 = vmatprep.subr.bf16.mxu0 0
      %854 = vmatpush1.bf16.msra.mxu0 0
      %855 = vmatprep.subr.bf16.mxu0 0
      %856 = vmatpush1.bf16.msra.mxu0 0
      %857 = vmatprep.subr.bf16.mxu0 0
      %858 = vmatpush1.bf16.msra.mxu0 0
      %859 = vmatprep.subr.bf16.mxu0 0
      %860 = vmatpush1.bf16.msra.mxu0 %v841
      %861 = vmatprep.subr.bf16.mxu0 0
      %862 = vmatpush1.bf16.msra.mxu0 %v840
      %863 = vmatprep.subr.bf16.mxu0 0
      %864 = vmatpush2.bf16.msra.mxu0 0
      %865 = vmatprep.subr.bf16.mxu0 0
      %866 = vmatpush2.bf16.msra.mxu0 0
      %867 = vmatprep.subr.bf16.mxu0 0
      %868 = vmatpush2.bf16.msra.mxu0 0
      %869 = vmatprep.subr.bf16.mxu0 0
      %870 = vmatpush2.bf16.msra.mxu0 0
      %871 = vmatprep.subr.bf16.mxu0 0
      %872 = vmatpush2.bf16.msra.mxu0 0
      %873 = vmatprep.subr.bf16.mxu0 0
      %874 = vmatpush2.bf16.msra.mxu0 0
      %875 = vmatprep.subr.bf16.mxu0 0
      %876 = vmatpush2.bf16.msra.mxu0 0
      %877 = vmatprep.subr.bf16.mxu0 0
      %878 = vmatpush2.bf16.msra.mxu0 0
      %879 = vmatprep.mubr.bf16.mxu0 0
      %880 = vmatmul.mubr.bf16.gmra.mxu0 %v845
      %v881 = vpop.f32.mrf.mxu0
      %v882 = vadd.f32 0.0, %v881
      %v883 = vpop.f32.mrf.mxu0
      %v884 = vpop.f32.mrf.mxu0
      %v885 = vadd.f32 0.0, %v884
      %v886 = vpop.f32.mrf.mxu0
      %887 = vdwg.mxu0
      %v888 = vadd.f32 %v721, %v882
      %v889 = vadd.f32 %v722, %v885
      %v891 = vunpack.c.l.s4 1983009808
      %v892 = vunpack.c.0.s8 %v891
      %v893 = vlaneseq
      %v894 = vshrl.u32 %v893, 7
      %v895 = vsub.s32 %v892, %v894
      %v896 = vrot.slane %v181, %v895
      %v897 = vcombine.high %v896, %v896
      %v899 = vunpack.c.l.s4 1983009808
      %v900 = vunpack.c.0.s8 %v899
      %v901 = vlaneseq
      %v902 = vshrl.u32 %v901, 7
      %v903 = vsub.s32 %v900, %v902
      %v904 = vrot.slane %v182, %v903
      %v905 = vcombine.high %v904, %v904
      %v907 = vunpack.c.l.s4 1983009808
      %v908 = vunpack.c.0.s8 %v907
      %v909 = vlaneseq
      %v910 = vshrl.u32 %v909, 7
      %v911 = vsub.s32 %v908, %v910
      %v912 = vrot.slane %v183, %v911
      %v913 = vcombine.high %v912, %v912
      %v915 = vunpack.c.l.s4 1983009808
      %v916 = vunpack.c.0.s8 %v915
      %v917 = vlaneseq
      %v918 = vshrl.u32 %v917, 7
      %v919 = vsub.s32 %v916, %v918
      %v920 = vrot.slane %v184, %v919
      %v921 = vcombine.high %v920, %v920
      %v923 = vshrl.u32 %v896, 16
      %v925 = vrot.slane %v923, 6
      %v926 = vshll.u32 %v896, 16
      %v928 = vrot.slane %v926, 7
      %v929 = vor.u32 %v925, %v928
      %v930 = vrot.slane %v929, 2
      %v932 = vshll.u32 %v897, 16
      %v934 = vrot.slane %v932, 7
      %v935 = vsel %vm273, %v930, %v934
      %v937 = vshrl.u32 %v904, 16
      %v939 = vrot.slane %v937, 6
      %v940 = vshll.u32 %v904, 16
      %v942 = vrot.slane %v940, 7
      %v943 = vor.u32 %v939, %v942
      %v944 = vrot.slane %v943, 2
      %v946 = vshll.u32 %v905, 16
      %v948 = vrot.slane %v946, 7
      %v949 = vsel %vm273, %v944, %v948
      %v951 = vshrl.u32 %v912, 16
      %v953 = vrot.slane %v951, 6
      %v954 = vshll.u32 %v912, 16
      %v956 = vrot.slane %v954, 7
      %v957 = vor.u32 %v953, %v956
      %v958 = vrot.slane %v957, 2
      %v960 = vshll.u32 %v913, 16
      %v962 = vrot.slane %v960, 7
      %v963 = vsel %vm273, %v958, %v962
      %v965 = vshrl.u32 %v920, 16
      %v967 = vrot.slane %v965, 6
      %v968 = vshll.u32 %v920, 16
      %v970 = vrot.slane %v968, 7
      %v971 = vor.u32 %v967, %v970
      %v972 = vrot.slane %v971, 2
      %v974 = vshll.u32 %v921, 16
      %v976 = vrot.slane %v974, 7
      %v977 = vsel %vm273, %v972, %v976
      %v978 = vcombine.low %v935, %v949
      %v979 = vcombine.low %v963, %v977
      %v981 = vunpack.c.l.s4 1983009808
      %v982 = vunpack.c.0.s8 %v981
      %v983 = vlaneseq
      %v984 = vshrl.u32 %v983, 7
      %v985 = vsub.s32 %v982, %v984
      %v986 = vrot.slane %v978, %v985
      %v988 = vunpack.c.l.s4 1983009808
      %v989 = vunpack.c.0.s8 %v988
      %v990 = vlaneseq
      %v991 = vshrl.u32 %v990, 7
      %v992 = vsub.s32 %v989, %v991
      %v993 = vrot.slane %v979, %v992
      %v994 = vcombine.low %v986, %v993
      %v999 = vunpack.c.l.b16 %v215
      %v1000 = vunpack.c.l.b16 %v216
      %v1001 = vunpack.c.l.b16 %v217
      %v1002 = vunpack.c.l.b16 %v218
      %v1003 = vpack.c.b16 %v1000, %v999
      %v1004 = vpack.c.b16 %v1002, %v1001
      %v1008 = vsel %vm359, %v994, 0
      %1010 = vmatprep.subr.bf16.mxu0 0
      %1011 = vmatpush1.bf16.msra.mxu0 0
      %1012 = vmatprep.subr.bf16.mxu0 0
      %1013 = vmatpush1.bf16.msra.mxu0 0
      %1014 = vmatprep.subr.bf16.mxu0 0
      %1015 = vmatpush1.bf16.msra.mxu0 0
      %1016 = vmatprep.subr.bf16.mxu0 0
      %1017 = vmatpush1.bf16.msra.mxu0 0
      %1018 = vmatprep.subr.bf16.mxu0 0
      %1019 = vmatpush1.bf16.msra.mxu0 0
      %1020 = vmatprep.subr.bf16.mxu0 0
      %1021 = vmatpush1.bf16.msra.mxu0 0
      %1022 = vmatprep.subr.bf16.mxu0 0
      %1023 = vmatpush1.bf16.msra.mxu0 %v1004
      %1024 = vmatprep.subr.bf16.mxu0 0
      %1025 = vmatpush1.bf16.msra.mxu0 %v1003
      %1026 = vmatprep.subr.bf16.mxu0 0
      %1027 = vmatpush2.bf16.msra.mxu0 0
      %1028 = vmatprep.subr.bf16.mxu0 0
      %1029 = vmatpush2.bf16.msra.mxu0 0
      %1030 = vmatprep.subr.bf16.mxu0 0
      %1031 = vmatpush2.bf16.msra.mxu0 0
      %1032 = vmatprep.subr.bf16.mxu0 0
      %1033 = vmatpush2.bf16.msra.mxu0 0
      %1034 = vmatprep.subr.bf16.mxu0 0
      %1035 = vmatpush2.bf16.msra.mxu0 0
      %1036 = vmatprep.subr.bf16.mxu0 0
      %1037 = vmatpush2.bf16.msra.mxu0 0
      %1038 = vmatprep.subr.bf16.mxu0 0
      %1039 = vmatpush2.bf16.msra.mxu0 0
      %1040 = vmatprep.subr.bf16.mxu0 0
      %1041 = vmatpush2.bf16.msra.mxu0 0
      %1042 = vmatprep.mubr.bf16.mxu0 0
      %1043 = vmatmul.mubr.bf16.gmra.mxu0 %v1008
      %v1044 = vpop.f32.mrf.mxu0
      %v1045 = vadd.f32 0.0, %v1044
      %v1046 = vpop.f32.mrf.mxu0
      %v1047 = vpop.f32.mrf.mxu0
      %v1048 = vadd.f32 0.0, %v1047
      %v1049 = vpop.f32.mrf.mxu0
      %1050 = vdwg.mxu0
      %v1051 = vadd.f32 %v888, %v1045
      %v1052 = vadd.f32 %v889, %v1048
      %v1054 = vcombine.low %v191, %v192
      %v1055 = vcombine.low %v193, %v194
      %v1057 = vunpack.c.l.s4 1983009808
      %v1058 = vunpack.c.0.s8 %v1057
      %v1059 = vlaneseq
      %v1060 = vshrl.u32 %v1059, 7
      %v1061 = vsub.s32 %v1058, %v1060
      %v1062 = vrot.slane %v1054, %v1061
      %v1064 = vunpack.c.l.s4 1983009808
      %v1065 = vunpack.c.0.s8 %v1064
      %v1066 = vlaneseq
      %v1067 = vshrl.u32 %v1066, 7
      %v1068 = vsub.s32 %v1065, %v1067
      %v1069 = vrot.slane %v1055, %v1068
      %v1070 = vcombine.low %v1062, %v1069
      %v1075 = vunpack.c.l.b16 %v219
      %v1076 = vunpack.c.l.b16 %v220
      %v1077 = vunpack.c.l.b16 %v221
      %v1078 = vunpack.c.l.b16 %v222
      %v1079 = vpack.c.b16 %v1076, %v1075
      %v1080 = vpack.c.b16 %v1078, %v1077
      %v1084 = vsel %vm359, %v1070, 0
      %1086 = vmatprep.subr.bf16.mxu0 0
      %1087 = vmatpush1.bf16.msra.mxu0 0
      %1088 = vmatprep.subr.bf16.mxu0 0
      %1089 = vmatpush1.bf16.msra.mxu0 0
      %1090 = vmatprep.subr.bf16.mxu0 0
      %1091 = vmatpush1.bf16.msra.mxu0 0
      %1092 = vmatprep.subr.bf16.mxu0 0
      %1093 = vmatpush1.bf16.msra.mxu0 0
      %1094 = vmatprep.subr.bf16.mxu0 0
      %1095 = vmatpush1.bf16.msra.mxu0 0
      %1096 = vmatprep.subr.bf16.mxu0 0
      %1097 = vmatpush1.bf16.msra.mxu0 0
      %1098 = vmatprep.subr.bf16.mxu0 0
      %1099 = vmatpush1.bf16.msra.mxu0 %v1080
      %1100 = vmatprep.subr.bf16.mxu0 0
      %1101 = vmatpush1.bf16.msra.mxu0 %v1079
      %1102 = vmatprep.subr.bf16.mxu0 0
      %1103 = vmatpush2.bf16.msra.mxu0 0
      %1104 = vmatprep.subr.bf16.mxu0 0
      %1105 = vmatpush2.bf16.msra.mxu0 0
      %1106 = vmatprep.subr.bf16.mxu0 0
      %1107 = vmatpush2.bf16.msra.mxu0 0
      %1108 = vmatprep.subr.bf16.mxu0 0
      %1109 = vmatpush2.bf16.msra.mxu0 0
      %1110 = vmatprep.subr.bf16.mxu0 0
      %1111 = vmatpush2.bf16.msra.mxu0 0
      %1112 = vmatprep.subr.bf16.mxu0 0
      %1113 = vmatpush2.bf16.msra.mxu0 0
      %1114 = vmatprep.subr.bf16.mxu0 0
      %1115 = vmatpush2.bf16.msra.mxu0 0
      %1116 = vmatprep.subr.bf16.mxu0 0
      %1117 = vmatpush2.bf16.msra.mxu0 0
      %1118 = vmatprep.mubr.bf16.mxu0 0
      %1119 = vmatmul.mubr.bf16.gmra.mxu0 %v1084
      %v1120 = vpop.f32.mrf.mxu0
      %v1121 = vadd.f32 0.0, %v1120
      %v1122 = vpop.f32.mrf.mxu0
      %v1123 = vpop.f32.mrf.mxu0
      %v1124 = vadd.f32 0.0, %v1123
      %v1125 = vpop.f32.mrf.mxu0
      %1126 = vdwg.mxu0
      %v1127 = vadd.f32 %v1051, %v1121
      %v1128 = vadd.f32 %v1052, %v1124
      %v1131 = vunpack.c.l.s4 1983009808
      %v1132 = vunpack.c.0.s8 %v1131
      %v1133 = vlaneseq
      %v1134 = vshrl.u32 %v1133, 7
      %v1135 = vsub.s32 %v1132, %v1134
      %v1136 = vrot.slane %v189, %v1135
      %v1137 = vcombine.high %v1136, %v1136
      %v1139 = vshrl.u32 %v1136, 16
      %v1141 = vrot.slane %v1139, 6
      %v1142 = vshll.u32 %v1136, 16
      %v1144 = vrot.slane %v1142, 7
      %v1145 = vor.u32 %v1141, %v1144
      %v1146 = vrot.slane %v1145, 2
      %v1148 = vshll.u32 %v1137, 16
      %v1150 = vrot.slane %v1148, 7
      %v1151 = vsel %vm273, %v1146, %v1150
      %v1152 = vcombine.low %v301, %v315
      %v1153 = vcombine.low %v329, %v1151
      %v1155 = vunpack.c.l.s4 1983009808
      %v1156 = vunpack.c.0.s8 %v1155
      %v1157 = vlaneseq
      %v1158 = vshrl.u32 %v1157, 7
      %v1159 = vsub.s32 %v1156, %v1158
      %v1160 = vrot.slane %v1152, %v1159
      %v1162 = vunpack.c.l.s4 1983009808
      %v1163 = vunpack.c.0.s8 %v1162
      %v1164 = vlaneseq
      %v1165 = vshrl.u32 %v1164, 7
      %v1166 = vsub.s32 %v1163, %v1165
      %v1167 = vrot.slane %v1153, %v1166
      %v1168 = vcombine.low %v1160, %v1167
      %v1173 = vunpack.c.l.b16 %v223
      %v1174 = vunpack.c.l.b16 %v224
      %v1175 = vunpack.c.l.b16 %v225
      %v1176 = vunpack.c.l.b16 %v226
      %v1177 = vpack.c.b16 %v1174, %v1173
      %v1178 = vpack.c.b16 %v1176, %v1175
      %v1182 = vsel %vm359, %v1168, 0
      %1184 = vmatprep.subr.bf16.mxu0 0
      %1185 = vmatpush1.bf16.msra.mxu0 0
      %1186 = vmatprep.subr.bf16.mxu0 0
      %1187 = vmatpush1.bf16.msra.mxu0 0
      %1188 = vmatprep.subr.bf16.mxu0 0
      %1189 = vmatpush1.bf16.msra.mxu0 0
      %1190 = vmatprep.subr.bf16.mxu0 0
      %1191 = vmatpush1.bf16.msra.mxu0 0
      %1192 = vmatprep.subr.bf16.mxu0 0
      %1193 = vmatpush1.bf16.msra.mxu0 0
      %1194 = vmatprep.subr.bf16.mxu0 0
      %1195 = vmatpush1.bf16.msra.mxu0 0
      %1196 = vmatprep.subr.bf16.mxu0 0
      %1197 = vmatpush1.bf16.msra.mxu0 %v1178
      %1198 = vmatprep.subr.bf16.mxu0 0
      %1199 = vmatpush1.bf16.msra.mxu0 %v1177
      %1200 = vmatprep.subr.bf16.mxu0 0
      %1201 = vmatpush2.bf16.msra.mxu0 0
      %1202 = vmatprep.subr.bf16.mxu0 0
      %1203 = vmatpush2.bf16.msra.mxu0 0
      %1204 = vmatprep.subr.bf16.mxu0 0
      %1205 = vmatpush2.bf16.msra.mxu0 0
      %1206 = vmatprep.subr.bf16.mxu0 0
      %1207 = vmatpush2.bf16.msra.mxu0 0
      %1208 = vmatprep.subr.bf16.mxu0 0
      %1209 = vmatpush2.bf16.msra.mxu0 0
      %1210 = vmatprep.subr.bf16.mxu0 0
      %1211 = vmatpush2.bf16.msra.mxu0 0
      %1212 = vmatprep.subr.bf16.mxu0 0
      %1213 = vmatpush2.bf16.msra.mxu0 0
      %1214 = vmatprep.subr.bf16.mxu0 0
      %1215 = vmatpush2.bf16.msra.mxu0 0
      %1216 = vmatprep.mubr.bf16.mxu0 0
      %1217 = vmatmul.mubr.bf16.gmra.mxu0 %v1182
      %v1218 = vpop.f32.mrf.mxu0
      %v1219 = vadd.f32 0.0, %v1218
      %v1220 = vpop.f32.mrf.mxu0
      %v1221 = vpop.f32.mrf.mxu0
      %v1222 = vadd.f32 0.0, %v1221
      %v1223 = vpop.f32.mrf.mxu0
      %1224 = vdwg.mxu0
      %v1225 = vadd.f32 %v1127, %v1219
      %v1226 = vadd.f32 %v1128, %v1222
      %v1228 = vunpack.c.l.s4 1983009808
      %v1229 = vunpack.c.0.s8 %v1228
      %v1230 = vlaneseq
      %v1231 = vshrl.u32 %v1230, 7
      %v1232 = vsub.s32 %v1229, %v1231
      %v1233 = vrot.slane %v194, %v1232
      %v1234 = vcombine.high %v1233, %v1233
      %v1236 = vshrl.u32 %v1233, 16
      %v1238 = vrot.slane %v1236, 6
      %v1239 = vshll.u32 %v1233, 16
      %v1241 = vrot.slane %v1239, 7
      %v1242 = vor.u32 %v1238, %v1241
      %v1243 = vrot.slane %v1242, 2
      %v1245 = vshll.u32 %v1234, 16
      %v1247 = vrot.slane %v1245, 7
      %v1248 = vsel %vm273, %v1243, %v1247
      %v1249 = vcombine.low %v540, %v554
      %v1250 = vcombine.low %v568, %v1248
      %v1252 = vunpack.c.l.s4 1983009808
      %v1253 = vunpack.c.0.s8 %v1252
      %v1254 = vlaneseq
      %v1255 = vshrl.u32 %v1254, 7
      %v1256 = vsub.s32 %v1253, %v1255
      %v1257 = vrot.slane %v1249, %v1256
      %v1259 = vunpack.c.l.s4 1983009808
      %v1260 = vunpack.c.0.s8 %v1259
      %v1261 = vlaneseq
      %v1262 = vshrl.u32 %v1261, 7
      %v1263 = vsub.s32 %v1260, %v1262
      %v1264 = vrot.slane %v1250, %v1263
      %v1265 = vcombine.low %v1257, %v1264
      %v1270 = vunpack.c.l.b16 %v227
      %v1271 = vunpack.c.l.b16 %v228
      %v1272 = vunpack.c.l.b16 %v229
      %v1273 = vunpack.c.l.b16 %v230
      %v1274 = vpack.c.b16 %v1271, %v1270
      %v1275 = vpack.c.b16 %v1273, %v1272
      %v1279 = vsel %vm359, %v1265, 0
      %1281 = vmatprep.subr.bf16.mxu0 0
      %1282 = vmatpush1.bf16.msra.mxu0 0
      %1283 = vmatprep.subr.bf16.mxu0 0
      %1284 = vmatpush1.bf16.msra.mxu0 0
      %1285 = vmatprep.subr.bf16.mxu0 0
      %1286 = vmatpush1.bf16.msra.mxu0 0
      %1287 = vmatprep.subr.bf16.mxu0 0
      %1288 = vmatpush1.bf16.msra.mxu0 0
      %1289 = vmatprep.subr.bf16.mxu0 0
      %1290 = vmatpush1.bf16.msra.mxu0 0
      %1291 = vmatprep.subr.bf16.mxu0 0
      %1292 = vmatpush1.bf16.msra.mxu0 0
      %1293 = vmatprep.subr.bf16.mxu0 0
      %1294 = vmatpush1.bf16.msra.mxu0 %v1275
      %1295 = vmatprep.subr.bf16.mxu0 0
      %1296 = vmatpush1.bf16.msra.mxu0 %v1274
      %1297 = vmatprep.subr.bf16.mxu0 0
      %1298 = vmatpush2.bf16.msra.mxu0 0
      %1299 = vmatprep.subr.bf16.mxu0 0
      %1300 = vmatpush2.bf16.msra.mxu0 0
      %1301 = vmatprep.subr.bf16.mxu0 0
      %1302 = vmatpush2.bf16.msra.mxu0 0
      %1303 = vmatprep.subr.bf16.mxu0 0
      %1304 = vmatpush2.bf16.msra.mxu0 0
      %1305 = vmatprep.subr.bf16.mxu0 0
      %1306 = vmatpush2.bf16.msra.mxu0 0
      %1307 = vmatprep.subr.bf16.mxu0 0
      %1308 = vmatpush2.bf16.msra.mxu0 0
      %1309 = vmatprep.subr.bf16.mxu0 0
      %1310 = vmatpush2.bf16.msra.mxu0 0
      %1311 = vmatprep.subr.bf16.mxu0 0
      %1312 = vmatpush2.bf16.msra.mxu0 0
      %1313 = vmatprep.mubr.bf16.mxu0 0
      %1314 = vmatmul.mubr.bf16.gmra.mxu0 %v1279
      %v1315 = vpop.f32.mrf.mxu0
      %v1316 = vadd.f32 0.0, %v1315
      %v1317 = vpop.f32.mrf.mxu0
      %v1318 = vpop.f32.mrf.mxu0
      %v1319 = vadd.f32 0.0, %v1318
      %v1320 = vpop.f32.mrf.mxu0
      %1321 = vdwg.mxu0
      %v1322 = vadd.f32 %v1225, %v1316
      %v1323 = vadd.f32 %v1226, %v1319
      %v1324 = vld [vmem:[%s2] sm:$0x1]
      %v1326 = vlaneseq
      %v1327 = vshrl.u32 %v1326, 7
      %v1328 = vsub.s32 0, %v1327
      %v1329 = vrot.slane %v1324, %v1328
      %v1331 = vadd.f32 %v1322, %v1329
      %v1332 = vadd.f32 %v1323, %v1329
      %v1333 = vmax.f32 %v1331, 0.0
      %v1334 = vmax.f32 %v1332, 0.0
      %v1337 = vcombine.high %v1333, %v1333
      %v1338 = vcombine.high %v1334, %v1334
      %v1341 = vpack.c.bf16 %v1333, %v1333
      %v1342 = vpack.c.bf16 %v1337, %v1337
      %v1343 = vpack.c.bf16 %v1334, %v1334
      %v1344 = vpack.c.bf16 %v1338, %v1338
      %vm1345 = vcmask 517120
      %1346 = vst.msk [vmem:[%s175] sm:$0x3] %vm1345, %v1341
      %1347 = vst.msk [vmem:[%s175 + $0x2] sm:$0x3] %vm1345, %v1342
      %1348 = vst.msk [vmem:[%s175 + $0x4] sm:$0x3] %vm1345, %v1343
      %1349 = vst.msk [vmem:[%s175 + $0x6] sm:$0x3] %vm1345, %v1344
      %p1350 = scmp.lt.s32.totalorder %s14, 1
      %s1351 = scalar_select %p1350, %s14, 1
      %s1352 = smul.addr %s1351, 4
      %s1353 = smul.addr %s1352, 2
      %s1354 = scalar_lea.vmem %s3, %s1353
      // Predicated region
      $region33: #{forward.7} parent=31 // pred_check
        %p1355 = pneg %p100
      $region34: #{forward.7} parent=31 // pred_check_branch
        %1357 = sbr.rel (%p1355) target = $region36
      $region35: #{forward.7} parent=31 // pred_region
        _
      $region36: #{forward.7} parent=31 // pred_fallthru
        _
    $region32: #{forward.7} parent=5 // pred_fallthru
      _
    %p1358 = scmp.le.s32.totalorder 2, %s9
    // Predicated region
    $region37: #{forward.7} parent=5 // pred_check
      %p1359 = pneg %p1358
    $region38: #{forward.7} parent=5 // pred_check_branch
      %1361 = sbr.rel (%p1359) target = $region40
    $region39: #{forward.7} parent=5 // pred_region
      %s1362 = ssub.s32 %s9, 2
      // Predicated region
      $region41: #{forward.7} parent=39 // pred_check
        %p1363 = pneg %p106
      $region42: #{forward.7} parent=39 // pred_check_branch
        %1365 = sbr.rel (%p1363) target = $region44
      $region43: #{forward.7} parent=39 // pred_region
        %p1366 = scmp.lt.s32.totalorder %s15, 1
        %s1367 = scalar_select %p1366, %s15, 1
        %s1368 = smul.addr %s1367, 4
        %s1369 = smul.addr %s1368, 2
        %s1370 = scalar_lea.vmem %s3, %s1369
      $region44: #{forward.7} parent=39 // pred_fallthru
        _
    $region40: #{forward.7} parent=5 // pred_fallthru
      _
  $region6: #{forward.7} parent=0 // loop_footer
    %s13 = sadd.s32 1, %s9
  $region7: #{forward.7} parent=0 // loop_footer_branch
    %8 = sbr.rel target = $region3
  $region8: #{forward.7} parent=0 // loop_exit
    _

// kernel: forward.6
$region0: #{forward.6}
  #allocation0 [shape = 'u32[]', space=smem, size = 0x4, offset = 0x4, fixed_abs, tag = 'smem constant byte address 0x4 - core index']
  #allocation1 [shape = 'u32[144,128]{1,0:T(1,128)}', space=vmem, size = 0x12000, scoped, tag = 'internal scratch']
  %s0 = inlined_call_operand.vmem [shape: bf16[8,9,9,3], index: 0, kind: input, shape index: {}]
  %s1 = inlined_call_operand.vmem [shape: bf16[9,3,32], index: 1, kind: input, shape index: {}]
  %s2 = inlined_call_operand.vmem [shape: f32[1,32], index: 2, kind: input, shape index: {}]
  %s3 = inlined_call_operand.vmem [shape: bf16[2,8,8,32], index: 3, kind: output, shape index: {}]
  %s4 = sld [smem:[#allocation0]]
  $region45: #{forward.6} parent=0
    _
  %s6 = ssub.s32 1, %s4
  %s7 = scalar_select 0, %s6, %s4
  loop: start=0, step=1, limit=4
  $region2: #{forward.6} parent=0 // loop_pre_header
    _
  $region3: #{forward.6} parent=0 // loop_header
    %s9 = sphi 0, %s13
    %p10 = scmp.ge.s32.totalorder %s9, 4
    %s19 = sphi 0, %s21
    %s22 = sphi 0, %s19
    %s23 = sphi 0, %s22
    %s39 = sphi 0, %s23
    %s43 = sphi 0, %s43
    %s45 = sphi 0, %s43
    %s46 = sphi 0, %s45
    %s60 = sphi 0, %s46
    %s64 = sphi 0, %s64
    %s66 = sphi 0, %s64
    %s67 = sphi 0, %s66
    %s81 = sphi 0, %s67
    %s87 = sphi 0, %s89
    %s90 = sphi 0, %s87
    %s91 = sphi 0, %s90
    %s107 = sphi 0, %s91
  $region4: #{forward.6} parent=0 // loop_header_branch
    %12 = sbr.rel (%p10) target = $region8
  $region5: #{forward.6} parent=0 // loop_body
    %s14 = ssub.s32 %s9, 1
    %s15 = ssub.s32 %s9, 2
    %s16 = sadd.s32 %s9, 1
    %s17 = ssub.s32 %s9, %s16
    %p18 = scmp.eq.s32.totalorder %s17, 0
    %s20 = sadd.s32 %s19, 1
    %s21 = scalar_select %p18, %s19, %s20
    %p24 = pneg %p18
    %p25 = scmp.eq.s32.totalorder %s9, 1
    %p26 = por %p24, %p25
    %p27 = scmp.ne.s32.totalorder %s19, %s22
    %p28 = scmp.eq.s32.totalorder %s9, 0
    %p29 = por %p27, %p28
    %p30 = scmp.ne.s32.totalorder %s19, %s22
    %p31 = scmp.eq.s32.totalorder %s14, 1
    %p32 = por %p30, %p31
    %p33 = scmp.ne.s32.totalorder %s22, %s23
    %p34 = scmp.eq.s32.totalorder %s14, 0
    %p35 = por %p33, %p34
    %p36 = scmp.ne.s32.totalorder %s22, %s23
    %p37 = scmp.eq.s32.totalorder %s15, 1
    %p38 = por %p36, %p37
    %p40 = scmp.ne.s32.totalorder %s23, %s39
    %p41 = scmp.eq.s32.totalorder %s15, 0
    %p42 = por %p40, %p41
    %s44 = sadd.s32 %s43, 1
    %p47 = scmp.eq.s32.totalorder %s9, 1
    %p48 = scmp.ne.s32.totalorder %s43, %s45
    %p49 = scmp.eq.s32.totalorder %s9, 0
    %p50 = por %p48, %p49
    %p51 = scmp.ne.s32.totalorder %s43, %s45
    %p52 = scmp.eq.s32.totalorder %s14, 1
    %p53 = por %p51, %p52
    %p54 = scmp.ne.s32.totalorder %s45, %s46
    %p55 = scmp.eq.s32.totalorder %s14, 0
    %p56 = por %p54, %p55
    %p57 = scmp.ne.s32.totalorder %s45, %s46
    %p58 = scmp.eq.s32.totalorder %s15, 1
    %p59 = por %p57, %p58
    %p61 = scmp.ne.s32.totalorder %s46, %s60
    %p62 = scmp.eq.s32.totalorder %s15, 0
    %p63 = por %p61, %p62
    %s65 = sadd.s32 %s64, 1
    %p68 = scmp.eq.s32.totalorder %s9, 1
    %p69 = scmp.ne.s32.totalorder %s64, %s66
    %p70 = scmp.eq.s32.totalorder %s9, 0
    %p71 = por %p69, %p70
    %p72 = scmp.ne.s32.totalorder %s64, %s66
    %p73 = scmp.eq.s32.totalorder %s14, 1
    %p74 = por %p72, %p73
    %p75 = scmp.ne.s32.totalorder %s66, %s67
    %p76 = scmp.eq.s32.totalorder %s14, 0
    %p77 = por %p75, %p76
    %p78 = scmp.ne.s32.totalorder %s66, %s67
    %p79 = scmp.eq.s32.totalorder %s15, 1
    %p80 = por %p78, %p79
    %p82 = scmp.ne.s32.totalorder %s67, %s81
    %p83 = scmp.eq.s32.totalorder %s15, 0
    %p84 = por %p82, %p83
    %s85 = ssub.s32 %s9, %s16
    %p86 = scmp.eq.s32.totalorder %s85, 0
    %s88 = sadd.s32 %s87, 1
    %s89 = scalar_select %p86, %s87, %s88
    %p92 = pneg %p86
    %p93 = scmp.eq.s32.totalorder %s9, 1
    %p94 = por %p92, %p93
    %p95 = scmp.ne.s32.totalorder %s87, %s90
    %p96 = scmp.eq.s32.totalorder %s9, 0
    %p97 = por %p95, %p96
    %p98 = scmp.ne.s32.totalorder %s87, %s90
    %p99 = scmp.eq.s32.totalorder %s14, 1
    %p100 = por %p98, %p99
    %p101 = scmp.ne.s32.totalorder %s90, %s91
    %p102 = scmp.eq.s32.totalorder %s14, 0
    %p103 = por %p101, %p102
    %p104 = scmp.ne.s32.totalorder %s90, %s91
    %p105 = scmp.eq.s32.totalorder %s15, 1
    %p106 = por %p104, %p105
    %p108 = scmp.ne.s32.totalorder %s91, %s107
    %p109 = scmp.eq.s32.totalorder %s15, 0
    %p110 = por %p108, %p109
    %p111 = scmp.le.s32.totalorder 1, %s9
    %p112 = scmp.lt.s32.totalorder %s9, 3
    %p113 = pnand %p111, %p112
    %p114 = pneg %p113
    // Predicated region
    $region9: #{forward.6} parent=5 // pred_check
      _
    $region10: #{forward.6} parent=5 // pred_check_branch
      %116 = sbr.rel (%p113) target = $region12
    $region11: #{forward.6} parent=5 // pred_region
      %s117 = ssub.s32 %s9, 1
      // Predicated region
      $region13: #{forward.6} parent=11 // pred_check
        %p118 = pneg %p56
      $region14: #{forward.6} parent=11 // pred_check_branch
        %120 = sbr.rel (%p118) target = $region16
      $region15: #{forward.6} parent=11 // pred_region
        _
      $region16: #{forward.6} parent=11 // pred_fallthru
        _
      // Predicated region
      $region17: #{forward.6} parent=11 // pred_check
        %p121 = pneg %p77
      $region18: #{forward.6} parent=11 // pred_check_branch
        %123 = sbr.rel (%p121) target = $region20
      $region19: #{forward.6} parent=11 // pred_region
        _
      $region20: #{forward.6} parent=11 // pred_fallthru
        _
    $region12: #{forward.6} parent=5 // pred_fallthru
      _
    %p124 = scmp.lt.s32.totalorder %s9, 2
    // Predicated region
    $region21: #{forward.6} parent=5 // pred_check
      %p125 = pneg %p124
    $region22: #{forward.6} parent=5 // pred_check_branch
      %127 = sbr.rel (%p125) target = $region24
    $region23: #{forward.6} parent=5 // pred_region
      // Predicated region
      $region25: #{forward.6} parent=23 // pred_check
        %p128 = pneg %p29
      $region26: #{forward.6} parent=23 // pred_check_branch
        %130 = sbr.rel (%p128) target = $region28
      $region27: #{forward.6} parent=23 // pred_region
        %s131 = smul.u32 4, %s9
        %p132 = scmp.lt.s32.totalorder %s131, 7
        %s133 = scalar_select %p132, %s131, 7
        %s134 = smul.addr %s133, 18
        %s135 = smul.addr %s134, 4
        %s136 = scalar_lea.vmem %s0, %s135
        %s137 = smul.u32 4, %s9
      $region28: #{forward.6} parent=23 // pred_fallthru
        _
    $region24: #{forward.6} parent=5 // pred_fallthru
      _
    %p138 = scmp.le.s32.totalorder 1, %s9
    %p139 = scmp.lt.s32.totalorder %s9, 3
    %p140 = pnand %p138, %p139
    %p141 = pneg %p140
    // Predicated region
    $region29: #{forward.6} parent=5 // pred_check
      _
    $region30: #{forward.6} parent=5 // pred_check_branch
      %143 = sbr.rel (%p140) target = $region32
    $region31: #{forward.6} parent=5 // pred_region
      %s144 = ssub.s32 %s9, 1
      %s145 = smul.u32 4, %s14
      %p146 = scmp.lt.s32.totalorder %s145, 7
      %s147 = scalar_select %p146, %s145, 7
      %s148 = smul.addr %s147, 18
      %s149 = smul.addr %s148, 4
      %s150 = scalar_lea.vmem %s0, %s149
      %p151 = pneg %p35
      %p152 = pneg %p32
      %p153 = pneg %p56
      %p154 = pneg %p53
      %p155 = pneg %p77
      %p156 = pneg %p74
      %p157 = pneg %p103
      %p158 = pneg %p100
      %p159 = scmp.lt.s32.totalorder %s14, 1
      %s160 = scalar_select %p159, %s14, 1
      %s161 = smul.addr %s160, 8
      %s162 = smul.addr %s161, 4
      %s163 = scalar_lea.vmem %s3, %s162
      %s164 = smul.u32 4, %s14
      %p165 = scmp.lt.s32.totalorder %s164, 7
      %s166 = scalar_select %p165, %s164, 7
      %s167 = smul.addr %s166, 18
      %s168 = smul.addr %s167, 4
      %s169 = scalar_lea.vmem %s0, %s168
      %s170 = smul.u32 4, %s14
      %p171 = scmp.lt.s32.totalorder %s14, 1
      %s172 = scalar_select %p171, %s14, 1
      %s173 = smul.addr %s172, 8
      %s174 = smul.addr %s173, 4
      %s175 = scalar_lea.vmem %s3, %s174
      %v177 = vld [vmem:[%s169 + $0x8] sm:$0xf]
      %v178 = vld [vmem:[%s169 + $0xc] sm:$0x1]
      %v179 = vld [vmem:[%s169 + $0x10] sm:$0xf]
      %v180 = vld [vmem:[%s169 + $0x14] sm:$0x1]
      %v181 = vld [vmem:[%s169 + $0x18] sm:$0xf]
      %v182 = vld [vmem:[%s169 + $0x1c] sm:$0x1]
      %v183 = vld [vmem:[%s169 + $0x20] sm:$0xf]
      %v184 = vld [vmem:[%s169 + $0x24] sm:$0x1]
      %v185 = vld [vmem:[%s169 + $0x28] sm:$0xf]
      %v186 = vld [vmem:[%s169 + $0x2c] sm:$0x1]
      %v187 = vld [vmem:[%s169 + $0x30] sm:$0xf]
      %v188 = vld [vmem:[%s169 + $0x34] sm:$0x1]
      %v189 = vld [vmem:[%s169 + $0x38] sm:$0xf]
      %v190 = vld [vmem:[%s169 + $0x3c] sm:$0x1]
      %v191 = vld [vmem:[%s169 + $0x40] sm:$0xf]
      %v192 = vld [vmem:[%s169 + $0x44] sm:$0x1]
      %v193 = vld [vmem:[%s169 + $0x50] sm:$0xf]
      %v194 = vld [vmem:[%s169 + $0x54] sm:$0x1]
      %v195 = vld [vmem:[%s169 + $0x58] sm:$0xf]
      %v196 = vld [vmem:[%s169 + $0x5c] sm:$0x1]
      %v197 = vld [vmem:[%s169 + $0x60] sm:$0xf]
      %v198 = vld [vmem:[%s169 + $0x64] sm:$0x1]
      %v199 = vld [vmem:[%s169 + $0x68] sm:$0xf]
      %v200 = vld [vmem:[%s169 + $0x6c] sm:$0x1]
      %v201 = vld [vmem:[%s169 + $0x70] sm:$0xf]
      %v202 = vld [vmem:[%s169 + $0x74] sm:$0x1]
      %v203 = vld [vmem:[%s169 + $0x78] sm:$0xf]
      %v204 = vld [vmem:[%s169 + $0x7c] sm:$0x1]
      %v205 = vld [vmem:[%s169 + $0x80] sm:$0xf]
      %v206 = vld [vmem:[%s169 + $0x84] sm:$0x1]
      %v207 = vld [vmem:[%s169 + $0x88] sm:$0xf]
      %v208 = vld [vmem:[%s169 + $0x8c] sm:$0x1]
      %v209 = vld [vmem:[%s169 + $0x90] sm:$0xf]
      %v210 = vld [vmem:[%s169 + $0x94] sm:$0x1]
      %v211 = vld [vmem:[%s169 + $0x98] sm:$0xf]
      %v212 = vld [vmem:[%s169 + $0x9c] sm:$0x1]
      %v213 = vld [vmem:[%s169 + $0xa0] sm:$0xf]
      %v214 = vld [vmem:[%s169 + $0xa4] sm:$0x1]
      %v215 = vld [vmem:[%s169 + $0xa8] sm:$0xf]
      %v216 = vld [vmem:[%s169 + $0xac] sm:$0x1]
      %v217 = vld [vmem:[%s169 + $0xb0] sm:$0xf]
      %v218 = vld [vmem:[%s169 + $0xb4] sm:$0x1]
      %v219 = vld [vmem:[%s169 + $0xb8] sm:$0xf]
      %v220 = vld [vmem:[%s169 + $0xbc] sm:$0x1]
      %v221 = vld [vmem:[%s169 + $0xc0] sm:$0xf]
      %v222 = vld [vmem:[%s169 + $0xc4] sm:$0x1]
      %v223 = vld [vmem:[%s169 + $0xc8] sm:$0xf]
      %v224 = vld [vmem:[%s169 + $0xcc] sm:$0x1]
      %v225 = vld [vmem:[%s169 + $0xd0] sm:$0xf]
      %v226 = vld [vmem:[%s169 + $0xd4] sm:$0x1]
      %v227 = vld [vmem:[%s169 + $0xd8] sm:$0xf]
      %v228 = vld [vmem:[%s169 + $0xdc] sm:$0x1]
      %v229 = vld [vmem:[%s169 + $0xe0] sm:$0xf]
      %v230 = vld [vmem:[%s169 + $0xe4] sm:$0x1]
      %v231 = vld [vmem:[%s169 + $0xe8] sm:$0xf]
      %v232 = vld [vmem:[%s169 + $0xec] sm:$0x1]
      %v233 = vld [vmem:[%s169 + $0xf0] sm:$0xf]
      %v234 = vld [vmem:[%s169 + $0xf4] sm:$0x1]
      %v235 = vld [vmem:[%s169 + $0xf8] sm:$0xf]
      %v236 = vld [vmem:[%s169 + $0xfc] sm:$0x1]
      %v237 = vld [vmem:[%s169 + $0x100] sm:$0xf]
      %v238 = vld [vmem:[%s169 + $0x104] sm:$0x1]
      %v239 = vld [vmem:[%s169 + $0x108] sm:$0xf]
      %v240 = vld [vmem:[%s169 + $0x10c] sm:$0x1]
      %v241 = vld [vmem:[%s169 + $0x110] sm:$0xf]
      %v242 = vld [vmem:[%s169 + $0x114] sm:$0x1]
      %v243 = vld [vmem:[%s169 + $0x118] sm:$0xf]
      %v244 = vld [vmem:[%s169 + $0x11c] sm:$0x1]
      %v245 = vld [vmem:[%s1] sm:$0x3]
      %v246 = vld [vmem:[%s1 + $0x2] sm:$0x3]
      %v247 = vld [vmem:[%s1 + $0x4] sm:$0x3]
      %v248 = vld [vmem:[%s1 + $0x6] sm:$0x3]
      %v249 = vld [vmem:[%s1 + $0x8] sm:$0x3]
      %v250 = vld [vmem:[%s1 + $0xa] sm:$0x3]
      %v251 = vld [vmem:[%s1 + $0xc] sm:$0x3]
      %v252 = vld [vmem:[%s1 + $0xe] sm:$0x3]
      %v253 = vld [vmem:[%s1 + $0x10] sm:$0x3]
      %vm254 = vsmask.f32 3328
      %vm255 = vsmask.f32 7440
      %vm256 = vmor %vm254, %vm255
      %v258 = vshrl.u32 %v209, 16
      %v260 = vrot.slane %v258, 4
      %v261 = vshll.u32 %v209, 16
      %v263 = vrot.slane %v261, 5
      %v264 = vor.u32 %v260, %v263
      %v265 = vrot.slane %v264, 4
      %v267 = vshll.u32 %v210, 16
      %v269 = vrot.slane %v267, 5
      %v270 = vsel %vm256, %v265, %v269
      %v272 = vshrl.u32 %v211, 16
      %v274 = vrot.slane %v272, 4
      %v275 = vshll.u32 %v211, 16
      %v277 = vrot.slane %v275, 5
      %v278 = vor.u32 %v274, %v277
      %v279 = vrot.slane %v278, 4
      %v281 = vshll.u32 %v212, 16
      %v283 = vrot.slane %v281, 5
      %v284 = vsel %vm256, %v279, %v283
      %v286 = vshrl.u32 %v213, 16
      %v288 = vrot.slane %v286, 4
      %v289 = vshll.u32 %v213, 16
      %v291 = vrot.slane %v289, 5
      %v292 = vor.u32 %v288, %v291
      %v293 = vrot.slane %v292, 4
      %v295 = vshll.u32 %v214, 16
      %v297 = vrot.slane %v295, 5
      %v298 = vsel %vm256, %v293, %v297
      %v300 = vshrl.u32 %v215, 16
      %v302 = vrot.slane %v300, 4
      %v303 = vshll.u32 %v215, 16
      %v305 = vrot.slane %v303, 5
      %v306 = vor.u32 %v302, %v305
      %v307 = vrot.slane %v306, 4
      %v309 = vshll.u32 %v216, 16
      %v311 = vrot.slane %v309, 5
      %v312 = vsel %vm256, %v307, %v311
      %v314 = vshrl.u32 %v217, 16
      %v316 = vrot.slane %v314, 4
      %v317 = vshll.u32 %v217, 16
      %v319 = vrot.slane %v317, 5
      %v320 = vor.u32 %v316, %v319
      %v321 = vrot.slane %v320, 4
      %v323 = vshll.u32 %v218, 16
      %v325 = vrot.slane %v323, 5
      %v326 = vsel %vm256, %v321, %v325
      %v328 = vshrl.u32 %v219, 16
      %v330 = vrot.slane %v328, 4
      %v331 = vshll.u32 %v219, 16
      %v333 = vrot.slane %v331, 5
      %v334 = vor.u32 %v330, %v333
      %v335 = vrot.slane %v334, 4
      %v337 = vshll.u32 %v220, 16
      %v339 = vrot.slane %v337, 5
      %v340 = vsel %vm256, %v335, %v339
      %v342 = vshrl.u32 %v221, 16
      %v344 = vrot.slane %v342, 4
      %v345 = vshll.u32 %v221, 16
      %v347 = vrot.slane %v345, 5
      %v348 = vor.u32 %v344, %v347
      %v349 = vrot.slane %v348, 4
      %v351 = vshll.u32 %v222, 16
      %v353 = vrot.slane %v351, 5
      %v354 = vsel %vm256, %v349, %v353
      %v356 = vshrl.u32 %v223, 16
      %v358 = vrot.slane %v356, 4
      %v359 = vshll.u32 %v223, 16
      %v361 = vrot.slane %v359, 5
      %v362 = vor.u32 %v358, %v361
      %v363 = vrot.slane %v362, 4
      %v365 = vshll.u32 %v224, 16
      %v367 = vrot.slane %v365, 5
      %v368 = vsel %vm256, %v363, %v367
      %v369 = vunpack.c.l.b16 %v270
      %v370 = vunpack.c.l.b16 %v284
      %v371 = vunpack.c.l.b16 %v298
      %v372 = vunpack.c.l.b16 %v312
      %v373 = vunpack.c.l.b16 %v326
      %v374 = vunpack.c.l.b16 %v340
      %v375 = vunpack.c.l.b16 %v354
      %v376 = vunpack.c.l.b16 %v368
      %v377 = vpack.c.b16 %v370, %v369
      %v378 = vpack.c.b16 %v372, %v371
      %v379 = vpack.c.b16 %v374, %v373
      %v380 = vpack.c.b16 %v376, %v375
      %vm381 = vcmask 23552
      %v383 = vsel %vm381, %v377, 0
      %v386 = vsel %vm381, %v378, 0
      %v389 = vsel %vm381, %v379, 0
      %v392 = vsel %vm381, %v380, 0
      %vm394 = vcmask 1040384
      %vm395 = vcmask 1041408
      %v396 = vsel %vm394, 4294967295, 65535
      %v397 = vsel %vm395, %v396, 0
      %v399 = vand.u32 %v246, %v397
      %401 = vmatprep.subr.bf16.mxu0 0
      %402 = vmatpush1.bf16.msra.mxu0 0
      %403 = vmatprep.subr.bf16.mxu0 0
      %404 = vmatpush1.bf16.msra.mxu0 0
      %405 = vmatprep.subr.bf16.mxu0 0
      %406 = vmatpush1.bf16.msra.mxu0 0
      %407 = vmatprep.subr.bf16.mxu0 0
      %408 = vmatpush1.bf16.msra.mxu0 0
      %409 = vmatprep.subr.bf16.mxu0 0
      %410 = vmatpush1.bf16.msra.mxu0 0
      %411 = vmatprep.subr.bf16.mxu0 0
      %412 = vmatpush1.bf16.msra.mxu0 0
      %413 = vmatprep.subr.bf16.mxu0 0
      %414 = vmatpush1.bf16.msra.mxu0 0
      %415 = vmatprep.subr.bf16.mxu0 0
      %416 = vmatpush1.bf16.msra.mxu0 %v399
      %417 = vmatprep.subr.bf16.mxu0 0
      %418 = vmatpush2.bf16.msra.mxu0 0
      %419 = vmatprep.subr.bf16.mxu0 0
      %420 = vmatpush2.bf16.msra.mxu0 0
      %421 = vmatprep.subr.bf16.mxu0 0
      %422 = vmatpush2.bf16.msra.mxu0 0
      %423 = vmatprep.subr.bf16.mxu0 0
      %424 = vmatpush2.bf16.msra.mxu0 0
      %425 = vmatprep.subr.bf16.mxu0 0
      %426 = vmatpush2.bf16.msra.mxu0 0
      %427 = vmatprep.subr.bf16.mxu0 0
      %428 = vmatpush2.bf16.msra.mxu0 0
      %429 = vmatprep.subr.bf16.mxu0 0
      %430 = vmatpush2.bf16.msra.mxu0 0
      %431 = vmatprep.subr.bf16.mxu0 0
      %432 = vmatpush2.bf16.msra.mxu0 0
      %433 = vmatprep.mubr.bf16.mxu0 0
      %434 = vmatmul.mubr.bf16.gmra.mxu0 %v383
      %v435 = vpop.f32.mrf.mxu0
      %v436 = vadd.f32 0.0, %v435
      %v437 = vpop.f32.mrf.mxu0
      %v438 = vpop.f32.mrf.mxu0
      %v439 = vadd.f32 0.0, %v438
      %v440 = vpop.f32.mrf.mxu0
      %441 = vmatprep.mubr.bf16.mxu0 0
      %442 = vmatmul.mubr.bf16.gmra.mxu0 %v386
      %v443 = vpop.f32.mrf.mxu0
      %v444 = vadd.f32 0.0, %v443
      %v445 = vpop.f32.mrf.mxu0
      %v446 = vpop.f32.mrf.mxu0
      %v447 = vadd.f32 0.0, %v446
      %v448 = vpop.f32.mrf.mxu0
      %449 = vmatprep.mubr.bf16.mxu0 0
      %450 = vmatmul.mubr.bf16.gmra.mxu0 %v389
      %v451 = vpop.f32.mrf.mxu0
      %v452 = vadd.f32 0.0, %v451
      %v453 = vpop.f32.mrf.mxu0
      %v454 = vpop.f32.mrf.mxu0
      %v455 = vadd.f32 0.0, %v454
      %v456 = vpop.f32.mrf.mxu0
      %457 = vmatprep.mubr.bf16.mxu0 0
      %458 = vmatmul.mubr.bf16.gmra.mxu0 %v392
      %v459 = vpop.f32.mrf.mxu0
      %v460 = vadd.f32 0.0, %v459
      %v461 = vpop.f32.mrf.mxu0
      %v462 = vpop.f32.mrf.mxu0
      %v463 = vadd.f32 0.0, %v462
      %v464 = vpop.f32.mrf.mxu0
      %465 = vdwg.mxu0
      %v474 = vunpack.c.l.b16 %v227
      %v475 = vunpack.c.l.b16 %v229
      %v476 = vunpack.c.l.b16 %v231
      %v477 = vunpack.c.l.b16 %v233
      %v478 = vunpack.c.l.b16 %v235
      %v479 = vunpack.c.l.b16 %v237
      %v480 = vunpack.c.l.b16 %v239
      %v481 = vunpack.c.l.b16 %v241
      %v482 = vpack.c.b16 %v475, %v474
      %v483 = vpack.c.b16 %v477, %v476
      %v484 = vpack.c.b16 %v479, %v478
      %v485 = vpack.c.b16 %v481, %v480
      %v487 = vsel %vm381, %v482, 0
      %v490 = vsel %vm381, %v483, 0
      %v493 = vsel %vm381, %v484, 0
      %v496 = vsel %vm381, %v485, 0
      %v499 = vand.u32 %v245, %v397
      %501 = vmatprep.subr.bf16.mxu0 0
      %502 = vmatpush1.bf16.msra.mxu0 0
      %503 = vmatprep.subr.bf16.mxu0 0
      %504 = vmatpush1.bf16.msra.mxu0 0
      %505 = vmatprep.subr.bf16.mxu0 0
      %506 = vmatpush1.bf16.msra.mxu0 0
      %507 = vmatprep.subr.bf16.mxu0 0
      %508 = vmatpush1.bf16.msra.mxu0 0
      %509 = vmatprep.subr.bf16.mxu0 0
      %510 = vmatpush1.bf16.msra.mxu0 0
      %511 = vmatprep.subr.bf16.mxu0 0
      %512 = vmatpush1.bf16.msra.mxu0 0
      %513 = vmatprep.subr.bf16.mxu0 0
      %514 = vmatpush1.bf16.msra.mxu0 0
      %515 = vmatprep.subr.bf16.mxu0 0
      %516 = vmatpush1.bf16.msra.mxu0 %v499
      %517 = vmatprep.subr.bf16.mxu0 0
      %518 = vmatpush2.bf16.msra.mxu0 0
      %519 = vmatprep.subr.bf16.mxu0 0
      %520 = vmatpush2.bf16.msra.mxu0 0
      %521 = vmatprep.subr.bf16.mxu0 0
      %522 = vmatpush2.bf16.msra.mxu0 0
      %523 = vmatprep.subr.bf16.mxu0 0
      %524 = vmatpush2.bf16.msra.mxu0 0
      %525 = vmatprep.subr.bf16.mxu0 0
      %526 = vmatpush2.bf16.msra.mxu0 0
      %527 = vmatprep.subr.bf16.mxu0 0
      %528 = vmatpush2.bf16.msra.mxu0 0
      %529 = vmatprep.subr.bf16.mxu0 0
      %530 = vmatpush2.bf16.msra.mxu0 0
      %531 = vmatprep.subr.bf16.mxu0 0
      %532 = vmatpush2.bf16.msra.mxu0 0
      %533 = vmatprep.mubr.bf16.mxu0 0
      %534 = vmatmul.mubr.bf16.gmra.mxu0 %v487
      %v535 = vpop.f32.mrf.mxu0
      %v536 = vadd.f32 %v436, %v535
      %v537 = vpop.f32.mrf.mxu0
      %v538 = vpop.f32.mrf.mxu0
      %v539 = vadd.f32 %v439, %v538
      %v540 = vpop.f32.mrf.mxu0
      %541 = vmatprep.mubr.bf16.mxu0 0
      %542 = vmatmul.mubr.bf16.gmra.mxu0 %v490
      %v543 = vpop.f32.mrf.mxu0
      %v544 = vadd.f32 %v444, %v543
      %v545 = vpop.f32.mrf.mxu0
      %v546 = vpop.f32.mrf.mxu0
      %v547 = vadd.f32 %v447, %v546
      %v548 = vpop.f32.mrf.mxu0
      %549 = vmatprep.mubr.bf16.mxu0 0
      %550 = vmatmul.mubr.bf16.gmra.mxu0 %v493
      %v551 = vpop.f32.mrf.mxu0
      %v552 = vadd.f32 %v452, %v551
      %v553 = vpop.f32.mrf.mxu0
      %v554 = vpop.f32.mrf.mxu0
      %v555 = vadd.f32 %v455, %v554
      %v556 = vpop.f32.mrf.mxu0
      %557 = vmatprep.mubr.bf16.mxu0 0
      %558 = vmatmul.mubr.bf16.gmra.mxu0 %v496
      %v559 = vpop.f32.mrf.mxu0
      %v560 = vadd.f32 %v460, %v559
      %v561 = vpop.f32.mrf.mxu0
      %v562 = vpop.f32.mrf.mxu0
      %v563 = vadd.f32 %v463, %v562
      %v564 = vpop.f32.mrf.mxu0
      %565 = vdwg.mxu0
      %v567 = vshrl.u32 %v227, 16
      %v569 = vrot.slane %v567, 4
      %v570 = vshll.u32 %v227, 16
      %v572 = vrot.slane %v570, 5
      %v573 = vor.u32 %v569, %v572
      %v574 = vrot.slane %v573, 4
      %v576 = vshll.u32 %v228, 16
      %v578 = vrot.slane %v576, 5
      %v579 = vsel %vm256, %v574, %v578
      %v581 = vshrl.u32 %v229, 16
      %v583 = vrot.slane %v581, 4
      %v584 = vshll.u32 %v229, 16
      %v586 = vrot.slane %v584, 5
      %v587 = vor.u32 %v583, %v586
      %v588 = vrot.slane %v587, 4
      %v590 = vshll.u32 %v230, 16
      %v592 = vrot.slane %v590, 5
      %v593 = vsel %vm256, %v588, %v592
      %v595 = vshrl.u32 %v231, 16
      %v597 = vrot.slane %v595, 4
      %v598 = vshll.u32 %v231, 16
      %v600 = vrot.slane %v598, 5
      %v601 = vor.u32 %v597, %v600
      %v602 = vrot.slane %v601, 4
      %v604 = vshll.u32 %v232, 16
      %v606 = vrot.slane %v604, 5
      %v607 = vsel %vm256, %v602, %v606
      %v609 = vshrl.u32 %v233, 16
      %v611 = vrot.slane %v609, 4
      %v612 = vshll.u32 %v233, 16
      %v614 = vrot.slane %v612, 5
      %v615 = vor.u32 %v611, %v614
      %v616 = vrot.slane %v615, 4
      %v618 = vshll.u32 %v234, 16
      %v620 = vrot.slane %v618, 5
      %v621 = vsel %vm256, %v616, %v620
      %v623 = vshrl.u32 %v235, 16
      %v625 = vrot.slane %v623, 4
      %v626 = vshll.u32 %v235, 16
      %v628 = vrot.slane %v626, 5
      %v629 = vor.u32 %v625, %v628
      %v630 = vrot.slane %v629, 4
      %v632 = vshll.u32 %v236, 16
      %v634 = vrot.slane %v632, 5
      %v635 = vsel %vm256, %v630, %v634
      %v637 = vshrl.u32 %v237, 16
      %v639 = vrot.slane %v637, 4
      %v640 = vshll.u32 %v237, 16
      %v642 = vrot.slane %v640, 5
      %v643 = vor.u32 %v639, %v642
      %v644 = vrot.slane %v643, 4
      %v646 = vshll.u32 %v238, 16
      %v648 = vrot.slane %v646, 5
      %v649 = vsel %vm256, %v644, %v648
      %v651 = vshrl.u32 %v239, 16
      %v653 = vrot.slane %v651, 4
      %v654 = vshll.u32 %v239, 16
      %v656 = vrot.slane %v654, 5
      %v657 = vor.u32 %v653, %v656
      %v658 = vrot.slane %v657, 4
      %v660 = vshll.u32 %v240, 16
      %v662 = vrot.slane %v660, 5
      %v663 = vsel %vm256, %v658, %v662
      %v665 = vshrl.u32 %v241, 16
      %v667 = vrot.slane %v665, 4
      %v668 = vshll.u32 %v241, 16
      %v670 = vrot.slane %v668, 5
      %v671 = vor.u32 %v667, %v670
      %v672 = vrot.slane %v671, 4
      %v674 = vshll.u32 %v242, 16
      %v676 = vrot.slane %v674, 5
      %v677 = vsel %vm256, %v672, %v676
      %v678 = vunpack.c.l.b16 %v579
      %v679 = vunpack.c.l.b16 %v593
      %v680 = vunpack.c.l.b16 %v607
      %v681 = vunpack.c.l.b16 %v621
      %v682 = vunpack.c.l.b16 %v635
      %v683 = vunpack.c.l.b16 %v649
      %v684 = vunpack.c.l.b16 %v663
      %v685 = vunpack.c.l.b16 %v677
      %v686 = vpack.c.b16 %v679, %v678
      %v687 = vpack.c.b16 %v681, %v680
      %v688 = vpack.c.b16 %v683, %v682
      %v689 = vpack.c.b16 %v685, %v684
      %v691 = vsel %vm381, %v686, 0
      %v694 = vsel %vm381, %v687, 0
      %v697 = vsel %vm381, %v688, 0
      %v700 = vsel %vm381, %v689, 0
      %v703 = vand.u32 %v247, %v397
      %705 = vmatprep.subr.bf16.mxu0 0
      %706 = vmatpush1.bf16.msra.mxu0 0
      %707 = vmatprep.subr.bf16.mxu0 0
      %708 = vmatpush1.bf16.msra.mxu0 0
      %709 = vmatprep.subr.bf16.mxu0 0
      %710 = vmatpush1.bf16.msra.mxu0 0
      %711 = vmatprep.subr.bf16.mxu0 0
      %712 = vmatpush1.bf16.msra.mxu0 0
      %713 = vmatprep.subr.bf16.mxu0 0
      %714 = vmatpush1.bf16.msra.mxu0 0
      %715 = vmatprep.subr.bf16.mxu0 0
      %716 = vmatpush1.bf16.msra.mxu0 0
      %717 = vmatprep.subr.bf16.mxu0 0
      %718 = vmatpush1.bf16.msra.mxu0 0
      %719 = vmatprep.subr.bf16.mxu0 0
      %720 = vmatpush1.bf16.msra.mxu0 %v703
      %721 = vmatprep.subr.bf16.mxu0 0
      %722 = vmatpush2.bf16.msra.mxu0 0
      %723 = vmatprep.subr.bf16.mxu0 0
      %724 = vmatpush2.bf16.msra.mxu0 0
      %725 = vmatprep.subr.bf16.mxu0 0
      %726 = vmatpush2.bf16.msra.mxu0 0
      %727 = vmatprep.subr.bf16.mxu0 0
      %728 = vmatpush2.bf16.msra.mxu0 0
      %729 = vmatprep.subr.bf16.mxu0 0
      %730 = vmatpush2.bf16.msra.mxu0 0
      %731 = vmatprep.subr.bf16.mxu0 0
      %732 = vmatpush2.bf16.msra.mxu0 0
      %733 = vmatprep.subr.bf16.mxu0 0
      %734 = vmatpush2.bf16.msra.mxu0 0
      %735 = vmatprep.subr.bf16.mxu0 0
      %736 = vmatpush2.bf16.msra.mxu0 0
      %737 = vmatprep.mubr.bf16.mxu0 0
      %738 = vmatmul.mubr.bf16.gmra.mxu0 %v691
      %v739 = vpop.f32.mrf.mxu0
      %v740 = vadd.f32 0.0, %v739
      %v741 = vpop.f32.mrf.mxu0
      %v742 = vpop.f32.mrf.mxu0
      %v743 = vadd.f32 0.0, %v742
      %v744 = vpop.f32.mrf.mxu0
      %745 = vmatprep.mubr.bf16.mxu0 0
      %746 = vmatmul.mubr.bf16.gmra.mxu0 %v694
      %v747 = vpop.f32.mrf.mxu0
      %v748 = vadd.f32 0.0, %v747
      %v749 = vpop.f32.mrf.mxu0
      %v750 = vpop.f32.mrf.mxu0
      %v751 = vadd.f32 0.0, %v750
      %v752 = vpop.f32.mrf.mxu0
      %753 = vmatprep.mubr.bf16.mxu0 0
      %754 = vmatmul.mubr.bf16.gmra.mxu0 %v697
      %v755 = vpop.f32.mrf.mxu0
      %v756 = vadd.f32 0.0, %v755
      %v757 = vpop.f32.mrf.mxu0
      %v758 = vpop.f32.mrf.mxu0
      %v759 = vadd.f32 0.0, %v758
      %v760 = vpop.f32.mrf.mxu0
      %761 = vmatprep.mubr.bf16.mxu0 0
      %762 = vmatmul.mubr.bf16.gmra.mxu0 %v700
      %v763 = vpop.f32.mrf.mxu0
      %v764 = vadd.f32 0.0, %v763
      %v765 = vpop.f32.mrf.mxu0
      %v766 = vpop.f32.mrf.mxu0
      %v767 = vadd.f32 0.0, %v766
      %v768 = vpop.f32.mrf.mxu0
      %769 = vdwg.mxu0
      %v770 = vadd.f32 %v536, %v740
      %v771 = vadd.f32 %v539, %v743
      %v772 = vadd.f32 %v544, %v748
      %v773 = vadd.f32 %v547, %v751
      %v774 = vadd.f32 %v552, %v756
      %v775 = vadd.f32 %v555, %v759
      %v776 = vadd.f32 %v560, %v764
      %v777 = vadd.f32 %v563, %v767
      %v786 = vunpack.c.l.b16 %v193
      %v787 = vunpack.c.l.b16 %v195
      %v788 = vunpack.c.l.b16 %v197
      %v789 = vunpack.c.l.b16 %v199
      %v790 = vunpack.c.l.b16 %v201
      %v791 = vunpack.c.l.b16 %v203
      %v792 = vunpack.c.l.b16 %v205
      %v793 = vunpack.c.l.b16 %v207
      %v794 = vpack.c.b16 %v787, %v786
      %v795 = vpack.c.b16 %v789, %v788
      %v796 = vpack.c.b16 %v791, %v790
      %v797 = vpack.c.b16 %v793, %v792
      %v799 = vsel %vm381, %v794, 0
      %v802 = vsel %vm381, %v795, 0
      %v805 = vsel %vm381, %v796, 0
      %v808 = vsel %vm381, %v797, 0
      %v811 = vand.u32 %v248, %v397
      %813 = vmatprep.subr.bf16.mxu0 0
      %814 = vmatpush1.bf16.msra.mxu0 0
      %815 = vmatprep.subr.bf16.mxu0 0
      %816 = vmatpush1.bf16.msra.mxu0 0
      %817 = vmatprep.subr.bf16.mxu0 0
      %818 = vmatpush1.bf16.msra.mxu0 0
      %819 = vmatprep.subr.bf16.mxu0 0
      %820 = vmatpush1.bf16.msra.mxu0 0
      %821 = vmatprep.subr.bf16.mxu0 0
      %822 = vmatpush1.bf16.msra.mxu0 0
      %823 = vmatprep.subr.bf16.mxu0 0
      %824 = vmatpush1.bf16.msra.mxu0 0
      %825 = vmatprep.subr.bf16.mxu0 0
      %826 = vmatpush1.bf16.msra.mxu0 0
      %827 = vmatprep.subr.bf16.mxu0 0
      %828 = vmatpush1.bf16.msra.mxu0 %v811
      %829 = vmatprep.subr.bf16.mxu0 0
      %830 = vmatpush2.bf16.msra.mxu0 0
      %831 = vmatprep.subr.bf16.mxu0 0
      %832 = vmatpush2.bf16.msra.mxu0 0
      %833 = vmatprep.subr.bf16.mxu0 0
      %834 = vmatpush2.bf16.msra.mxu0 0
      %835 = vmatprep.subr.bf16.mxu0 0
      %836 = vmatpush2.bf16.msra.mxu0 0
      %837 = vmatprep.subr.bf16.mxu0 0
      %838 = vmatpush2.bf16.msra.mxu0 0
      %839 = vmatprep.subr.bf16.mxu0 0
      %840 = vmatpush2.bf16.msra.mxu0 0
      %841 = vmatprep.subr.bf16.mxu0 0
      %842 = vmatpush2.bf16.msra.mxu0 0
      %843 = vmatprep.subr.bf16.mxu0 0
      %844 = vmatpush2.bf16.msra.mxu0 0
      %845 = vmatprep.mubr.bf16.mxu0 0
      %846 = vmatmul.mubr.bf16.gmra.mxu0 %v799
      %v847 = vpop.f32.mrf.mxu0
      %v848 = vadd.f32 0.0, %v847
      %v849 = vpop.f32.mrf.mxu0
      %v850 = vpop.f32.mrf.mxu0
      %v851 = vadd.f32 0.0, %v850
      %v852 = vpop.f32.mrf.mxu0
      %853 = vmatprep.mubr.bf16.mxu0 0
      %854 = vmatmul.mubr.bf16.gmra.mxu0 %v802
      %v855 = vpop.f32.mrf.mxu0
      %v856 = vadd.f32 0.0, %v855
      %v857 = vpop.f32.mrf.mxu0
      %v858 = vpop.f32.mrf.mxu0
      %v859 = vadd.f32 0.0, %v858
      %v860 = vpop.f32.mrf.mxu0
      %861 = vmatprep.mubr.bf16.mxu0 0
      %862 = vmatmul.mubr.bf16.gmra.mxu0 %v805
      %v863 = vpop.f32.mrf.mxu0
      %v864 = vadd.f32 0.0, %v863
      %v865 = vpop.f32.mrf.mxu0
      %v866 = vpop.f32.mrf.mxu0
      %v867 = vadd.f32 0.0, %v866
      %v868 = vpop.f32.mrf.mxu0
      %869 = vmatprep.mubr.bf16.mxu0 0
      %870 = vmatmul.mubr.bf16.gmra.mxu0 %v808
      %v871 = vpop.f32.mrf.mxu0
      %v872 = vadd.f32 0.0, %v871
      %v873 = vpop.f32.mrf.mxu0
      %v874 = vpop.f32.mrf.mxu0
      %v875 = vadd.f32 0.0, %v874
      %v876 = vpop.f32.mrf.mxu0
      %877 = vdwg.mxu0
      %v878 = vadd.f32 %v770, %v848
      %v879 = vadd.f32 %v771, %v851
      %v880 = vadd.f32 %v772, %v856
      %v881 = vadd.f32 %v773, %v859
      %v882 = vadd.f32 %v774, %v864
      %v883 = vadd.f32 %v775, %v867
      %v884 = vadd.f32 %v776, %v872
      %v885 = vadd.f32 %v777, %v875
      %v887 = vshrl.u32 %v177, 16
      %v889 = vrot.slane %v887, 4
      %v890 = vshll.u32 %v177, 16
      %v892 = vrot.slane %v890, 5
      %v893 = vor.u32 %v889, %v892
      %v894 = vrot.slane %v893, 4
      %v896 = vshll.u32 %v178, 16
      %v898 = vrot.slane %v896, 5
      %v899 = vsel %vm256, %v894, %v898
      %v901 = vshrl.u32 %v179, 16
      %v903 = vrot.slane %v901, 4
      %v904 = vshll.u32 %v179, 16
      %v906 = vrot.slane %v904, 5
      %v907 = vor.u32 %v903, %v906
      %v908 = vrot.slane %v907, 4
      %v910 = vshll.u32 %v180, 16
      %v912 = vrot.slane %v910, 5
      %v913 = vsel %vm256, %v908, %v912
      %v915 = vshrl.u32 %v181, 16
      %v917 = vrot.slane %v915, 4
      %v918 = vshll.u32 %v181, 16
      %v920 = vrot.slane %v918, 5
      %v921 = vor.u32 %v917, %v920
      %v922 = vrot.slane %v921, 4
      %v924 = vshll.u32 %v182, 16
      %v926 = vrot.slane %v924, 5
      %v927 = vsel %vm256, %v922, %v926
      %v929 = vshrl.u32 %v183, 16
      %v931 = vrot.slane %v929, 4
      %v932 = vshll.u32 %v183, 16
      %v934 = vrot.slane %v932, 5
      %v935 = vor.u32 %v931, %v934
      %v936 = vrot.slane %v935, 4
      %v938 = vshll.u32 %v184, 16
      %v940 = vrot.slane %v938, 5
      %v941 = vsel %vm256, %v936, %v940
      %v943 = vshrl.u32 %v185, 16
      %v945 = vrot.slane %v943, 4
      %v946 = vshll.u32 %v185, 16
      %v948 = vrot.slane %v946, 5
      %v949 = vor.u32 %v945, %v948
      %v950 = vrot.slane %v949, 4
      %v952 = vshll.u32 %v186, 16
      %v954 = vrot.slane %v952, 5
      %v955 = vsel %vm256, %v950, %v954
      %v957 = vshrl.u32 %v187, 16
      %v959 = vrot.slane %v957, 4
      %v960 = vshll.u32 %v187, 16
      %v962 = vrot.slane %v960, 5
      %v963 = vor.u32 %v959, %v962
      %v964 = vrot.slane %v963, 4
      %v966 = vshll.u32 %v188, 16
      %v968 = vrot.slane %v966, 5
      %v969 = vsel %vm256, %v964, %v968
      %v971 = vshrl.u32 %v189, 16
      %v973 = vrot.slane %v971, 4
      %v974 = vshll.u32 %v189, 16
      %v976 = vrot.slane %v974, 5
      %v977 = vor.u32 %v973, %v976
      %v978 = vrot.slane %v977, 4
      %v980 = vshll.u32 %v190, 16
      %v982 = vrot.slane %v980, 5
      %v983 = vsel %vm256, %v978, %v982
      %v985 = vshrl.u32 %v191, 16
      %v987 = vrot.slane %v985, 4
      %v988 = vshll.u32 %v191, 16
      %v990 = vrot.slane %v988, 5
      %v991 = vor.u32 %v987, %v990
      %v992 = vrot.slane %v991, 4
      %v994 = vshll.u32 %v192, 16
      %v996 = vrot.slane %v994, 5
      %v997 = vsel %vm256, %v992, %v996
      %v998 = vunpack.c.l.b16 %v899
      %v999 = vunpack.c.l.b16 %v913
      %v1000 = vunpack.c.l.b16 %v927
      %v1001 = vunpack.c.l.b16 %v941
      %v1002 = vunpack.c.l.b16 %v955
      %v1003 = vunpack.c.l.b16 %v969
      %v1004 = vunpack.c.l.b16 %v983
      %v1005 = vunpack.c.l.b16 %v997
      %v1006 = vpack.c.b16 %v999, %v998
      %v1007 = vpack.c.b16 %v1001, %v1000
      %v1008 = vpack.c.b16 %v1003, %v1002
      %v1009 = vpack.c.b16 %v1005, %v1004
      %v1011 = vsel %vm381, %v1006, 0
      %v1014 = vsel %vm381, %v1007, 0
      %v1017 = vsel %vm381, %v1008, 0
      %v1020 = vsel %vm381, %v1009, 0
      %v1023 = vand.u32 %v249, %v397
      %1025 = vmatprep.subr.bf16.mxu0 0
      %1026 = vmatpush1.bf16.msra.mxu0 0
      %1027 = vmatprep.subr.bf16.mxu0 0
      %1028 = vmatpush1.bf16.msra.mxu0 0
      %1029 = vmatprep.subr.bf16.mxu0 0
      %1030 = vmatpush1.bf16.msra.mxu0 0
      %1031 = vmatprep.subr.bf16.mxu0 0
      %1032 = vmatpush1.bf16.msra.mxu0 0
      %1033 = vmatprep.subr.bf16.mxu0 0
      %1034 = vmatpush1.bf16.msra.mxu0 0
      %1035 = vmatprep.subr.bf16.mxu0 0
      %1036 = vmatpush1.bf16.msra.mxu0 0
      %1037 = vmatprep.subr.bf16.mxu0 0
      %1038 = vmatpush1.bf16.msra.mxu0 0
      %1039 = vmatprep.subr.bf16.mxu0 0
      %1040 = vmatpush1.bf16.msra.mxu0 %v1023
      %1041 = vmatprep.subr.bf16.mxu0 0
      %1042 = vmatpush2.bf16.msra.mxu0 0
      %1043 = vmatprep.subr.bf16.mxu0 0
      %1044 = vmatpush2.bf16.msra.mxu0 0
      %1045 = vmatprep.subr.bf16.mxu0 0
      %1046 = vmatpush2.bf16.msra.mxu0 0
      %1047 = vmatprep.subr.bf16.mxu0 0
      %1048 = vmatpush2.bf16.msra.mxu0 0
      %1049 = vmatprep.subr.bf16.mxu0 0
      %1050 = vmatpush2.bf16.msra.mxu0 0
      %1051 = vmatprep.subr.bf16.mxu0 0
      %1052 = vmatpush2.bf16.msra.mxu0 0
      %1053 = vmatprep.subr.bf16.mxu0 0
      %1054 = vmatpush2.bf16.msra.mxu0 0
      %1055 = vmatprep.subr.bf16.mxu0 0
      %1056 = vmatpush2.bf16.msra.mxu0 0
      %1057 = vmatprep.mubr.bf16.mxu0 0
      %1058 = vmatmul.mubr.bf16.gmra.mxu0 %v1011
      %v1059 = vpop.f32.mrf.mxu0
      %v1060 = vadd.f32 0.0, %v1059
      %v1061 = vpop.f32.mrf.mxu0
      %v1062 = vpop.f32.mrf.mxu0
      %v1063 = vadd.f32 0.0, %v1062
      %v1064 = vpop.f32.mrf.mxu0
      %1065 = vmatprep.mubr.bf16.mxu0 0
      %1066 = vmatmul.mubr.bf16.gmra.mxu0 %v1014
      %v1067 = vpop.f32.mrf.mxu0
      %v1068 = vadd.f32 0.0, %v1067
      %v1069 = vpop.f32.mrf.mxu0
      %v1070 = vpop.f32.mrf.mxu0
      %v1071 = vadd.f32 0.0, %v1070
      %v1072 = vpop.f32.mrf.mxu0
      %1073 = vmatprep.mubr.bf16.mxu0 0
      %1074 = vmatmul.mubr.bf16.gmra.mxu0 %v1017
      %v1075 = vpop.f32.mrf.mxu0
      %v1076 = vadd.f32 0.0, %v1075
      %v1077 = vpop.f32.mrf.mxu0
      %v1078 = vpop.f32.mrf.mxu0
      %v1079 = vadd.f32 0.0, %v1078
      %v1080 = vpop.f32.mrf.mxu0
      %1081 = vmatprep.mubr.bf16.mxu0 0
      %1082 = vmatmul.mubr.bf16.gmra.mxu0 %v1020
      %v1083 = vpop.f32.mrf.mxu0
      %v1084 = vadd.f32 0.0, %v1083
      %v1085 = vpop.f32.mrf.mxu0
      %v1086 = vpop.f32.mrf.mxu0
      %v1087 = vadd.f32 0.0, %v1086
      %v1088 = vpop.f32.mrf.mxu0
      %1089 = vdwg.mxu0
      %v1090 = vadd.f32 %v878, %v1060
      %v1091 = vadd.f32 %v879, %v1063
      %v1092 = vadd.f32 %v880, %v1068
      %v1093 = vadd.f32 %v881, %v1071
      %v1094 = vadd.f32 %v882, %v1076
      %v1095 = vadd.f32 %v883, %v1079
      %v1096 = vadd.f32 %v884, %v1084
      %v1097 = vadd.f32 %v885, %v1087
      %v1099 = vshrl.u32 %v193, 16
      %v1101 = vrot.slane %v1099, 4
      %v1102 = vshll.u32 %v193, 16
      %v1104 = vrot.slane %v1102, 5
      %v1105 = vor.u32 %v1101, %v1104
      %v1106 = vrot.slane %v1105, 4
      %v1108 = vshll.u32 %v194, 16
      %v1110 = vrot.slane %v1108, 5
      %v1111 = vsel %vm256, %v1106, %v1110
      %v1113 = vshrl.u32 %v195, 16
      %v1115 = vrot.slane %v1113, 4
      %v1116 = vshll.u32 %v195, 16
      %v1118 = vrot.slane %v1116, 5
      %v1119 = vor.u32 %v1115, %v1118
      %v1120 = vrot.slane %v1119, 4
      %v1122 = vshll.u32 %v196, 16
      %v1124 = vrot.slane %v1122, 5
      %v1125 = vsel %vm256, %v1120, %v1124
      %v1127 = vshrl.u32 %v197, 16
      %v1129 = vrot.slane %v1127, 4
      %v1130 = vshll.u32 %v197, 16
      %v1132 = vrot.slane %v1130, 5
      %v1133 = vor.u32 %v1129, %v1132
      %v1134 = vrot.slane %v1133, 4
      %v1136 = vshll.u32 %v198, 16
      %v1138 = vrot.slane %v1136, 5
      %v1139 = vsel %vm256, %v1134, %v1138
      %v1141 = vshrl.u32 %v199, 16
      %v1143 = vrot.slane %v1141, 4
      %v1144 = vshll.u32 %v199, 16
      %v1146 = vrot.slane %v1144, 5
      %v1147 = vor.u32 %v1143, %v1146
      %v1148 = vrot.slane %v1147, 4
      %v1150 = vshll.u32 %v200, 16
      %v1152 = vrot.slane %v1150, 5
      %v1153 = vsel %vm256, %v1148, %v1152
      %v1155 = vshrl.u32 %v201, 16
      %v1157 = vrot.slane %v1155, 4
      %v1158 = vshll.u32 %v201, 16
      %v1160 = vrot.slane %v1158, 5
      %v1161 = vor.u32 %v1157, %v1160
      %v1162 = vrot.slane %v1161, 4
      %v1164 = vshll.u32 %v202, 16
      %v1166 = vrot.slane %v1164, 5
      %v1167 = vsel %vm256, %v1162, %v1166
      %v1169 = vshrl.u32 %v203, 16
      %v1171 = vrot.slane %v1169, 4
      %v1172 = vshll.u32 %v203, 16
      %v1174 = vrot.slane %v1172, 5
      %v1175 = vor.u32 %v1171, %v1174
      %v1176 = vrot.slane %v1175, 4
      %v1178 = vshll.u32 %v204, 16
      %v1180 = vrot.slane %v1178, 5
      %v1181 = vsel %vm256, %v1176, %v1180
      %v1183 = vshrl.u32 %v205, 16
      %v1185 = vrot.slane %v1183, 4
      %v1186 = vshll.u32 %v205, 16
      %v1188 = vrot.slane %v1186, 5
      %v1189 = vor.u32 %v1185, %v1188
      %v1190 = vrot.slane %v1189, 4
      %v1192 = vshll.u32 %v206, 16
      %v1194 = vrot.slane %v1192, 5
      %v1195 = vsel %vm256, %v1190, %v1194
      %v1197 = vshrl.u32 %v207, 16
      %v1199 = vrot.slane %v1197, 4
      %v1200 = vshll.u32 %v207, 16
      %v1202 = vrot.slane %v1200, 5
      %v1203 = vor.u32 %v1199, %v1202
      %v1204 = vrot.slane %v1203, 4
      %v1206 = vshll.u32 %v208, 16
      %v1208 = vrot.slane %v1206, 5
      %v1209 = vsel %vm256, %v1204, %v1208
      %v1210 = vunpack.c.l.b16 %v1111
      %v1211 = vunpack.c.l.b16 %v1125
      %v1212 = vunpack.c.l.b16 %v1139
      %v1213 = vunpack.c.l.b16 %v1153
      %v1214 = vunpack.c.l.b16 %v1167
      %v1215 = vunpack.c.l.b16 %v1181
      %v1216 = vunpack.c.l.b16 %v1195
      %v1217 = vunpack.c.l.b16 %v1209
      %v1218 = vpack.c.b16 %v1211, %v1210
      %v1219 = vpack.c.b16 %v1213, %v1212
      %v1220 = vpack.c.b16 %v1215, %v1214
      %v1221 = vpack.c.b16 %v1217, %v1216
      %v1223 = vsel %vm381, %v1218, 0
      %v1226 = vsel %vm381, %v1219, 0
      %v1229 = vsel %vm381, %v1220, 0
      %v1232 = vsel %vm381, %v1221, 0
      %v1235 = vand.u32 %v250, %v397
      %1237 = vmatprep.subr.bf16.mxu0 0
      %1238 = vmatpush1.bf16.msra.mxu0 0
      %1239 = vmatprep.subr.bf16.mxu0 0
      %1240 = vmatpush1.bf16.msra.mxu0 0
      %1241 = vmatprep.subr.bf16.mxu0 0
      %1242 = vmatpush1.bf16.msra.mxu0 0
      %1243 = vmatprep.subr.bf16.mxu0 0
      %1244 = vmatpush1.bf16.msra.mxu0 0
      %1245 = vmatprep.subr.bf16.mxu0 0
      %1246 = vmatpush1.bf16.msra.mxu0 0
      %1247 = vmatprep.subr.bf16.mxu0 0
      %1248 = vmatpush1.bf16.msra.mxu0 0
      %1249 = vmatprep.subr.bf16.mxu0 0
      %1250 = vmatpush1.bf16.msra.mxu0 0
      %1251 = vmatprep.subr.bf16.mxu0 0
      %1252 = vmatpush1.bf16.msra.mxu0 %v1235
      %1253 = vmatprep.subr.bf16.mxu0 0
      %1254 = vmatpush2.bf16.msra.mxu0 0
      %1255 = vmatprep.subr.bf16.mxu0 0
      %1256 = vmatpush2.bf16.msra.mxu0 0
      %1257 = vmatprep.subr.bf16.mxu0 0
      %1258 = vmatpush2.bf16.msra.mxu0 0
      %1259 = vmatprep.subr.bf16.mxu0 0
      %1260 = vmatpush2.bf16.msra.mxu0 0
      %1261 = vmatprep.subr.bf16.mxu0 0
      %1262 = vmatpush2.bf16.msra.mxu0 0
      %1263 = vmatprep.subr.bf16.mxu0 0
      %1264 = vmatpush2.bf16.msra.mxu0 0
      %1265 = vmatprep.subr.bf16.mxu0 0
      %1266 = vmatpush2.bf16.msra.mxu0 0
      %1267 = vmatprep.subr.bf16.mxu0 0
      %1268 = vmatpush2.bf16.msra.mxu0 0
      %1269 = vmatprep.mubr.bf16.mxu0 0
      %1270 = vmatmul.mubr.bf16.gmra.mxu0 %v1223
      %v1271 = vpop.f32.mrf.mxu0
      %v1272 = vadd.f32 0.0, %v1271
      %v1273 = vpop.f32.mrf.mxu0
      %v1274 = vpop.f32.mrf.mxu0
      %v1275 = vadd.f32 0.0, %v1274
      %v1276 = vpop.f32.mrf.mxu0
      %1277 = vmatprep.mubr.bf16.mxu0 0
      %1278 = vmatmul.mubr.bf16.gmra.mxu0 %v1226
      %v1279 = vpop.f32.mrf.mxu0
      %v1280 = vadd.f32 0.0, %v1279
      %v1281 = vpop.f32.mrf.mxu0
      %v1282 = vpop.f32.mrf.mxu0
      %v1283 = vadd.f32 0.0, %v1282
      %v1284 = vpop.f32.mrf.mxu0
      %1285 = vmatprep.mubr.bf16.mxu0 0
      %1286 = vmatmul.mubr.bf16.gmra.mxu0 %v1229
      %v1287 = vpop.f32.mrf.mxu0
      %v1288 = vadd.f32 0.0, %v1287
      %v1289 = vpop.f32.mrf.mxu0
      %v1290 = vpop.f32.mrf.mxu0
      %v1291 = vadd.f32 0.0, %v1290
      %v1292 = vpop.f32.mrf.mxu0
      %1293 = vmatprep.mubr.bf16.mxu0 0
      %1294 = vmatmul.mubr.bf16.gmra.mxu0 %v1232
      %v1295 = vpop.f32.mrf.mxu0
      %v1296 = vadd.f32 0.0, %v1295
      %v1297 = vpop.f32.mrf.mxu0
      %v1298 = vpop.f32.mrf.mxu0
      %v1299 = vadd.f32 0.0, %v1298
      %v1300 = vpop.f32.mrf.mxu0
      %1301 = vdwg.mxu0
      %v1302 = vadd.f32 %v1090, %v1272
      %v1303 = vadd.f32 %v1091, %v1275
      %v1304 = vadd.f32 %v1092, %v1280
      %v1305 = vadd.f32 %v1093, %v1283
      %v1306 = vadd.f32 %v1094, %v1288
      %v1307 = vadd.f32 %v1095, %v1291
      %v1308 = vadd.f32 %v1096, %v1296
      %v1309 = vadd.f32 %v1097, %v1299
      %v1311 = vunpack.c.l.b16 %v243
      %v1312 = vpack.c.b16 %v476, %v475
      %v1313 = vpack.c.b16 %v478, %v477
      %v1314 = vpack.c.b16 %v480, %v479
      %v1315 = vpack.c.b16 %v1311, %v481
      %v1317 = vsel %vm381, %v1312, 0
      %v1320 = vsel %vm381, %v1313, 0
      %v1323 = vsel %vm381, %v1314, 0
      %v1326 = vsel %vm381, %v1315, 0
      %v1329 = vand.u32 %v251, %v397
      %1331 = vmatprep.subr.bf16.mxu0 0
      %1332 = vmatpush1.bf16.msra.mxu0 0
      %1333 = vmatprep.subr.bf16.mxu0 0
      %1334 = vmatpush1.bf16.msra.mxu0 0
      %1335 = vmatprep.subr.bf16.mxu0 0
      %1336 = vmatpush1.bf16.msra.mxu0 0
      %1337 = vmatprep.subr.bf16.mxu0 0
      %1338 = vmatpush1.bf16.msra.mxu0 0
      %1339 = vmatprep.subr.bf16.mxu0 0
      %1340 = vmatpush1.bf16.msra.mxu0 0
      %1341 = vmatprep.subr.bf16.mxu0 0
      %1342 = vmatpush1.bf16.msra.mxu0 0
      %1343 = vmatprep.subr.bf16.mxu0 0
      %1344 = vmatpush1.bf16.msra.mxu0 0
      %1345 = vmatprep.subr.bf16.mxu0 0
      %1346 = vmatpush1.bf16.msra.mxu0 %v1329
      %1347 = vmatprep.subr.bf16.mxu0 0
      %1348 = vmatpush2.bf16.msra.mxu0 0
      %1349 = vmatprep.subr.bf16.mxu0 0
      %1350 = vmatpush2.bf16.msra.mxu0 0
      %1351 = vmatprep.subr.bf16.mxu0 0
      %1352 = vmatpush2.bf16.msra.mxu0 0
      %1353 = vmatprep.subr.bf16.mxu0 0
      %1354 = vmatpush2.bf16.msra.mxu0 0
      %1355 = vmatprep.subr.bf16.mxu0 0
      %1356 = vmatpush2.bf16.msra.mxu0 0
      %1357 = vmatprep.subr.bf16.mxu0 0
      %1358 = vmatpush2.bf16.msra.mxu0 0
      %1359 = vmatprep.subr.bf16.mxu0 0
      %1360 = vmatpush2.bf16.msra.mxu0 0
      %1361 = vmatprep.subr.bf16.mxu0 0
      %1362 = vmatpush2.bf16.msra.mxu0 0
      %1363 = vmatprep.mubr.bf16.mxu0 0
      %1364 = vmatmul.mubr.bf16.gmra.mxu0 %v1317
      %v1365 = vpop.f32.mrf.mxu0
      %v1366 = vadd.f32 0.0, %v1365
      %v1367 = vpop.f32.mrf.mxu0
      %v1368 = vpop.f32.mrf.mxu0
      %v1369 = vadd.f32 0.0, %v1368
      %v1370 = vpop.f32.mrf.mxu0
      %1371 = vmatprep.mubr.bf16.mxu0 0
      %1372 = vmatmul.mubr.bf16.gmra.mxu0 %v1320
      %v1373 = vpop.f32.mrf.mxu0
      %v1374 = vadd.f32 0.0, %v1373
      %v1375 = vpop.f32.mrf.mxu0
      %v1376 = vpop.f32.mrf.mxu0
      %v1377 = vadd.f32 0.0, %v1376
      %v1378 = vpop.f32.mrf.mxu0
      %1379 = vmatprep.mubr.bf16.mxu0 0
      %1380 = vmatmul.mubr.bf16.gmra.mxu0 %v1323
      %v1381 = vpop.f32.mrf.mxu0
      %v1382 = vadd.f32 0.0, %v1381
      %v1383 = vpop.f32.mrf.mxu0
      %v1384 = vpop.f32.mrf.mxu0
      %v1385 = vadd.f32 0.0, %v1384
      %v1386 = vpop.f32.mrf.mxu0
      %1387 = vmatprep.mubr.bf16.mxu0 0
      %1388 = vmatmul.mubr.bf16.gmra.mxu0 %v1326
      %v1389 = vpop.f32.mrf.mxu0
      %v1390 = vadd.f32 0.0, %v1389
      %v1391 = vpop.f32.mrf.mxu0
      %v1392 = vpop.f32.mrf.mxu0
      %v1393 = vadd.f32 0.0, %v1392
      %v1394 = vpop.f32.mrf.mxu0
      %1395 = vdwg.mxu0
      %v1396 = vadd.f32 %v1302, %v1366
      %v1397 = vadd.f32 %v1303, %v1369
      %v1398 = vadd.f32 %v1304, %v1374
      %v1399 = vadd.f32 %v1305, %v1377
      %v1400 = vadd.f32 %v1306, %v1382
      %v1401 = vadd.f32 %v1307, %v1385
      %v1402 = vadd.f32 %v1308, %v1390
      %v1403 = vadd.f32 %v1309, %v1393
      %v1405 = vshrl.u32 %v225, 16
      %v1407 = vrot.slane %v1405, 4
      %v1408 = vshll.u32 %v225, 16
      %v1410 = vrot.slane %v1408, 5
      %v1411 = vor.u32 %v1407, %v1410
      %v1412 = vrot.slane %v1411, 4
      %v1414 = vshll.u32 %v226, 16
      %v1416 = vrot.slane %v1414, 5
      %v1417 = vsel %vm256, %v1412, %v1416
      %v1418 = vunpack.c.l.b16 %v1417
      %v1419 = vpack.c.b16 %v371, %v370
      %v1420 = vpack.c.b16 %v373, %v372
      %v1421 = vpack.c.b16 %v375, %v374
      %v1422 = vpack.c.b16 %v1418, %v376
      %v1424 = vsel %vm381, %v1419, 0
      %v1427 = vsel %vm381, %v1420, 0
      %v1430 = vsel %vm381, %v1421, 0
      %v1433 = vsel %vm381, %v1422, 0
      %v1436 = vand.u32 %v252, %v397
      %1438 = vmatprep.subr.bf16.mxu0 0
      %1439 = vmatpush1.bf16.msra.mxu0 0
      %1440 = vmatprep.subr.bf16.mxu0 0
      %1441 = vmatpush1.bf16.msra.mxu0 0
      %1442 = vmatprep.subr.bf16.mxu0 0
      %1443 = vmatpush1.bf16.msra.mxu0 0
      %1444 = vmatprep.subr.bf16.mxu0 0
      %1445 = vmatpush1.bf16.msra.mxu0 0
      %1446 = vmatprep.subr.bf16.mxu0 0
      %1447 = vmatpush1.bf16.msra.mxu0 0
      %1448 = vmatprep.subr.bf16.mxu0 0
      %1449 = vmatpush1.bf16.msra.mxu0 0
      %1450 = vmatprep.subr.bf16.mxu0 0
      %1451 = vmatpush1.bf16.msra.mxu0 0
      %1452 = vmatprep.subr.bf16.mxu0 0
      %1453 = vmatpush1.bf16.msra.mxu0 %v1436
      %1454 = vmatprep.subr.bf16.mxu0 0
      %1455 = vmatpush2.bf16.msra.mxu0 0
      %1456 = vmatprep.subr.bf16.mxu0 0
      %1457 = vmatpush2.bf16.msra.mxu0 0
      %1458 = vmatprep.subr.bf16.mxu0 0
      %1459 = vmatpush2.bf16.msra.mxu0 0
      %1460 = vmatprep.subr.bf16.mxu0 0
      %1461 = vmatpush2.bf16.msra.mxu0 0
      %1462 = vmatprep.subr.bf16.mxu0 0
      %1463 = vmatpush2.bf16.msra.mxu0 0
      %1464 = vmatprep.subr.bf16.mxu0 0
      %1465 = vmatpush2.bf16.msra.mxu0 0
      %1466 = vmatprep.subr.bf16.mxu0 0
      %1467 = vmatpush2.bf16.msra.mxu0 0
      %1468 = vmatprep.subr.bf16.mxu0 0
      %1469 = vmatpush2.bf16.msra.mxu0 0
      %1470 = vmatprep.mubr.bf16.mxu0 0
      %1471 = vmatmul.mubr.bf16.gmra.mxu0 %v1424
      %v1472 = vpop.f32.mrf.mxu0
      %v1473 = vadd.f32 0.0, %v1472
      %v1474 = vpop.f32.mrf.mxu0
      %v1475 = vpop.f32.mrf.mxu0
      %v1476 = vadd.f32 0.0, %v1475
      %v1477 = vpop.f32.mrf.mxu0
      %1478 = vmatprep.mubr.bf16.mxu0 0
      %1479 = vmatmul.mubr.bf16.gmra.mxu0 %v1427
      %v1480 = vpop.f32.mrf.mxu0
      %v1481 = vadd.f32 0.0, %v1480
      %v1482 = vpop.f32.mrf.mxu0
      %v1483 = vpop.f32.mrf.mxu0
      %v1484 = vadd.f32 0.0, %v1483
      %v1485 = vpop.f32.mrf.mxu0
      %1486 = vmatprep.mubr.bf16.mxu0 0
      %1487 = vmatmul.mubr.bf16.gmra.mxu0 %v1430
      %v1488 = vpop.f32.mrf.mxu0
      %v1489 = vadd.f32 0.0, %v1488
      %v1490 = vpop.f32.mrf.mxu0
      %v1491 = vpop.f32.mrf.mxu0
      %v1492 = vadd.f32 0.0, %v1491
      %v1493 = vpop.f32.mrf.mxu0
      %1494 = vmatprep.mubr.bf16.mxu0 0
      %1495 = vmatmul.mubr.bf16.gmra.mxu0 %v1433
      %v1496 = vpop.f32.mrf.mxu0
      %v1497 = vadd.f32 0.0, %v1496
      %v1498 = vpop.f32.mrf.mxu0
      %v1499 = vpop.f32.mrf.mxu0
      %v1500 = vadd.f32 0.0, %v1499
      %v1501 = vpop.f32.mrf.mxu0
      %1502 = vdwg.mxu0
      %v1503 = vadd.f32 %v1396, %v1473
      %v1504 = vadd.f32 %v1397, %v1476
      %v1505 = vadd.f32 %v1398, %v1481
      %v1506 = vadd.f32 %v1399, %v1484
      %v1507 = vadd.f32 %v1400, %v1489
      %v1508 = vadd.f32 %v1401, %v1492
      %v1509 = vadd.f32 %v1402, %v1497
      %v1510 = vadd.f32 %v1403, %v1500
      %v1512 = vshrl.u32 %v243, 16
      %v1514 = vrot.slane %v1512, 4
      %v1515 = vshll.u32 %v243, 16
      %v1517 = vrot.slane %v1515, 5
      %v1518 = vor.u32 %v1514, %v1517
      %v1519 = vrot.slane %v1518, 4
      %v1521 = vshll.u32 %v244, 16
      %v1523 = vrot.slane %v1521, 5
      %v1524 = vsel %vm256, %v1519, %v1523
      %v1525 = vunpack.c.l.b16 %v1524
      %v1526 = vpack.c.b16 %v680, %v679
      %v1527 = vpack.c.b16 %v682, %v681
      %v1528 = vpack.c.b16 %v684, %v683
      %v1529 = vpack.c.b16 %v1525, %v685
      %v1531 = vsel %vm381, %v1526, 0
      %v1534 = vsel %vm381, %v1527, 0
      %v1537 = vsel %vm381, %v1528, 0
      %v1540 = vsel %vm381, %v1529, 0
      %v1543 = vand.u32 %v253, %v397
      %1545 = vmatprep.subr.bf16.mxu0 0
      %1546 = vmatpush1.bf16.msra.mxu0 0
      %1547 = vmatprep.subr.bf16.mxu0 0
      %1548 = vmatpush1.bf16.msra.mxu0 0
      %1549 = vmatprep.subr.bf16.mxu0 0
      %1550 = vmatpush1.bf16.msra.mxu0 0
      %1551 = vmatprep.subr.bf16.mxu0 0
      %1552 = vmatpush1.bf16.msra.mxu0 0
      %1553 = vmatprep.subr.bf16.mxu0 0
      %1554 = vmatpush1.bf16.msra.mxu0 0
      %1555 = vmatprep.subr.bf16.mxu0 0
      %1556 = vmatpush1.bf16.msra.mxu0 0
      %1557 = vmatprep.subr.bf16.mxu0 0
      %1558 = vmatpush1.bf16.msra.mxu0 0
      %1559 = vmatprep.subr.bf16.mxu0 0
      %1560 = vmatpush1.bf16.msra.mxu0 %v1543
      %1561 = vmatprep.subr.bf16.mxu0 0
      %1562 = vmatpush2.bf16.msra.mxu0 0
      %1563 = vmatprep.subr.bf16.mxu0 0
      %1564 = vmatpush2.bf16.msra.mxu0 0
      %1565 = vmatprep.subr.bf16.mxu0 0
      %1566 = vmatpush2.bf16.msra.mxu0 0
      %1567 = vmatprep.subr.bf16.mxu0 0
      %1568 = vmatpush2.bf16.msra.mxu0 0
      %1569 = vmatprep.subr.bf16.mxu0 0
      %1570 = vmatpush2.bf16.msra.mxu0 0
      %1571 = vmatprep.subr.bf16.mxu0 0
      %1572 = vmatpush2.bf16.msra.mxu0 0
      %1573 = vmatprep.subr.bf16.mxu0 0
      %1574 = vmatpush2.bf16.msra.mxu0 0
      %1575 = vmatprep.subr.bf16.mxu0 0
      %1576 = vmatpush2.bf16.msra.mxu0 0
      %1577 = vmatprep.mubr.bf16.mxu0 0
      %1578 = vmatmul.mubr.bf16.gmra.mxu0 %v1531
      %v1579 = vpop.f32.mrf.mxu0
      %v1580 = vadd.f32 0.0, %v1579
      %v1581 = vpop.f32.mrf.mxu0
      %v1582 = vpop.f32.mrf.mxu0
      %v1583 = vadd.f32 0.0, %v1582
      %v1584 = vpop.f32.mrf.mxu0
      %1585 = vmatprep.mubr.bf16.mxu0 0
      %1586 = vmatmul.mubr.bf16.gmra.mxu0 %v1534
      %v1587 = vpop.f32.mrf.mxu0
      %v1588 = vadd.f32 0.0, %v1587
      %v1589 = vpop.f32.mrf.mxu0
      %v1590 = vpop.f32.mrf.mxu0
      %v1591 = vadd.f32 0.0, %v1590
      %v1592 = vpop.f32.mrf.mxu0
      %1593 = vmatprep.mubr.bf16.mxu0 0
      %1594 = vmatmul.mubr.bf16.gmra.mxu0 %v1537
      %v1595 = vpop.f32.mrf.mxu0
      %v1596 = vadd.f32 0.0, %v1595
      %v1597 = vpop.f32.mrf.mxu0
      %v1598 = vpop.f32.mrf.mxu0
      %v1599 = vadd.f32 0.0, %v1598
      %v1600 = vpop.f32.mrf.mxu0
      %1601 = vmatprep.mubr.bf16.mxu0 0
      %1602 = vmatmul.mubr.bf16.gmra.mxu0 %v1540
      %v1603 = vpop.f32.mrf.mxu0
      %v1604 = vadd.f32 0.0, %v1603
      %v1605 = vpop.f32.mrf.mxu0
      %v1606 = vpop.f32.mrf.mxu0
      %v1607 = vadd.f32 0.0, %v1606
      %v1608 = vpop.f32.mrf.mxu0
      %1609 = vdwg.mxu0
      %v1610 = vadd.f32 %v1503, %v1580
      %v1611 = vadd.f32 %v1504, %v1583
      %v1612 = vadd.f32 %v1505, %v1588
      %v1613 = vadd.f32 %v1506, %v1591
      %v1614 = vadd.f32 %v1507, %v1596
      %v1615 = vadd.f32 %v1508, %v1599
      %v1616 = vadd.f32 %v1509, %v1604
      %v1617 = vadd.f32 %v1510, %v1607
      %v1618 = vld [vmem:[%s2] sm:$0x1]
      %v1620 = vlaneseq
      %v1621 = vshrl.u32 %v1620, 7
      %v1622 = vsub.s32 0, %v1621
      %v1623 = vrot.slane %v1618, %v1622
      %v1625 = vadd.f32 %v1610, %v1623
      %v1626 = vadd.f32 %v1611, %v1623
      %v1627 = vadd.f32 %v1612, %v1623
      %v1628 = vadd.f32 %v1613, %v1623
      %v1629 = vadd.f32 %v1614, %v1623
      %v1630 = vadd.f32 %v1615, %v1623
      %v1631 = vadd.f32 %v1616, %v1623
      %v1632 = vadd.f32 %v1617, %v1623
      %v1633 = vmax.f32 %v1625, 0.0
      %v1634 = vmax.f32 %v1626, 0.0
      %v1635 = vmax.f32 %v1627, 0.0
      %v1636 = vmax.f32 %v1628, 0.0
      %v1637 = vmax.f32 %v1629, 0.0
      %v1638 = vmax.f32 %v1630, 0.0
      %v1639 = vmax.f32 %v1631, 0.0
      %v1640 = vmax.f32 %v1632, 0.0
      %v1641 = vpack.c.bf16 %v1633, %v1633
      %v1642 = vpack.c.bf16 %v1634, %v1634
      %v1643 = vpack.c.bf16 %v1635, %v1635
      %v1644 = vpack.c.bf16 %v1636, %v1636
      %v1645 = vpack.c.bf16 %v1637, %v1637
      %v1646 = vpack.c.bf16 %v1638, %v1638
      %v1647 = vpack.c.bf16 %v1639, %v1639
      %v1648 = vpack.c.bf16 %v1640, %v1640
      %vm1649 = vcmask 257024
      %1650 = vst.msk [vmem:[%s175] sm:$0xf] %vm1649, %v1641
      %1651 = vst.msk [vmem:[%s175 + $0x4] sm:$0xf] %vm1649, %v1642
      %1652 = vst.msk [vmem:[%s175 + $0x8] sm:$0xf] %vm1649, %v1643
      %1653 = vst.msk [vmem:[%s175 + $0xc] sm:$0xf] %vm1649, %v1644
      %1654 = vst.msk [vmem:[%s175 + $0x10] sm:$0xf] %vm1649, %v1645
      %1655 = vst.msk [vmem:[%s175 + $0x14] sm:$0xf] %vm1649, %v1646
      %1656 = vst.msk [vmem:[%s175 + $0x18] sm:$0xf] %vm1649, %v1647
      %1657 = vst.msk [vmem:[%s175 + $0x1c] sm:$0xf] %vm1649, %v1648
      %p1658 = scmp.lt.s32.totalorder %s14, 1
      %s1659 = scalar_select %p1658, %s14, 1
      %s1660 = smul.addr %s1659, 8
      %s1661 = smul.addr %s1660, 4
      %s1662 = scalar_lea.vmem %s3, %s1661
      // Predicated region
      $region33: #{forward.6} parent=31 // pred_check
        %p1663 = pneg %p100
      $region34: #{forward.6} parent=31 // pred_check_branch
        %1665 = sbr.rel (%p1663) target = $region36
      $region35: #{forward.6} parent=31 // pred_region
        _
      $region36: #{forward.6} parent=31 // pred_fallthru
        _
    $region32: #{forward.6} parent=5 // pred_fallthru
      _
    %p1666 = scmp.le.s32.totalorder 2, %s9
    // Predicated region
    $region37: #{forward.6} parent=5 // pred_check
      %p1667 = pneg %p1666
    $region38: #{forward.6} parent=5 // pred_check_branch
      %1669 = sbr.rel (%p1667) target = $region40
    $region39: #{forward.6} parent=5 // pred_region
      %s1670 = ssub.s32 %s9, 2
      // Predicated region
      $region41: #{forward.6} parent=39 // pred_check
        %p1671 = pneg %p106
      $region42: #{forward.6} parent=39 // pred_check_branch
        %1673 = sbr.rel (%p1671) target = $region44
      $region43: #{forward.6} parent=39 // pred_region
        %p1674 = scmp.lt.s32.totalorder %s15, 1
        %s1675 = scalar_select %p1674, %s15, 1
        %s1676 = smul.addr %s1675, 8
        %s1677 = smul.addr %s1676, 4
        %s1678 = scalar_lea.vmem %s3, %s1677
      $region44: #{forward.6} parent=39 // pred_fallthru
        _
    $region40: #{forward.6} parent=5 // pred_fallthru
      _
  $region6: #{forward.6} parent=0 // loop_footer
    %s13 = sadd.s32 1, %s9
  $region7: #{forward.6} parent=0 // loop_footer_branch
    %8 = sbr.rel target = $region3
  $region8: #{forward.6} parent=0 // loop_exit
    _

// kernel: forward.8
$region0: #{forward.8}
  #allocation0 [shape = 'u32[]', space=smem, size = 0x4, offset = 0x4, fixed_abs, tag = 'smem constant byte address 0x4 - core index']
  #allocation1 [shape = 'u32[144,128]{1,0:T(1,128)}', space=vmem, size = 0x12000, scoped, tag = 'internal scratch']
  %s0 = inlined_call_operand.vmem [shape: bf16[8,3,3,64], index: 0, kind: input, shape index: {}]
  %s1 = inlined_call_operand.vmem [shape: bf16[9,64,128], index: 1, kind: input, shape index: {}]
  %s2 = inlined_call_operand.vmem [shape: f32[1,128], index: 2, kind: input, shape index: {}]
  %s3 = inlined_call_operand.vmem [shape: bf16[2,2,2,128], index: 3, kind: output, shape index: {}]
  %s4 = sld [smem:[#allocation0]]
  $region45: #{forward.8} parent=0
    _
  %s6 = ssub.s32 1, %s4
  %s7 = scalar_select 0, %s6, %s4
  loop: start=0, step=1, limit=4
  $region2: #{forward.8} parent=0 // loop_pre_header
    _
  $region3: #{forward.8} parent=0 // loop_header
    %s9 = sphi 0, %s13
    %p10 = scmp.ge.s32.totalorder %s9, 4
    %s19 = sphi 0, %s21
    %s22 = sphi 0, %s19
    %s23 = sphi 0, %s22
    %s39 = sphi 0, %s23
    %s43 = sphi 0, %s43
    %s45 = sphi 0, %s43
    %s46 = sphi 0, %s45
    %s60 = sphi 0, %s46
    %s64 = sphi 0, %s64
    %s66 = sphi 0, %s64
    %s67 = sphi 0, %s66
    %s81 = sphi 0, %s67
    %s87 = sphi 0, %s89
    %s90 = sphi 0, %s87
    %s91 = sphi 0, %s90
    %s107 = sphi 0, %s91
  $region4: #{forward.8} parent=0 // loop_header_branch
    %12 = sbr.rel (%p10) target = $region8
  $region5: #{forward.8} parent=0 // loop_body
    %s14 = ssub.s32 %s9, 1
    %s15 = ssub.s32 %s9, 2
    %s16 = sadd.s32 %s9, 1
    %s17 = ssub.s32 %s9, %s16
    %p18 = scmp.eq.s32.totalorder %s17, 0
    %s20 = sadd.s32 %s19, 1
    %s21 = scalar_select %p18, %s19, %s20
    %p24 = pneg %p18
    %p25 = scmp.eq.s32.totalorder %s9, 1
    %p26 = por %p24, %p25
    %p27 = scmp.ne.s32.totalorder %s19, %s22
    %p28 = scmp.eq.s32.totalorder %s9, 0
    %p29 = por %p27, %p28
    %p30 = scmp.ne.s32.totalorder %s19, %s22
    %p31 = scmp.eq.s32.totalorder %s14, 1
    %p32 = por %p30, %p31
    %p33 = scmp.ne.s32.totalorder %s22, %s23
    %p34 = scmp.eq.s32.totalorder %s14, 0
    %p35 = por %p33, %p34
    %p36 = scmp.ne.s32.totalorder %s22, %s23
    %p37 = scmp.eq.s32.totalorder %s15, 1
    %p38 = por %p36, %p37
    %p40 = scmp.ne.s32.totalorder %s23, %s39
    %p41 = scmp.eq.s32.totalorder %s15, 0
    %p42 = por %p40, %p41
    %s44 = sadd.s32 %s43, 1
    %p47 = scmp.eq.s32.totalorder %s9, 1
    %p48 = scmp.ne.s32.totalorder %s43, %s45
    %p49 = scmp.eq.s32.totalorder %s9, 0
    %p50 = por %p48, %p49
    %p51 = scmp.ne.s32.totalorder %s43, %s45
    %p52 = scmp.eq.s32.totalorder %s14, 1
    %p53 = por %p51, %p52
    %p54 = scmp.ne.s32.totalorder %s45, %s46
    %p55 = scmp.eq.s32.totalorder %s14, 0
    %p56 = por %p54, %p55
    %p57 = scmp.ne.s32.totalorder %s45, %s46
    %p58 = scmp.eq.s32.totalorder %s15, 1
    %p59 = por %p57, %p58
    %p61 = scmp.ne.s32.totalorder %s46, %s60
    %p62 = scmp.eq.s32.totalorder %s15, 0
    %p63 = por %p61, %p62
    %s65 = sadd.s32 %s64, 1
    %p68 = scmp.eq.s32.totalorder %s9, 1
    %p69 = scmp.ne.s32.totalorder %s64, %s66
    %p70 = scmp.eq.s32.totalorder %s9, 0
    %p71 = por %p69, %p70
    %p72 = scmp.ne.s32.totalorder %s64, %s66
    %p73 = scmp.eq.s32.totalorder %s14, 1
    %p74 = por %p72, %p73
    %p75 = scmp.ne.s32.totalorder %s66, %s67
    %p76 = scmp.eq.s32.totalorder %s14, 0
    %p77 = por %p75, %p76
    %p78 = scmp.ne.s32.totalorder %s66, %s67
    %p79 = scmp.eq.s32.totalorder %s15, 1
    %p80 = por %p78, %p79
    %p82 = scmp.ne.s32.totalorder %s67, %s81
    %p83 = scmp.eq.s32.totalorder %s15, 0
    %p84 = por %p82, %p83
    %s85 = ssub.s32 %s9, %s16
    %p86 = scmp.eq.s32.totalorder %s85, 0
    %s88 = sadd.s32 %s87, 1
    %s89 = scalar_select %p86, %s87, %s88
    %p92 = pneg %p86
    %p93 = scmp.eq.s32.totalorder %s9, 1
    %p94 = por %p92, %p93
    %p95 = scmp.ne.s32.totalorder %s87, %s90
    %p96 = scmp.eq.s32.totalorder %s9, 0
    %p97 = por %p95, %p96
    %p98 = scmp.ne.s32.totalorder %s87, %s90
    %p99 = scmp.eq.s32.totalorder %s14, 1
    %p100 = por %p98, %p99
    %p101 = scmp.ne.s32.totalorder %s90, %s91
    %p102 = scmp.eq.s32.totalorder %s14, 0
    %p103 = por %p101, %p102
    %p104 = scmp.ne.s32.totalorder %s90, %s91
    %p105 = scmp.eq.s32.totalorder %s15, 1
    %p106 = por %p104, %p105
    %p108 = scmp.ne.s32.totalorder %s91, %s107
    %p109 = scmp.eq.s32.totalorder %s15, 0
    %p110 = por %p108, %p109
    %p111 = scmp.le.s32.totalorder 1, %s9
    %p112 = scmp.lt.s32.totalorder %s9, 3
    %p113 = pnand %p111, %p112
    %p114 = pneg %p113
    // Predicated region
    $region9: #{forward.8} parent=5 // pred_check
      _
    $region10: #{forward.8} parent=5 // pred_check_branch
      %116 = sbr.rel (%p113) target = $region12
    $region11: #{forward.8} parent=5 // pred_region
      %s117 = ssub.s32 %s9, 1
      // Predicated region
      $region13: #{forward.8} parent=11 // pred_check
        %p118 = pneg %p56
      $region14: #{forward.8} parent=11 // pred_check_branch
        %120 = sbr.rel (%p118) target = $region16
      $region15: #{forward.8} parent=11 // pred_region
        _
      $region16: #{forward.8} parent=11 // pred_fallthru
        _
      // Predicated region
      $region17: #{forward.8} parent=11 // pred_check
        %p121 = pneg %p77
      $region18: #{forward.8} parent=11 // pred_check_branch
        %123 = sbr.rel (%p121) target = $region20
      $region19: #{forward.8} parent=11 // pred_region
        _
      $region20: #{forward.8} parent=11 // pred_fallthru
        _
    $region12: #{forward.8} parent=5 // pred_fallthru
      _
    %p124 = scmp.lt.s32.totalorder %s9, 2
    // Predicated region
    $region21: #{forward.8} parent=5 // pred_check
      %p125 = pneg %p124
    $region22: #{forward.8} parent=5 // pred_check_branch
      %127 = sbr.rel (%p125) target = $region24
    $region23: #{forward.8} parent=5 // pred_region
      // Predicated region
      $region25: #{forward.8} parent=23 // pred_check
        %p128 = pneg %p29
      $region26: #{forward.8} parent=23 // pred_check_branch
        %130 = sbr.rel (%p128) target = $region28
      $region27: #{forward.8} parent=23 // pred_region
        %s131 = smul.u32 4, %s9
        %p132 = scmp.lt.s32.totalorder %s131, 7
        %s133 = scalar_select %p132, %s131, 7
        %s134 = smul.addr %s133, 3
        %s135 = smul.addr %s134, 2
        %s136 = scalar_lea.vmem %s0, %s135
        %s137 = smul.u32 4, %s9
      $region28: #{forward.8} parent=23 // pred_fallthru
        _
    $region24: #{forward.8} parent=5 // pred_fallthru
      _
    %p138 = scmp.le.s32.totalorder 1, %s9
    %p139 = scmp.lt.s32.totalorder %s9, 3
    %p140 = pnand %p138, %p139
    %p141 = pneg %p140
    // Predicated region
    $region29: #{forward.8} parent=5 // pred_check
      _
    $region30: #{forward.8} parent=5 // pred_check_branch
      %143 = sbr.rel (%p140) target = $region32
    $region31: #{forward.8} parent=5 // pred_region
      %s144 = ssub.s32 %s9, 1
      %s145 = smul.u32 4, %s14
      %p146 = scmp.lt.s32.totalorder %s145, 7
      %s147 = scalar_select %p146, %s145, 7
      %s148 = smul.addr %s147, 3
      %s149 = smul.addr %s148, 2
      %s150 = scalar_lea.vmem %s0, %s149
      %p151 = pneg %p35
      %p152 = pneg %p32
      %p153 = pneg %p56
      %p154 = pneg %p53
      %p155 = pneg %p77
      %p156 = pneg %p74
      %p157 = pneg %p103
      %p158 = pneg %p100
      %p159 = scmp.lt.s32.totalorder %s14, 1
      %s160 = scalar_select %p159, %s14, 1
      %s161 = smul.addr %s160, 2
      %s162 = scalar_lea.vmem %s3, %s161
      %s163 = smul.u32 4, %s14
      %p164 = scmp.lt.s32.totalorder %s163, 7
      %s165 = scalar_select %p164, %s163, 7
      %s166 = smul.addr %s165, 3
      %s167 = smul.addr %s166, 2
      %s168 = scalar_lea.vmem %s0, %s167
      %s169 = smul.u32 4, %s14
      %p170 = scmp.lt.s32.totalorder %s14, 1
      %s171 = scalar_select %p170, %s14, 1
      %s172 = smul.addr %s171, 2
      %s173 = scalar_lea.vmem %s3, %s172
      %v175 = vld [vmem:[%s168 + $0x2] sm:$0x3]
      %v176 = vld [vmem:[%s168 + $0x4] sm:$0x3]
      %v177 = vld [vmem:[%s168 + $0x8] sm:$0x3]
      %v178 = vld [vmem:[%s168 + $0xa] sm:$0x3]
      %v179 = vld [vmem:[%s168 + $0xc] sm:$0x3]
      %v180 = vld [vmem:[%s168 + $0xe] sm:$0x3]
      %v181 = vld [vmem:[%s168 + $0x10] sm:$0x3]
      %v182 = vld [vmem:[%s168 + $0x12] sm:$0x3]
      %v183 = vld [vmem:[%s168 + $0x14] sm:$0x3]
      %v184 = vld [vmem:[%s168 + $0x16] sm:$0x3]
      %v185 = vld [vmem:[%s1] sm:$0xf]
      %v186 = vld [vmem:[%s1 + $0x4] sm:$0xf]
      %v187 = vld [vmem:[%s1 + $0x8] sm:$0xf]
      %v188 = vld [vmem:[%s1 + $0xc] sm:$0xf]
      %v189 = vld [vmem:[%s1 + $0x10] sm:$0xf]
      %v190 = vld [vmem:[%s1 + $0x14] sm:$0xf]
      %v191 = vld [vmem:[%s1 + $0x18] sm:$0xf]
      %v192 = vld [vmem:[%s1 + $0x1c] sm:$0xf]
      %v193 = vld [vmem:[%s1 + $0x20] sm:$0xf]
      %v194 = vld [vmem:[%s1 + $0x24] sm:$0xf]
      %v195 = vld [vmem:[%s1 + $0x28] sm:$0xf]
      %v196 = vld [vmem:[%s1 + $0x2c] sm:$0xf]
      %v197 = vld [vmem:[%s1 + $0x30] sm:$0xf]
      %v198 = vld [vmem:[%s1 + $0x34] sm:$0xf]
      %v199 = vld [vmem:[%s1 + $0x38] sm:$0xf]
      %v200 = vld [vmem:[%s1 + $0x3c] sm:$0xf]
      %v201 = vld [vmem:[%s1 + $0x40] sm:$0xf]
      %v202 = vld [vmem:[%s1 + $0x44] sm:$0xf]
      %v203 = vld [vmem:[%s1 + $0x48] sm:$0xf]
      %v204 = vld [vmem:[%s1 + $0x4c] sm:$0xf]
      %v205 = vld [vmem:[%s1 + $0x50] sm:$0xf]
      %v206 = vld [vmem:[%s1 + $0x54] sm:$0xf]
      %v207 = vld [vmem:[%s1 + $0x58] sm:$0xf]
      %v208 = vld [vmem:[%s1 + $0x5c] sm:$0xf]
      %v209 = vld [vmem:[%s1 + $0x60] sm:$0xf]
      %v210 = vld [vmem:[%s1 + $0x64] sm:$0xf]
      %v211 = vld [vmem:[%s1 + $0x68] sm:$0xf]
      %v212 = vld [vmem:[%s1 + $0x6c] sm:$0xf]
      %v213 = vld [vmem:[%s1 + $0x70] sm:$0xf]
      %v214 = vld [vmem:[%s1 + $0x74] sm:$0xf]
      %v215 = vld [vmem:[%s1 + $0x78] sm:$0xf]
      %v216 = vld [vmem:[%s1 + $0x7c] sm:$0xf]
      %v217 = vld [vmem:[%s1 + $0x80] sm:$0xf]
      %v218 = vld [vmem:[%s1 + $0x84] sm:$0xf]
      %v219 = vld [vmem:[%s1 + $0x88] sm:$0xf]
      %v220 = vld [vmem:[%s1 + $0x8c] sm:$0xf]
      %v221 = vld [vmem:[%s1 + $0x90] sm:$0xf]
      %v222 = vld [vmem:[%s1 + $0x94] sm:$0xf]
      %v223 = vld [vmem:[%s1 + $0x98] sm:$0xf]
      %v224 = vld [vmem:[%s1 + $0x9c] sm:$0xf]
      %v225 = vld [vmem:[%s1 + $0xa0] sm:$0xf]
      %v226 = vld [vmem:[%s1 + $0xa4] sm:$0xf]
      %v227 = vld [vmem:[%s1 + $0xa8] sm:$0xf]
      %v228 = vld [vmem:[%s1 + $0xac] sm:$0xf]
      %v229 = vld [vmem:[%s1 + $0xb0] sm:$0xf]
      %v230 = vld [vmem:[%s1 + $0xb4] sm:$0xf]
      %v231 = vld [vmem:[%s1 + $0xb8] sm:$0xf]
      %v232 = vld [vmem:[%s1 + $0xbc] sm:$0xf]
      %v233 = vld [vmem:[%s1 + $0xc0] sm:$0xf]
      %v234 = vld [vmem:[%s1 + $0xc4] sm:$0xf]
      %v235 = vld [vmem:[%s1 + $0xc8] sm:$0xf]
      %v236 = vld [vmem:[%s1 + $0xcc] sm:$0xf]
      %v237 = vld [vmem:[%s1 + $0xd0] sm:$0xf]
      %v238 = vld [vmem:[%s1 + $0xd4] sm:$0xf]
      %v239 = vld [vmem:[%s1 + $0xd8] sm:$0xf]
      %v240 = vld [vmem:[%s1 + $0xdc] sm:$0xf]
      %v241 = vld [vmem:[%s1 + $0xe0] sm:$0xf]
      %v242 = vld [vmem:[%s1 + $0xe4] sm:$0xf]
      %v243 = vld [vmem:[%s1 + $0xe8] sm:$0xf]
      %v244 = vld [vmem:[%s1 + $0xec] sm:$0xf]
      %v245 = vld [vmem:[%s1 + $0xf0] sm:$0xf]
      %v246 = vld [vmem:[%s1 + $0xf4] sm:$0xf]
      %v247 = vld [vmem:[%s1 + $0xf8] sm:$0xf]
      %v248 = vld [vmem:[%s1 + $0xfc] sm:$0xf]
      %v249 = vld [vmem:[%s1 + $0x100] sm:$0xf]
      %v250 = vld [vmem:[%s1 + $0x104] sm:$0xf]
      %v251 = vld [vmem:[%s1 + $0x108] sm:$0xf]
      %v252 = vld [vmem:[%s1 + $0x10c] sm:$0xf]
      %v253 = vld [vmem:[%s1 + $0x110] sm:$0xf]
      %v254 = vld [vmem:[%s1 + $0x114] sm:$0xf]
      %v255 = vld [vmem:[%s1 + $0x118] sm:$0xf]
      %v256 = vld [vmem:[%s1 + $0x11c] sm:$0xf]
      %v260 = vunpack.c.l.s4 1966171168
      %v261 = vunpack.c.0.s8 %v260
      %v262 = vlaneseq
      %v263 = vshrl.u32 %v262, 7
      %v264 = vsub.s32 %v261, %v263
      %v265 = vrot.slane %v179, %v264
      %v266 = vcombine.high %v265, %v265
      %v268 = vunpack.c.l.s4 1966171168
      %v269 = vunpack.c.0.s8 %v268
      %v270 = vlaneseq
      %v271 = vshrl.u32 %v270, 7
      %v272 = vsub.s32 %v269, %v271
      %v273 = vrot.slane %v180, %v272
      %v274 = vcombine.high %v273, %v273
      %vm275 = vsmask.f32 256
      %vm276 = vsmask.f32 1284
      %vm277 = vmor %vm275, %vm276
      %vm278 = vsmask.f32 2312
      %vm279 = vmor %vm277, %vm278
      %vm280 = vsmask.f32 3340
      %vm281 = vmor %vm279, %vm280
      %vm282 = vsmask.f32 4368
      %vm283 = vmor %vm281, %vm282
      %vm284 = vsmask.f32 5396
      %vm285 = vmor %vm283, %vm284
      %vm286 = vsmask.f32 6424
      %vm287 = vmor %vm285, %vm286
      %vm288 = vsmask.f32 7452
      %vm289 = vmor %vm287, %vm288
      %v291 = vshrl.u32 %v265, 16
      %v293 = vrot.slane %v291, 7
      %v294 = vrot.slane %v293, 1
      %v296 = vshll.u32 %v266, 16
      %v298 = vsel %vm289, %v294, %v296
      %v300 = vshrl.u32 %v273, 16
      %v302 = vrot.slane %v300, 7
      %v303 = vrot.slane %v302, 1
      %v305 = vshll.u32 %v274, 16
      %v307 = vsel %vm289, %v303, %v305
      %v308 = vcombine.low %v298, %v307
      %v310 = vunpack.c.l.s4 1966171168
      %v311 = vunpack.c.0.s8 %v310
      %v312 = vlaneseq
      %v313 = vshrl.u32 %v312, 7
      %v314 = vsub.s32 %v311, %v313
      %v315 = vrot.slane %v308, %v314
      %v317 = vunpack.c.l.s4 1966171168
      %v318 = vunpack.c.0.s8 %v317
      %v319 = vlaneseq
      %v320 = vshrl.u32 %v319, 7
      %v321 = vsub.s32 %v318, %v320
      %v322 = vrot.slane %v315, %v321
      %v331 = vunpack.c.l.b16 %v193
      %v332 = vunpack.c.l.b16 %v194
      %v333 = vunpack.c.l.b16 %v195
      %v334 = vunpack.c.l.b16 %v196
      %v335 = vunpack.c.l.b16 %v197
      %v336 = vunpack.c.l.b16 %v198
      %v337 = vunpack.c.l.b16 %v199
      %v338 = vunpack.c.l.b16 %v200
      %v339 = vpack.c.b16 %v332, %v331
      %v340 = vpack.c.b16 %v334, %v333
      %v341 = vpack.c.b16 %v336, %v335
      %v342 = vpack.c.b16 %v338, %v337
      %vm347 = vcmask 523264
      %v349 = vsel %vm347, %v322, 0
      %351 = vmatprep.subr.bf16.mxu0 0
      %352 = vmatpush1.bf16.msra.mxu0 0
      %353 = vmatprep.subr.bf16.mxu0 0
      %354 = vmatpush1.bf16.msra.mxu0 0
      %355 = vmatprep.subr.bf16.mxu0 0
      %356 = vmatpush1.bf16.msra.mxu0 0
      %357 = vmatprep.subr.bf16.mxu0 0
      %358 = vmatpush1.bf16.msra.mxu0 0
      %359 = vmatprep.subr.bf16.mxu0 0
      %360 = vmatpush1.bf16.msra.mxu0 %v342
      %361 = vmatprep.subr.bf16.mxu0 0
      %362 = vmatpush1.bf16.msra.mxu0 %v341
      %363 = vmatprep.subr.bf16.mxu0 0
      %364 = vmatpush1.bf16.msra.mxu0 %v340
      %365 = vmatprep.subr.bf16.mxu0 0
      %366 = vmatpush1.bf16.msra.mxu0 %v339
      %367 = vmatprep.subr.bf16.mxu0 0
      %368 = vmatpush2.bf16.msra.mxu0 0
      %369 = vmatprep.subr.bf16.mxu0 0
      %370 = vmatpush2.bf16.msra.mxu0 0
      %371 = vmatprep.subr.bf16.mxu0 0
      %372 = vmatpush2.bf16.msra.mxu0 0
      %373 = vmatprep.subr.bf16.mxu0 0
      %374 = vmatpush2.bf16.msra.mxu0 0
      %375 = vmatprep.subr.bf16.mxu0 0
      %376 = vmatpush2.bf16.msra.mxu0 0
      %377 = vmatprep.subr.bf16.mxu0 0
      %378 = vmatpush2.bf16.msra.mxu0 0
      %379 = vmatprep.subr.bf16.mxu0 0
      %380 = vmatpush2.bf16.msra.mxu0 0
      %381 = vmatprep.subr.bf16.mxu0 0
      %382 = vmatpush2.bf16.msra.mxu0 0
      %383 = vmatprep.mubr.bf16.mxu0 0
      %384 = vmatmul.mubr.bf16.gmra.mxu0 %v349
      %v385 = vpop.f32.mrf.mxu0
      %v386 = vadd.f32 0.0, %v385
      %v387 = vpop.f32.mrf.mxu0
      %v388 = vpop.f32.mrf.mxu0
      %v389 = vpop.f32.mrf.mxu0
      %390 = vdwg.mxu0
      %v393 = vcombine.low %v182, %v183
      %v395 = vunpack.c.l.s4 1966171168
      %v396 = vunpack.c.0.s8 %v395
      %v397 = vlaneseq
      %v398 = vshrl.u32 %v397, 7
      %v399 = vsub.s32 %v396, %v398
      %v400 = vrot.slane %v393, %v399
      %v402 = vunpack.c.l.s4 1966171168
      %v403 = vunpack.c.0.s8 %v402
      %v404 = vlaneseq
      %v405 = vshrl.u32 %v404, 7
      %v406 = vsub.s32 %v403, %v405
      %v407 = vrot.slane %v400, %v406
      %v416 = vunpack.c.l.b16 %v185
      %v417 = vunpack.c.l.b16 %v186
      %v418 = vunpack.c.l.b16 %v187
      %v419 = vunpack.c.l.b16 %v188
      %v420 = vunpack.c.l.b16 %v189
      %v421 = vunpack.c.l.b16 %v190
      %v422 = vunpack.c.l.b16 %v191
      %v423 = vunpack.c.l.b16 %v192
      %v424 = vpack.c.b16 %v417, %v416
      %v425 = vpack.c.b16 %v419, %v418
      %v426 = vpack.c.b16 %v421, %v420
      %v427 = vpack.c.b16 %v423, %v422
      %v433 = vsel %vm347, %v407, 0
      %435 = vmatprep.subr.bf16.mxu0 0
      %436 = vmatpush1.bf16.msra.mxu0 0
      %437 = vmatprep.subr.bf16.mxu0 0
      %438 = vmatpush1.bf16.msra.mxu0 0
      %439 = vmatprep.subr.bf16.mxu0 0
      %440 = vmatpush1.bf16.msra.mxu0 0
      %441 = vmatprep.subr.bf16.mxu0 0
      %442 = vmatpush1.bf16.msra.mxu0 0
      %443 = vmatprep.subr.bf16.mxu0 0
      %444 = vmatpush1.bf16.msra.mxu0 %v427
      %445 = vmatprep.subr.bf16.mxu0 0
      %446 = vmatpush1.bf16.msra.mxu0 %v426
      %447 = vmatprep.subr.bf16.mxu0 0
      %448 = vmatpush1.bf16.msra.mxu0 %v425
      %449 = vmatprep.subr.bf16.mxu0 0
      %450 = vmatpush1.bf16.msra.mxu0 %v424
      %451 = vmatprep.subr.bf16.mxu0 0
      %452 = vmatpush2.bf16.msra.mxu0 0
      %453 = vmatprep.subr.bf16.mxu0 0
      %454 = vmatpush2.bf16.msra.mxu0 0
      %455 = vmatprep.subr.bf16.mxu0 0
      %456 = vmatpush2.bf16.msra.mxu0 0
      %457 = vmatprep.subr.bf16.mxu0 0
      %458 = vmatpush2.bf16.msra.mxu0 0
      %459 = vmatprep.subr.bf16.mxu0 0
      %460 = vmatpush2.bf16.msra.mxu0 0
      %461 = vmatprep.subr.bf16.mxu0 0
      %462 = vmatpush2.bf16.msra.mxu0 0
      %463 = vmatprep.subr.bf16.mxu0 0
      %464 = vmatpush2.bf16.msra.mxu0 0
      %465 = vmatprep.subr.bf16.mxu0 0
      %466 = vmatpush2.bf16.msra.mxu0 0
      %467 = vmatprep.mubr.bf16.mxu0 0
      %468 = vmatmul.mubr.bf16.gmra.mxu0 %v433
      %v469 = vpop.f32.mrf.mxu0
      %v470 = vadd.f32 %v386, %v469
      %v471 = vpop.f32.mrf.mxu0
      %v472 = vpop.f32.mrf.mxu0
      %v473 = vpop.f32.mrf.mxu0
      %474 = vdwg.mxu0
      %v476 = vunpack.c.l.s4 1966171168
      %v477 = vunpack.c.0.s8 %v476
      %v478 = vlaneseq
      %v479 = vshrl.u32 %v478, 7
      %v480 = vsub.s32 %v477, %v479
      %v481 = vrot.slane %v182, %v480
      %v482 = vcombine.high %v481, %v481
      %v484 = vunpack.c.l.s4 1966171168
      %v485 = vunpack.c.0.s8 %v484
      %v486 = vlaneseq
      %v487 = vshrl.u32 %v486, 7
      %v488 = vsub.s32 %v485, %v487
      %v489 = vrot.slane %v183, %v488
      %v490 = vcombine.high %v489, %v489
      %v492 = vshrl.u32 %v481, 16
      %v494 = vrot.slane %v492, 7
      %v495 = vrot.slane %v494, 1
      %v497 = vshll.u32 %v482, 16
      %v499 = vsel %vm289, %v495, %v497
      %v501 = vshrl.u32 %v489, 16
      %v503 = vrot.slane %v501, 7
      %v504 = vrot.slane %v503, 1
      %v506 = vshll.u32 %v490, 16
      %v508 = vsel %vm289, %v504, %v506
      %v509 = vcombine.low %v499, %v508
      %v511 = vunpack.c.l.s4 1966171168
      %v512 = vunpack.c.0.s8 %v511
      %v513 = vlaneseq
      %v514 = vshrl.u32 %v513, 7
      %v515 = vsub.s32 %v512, %v514
      %v516 = vrot.slane %v509, %v515
      %v518 = vunpack.c.l.s4 1966171168
      %v519 = vunpack.c.0.s8 %v518
      %v520 = vlaneseq
      %v521 = vshrl.u32 %v520, 7
      %v522 = vsub.s32 %v519, %v521
      %v523 = vrot.slane %v516, %v522
      %v532 = vunpack.c.l.b16 %v201
      %v533 = vunpack.c.l.b16 %v202
      %v534 = vunpack.c.l.b16 %v203
      %v535 = vunpack.c.l.b16 %v204
      %v536 = vunpack.c.l.b16 %v205
      %v537 = vunpack.c.l.b16 %v206
      %v538 = vunpack.c.l.b16 %v207
      %v539 = vunpack.c.l.b16 %v208
      %v540 = vpack.c.b16 %v533, %v532
      %v541 = vpack.c.b16 %v535, %v534
      %v542 = vpack.c.b16 %v537, %v536
      %v543 = vpack.c.b16 %v539, %v538
      %v549 = vsel %vm347, %v523, 0
      %551 = vmatprep.subr.bf16.mxu0 0
      %552 = vmatpush1.bf16.msra.mxu0 0
      %553 = vmatprep.subr.bf16.mxu0 0
      %554 = vmatpush1.bf16.msra.mxu0 0
      %555 = vmatprep.subr.bf16.mxu0 0
      %556 = vmatpush1.bf16.msra.mxu0 0
      %557 = vmatprep.subr.bf16.mxu0 0
      %558 = vmatpush1.bf16.msra.mxu0 0
      %559 = vmatprep.subr.bf16.mxu0 0
      %560 = vmatpush1.bf16.msra.mxu0 %v543
      %561 = vmatprep.subr.bf16.mxu0 0
      %562 = vmatpush1.bf16.msra.mxu0 %v542
      %563 = vmatprep.subr.bf16.mxu0 0
      %564 = vmatpush1.bf16.msra.mxu0 %v541
      %565 = vmatprep.subr.bf16.mxu0 0
      %566 = vmatpush1.bf16.msra.mxu0 %v540
      %567 = vmatprep.subr.bf16.mxu0 0
      %568 = vmatpush2.bf16.msra.mxu0 0
      %569 = vmatprep.subr.bf16.mxu0 0
      %570 = vmatpush2.bf16.msra.mxu0 0
      %571 = vmatprep.subr.bf16.mxu0 0
      %572 = vmatpush2.bf16.msra.mxu0 0
      %573 = vmatprep.subr.bf16.mxu0 0
      %574 = vmatpush2.bf16.msra.mxu0 0
      %575 = vmatprep.subr.bf16.mxu0 0
      %576 = vmatpush2.bf16.msra.mxu0 0
      %577 = vmatprep.subr.bf16.mxu0 0
      %578 = vmatpush2.bf16.msra.mxu0 0
      %579 = vmatprep.subr.bf16.mxu0 0
      %580 = vmatpush2.bf16.msra.mxu0 0
      %581 = vmatprep.subr.bf16.mxu0 0
      %582 = vmatpush2.bf16.msra.mxu0 0
      %583 = vmatprep.mubr.bf16.mxu0 0
      %584 = vmatmul.mubr.bf16.gmra.mxu0 %v549
      %v585 = vpop.f32.mrf.mxu0
      %v586 = vadd.f32 0.0, %v585
      %v587 = vpop.f32.mrf.mxu0
      %v588 = vpop.f32.mrf.mxu0
      %v589 = vpop.f32.mrf.mxu0
      %590 = vdwg.mxu0
      %v591 = vadd.f32 %v470, %v586
      %v594 = vcombine.low %v177, %v178
      %v596 = vunpack.c.l.s4 1966171168
      %v597 = vunpack.c.0.s8 %v596
      %v598 = vlaneseq
      %v599 = vshrl.u32 %v598, 7
      %v600 = vsub.s32 %v597, %v599
      %v601 = vrot.slane %v594, %v600
      %v603 = vunpack.c.l.s4 1966171168
      %v604 = vunpack.c.0.s8 %v603
      %v605 = vlaneseq
      %v606 = vshrl.u32 %v605, 7
      %v607 = vsub.s32 %v604, %v606
      %v608 = vrot.slane %v601, %v607
      %v617 = vunpack.c.l.b16 %v209
      %v618 = vunpack.c.l.b16 %v210
      %v619 = vunpack.c.l.b16 %v211
      %v620 = vunpack.c.l.b16 %v212
      %v621 = vunpack.c.l.b16 %v213
      %v622 = vunpack.c.l.b16 %v214
      %v623 = vunpack.c.l.b16 %v215
      %v624 = vunpack.c.l.b16 %v216
      %v625 = vpack.c.b16 %v618, %v617
      %v626 = vpack.c.b16 %v620, %v619
      %v627 = vpack.c.b16 %v622, %v621
      %v628 = vpack.c.b16 %v624, %v623
      %v634 = vsel %vm347, %v608, 0
      %636 = vmatprep.subr.bf16.mxu0 0
      %637 = vmatpush1.bf16.msra.mxu0 0
      %638 = vmatprep.subr.bf16.mxu0 0
      %639 = vmatpush1.bf16.msra.mxu0 0
      %640 = vmatprep.subr.bf16.mxu0 0
      %641 = vmatpush1.bf16.msra.mxu0 0
      %642 = vmatprep.subr.bf16.mxu0 0
      %643 = vmatpush1.bf16.msra.mxu0 0
      %644 = vmatprep.subr.bf16.mxu0 0
      %645 = vmatpush1.bf16.msra.mxu0 %v628
      %646 = vmatprep.subr.bf16.mxu0 0
      %647 = vmatpush1.bf16.msra.mxu0 %v627
      %648 = vmatprep.subr.bf16.mxu0 0
      %649 = vmatpush1.bf16.msra.mxu0 %v626
      %650 = vmatprep.subr.bf16.mxu0 0
      %651 = vmatpush1.bf16.msra.mxu0 %v625
      %652 = vmatprep.subr.bf16.mxu0 0
      %653 = vmatpush2.bf16.msra.mxu0 0
      %654 = vmatprep.subr.bf16.mxu0 0
      %655 = vmatpush2.bf16.msra.mxu0 0
      %656 = vmatprep.subr.bf16.mxu0 0
      %657 = vmatpush2.bf16.msra.mxu0 0
      %658 = vmatprep.subr.bf16.mxu0 0
      %659 = vmatpush2.bf16.msra.mxu0 0
      %660 = vmatprep.subr.bf16.mxu0 0
      %661 = vmatpush2.bf16.msra.mxu0 0
      %662 = vmatprep.subr.bf16.mxu0 0
      %663 = vmatpush2.bf16.msra.mxu0 0
      %664 = vmatprep.subr.bf16.mxu0 0
      %665 = vmatpush2.bf16.msra.mxu0 0
      %666 = vmatprep.subr.bf16.mxu0 0
      %667 = vmatpush2.bf16.msra.mxu0 0
      %668 = vmatprep.mubr.bf16.mxu0 0
      %669 = vmatmul.mubr.bf16.gmra.mxu0 %v634
      %v670 = vpop.f32.mrf.mxu0
      %v671 = vadd.f32 0.0, %v670
      %v672 = vpop.f32.mrf.mxu0
      %v673 = vpop.f32.mrf.mxu0
      %v674 = vpop.f32.mrf.mxu0
      %675 = vdwg.mxu0
      %v676 = vadd.f32 %v591, %v671
      %v680 = vunpack.c.l.s4 1966171168
      %v681 = vunpack.c.0.s8 %v680
      %v682 = vlaneseq
      %v683 = vshrl.u32 %v682, 7
      %v684 = vsub.s32 %v681, %v683
      %v685 = vrot.slane %v175, %v684
      %v686 = vcombine.high %v685, %v685
      %v688 = vunpack.c.l.s4 1966171168
      %v689 = vunpack.c.0.s8 %v688
      %v690 = vlaneseq
      %v691 = vshrl.u32 %v690, 7
      %v692 = vsub.s32 %v689, %v691
      %v693 = vrot.slane %v176, %v692
      %v694 = vcombine.high %v693, %v693
      %v696 = vshrl.u32 %v685, 16
      %v698 = vrot.slane %v696, 7
      %v699 = vrot.slane %v698, 1
      %v701 = vshll.u32 %v686, 16
      %v703 = vsel %vm289, %v699, %v701
      %v705 = vshrl.u32 %v693, 16
      %v707 = vrot.slane %v705, 7
      %v708 = vrot.slane %v707, 1
      %v710 = vshll.u32 %v694, 16
      %v712 = vsel %vm289, %v708, %v710
      %v713 = vcombine.low %v703, %v712
      %v715 = vunpack.c.l.s4 1966171168
      %v716 = vunpack.c.0.s8 %v715
      %v717 = vlaneseq
      %v718 = vshrl.u32 %v717, 7
      %v719 = vsub.s32 %v716, %v718
      %v720 = vrot.slane %v713, %v719
      %v722 = vunpack.c.l.s4 1966171168
      %v723 = vunpack.c.0.s8 %v722
      %v724 = vlaneseq
      %v725 = vshrl.u32 %v724, 7
      %v726 = vsub.s32 %v723, %v725
      %v727 = vrot.slane %v720, %v726
      %v736 = vunpack.c.l.b16 %v217
      %v737 = vunpack.c.l.b16 %v218
      %v738 = vunpack.c.l.b16 %v219
      %v739 = vunpack.c.l.b16 %v220
      %v740 = vunpack.c.l.b16 %v221
      %v741 = vunpack.c.l.b16 %v222
      %v742 = vunpack.c.l.b16 %v223
      %v743 = vunpack.c.l.b16 %v224
      %v744 = vpack.c.b16 %v737, %v736
      %v745 = vpack.c.b16 %v739, %v738
      %v746 = vpack.c.b16 %v741, %v740
      %v747 = vpack.c.b16 %v743, %v742
      %v753 = vsel %vm347, %v727, 0
      %755 = vmatprep.subr.bf16.mxu0 0
      %756 = vmatpush1.bf16.msra.mxu0 0
      %757 = vmatprep.subr.bf16.mxu0 0
      %758 = vmatpush1.bf16.msra.mxu0 0
      %759 = vmatprep.subr.bf16.mxu0 0
      %760 = vmatpush1.bf16.msra.mxu0 0
      %761 = vmatprep.subr.bf16.mxu0 0
      %762 = vmatpush1.bf16.msra.mxu0 0
      %763 = vmatprep.subr.bf16.mxu0 0
      %764 = vmatpush1.bf16.msra.mxu0 %v747
      %765 = vmatprep.subr.bf16.mxu0 0
      %766 = vmatpush1.bf16.msra.mxu0 %v746
      %767 = vmatprep.subr.bf16.mxu0 0
      %768 = vmatpush1.bf16.msra.mxu0 %v745
      %769 = vmatprep.subr.bf16.mxu0 0
      %770 = vmatpush1.bf16.msra.mxu0 %v744
      %771 = vmatprep.subr.bf16.mxu0 0
      %772 = vmatpush2.bf16.msra.mxu0 0
      %773 = vmatprep.subr.bf16.mxu0 0
      %774 = vmatpush2.bf16.msra.mxu0 0
      %775 = vmatprep.subr.bf16.mxu0 0
      %776 = vmatpush2.bf16.msra.mxu0 0
      %777 = vmatprep.subr.bf16.mxu0 0
      %778 = vmatpush2.bf16.msra.mxu0 0
      %779 = vmatprep.subr.bf16.mxu0 0
      %780 = vmatpush2.bf16.msra.mxu0 0
      %781 = vmatprep.subr.bf16.mxu0 0
      %782 = vmatpush2.bf16.msra.mxu0 0
      %783 = vmatprep.subr.bf16.mxu0 0
      %784 = vmatpush2.bf16.msra.mxu0 0
      %785 = vmatprep.subr.bf16.mxu0 0
      %786 = vmatpush2.bf16.msra.mxu0 0
      %787 = vmatprep.mubr.bf16.mxu0 0
      %788 = vmatmul.mubr.bf16.gmra.mxu0 %v753
      %v789 = vpop.f32.mrf.mxu0
      %v790 = vadd.f32 0.0, %v789
      %v791 = vpop.f32.mrf.mxu0
      %v792 = vpop.f32.mrf.mxu0
      %v793 = vpop.f32.mrf.mxu0
      %794 = vdwg.mxu0
      %v795 = vadd.f32 %v676, %v790
      %v797 = vunpack.c.l.s4 1966171168
      %v798 = vunpack.c.0.s8 %v797
      %v799 = vlaneseq
      %v800 = vshrl.u32 %v799, 7
      %v801 = vsub.s32 %v798, %v800
      %v802 = vrot.slane %v177, %v801
      %v803 = vcombine.high %v802, %v802
      %v805 = vunpack.c.l.s4 1966171168
      %v806 = vunpack.c.0.s8 %v805
      %v807 = vlaneseq
      %v808 = vshrl.u32 %v807, 7
      %v809 = vsub.s32 %v806, %v808
      %v810 = vrot.slane %v178, %v809
      %v811 = vcombine.high %v810, %v810
      %v813 = vshrl.u32 %v802, 16
      %v815 = vrot.slane %v813, 7
      %v816 = vrot.slane %v815, 1
      %v818 = vshll.u32 %v803, 16
      %v820 = vsel %vm289, %v816, %v818
      %v822 = vshrl.u32 %v810, 16
      %v824 = vrot.slane %v822, 7
      %v825 = vrot.slane %v824, 1
      %v827 = vshll.u32 %v811, 16
      %v829 = vsel %vm289, %v825, %v827
      %v830 = vcombine.low %v820, %v829
      %v832 = vunpack.c.l.s4 1966171168
      %v833 = vunpack.c.0.s8 %v832
      %v834 = vlaneseq
      %v835 = vshrl.u32 %v834, 7
      %v836 = vsub.s32 %v833, %v835
      %v837 = vrot.slane %v830, %v836
      %v839 = vunpack.c.l.s4 1966171168
      %v840 = vunpack.c.0.s8 %v839
      %v841 = vlaneseq
      %v842 = vshrl.u32 %v841, 7
      %v843 = vsub.s32 %v840, %v842
      %v844 = vrot.slane %v837, %v843
      %v853 = vunpack.c.l.b16 %v225
      %v854 = vunpack.c.l.b16 %v226
      %v855 = vunpack.c.l.b16 %v227
      %v856 = vunpack.c.l.b16 %v228
      %v857 = vunpack.c.l.b16 %v229
      %v858 = vunpack.c.l.b16 %v230
      %v859 = vunpack.c.l.b16 %v231
      %v860 = vunpack.c.l.b16 %v232
      %v861 = vpack.c.b16 %v854, %v853
      %v862 = vpack.c.b16 %v856, %v855
      %v863 = vpack.c.b16 %v858, %v857
      %v864 = vpack.c.b16 %v860, %v859
      %v870 = vsel %vm347, %v844, 0
      %872 = vmatprep.subr.bf16.mxu0 0
      %873 = vmatpush1.bf16.msra.mxu0 0
      %874 = vmatprep.subr.bf16.mxu0 0
      %875 = vmatpush1.bf16.msra.mxu0 0
      %876 = vmatprep.subr.bf16.mxu0 0
      %877 = vmatpush1.bf16.msra.mxu0 0
      %878 = vmatprep.subr.bf16.mxu0 0
      %879 = vmatpush1.bf16.msra.mxu0 0
      %880 = vmatprep.subr.bf16.mxu0 0
      %881 = vmatpush1.bf16.msra.mxu0 %v864
      %882 = vmatprep.subr.bf16.mxu0 0
      %883 = vmatpush1.bf16.msra.mxu0 %v863
      %884 = vmatprep.subr.bf16.mxu0 0
      %885 = vmatpush1.bf16.msra.mxu0 %v862
      %886 = vmatprep.subr.bf16.mxu0 0
      %887 = vmatpush1.bf16.msra.mxu0 %v861
      %888 = vmatprep.subr.bf16.mxu0 0
      %889 = vmatpush2.bf16.msra.mxu0 0
      %890 = vmatprep.subr.bf16.mxu0 0
      %891 = vmatpush2.bf16.msra.mxu0 0
      %892 = vmatprep.subr.bf16.mxu0 0
      %893 = vmatpush2.bf16.msra.mxu0 0
      %894 = vmatprep.subr.bf16.mxu0 0
      %895 = vmatpush2.bf16.msra.mxu0 0
      %896 = vmatprep.subr.bf16.mxu0 0
      %897 = vmatpush2.bf16.msra.mxu0 0
      %898 = vmatprep.subr.bf16.mxu0 0
      %899 = vmatpush2.bf16.msra.mxu0 0
      %900 = vmatprep.subr.bf16.mxu0 0
      %901 = vmatpush2.bf16.msra.mxu0 0
      %902 = vmatprep.subr.bf16.mxu0 0
      %903 = vmatpush2.bf16.msra.mxu0 0
      %904 = vmatprep.mubr.bf16.mxu0 0
      %905 = vmatmul.mubr.bf16.gmra.mxu0 %v870
      %v906 = vpop.f32.mrf.mxu0
      %v907 = vadd.f32 0.0, %v906
      %v908 = vpop.f32.mrf.mxu0
      %v909 = vpop.f32.mrf.mxu0
      %v910 = vpop.f32.mrf.mxu0
      %911 = vdwg.mxu0
      %v912 = vadd.f32 %v795, %v907
      %v914 = vcombine.low %v183, %v184
      %v916 = vunpack.c.l.s4 1966171168
      %v917 = vunpack.c.0.s8 %v916
      %v918 = vlaneseq
      %v919 = vshrl.u32 %v918, 7
      %v920 = vsub.s32 %v917, %v919
      %v921 = vrot.slane %v914, %v920
      %v923 = vunpack.c.l.s4 1966171168
      %v924 = vunpack.c.0.s8 %v923
      %v925 = vlaneseq
      %v926 = vshrl.u32 %v925, 7
      %v927 = vsub.s32 %v924, %v926
      %v928 = vrot.slane %v921, %v927
      %v937 = vunpack.c.l.b16 %v233
      %v938 = vunpack.c.l.b16 %v234
      %v939 = vunpack.c.l.b16 %v235
      %v940 = vunpack.c.l.b16 %v236
      %v941 = vunpack.c.l.b16 %v237
      %v942 = vunpack.c.l.b16 %v238
      %v943 = vunpack.c.l.b16 %v239
      %v944 = vunpack.c.l.b16 %v240
      %v945 = vpack.c.b16 %v938, %v937
      %v946 = vpack.c.b16 %v940, %v939
      %v947 = vpack.c.b16 %v942, %v941
      %v948 = vpack.c.b16 %v944, %v943
      %v954 = vsel %vm347, %v928, 0
      %956 = vmatprep.subr.bf16.mxu0 0
      %957 = vmatpush1.bf16.msra.mxu0 0
      %958 = vmatprep.subr.bf16.mxu0 0
      %959 = vmatpush1.bf16.msra.mxu0 0
      %960 = vmatprep.subr.bf16.mxu0 0
      %961 = vmatpush1.bf16.msra.mxu0 0
      %962 = vmatprep.subr.bf16.mxu0 0
      %963 = vmatpush1.bf16.msra.mxu0 0
      %964 = vmatprep.subr.bf16.mxu0 0
      %965 = vmatpush1.bf16.msra.mxu0 %v948
      %966 = vmatprep.subr.bf16.mxu0 0
      %967 = vmatpush1.bf16.msra.mxu0 %v947
      %968 = vmatprep.subr.bf16.mxu0 0
      %969 = vmatpush1.bf16.msra.mxu0 %v946
      %970 = vmatprep.subr.bf16.mxu0 0
      %971 = vmatpush1.bf16.msra.mxu0 %v945
      %972 = vmatprep.subr.bf16.mxu0 0
      %973 = vmatpush2.bf16.msra.mxu0 0
      %974 = vmatprep.subr.bf16.mxu0 0
      %975 = vmatpush2.bf16.msra.mxu0 0
      %976 = vmatprep.subr.bf16.mxu0 0
      %977 = vmatpush2.bf16.msra.mxu0 0
      %978 = vmatprep.subr.bf16.mxu0 0
      %979 = vmatpush2.bf16.msra.mxu0 0
      %980 = vmatprep.subr.bf16.mxu0 0
      %981 = vmatpush2.bf16.msra.mxu0 0
      %982 = vmatprep.subr.bf16.mxu0 0
      %983 = vmatpush2.bf16.msra.mxu0 0
      %984 = vmatprep.subr.bf16.mxu0 0
      %985 = vmatpush2.bf16.msra.mxu0 0
      %986 = vmatprep.subr.bf16.mxu0 0
      %987 = vmatpush2.bf16.msra.mxu0 0
      %988 = vmatprep.mubr.bf16.mxu0 0
      %989 = vmatmul.mubr.bf16.gmra.mxu0 %v954
      %v990 = vpop.f32.mrf.mxu0
      %v991 = vadd.f32 0.0, %v990
      %v992 = vpop.f32.mrf.mxu0
      %v993 = vpop.f32.mrf.mxu0
      %v994 = vpop.f32.mrf.mxu0
      %995 = vdwg.mxu0
      %v996 = vadd.f32 %v912, %v991
      %v999 = vunpack.c.l.s4 1966171168
      %v1000 = vunpack.c.0.s8 %v999
      %v1001 = vlaneseq
      %v1002 = vshrl.u32 %v1001, 7
      %v1003 = vsub.s32 %v1000, %v1002
      %v1004 = vrot.slane %v181, %v1003
      %v1005 = vcombine.high %v1004, %v1004
      %v1007 = vshrl.u32 %v1004, 16
      %v1009 = vrot.slane %v1007, 7
      %v1010 = vrot.slane %v1009, 1
      %v1012 = vshll.u32 %v1005, 16
      %v1014 = vsel %vm289, %v1010, %v1012
      %v1015 = vcombine.low %v307, %v1014
      %v1017 = vunpack.c.l.s4 1966171168
      %v1018 = vunpack.c.0.s8 %v1017
      %v1019 = vlaneseq
      %v1020 = vshrl.u32 %v1019, 7
      %v1021 = vsub.s32 %v1018, %v1020
      %v1022 = vrot.slane %v1015, %v1021
      %v1024 = vunpack.c.l.s4 1966171168
      %v1025 = vunpack.c.0.s8 %v1024
      %v1026 = vlaneseq
      %v1027 = vshrl.u32 %v1026, 7
      %v1028 = vsub.s32 %v1025, %v1027
      %v1029 = vrot.slane %v1022, %v1028
      %v1038 = vunpack.c.l.b16 %v241
      %v1039 = vunpack.c.l.b16 %v242
      %v1040 = vunpack.c.l.b16 %v243
      %v1041 = vunpack.c.l.b16 %v244
      %v1042 = vunpack.c.l.b16 %v245
      %v1043 = vunpack.c.l.b16 %v246
      %v1044 = vunpack.c.l.b16 %v247
      %v1045 = vunpack.c.l.b16 %v248
      %v1046 = vpack.c.b16 %v1039, %v1038
      %v1047 = vpack.c.b16 %v1041, %v1040
      %v1048 = vpack.c.b16 %v1043, %v1042
      %v1049 = vpack.c.b16 %v1045, %v1044
      %v1055 = vsel %vm347, %v1029, 0
      %1057 = vmatprep.subr.bf16.mxu0 0
      %1058 = vmatpush1.bf16.msra.mxu0 0
      %1059 = vmatprep.subr.bf16.mxu0 0
      %1060 = vmatpush1.bf16.msra.mxu0 0
      %1061 = vmatprep.subr.bf16.mxu0 0
      %1062 = vmatpush1.bf16.msra.mxu0 0
      %1063 = vmatprep.subr.bf16.mxu0 0
      %1064 = vmatpush1.bf16.msra.mxu0 0
      %1065 = vmatprep.subr.bf16.mxu0 0
      %1066 = vmatpush1.bf16.msra.mxu0 %v1049
      %1067 = vmatprep.subr.bf16.mxu0 0
      %1068 = vmatpush1.bf16.msra.mxu0 %v1048
      %1069 = vmatprep.subr.bf16.mxu0 0
      %1070 = vmatpush1.bf16.msra.mxu0 %v1047
      %1071 = vmatprep.subr.bf16.mxu0 0
      %1072 = vmatpush1.bf16.msra.mxu0 %v1046
      %1073 = vmatprep.subr.bf16.mxu0 0
      %1074 = vmatpush2.bf16.msra.mxu0 0
      %1075 = vmatprep.subr.bf16.mxu0 0
      %1076 = vmatpush2.bf16.msra.mxu0 0
      %1077 = vmatprep.subr.bf16.mxu0 0
      %1078 = vmatpush2.bf16.msra.mxu0 0
      %1079 = vmatprep.subr.bf16.mxu0 0
      %1080 = vmatpush2.bf16.msra.mxu0 0
      %1081 = vmatprep.subr.bf16.mxu0 0
      %1082 = vmatpush2.bf16.msra.mxu0 0
      %1083 = vmatprep.subr.bf16.mxu0 0
      %1084 = vmatpush2.bf16.msra.mxu0 0
      %1085 = vmatprep.subr.bf16.mxu0 0
      %1086 = vmatpush2.bf16.msra.mxu0 0
      %1087 = vmatprep.subr.bf16.mxu0 0
      %1088 = vmatpush2.bf16.msra.mxu0 0
      %1089 = vmatprep.mubr.bf16.mxu0 0
      %1090 = vmatmul.mubr.bf16.gmra.mxu0 %v1055
      %v1091 = vpop.f32.mrf.mxu0
      %v1092 = vadd.f32 0.0, %v1091
      %v1093 = vpop.f32.mrf.mxu0
      %v1094 = vpop.f32.mrf.mxu0
      %v1095 = vpop.f32.mrf.mxu0
      %1096 = vdwg.mxu0
      %v1097 = vadd.f32 %v996, %v1092
      %v1099 = vunpack.c.l.s4 1966171168
      %v1100 = vunpack.c.0.s8 %v1099
      %v1101 = vlaneseq
      %v1102 = vshrl.u32 %v1101, 7
      %v1103 = vsub.s32 %v1100, %v1102
      %v1104 = vrot.slane %v184, %v1103
      %v1105 = vcombine.high %v1104, %v1104
      %v1107 = vshrl.u32 %v1104, 16
      %v1109 = vrot.slane %v1107, 7
      %v1110 = vrot.slane %v1109, 1
      %v1112 = vshll.u32 %v1105, 16
      %v1114 = vsel %vm289, %v1110, %v1112
      %v1115 = vcombine.low %v508, %v1114
      %v1117 = vunpack.c.l.s4 1966171168
      %v1118 = vunpack.c.0.s8 %v1117
      %v1119 = vlaneseq
      %v1120 = vshrl.u32 %v1119, 7
      %v1121 = vsub.s32 %v1118, %v1120
      %v1122 = vrot.slane %v1115, %v1121
      %v1124 = vunpack.c.l.s4 1966171168
      %v1125 = vunpack.c.0.s8 %v1124
      %v1126 = vlaneseq
      %v1127 = vshrl.u32 %v1126, 7
      %v1128 = vsub.s32 %v1125, %v1127
      %v1129 = vrot.slane %v1122, %v1128
      %v1138 = vunpack.c.l.b16 %v249
      %v1139 = vunpack.c.l.b16 %v250
      %v1140 = vunpack.c.l.b16 %v251
      %v1141 = vunpack.c.l.b16 %v252
      %v1142 = vunpack.c.l.b16 %v253
      %v1143 = vunpack.c.l.b16 %v254
      %v1144 = vunpack.c.l.b16 %v255
      %v1145 = vunpack.c.l.b16 %v256
      %v1146 = vpack.c.b16 %v1139, %v1138
      %v1147 = vpack.c.b16 %v1141, %v1140
      %v1148 = vpack.c.b16 %v1143, %v1142
      %v1149 = vpack.c.b16 %v1145, %v1144
      %v1155 = vsel %vm347, %v1129, 0
      %1157 = vmatprep.subr.bf16.mxu0 0
      %1158 = vmatpush1.bf16.msra.mxu0 0
      %1159 = vmatprep.subr.bf16.mxu0 0
      %1160 = vmatpush1.bf16.msra.mxu0 0
      %1161 = vmatprep.subr.bf16.mxu0 0
      %1162 = vmatpush1.bf16.msra.mxu0 0
      %1163 = vmatprep.subr.bf16.mxu0 0
      %1164 = vmatpush1.bf16.msra.mxu0 0
      %1165 = vmatprep.subr.bf16.mxu0 0
      %1166 = vmatpush1.bf16.msra.mxu0 %v1149
      %1167 = vmatprep.subr.bf16.mxu0 0
      %1168 = vmatpush1.bf16.msra.mxu0 %v1148
      %1169 = vmatprep.subr.bf16.mxu0 0
      %1170 = vmatpush1.bf16.msra.mxu0 %v1147
      %1171 = vmatprep.subr.bf16.mxu0 0
      %1172 = vmatpush1.bf16.msra.mxu0 %v1146
      %1173 = vmatprep.subr.bf16.mxu0 0
      %1174 = vmatpush2.bf16.msra.mxu0 0
      %1175 = vmatprep.subr.bf16.mxu0 0
      %1176 = vmatpush2.bf16.msra.mxu0 0
      %1177 = vmatprep.subr.bf16.mxu0 0
      %1178 = vmatpush2.bf16.msra.mxu0 0
      %1179 = vmatprep.subr.bf16.mxu0 0
      %1180 = vmatpush2.bf16.msra.mxu0 0
      %1181 = vmatprep.subr.bf16.mxu0 0
      %1182 = vmatpush2.bf16.msra.mxu0 0
      %1183 = vmatprep.subr.bf16.mxu0 0
      %1184 = vmatpush2.bf16.msra.mxu0 0
      %1185 = vmatprep.subr.bf16.mxu0 0
      %1186 = vmatpush2.bf16.msra.mxu0 0
      %1187 = vmatprep.subr.bf16.mxu0 0
      %1188 = vmatpush2.bf16.msra.mxu0 0
      %1189 = vmatprep.mubr.bf16.mxu0 0
      %1190 = vmatmul.mubr.bf16.gmra.mxu0 %v1155
      %v1191 = vpop.f32.mrf.mxu0
      %v1192 = vadd.f32 0.0, %v1191
      %v1193 = vpop.f32.mrf.mxu0
      %v1194 = vpop.f32.mrf.mxu0
      %v1195 = vpop.f32.mrf.mxu0
      %1196 = vdwg.mxu0
      %v1197 = vadd.f32 %v1097, %v1192
      %v1198 = vld [vmem:[%s2] sm:$0x1]
      %v1200 = vlaneseq
      %v1201 = vshrl.u32 %v1200, 7
      %v1202 = vsub.s32 0, %v1201
      %v1203 = vrot.slane %v1198, %v1202
      %v1205 = vadd.f32 %v1197, %v1203
      %v1206 = vmax.f32 %v1205, 0.0
      %v1209 = vunpack.c.l.s4 1983009808
      %v1210 = vunpack.c.0.s8 %v1209
      %v1211 = vlaneseq
      %v1212 = vshrl.u32 %v1211, 7
      %v1213 = vsub.s32 %v1210, %v1212
      %v1214 = vrot.slane %v1206, %v1213
      %v1215 = vcombine.high %v1214, %v1214
      %v1218 = vpack.c.bf16 %v1214, %v1214
      %v1219 = vpack.c.bf16 %v1215, %v1215
      %1220 = vst [vmem:[%s173] sm:$0x1] %v1218
      %1221 = vst [vmem:[%s173 + $0x1] sm:$0x1] %v1219
      %p1222 = scmp.lt.s32.totalorder %s14, 1
      %s1223 = scalar_select %p1222, %s14, 1
      %s1224 = smul.addr %s1223, 2
      %s1225 = scalar_lea.vmem %s3, %s1224
      // Predicated region
      $region33: #{forward.8} parent=31 // pred_check
        %p1226 = pneg %p100
      $region34: #{forward.8} parent=31 // pred_check_branch
        %1228 = sbr.rel (%p1226) target = $region36
      $region35: #{forward.8} parent=31 // pred_region
        _
      $region36: #{forward.8} parent=31 // pred_fallthru
        _
    $region32: #{forward.8} parent=5 // pred_fallthru
      _
    %p1229 = scmp.le.s32.totalorder 2, %s9
    // Predicated region
    $region37: #{forward.8} parent=5 // pred_check
      %p1230 = pneg %p1229
    $region38: #{forward.8} parent=5 // pred_check_branch
      %1232 = sbr.rel (%p1230) target = $region40
    $region39: #{forward.8} parent=5 // pred_region
      %s1233 = ssub.s32 %s9, 2
      // Predicated region
      $region41: #{forward.8} parent=39 // pred_check
        %p1234 = pneg %p106
      $region42: #{forward.8} parent=39 // pred_check_branch
        %1236 = sbr.rel (%p1234) target = $region44
      $region43: #{forward.8} parent=39 // pred_region
        %p1237 = scmp.lt.s32.totalorder %s15, 1
        %s1238 = scalar_select %p1237, %s15, 1
        %s1239 = smul.addr %s1238, 2
        %s1240 = scalar_lea.vmem %s3, %s1239
      $region44: #{forward.8} parent=39 // pred_fallthru
        _
    $region40: #{forward.8} parent=5 // pred_fallthru
      _
  $region6: #{forward.8} parent=0 // loop_footer
    %s13 = sadd.s32 1, %s9
  $region7: #{forward.8} parent=0 // loop_footer_branch
    %8 = sbr.rel target = $region3
  $region8: #{forward.8} parent=0 // loop_exit
    _

// kernel: forward.10
$region0: #{forward.10}
  #allocation0 [shape = 'u32[]', space=smem, size = 0x4, offset = 0x4, fixed_abs, tag = 'smem constant byte address 0x4 - core index']
  #allocation1 [shape = 'u32[144,128]{1,0:T(1,128)}', space=vmem, size = 0x12000, scoped, tag = 'internal scratch']
  %s0 = inlined_call_operand.vmem [shape: bf16[2,5,5,64], index: 0, kind: input, shape index: {}]
  %s1 = inlined_call_operand.vmem [shape: bf16[4,64,128], index: 1, kind: input, shape index: {}]
  %s2 = inlined_call_operand.vmem [shape: f32[1,128], index: 2, kind: input, shape index: {}]
  %s3 = inlined_call_operand.vmem [shape: bf16[2,4,4,128], index: 3, kind: output, shape index: {}]
  %s4 = sld [smem:[#allocation0]]
  $region45: #{forward.10} parent=0
    _
  %s6 = ssub.s32 1, %s4
  %s7 = scalar_select 0, %s6, %s4
  loop: start=0, step=1, limit=4
  $region2: #{forward.10} parent=0 // loop_pre_header
    _
  $region3: #{forward.10} parent=0 // loop_header
    %s9 = sphi 0, %s13
    %p10 = scmp.ge.s32.totalorder %s9, 4
    %s19 = sphi 0, %s21
    %s22 = sphi 0, %s19
    %s23 = sphi 0, %s22
    %s39 = sphi 0, %s23
    %s43 = sphi 0, %s43
    %s45 = sphi 0, %s43
    %s46 = sphi 0, %s45
    %s60 = sphi 0, %s46
    %s64 = sphi 0, %s64
    %s66 = sphi 0, %s64
    %s67 = sphi 0, %s66
    %s81 = sphi 0, %s67
    %s87 = sphi 0, %s89
    %s90 = sphi 0, %s87
    %s91 = sphi 0, %s90
    %s107 = sphi 0, %s91
  $region4: #{forward.10} parent=0 // loop_header_branch
    %12 = sbr.rel (%p10) target = $region8
  $region5: #{forward.10} parent=0 // loop_body
    %s14 = ssub.s32 %s9, 1
    %s15 = ssub.s32 %s9, 2
    %s16 = sadd.s32 %s9, 1
    %s17 = ssub.s32 %s9, %s16
    %p18 = scmp.eq.s32.totalorder %s17, 0
    %s20 = sadd.s32 %s19, 1
    %s21 = scalar_select %p18, %s19, %s20
    %p24 = pneg %p18
    %p25 = scmp.eq.s32.totalorder %s9, 1
    %p26 = por %p24, %p25
    %p27 = scmp.ne.s32.totalorder %s19, %s22
    %p28 = scmp.eq.s32.totalorder %s9, 0
    %p29 = por %p27, %p28
    %p30 = scmp.ne.s32.totalorder %s19, %s22
    %p31 = scmp.eq.s32.totalorder %s14, 1
    %p32 = por %p30, %p31
    %p33 = scmp.ne.s32.totalorder %s22, %s23
    %p34 = scmp.eq.s32.totalorder %s14, 0
    %p35 = por %p33, %p34
    %p36 = scmp.ne.s32.totalorder %s22, %s23
    %p37 = scmp.eq.s32.totalorder %s15, 1
    %p38 = por %p36, %p37
    %p40 = scmp.ne.s32.totalorder %s23, %s39
    %p41 = scmp.eq.s32.totalorder %s15, 0
    %p42 = por %p40, %p41
    %s44 = sadd.s32 %s43, 1
    %p47 = scmp.eq.s32.totalorder %s9, 1
    %p48 = scmp.ne.s32.totalorder %s43, %s45
    %p49 = scmp.eq.s32.totalorder %s9, 0
    %p50 = por %p48, %p49
    %p51 = scmp.ne.s32.totalorder %s43, %s45
    %p52 = scmp.eq.s32.totalorder %s14, 1
    %p53 = por %p51, %p52
    %p54 = scmp.ne.s32.totalorder %s45, %s46
    %p55 = scmp.eq.s32.totalorder %s14, 0
    %p56 = por %p54, %p55
    %p57 = scmp.ne.s32.totalorder %s45, %s46
    %p58 = scmp.eq.s32.totalorder %s15, 1
    %p59 = por %p57, %p58
    %p61 = scmp.ne.s32.totalorder %s46, %s60
    %p62 = scmp.eq.s32.totalorder %s15, 0
    %p63 = por %p61, %p62
    %s65 = sadd.s32 %s64, 1
    %p68 = scmp.eq.s32.totalorder %s9, 1
    %p69 = scmp.ne.s32.totalorder %s64, %s66
    %p70 = scmp.eq.s32.totalorder %s9, 0
    %p71 = por %p69, %p70
    %p72 = scmp.ne.s32.totalorder %s64, %s66
    %p73 = scmp.eq.s32.totalorder %s14, 1
    %p74 = por %p72, %p73
    %p75 = scmp.ne.s32.totalorder %s66, %s67
    %p76 = scmp.eq.s32.totalorder %s14, 0
    %p77 = por %p75, %p76
    %p78 = scmp.ne.s32.totalorder %s66, %s67
    %p79 = scmp.eq.s32.totalorder %s15, 1
    %p80 = por %p78, %p79
    %p82 = scmp.ne.s32.totalorder %s67, %s81
    %p83 = scmp.eq.s32.totalorder %s15, 0
    %p84 = por %p82, %p83
    %s85 = ssub.s32 %s9, %s16
    %p86 = scmp.eq.s32.totalorder %s85, 0
    %s88 = sadd.s32 %s87, 1
    %s89 = scalar_select %p86, %s87, %s88
    %p92 = pneg %p86
    %p93 = scmp.eq.s32.totalorder %s9, 1
    %p94 = por %p92, %p93
    %p95 = scmp.ne.s32.totalorder %s87, %s90
    %p96 = scmp.eq.s32.totalorder %s9, 0
    %p97 = por %p95, %p96
    %p98 = scmp.ne.s32.totalorder %s87, %s90
    %p99 = scmp.eq.s32.totalorder %s14, 1
    %p100 = por %p98, %p99
    %p101 = scmp.ne.s32.totalorder %s90, %s91
    %p102 = scmp.eq.s32.totalorder %s14, 0
    %p103 = por %p101, %p102
    %p104 = scmp.ne.s32.totalorder %s90, %s91
    %p105 = scmp.eq.s32.totalorder %s15, 1
    %p106 = por %p104, %p105
    %p108 = scmp.ne.s32.totalorder %s91, %s107
    %p109 = scmp.eq.s32.totalorder %s15, 0
    %p110 = por %p108, %p109
    %p111 = scmp.le.s32.totalorder 1, %s9
    %p112 = scmp.lt.s32.totalorder %s9, 3
    %p113 = pnand %p111, %p112
    %p114 = pneg %p113
    // Predicated region
    $region9: #{forward.10} parent=5 // pred_check
      _
    $region10: #{forward.10} parent=5 // pred_check_branch
      %116 = sbr.rel (%p113) target = $region12
    $region11: #{forward.10} parent=5 // pred_region
      %s117 = ssub.s32 %s9, 1
      // Predicated region
      $region13: #{forward.10} parent=11 // pred_check
        %p118 = pneg %p56
      $region14: #{forward.10} parent=11 // pred_check_branch
        %120 = sbr.rel (%p118) target = $region16
      $region15: #{forward.10} parent=11 // pred_region
        _
      $region16: #{forward.10} parent=11 // pred_fallthru
        _
      // Predicated region
      $region17: #{forward.10} parent=11 // pred_check
        %p121 = pneg %p77
      $region18: #{forward.10} parent=11 // pred_check_branch
        %123 = sbr.rel (%p121) target = $region20
      $region19: #{forward.10} parent=11 // pred_region
        _
      $region20: #{forward.10} parent=11 // pred_fallthru
        _
    $region12: #{forward.10} parent=5 // pred_fallthru
      _
    %p124 = scmp.lt.s32.totalorder %s9, 2
    // Predicated region
    $region21: #{forward.10} parent=5 // pred_check
      %p125 = pneg %p124
    $region22: #{forward.10} parent=5 // pred_check_branch
      %127 = sbr.rel (%p125) target = $region24
    $region23: #{forward.10} parent=5 // pred_region
      // Predicated region
      $region25: #{forward.10} parent=23 // pred_check
        %p128 = pneg %p29
      $region26: #{forward.10} parent=23 // pred_check_branch
        %130 = sbr.rel (%p128) target = $region28
      $region27: #{forward.10} parent=23 // pred_region
        %p131 = scmp.lt.s32.totalorder %s9, 1
        %s132 = scalar_select %p131, %s9, 1
        %s133 = smul.addr %s132, 5
        %s134 = smul.addr %s133, 4
        %s135 = scalar_lea.vmem %s0, %s134
      $region28: #{forward.10} parent=23 // pred_fallthru
        _
    $region24: #{forward.10} parent=5 // pred_fallthru
      _
    %p136 = scmp.le.s32.totalorder 1, %s9
    %p137 = scmp.lt.s32.totalorder %s9, 3
    %p138 = pnand %p136, %p137
    %p139 = pneg %p138
    // Predicated region
    $region29: #{forward.10} parent=5 // pred_check
      _
    $region30: #{forward.10} parent=5 // pred_check_branch
      %141 = sbr.rel (%p138) target = $region32
    $region31: #{forward.10} parent=5 // pred_region
      %s142 = ssub.s32 %s9, 1
      %p143 = scmp.lt.s32.totalorder %s14, 1
      %s144 = scalar_select %p143, %s14, 1
      %s145 = smul.addr %s144, 5
      %s146 = smul.addr %s145, 4
      %s147 = scalar_lea.vmem %s0, %s146
      %p148 = pneg %p35
      %p149 = pneg %p32
      %p150 = pneg %p56
      %p151 = pneg %p53
      %p152 = pneg %p77
      %p153 = pneg %p74
      %p154 = pneg %p103
      %p155 = pneg %p100
      %p156 = scmp.lt.s32.totalorder %s14, 1
      %s157 = scalar_select %p156, %s14, 1
      %s158 = smul.addr %s157, 4
      %s159 = smul.addr %s158, 2
      %s160 = scalar_lea.vmem %s3, %s159
      %p161 = scmp.lt.s32.totalorder %s14, 1
      %s162 = scalar_select %p161, %s14, 1
      %s163 = smul.addr %s162, 5
      %s164 = smul.addr %s163, 4
      %s165 = scalar_lea.vmem %s0, %s164
      %p166 = scmp.lt.s32.totalorder %s14, 1
      %s167 = scalar_select %p166, %s14, 1
      %s168 = smul.addr %s167, 4
      %s169 = smul.addr %s168, 2
      %s170 = scalar_lea.vmem %s3, %s169
      %v172 = vld [vmem:[%s165] sm:$0x7]
      %v173 = vld [vmem:[%s165 + $0x4] sm:$0x7]
      %v174 = vld [vmem:[%s165 + $0x8] sm:$0x7]
      %v175 = vld [vmem:[%s165 + $0xc] sm:$0x7]
      %v176 = vld [vmem:[%s165 + $0x10] sm:$0x7]
      %v177 = vld [vmem:[%s1] sm:$0xf]
      %v178 = vld [vmem:[%s1 + $0x4] sm:$0xf]
      %v179 = vld [vmem:[%s1 + $0x8] sm:$0xf]
      %v180 = vld [vmem:[%s1 + $0xc] sm:$0xf]
      %v181 = vld [vmem:[%s1 + $0x10] sm:$0xf]
      %v182 = vld [vmem:[%s1 + $0x14] sm:$0xf]
      %v183 = vld [vmem:[%s1 + $0x18] sm:$0xf]
      %v184 = vld [vmem:[%s1 + $0x1c] sm:$0xf]
      %v185 = vld [vmem:[%s1 + $0x20] sm:$0xf]
      %v186 = vld [vmem:[%s1 + $0x24] sm:$0xf]
      %v187 = vld [vmem:[%s1 + $0x28] sm:$0xf]
      %v188 = vld [vmem:[%s1 + $0x2c] sm:$0xf]
      %v189 = vld [vmem:[%s1 + $0x30] sm:$0xf]
      %v190 = vld [vmem:[%s1 + $0x34] sm:$0xf]
      %v191 = vld [vmem:[%s1 + $0x38] sm:$0xf]
      %v192 = vld [vmem:[%s1 + $0x3c] sm:$0xf]
      %v193 = vld [vmem:[%s1 + $0x40] sm:$0xf]
      %v194 = vld [vmem:[%s1 + $0x44] sm:$0xf]
      %v195 = vld [vmem:[%s1 + $0x48] sm:$0xf]
      %v196 = vld [vmem:[%s1 + $0x4c] sm:$0xf]
      %v197 = vld [vmem:[%s1 + $0x50] sm:$0xf]
      %v198 = vld [vmem:[%s1 + $0x54] sm:$0xf]
      %v199 = vld [vmem:[%s1 + $0x58] sm:$0xf]
      %v200 = vld [vmem:[%s1 + $0x5c] sm:$0xf]
      %v201 = vld [vmem:[%s1 + $0x60] sm:$0xf]
      %v202 = vld [vmem:[%s1 + $0x64] sm:$0xf]
      %v203 = vld [vmem:[%s1 + $0x68] sm:$0xf]
      %v204 = vld [vmem:[%s1 + $0x6c] sm:$0xf]
      %v205 = vld [vmem:[%s1 + $0x70] sm:$0xf]
      %v206 = vld [vmem:[%s1 + $0x74] sm:$0xf]
      %v207 = vld [vmem:[%s1 + $0x78] sm:$0xf]
      %v208 = vld [vmem:[%s1 + $0x7c] sm:$0xf]
      %v214 = vunpack.c.l.s4 1983009808
      %v215 = vunpack.c.0.s8 %v214
      %v216 = vlaneseq
      %v217 = vshrl.u32 %v216, 7
      %v218 = vsub.s32 %v215, %v217
      %v219 = vrot.slane %v172, %v218
      %v220 = vcombine.high %v219, %v219
      %v222 = vunpack.c.l.s4 1983009808
      %v223 = vunpack.c.0.s8 %v222
      %v224 = vlaneseq
      %v225 = vshrl.u32 %v224, 7
      %v226 = vsub.s32 %v223, %v225
      %v227 = vrot.slane %v173, %v226
      %v228 = vcombine.high %v227, %v227
      %v230 = vunpack.c.l.s4 1983009808
      %v231 = vunpack.c.0.s8 %v230
      %v232 = vlaneseq
      %v233 = vshrl.u32 %v232, 7
      %v234 = vsub.s32 %v231, %v233
      %v235 = vrot.slane %v174, %v234
      %v236 = vcombine.high %v235, %v235
      %v238 = vunpack.c.l.s4 1983009808
      %v239 = vunpack.c.0.s8 %v238
      %v240 = vlaneseq
      %v241 = vshrl.u32 %v240, 7
      %v242 = vsub.s32 %v239, %v241
      %v243 = vrot.slane %v175, %v242
      %v244 = vcombine.high %v243, %v243
      %vm245 = vsmask.f32 1280
      %vm246 = vsmask.f32 3336
      %vm247 = vmor %vm245, %vm246
      %vm248 = vsmask.f32 5392
      %vm249 = vmor %vm247, %vm248
      %vm250 = vsmask.f32 7448
      %vm251 = vmor %vm249, %vm250
      %v253 = vshrl.u32 %v219, 16
      %v255 = vrot.slane %v253, 6
      %v256 = vshll.u32 %v219, 16
      %v258 = vrot.slane %v256, 7
      %v259 = vor.u32 %v255, %v258
      %v260 = vrot.slane %v259, 2
      %v262 = vshll.u32 %v220, 16
      %v264 = vrot.slane %v262, 7
      %v265 = vsel %vm251, %v260, %v264
      %v267 = vshrl.u32 %v227, 16
      %v269 = vrot.slane %v267, 6
      %v270 = vshll.u32 %v227, 16
      %v272 = vrot.slane %v270, 7
      %v273 = vor.u32 %v269, %v272
      %v274 = vrot.slane %v273, 2
      %v276 = vshll.u32 %v228, 16
      %v278 = vrot.slane %v276, 7
      %v279 = vsel %vm251, %v274, %v278
      %v281 = vshrl.u32 %v235, 16
      %v283 = vrot.slane %v281, 6
      %v284 = vshll.u32 %v235, 16
      %v286 = vrot.slane %v284, 7
      %v287 = vor.u32 %v283, %v286
      %v288 = vrot.slane %v287, 2
      %v290 = vshll.u32 %v236, 16
      %v292 = vrot.slane %v290, 7
      %v293 = vsel %vm251, %v288, %v292
      %v295 = vshrl.u32 %v243, 16
      %v297 = vrot.slane %v295, 6
      %v298 = vshll.u32 %v243, 16
      %v300 = vrot.slane %v298, 7
      %v301 = vor.u32 %v297, %v300
      %v302 = vrot.slane %v301, 2
      %v304 = vshll.u32 %v244, 16
      %v306 = vrot.slane %v304, 7
      %v307 = vsel %vm251, %v302, %v306
      %v308 = vcombine.low %v265, %v279
      %v309 = vcombine.low %v293, %v307
      %v311 = vunpack.c.l.s4 1983009808
      %v312 = vunpack.c.0.s8 %v311
      %v313 = vlaneseq
      %v314 = vshrl.u32 %v313, 7
      %v315 = vsub.s32 %v312, %v314
      %v316 = vrot.slane %v308, %v315
      %v318 = vunpack.c.l.s4 1983009808
      %v319 = vunpack.c.0.s8 %v318
      %v320 = vlaneseq
      %v321 = vshrl.u32 %v320, 7
      %v322 = vsub.s32 %v319, %v321
      %v323 = vrot.slane %v309, %v322
      %v324 = vcombine.low %v316, %v323
      %v333 = vunpack.c.l.b16 %v185
      %v334 = vunpack.c.l.b16 %v186
      %v335 = vunpack.c.l.b16 %v187
      %v336 = vunpack.c.l.b16 %v188
      %v337 = vunpack.c.l.b16 %v189
      %v338 = vunpack.c.l.b16 %v190
      %v339 = vunpack.c.l.b16 %v191
      %v340 = vunpack.c.l.b16 %v192
      %v341 = vpack.c.b16 %v334, %v333
      %v342 = vpack.c.b16 %v336, %v335
      %v343 = vpack.c.b16 %v338, %v337
      %v344 = vpack.c.b16 %v340, %v339
      %vm349 = vcmask 523264
      %v351 = vsel %vm349, %v324, 0
      %353 = vmatprep.subr.bf16.mxu0 0
      %354 = vmatpush1.bf16.msra.mxu0 0
      %355 = vmatprep.subr.bf16.mxu0 0
      %356 = vmatpush1.bf16.msra.mxu0 0
      %357 = vmatprep.subr.bf16.mxu0 0
      %358 = vmatpush1.bf16.msra.mxu0 0
      %359 = vmatprep.subr.bf16.mxu0 0
      %360 = vmatpush1.bf16.msra.mxu0 0
      %361 = vmatprep.subr.bf16.mxu0 0
      %362 = vmatpush1.bf16.msra.mxu0 %v344
      %363 = vmatprep.subr.bf16.mxu0 0
      %364 = vmatpush1.bf16.msra.mxu0 %v343
      %365 = vmatprep.subr.bf16.mxu0 0
      %366 = vmatpush1.bf16.msra.mxu0 %v342
      %367 = vmatprep.subr.bf16.mxu0 0
      %368 = vmatpush1.bf16.msra.mxu0 %v341
      %369 = vmatprep.subr.bf16.mxu0 0
      %370 = vmatpush2.bf16.msra.mxu0 0
      %371 = vmatprep.subr.bf16.mxu0 0
      %372 = vmatpush2.bf16.msra.mxu0 0
      %373 = vmatprep.subr.bf16.mxu0 0
      %374 = vmatpush2.bf16.msra.mxu0 0
      %375 = vmatprep.subr.bf16.mxu0 0
      %376 = vmatpush2.bf16.msra.mxu0 0
      %377 = vmatprep.subr.bf16.mxu0 0
      %378 = vmatpush2.bf16.msra.mxu0 0
      %379 = vmatprep.subr.bf16.mxu0 0
      %380 = vmatpush2.bf16.msra.mxu0 0
      %381 = vmatprep.subr.bf16.mxu0 0
      %382 = vmatpush2.bf16.msra.mxu0 0
      %383 = vmatprep.subr.bf16.mxu0 0
      %384 = vmatpush2.bf16.msra.mxu0 0
      %385 = vmatprep.mubr.bf16.mxu0 0
      %386 = vmatmul.mubr.bf16.gmra.mxu0 %v351
      %v387 = vpop.f32.mrf.mxu0
      %v388 = vadd.f32 0.0, %v387
      %v389 = vpop.f32.mrf.mxu0
      %v390 = vpop.f32.mrf.mxu0
      %v391 = vadd.f32 0.0, %v390
      %v392 = vpop.f32.mrf.mxu0
      %393 = vdwg.mxu0
      %v394 = vcombine.low %v172, %v173
      %v395 = vcombine.low %v174, %v175
      %v397 = vunpack.c.l.s4 1983009808
      %v398 = vunpack.c.0.s8 %v397
      %v399 = vlaneseq
      %v400 = vshrl.u32 %v399, 7
      %v401 = vsub.s32 %v398, %v400
      %v402 = vrot.slane %v394, %v401
      %v404 = vunpack.c.l.s4 1983009808
      %v405 = vunpack.c.0.s8 %v404
      %v406 = vlaneseq
      %v407 = vshrl.u32 %v406, 7
      %v408 = vsub.s32 %v405, %v407
      %v409 = vrot.slane %v395, %v408
      %v410 = vcombine.low %v402, %v409
      %v419 = vunpack.c.l.b16 %v177
      %v420 = vunpack.c.l.b16 %v178
      %v421 = vunpack.c.l.b16 %v179
      %v422 = vunpack.c.l.b16 %v180
      %v423 = vunpack.c.l.b16 %v181
      %v424 = vunpack.c.l.b16 %v182
      %v425 = vunpack.c.l.b16 %v183
      %v426 = vunpack.c.l.b16 %v184
      %v427 = vpack.c.b16 %v420, %v419
      %v428 = vpack.c.b16 %v422, %v421
      %v429 = vpack.c.b16 %v424, %v423
      %v430 = vpack.c.b16 %v426, %v425
      %v436 = vsel %vm349, %v410, 0
      %438 = vmatprep.subr.bf16.mxu0 0
      %439 = vmatpush1.bf16.msra.mxu0 0
      %440 = vmatprep.subr.bf16.mxu0 0
      %441 = vmatpush1.bf16.msra.mxu0 0
      %442 = vmatprep.subr.bf16.mxu0 0
      %443 = vmatpush1.bf16.msra.mxu0 0
      %444 = vmatprep.subr.bf16.mxu0 0
      %445 = vmatpush1.bf16.msra.mxu0 0
      %446 = vmatprep.subr.bf16.mxu0 0
      %447 = vmatpush1.bf16.msra.mxu0 %v430
      %448 = vmatprep.subr.bf16.mxu0 0
      %449 = vmatpush1.bf16.msra.mxu0 %v429
      %450 = vmatprep.subr.bf16.mxu0 0
      %451 = vmatpush1.bf16.msra.mxu0 %v428
      %452 = vmatprep.subr.bf16.mxu0 0
      %453 = vmatpush1.bf16.msra.mxu0 %v427
      %454 = vmatprep.subr.bf16.mxu0 0
      %455 = vmatpush2.bf16.msra.mxu0 0
      %456 = vmatprep.subr.bf16.mxu0 0
      %457 = vmatpush2.bf16.msra.mxu0 0
      %458 = vmatprep.subr.bf16.mxu0 0
      %459 = vmatpush2.bf16.msra.mxu0 0
      %460 = vmatprep.subr.bf16.mxu0 0
      %461 = vmatpush2.bf16.msra.mxu0 0
      %462 = vmatprep.subr.bf16.mxu0 0
      %463 = vmatpush2.bf16.msra.mxu0 0
      %464 = vmatprep.subr.bf16.mxu0 0
      %465 = vmatpush2.bf16.msra.mxu0 0
      %466 = vmatprep.subr.bf16.mxu0 0
      %467 = vmatpush2.bf16.msra.mxu0 0
      %468 = vmatprep.subr.bf16.mxu0 0
      %469 = vmatpush2.bf16.msra.mxu0 0
      %470 = vmatprep.mubr.bf16.mxu0 0
      %471 = vmatmul.mubr.bf16.gmra.mxu0 %v436
      %v472 = vpop.f32.mrf.mxu0
      %v473 = vadd.f32 %v388, %v472
      %v474 = vpop.f32.mrf.mxu0
      %v475 = vpop.f32.mrf.mxu0
      %v476 = vadd.f32 %v391, %v475
      %v477 = vpop.f32.mrf.mxu0
      %478 = vdwg.mxu0
      %v480 = vcombine.low %v173, %v174
      %v481 = vcombine.low %v175, %v176
      %v483 = vunpack.c.l.s4 1983009808
      %v484 = vunpack.c.0.s8 %v483
      %v485 = vlaneseq
      %v486 = vshrl.u32 %v485, 7
      %v487 = vsub.s32 %v484, %v486
      %v488 = vrot.slane %v480, %v487
      %v490 = vunpack.c.l.s4 1983009808
      %v491 = vunpack.c.0.s8 %v490
      %v492 = vlaneseq
      %v493 = vshrl.u32 %v492, 7
      %v494 = vsub.s32 %v491, %v493
      %v495 = vrot.slane %v481, %v494
      %v496 = vcombine.low %v488, %v495
      %v505 = vunpack.c.l.b16 %v193
      %v506 = vunpack.c.l.b16 %v194
      %v507 = vunpack.c.l.b16 %v195
      %v508 = vunpack.c.l.b16 %v196
      %v509 = vunpack.c.l.b16 %v197
      %v510 = vunpack.c.l.b16 %v198
      %v511 = vunpack.c.l.b16 %v199
      %v512 = vunpack.c.l.b16 %v200
      %v513 = vpack.c.b16 %v506, %v505
      %v514 = vpack.c.b16 %v508, %v507
      %v515 = vpack.c.b16 %v510, %v509
      %v516 = vpack.c.b16 %v512, %v511
      %v522 = vsel %vm349, %v496, 0
      %524 = vmatprep.subr.bf16.mxu0 0
      %525 = vmatpush1.bf16.msra.mxu0 0
      %526 = vmatprep.subr.bf16.mxu0 0
      %527 = vmatpush1.bf16.msra.mxu0 0
      %528 = vmatprep.subr.bf16.mxu0 0
      %529 = vmatpush1.bf16.msra.mxu0 0
      %530 = vmatprep.subr.bf16.mxu0 0
      %531 = vmatpush1.bf16.msra.mxu0 0
      %532 = vmatprep.subr.bf16.mxu0 0
      %533 = vmatpush1.bf16.msra.mxu0 %v516
      %534 = vmatprep.subr.bf16.mxu0 0
      %535 = vmatpush1.bf16.msra.mxu0 %v515
      %536 = vmatprep.subr.bf16.mxu0 0
      %537 = vmatpush1.bf16.msra.mxu0 %v514
      %538 = vmatprep.subr.bf16.mxu0 0
      %539 = vmatpush1.bf16.msra.mxu0 %v513
      %540 = vmatprep.subr.bf16.mxu0 0
      %541 = vmatpush2.bf16.msra.mxu0 0
      %542 = vmatprep.subr.bf16.mxu0 0
      %543 = vmatpush2.bf16.msra.mxu0 0
      %544 = vmatprep.subr.bf16.mxu0 0
      %545 = vmatpush2.bf16.msra.mxu0 0
      %546 = vmatprep.subr.bf16.mxu0 0
      %547 = vmatpush2.bf16.msra.mxu0 0
      %548 = vmatprep.subr.bf16.mxu0 0
      %549 = vmatpush2.bf16.msra.mxu0 0
      %550 = vmatprep.subr.bf16.mxu0 0
      %551 = vmatpush2.bf16.msra.mxu0 0
      %552 = vmatprep.subr.bf16.mxu0 0
      %553 = vmatpush2.bf16.msra.mxu0 0
      %554 = vmatprep.subr.bf16.mxu0 0
      %555 = vmatpush2.bf16.msra.mxu0 0
      %556 = vmatprep.mubr.bf16.mxu0 0
      %557 = vmatmul.mubr.bf16.gmra.mxu0 %v522
      %v558 = vpop.f32.mrf.mxu0
      %v559 = vadd.f32 0.0, %v558
      %v560 = vpop.f32.mrf.mxu0
      %v561 = vpop.f32.mrf.mxu0
      %v562 = vadd.f32 0.0, %v561
      %v563 = vpop.f32.mrf.mxu0
      %564 = vdwg.mxu0
      %v565 = vadd.f32 %v473, %v559
      %v566 = vadd.f32 %v476, %v562
      %v568 = vunpack.c.l.s4 1983009808
      %v569 = vunpack.c.0.s8 %v568
      %v570 = vlaneseq
      %v571 = vshrl.u32 %v570, 7
      %v572 = vsub.s32 %v569, %v571
      %v573 = vrot.slane %v176, %v572
      %v574 = vcombine.high %v573, %v573
      %v576 = vshrl.u32 %v573, 16
      %v578 = vrot.slane %v576, 6
      %v579 = vshll.u32 %v573, 16
      %v581 = vrot.slane %v579, 7
      %v582 = vor.u32 %v578, %v581
      %v583 = vrot.slane %v582, 2
      %v585 = vshll.u32 %v574, 16
      %v587 = vrot.slane %v585, 7
      %v588 = vsel %vm251, %v583, %v587
      %v589 = vcombine.low %v279, %v293
      %v590 = vcombine.low %v307, %v588
      %v592 = vunpack.c.l.s4 1983009808
      %v593 = vunpack.c.0.s8 %v592
      %v594 = vlaneseq
      %v595 = vshrl.u32 %v594, 7
      %v596 = vsub.s32 %v593, %v595
      %v597 = vrot.slane %v589, %v596
      %v599 = vunpack.c.l.s4 1983009808
      %v600 = vunpack.c.0.s8 %v599
      %v601 = vlaneseq
      %v602 = vshrl.u32 %v601, 7
      %v603 = vsub.s32 %v600, %v602
      %v604 = vrot.slane %v590, %v603
      %v605 = vcombine.low %v597, %v604
      %v614 = vunpack.c.l.b16 %v201
      %v615 = vunpack.c.l.b16 %v202
      %v616 = vunpack.c.l.b16 %v203
      %v617 = vunpack.c.l.b16 %v204
      %v618 = vunpack.c.l.b16 %v205
      %v619 = vunpack.c.l.b16 %v206
      %v620 = vunpack.c.l.b16 %v207
      %v621 = vunpack.c.l.b16 %v208
      %v622 = vpack.c.b16 %v615, %v614
      %v623 = vpack.c.b16 %v617, %v616
      %v624 = vpack.c.b16 %v619, %v618
      %v625 = vpack.c.b16 %v621, %v620
      %v631 = vsel %vm349, %v605, 0
      %633 = vmatprep.subr.bf16.mxu0 0
      %634 = vmatpush1.bf16.msra.mxu0 0
      %635 = vmatprep.subr.bf16.mxu0 0
      %636 = vmatpush1.bf16.msra.mxu0 0
      %637 = vmatprep.subr.bf16.mxu0 0
      %638 = vmatpush1.bf16.msra.mxu0 0
      %639 = vmatprep.subr.bf16.mxu0 0
      %640 = vmatpush1.bf16.msra.mxu0 0
      %641 = vmatprep.subr.bf16.mxu0 0
      %642 = vmatpush1.bf16.msra.mxu0 %v625
      %643 = vmatprep.subr.bf16.mxu0 0
      %644 = vmatpush1.bf16.msra.mxu0 %v624
      %645 = vmatprep.subr.bf16.mxu0 0
      %646 = vmatpush1.bf16.msra.mxu0 %v623
      %647 = vmatprep.subr.bf16.mxu0 0
      %648 = vmatpush1.bf16.msra.mxu0 %v622
      %649 = vmatprep.subr.bf16.mxu0 0
      %650 = vmatpush2.bf16.msra.mxu0 0
      %651 = vmatprep.subr.bf16.mxu0 0
      %652 = vmatpush2.bf16.msra.mxu0 0
      %653 = vmatprep.subr.bf16.mxu0 0
      %654 = vmatpush2.bf16.msra.mxu0 0
      %655 = vmatprep.subr.bf16.mxu0 0
      %656 = vmatpush2.bf16.msra.mxu0 0
      %657 = vmatprep.subr.bf16.mxu0 0
      %658 = vmatpush2.bf16.msra.mxu0 0
      %659 = vmatprep.subr.bf16.mxu0 0
      %660 = vmatpush2.bf16.msra.mxu0 0
      %661 = vmatprep.subr.bf16.mxu0 0
      %662 = vmatpush2.bf16.msra.mxu0 0
      %663 = vmatprep.subr.bf16.mxu0 0
      %664 = vmatpush2.bf16.msra.mxu0 0
      %665 = vmatprep.mubr.bf16.mxu0 0
      %666 = vmatmul.mubr.bf16.gmra.mxu0 %v631
      %v667 = vpop.f32.mrf.mxu0
      %v668 = vadd.f32 0.0, %v667
      %v669 = vpop.f32.mrf.mxu0
      %v670 = vpop.f32.mrf.mxu0
      %v671 = vadd.f32 0.0, %v670
      %v672 = vpop.f32.mrf.mxu0
      %673 = vdwg.mxu0
      %v674 = vadd.f32 %v565, %v668
      %v675 = vadd.f32 %v566, %v671
      %v676 = vld [vmem:[%s2] sm:$0x1]
      %v678 = vlaneseq
      %v679 = vshrl.u32 %v678, 7
      %v680 = vsub.s32 0, %v679
      %v681 = vrot.slane %v676, %v680
      %v683 = vadd.f32 %v674, %v681
      %v684 = vadd.f32 %v675, %v681
      %v685 = vmax.f32 %v683, 0.0
      %v686 = vmax.f32 %v684, 0.0
      %v689 = vcombine.high %v685, %v685
      %v690 = vcombine.high %v686, %v686
      %v693 = vpack.c.bf16 %v685, %v685
      %v694 = vpack.c.bf16 %v689, %v689
      %v695 = vpack.c.bf16 %v686, %v686
      %v696 = vpack.c.bf16 %v690, %v690
      %697 = vst [vmem:[%s170] sm:$0x3] %v693
      %698 = vst [vmem:[%s170 + $0x2] sm:$0x3] %v694
      %699 = vst [vmem:[%s170 + $0x4] sm:$0x3] %v695
      %700 = vst [vmem:[%s170 + $0x6] sm:$0x3] %v696
      %p701 = scmp.lt.s32.totalorder %s14, 1
      %s702 = scalar_select %p701, %s14, 1
      %s703 = smul.addr %s702, 4
      %s704 = smul.addr %s703, 2
      %s705 = scalar_lea.vmem %s3, %s704
      // Predicated region
      $region33: #{forward.10} parent=31 // pred_check
        %p706 = pneg %p100
      $region34: #{forward.10} parent=31 // pred_check_branch
        %708 = sbr.rel (%p706) target = $region36
      $region35: #{forward.10} parent=31 // pred_region
        _
      $region36: #{forward.10} parent=31 // pred_fallthru
        _
    $region32: #{forward.10} parent=5 // pred_fallthru
      _
    %p709 = scmp.le.s32.totalorder 2, %s9
    // Predicated region
    $region37: #{forward.10} parent=5 // pred_check
      %p710 = pneg %p709
    $region38: #{forward.10} parent=5 // pred_check_branch
      %712 = sbr.rel (%p710) target = $region40
    $region39: #{forward.10} parent=5 // pred_region
      %s713 = ssub.s32 %s9, 2
      // Predicated region
      $region41: #{forward.10} parent=39 // pred_check
        %p714 = pneg %p106
      $region42: #{forward.10} parent=39 // pred_check_branch
        %716 = sbr.rel (%p714) target = $region44
      $region43: #{forward.10} parent=39 // pred_region
        %p717 = scmp.lt.s32.totalorder %s15, 1
        %s718 = scalar_select %p717, %s15, 1
        %s719 = smul.addr %s718, 4
        %s720 = smul.addr %s719, 2
        %s721 = scalar_lea.vmem %s3, %s720
      $region44: #{forward.10} parent=39 // pred_fallthru
        _
    $region40: #{forward.10} parent=5 // pred_fallthru
      _
  $region6: #{forward.10} parent=0 // loop_footer
    %s13 = sadd.s32 1, %s9
  $region7: #{forward.10} parent=0 // loop_footer_branch
    %8 = sbr.rel target = $region3
  $region8: #{forward.10} parent=0 // loop_exit
    _

// kernel: forward.9
$region0: #{forward.9}
  #allocation0 [shape = 'u32[]', space=smem, size = 0x4, offset = 0x4, fixed_abs, tag = 'smem constant byte address 0x4 - core index']
  #allocation1 [shape = 'u32[144,128]{1,0:T(1,128)}', space=vmem, size = 0x12000, scoped, tag = 'internal scratch']
  %s0 = inlined_call_operand.vmem [shape: bf16[2,3,3,128], index: 0, kind: input, shape index: {}]
  %s1 = inlined_call_operand.vmem [shape: bf16[4,128,256], index: 1, kind: input, shape index: {}]
  %s2 = inlined_call_operand.vmem [shape: f32[1,256], index: 2, kind: input, shape index: {}]
  %s3 = inlined_call_operand.vmem [shape: bf16[2,2,2,256], index: 3, kind: output, shape index: {}]
  %s4 = sld [smem:[#allocation0]]
  $region45: #{forward.9} parent=0
    _
  %s6 = ssub.s32 1, %s4
  %s7 = scalar_select 0, %s6, %s4
  loop: start=0, step=1, limit=4
  $region2: #{forward.9} parent=0 // loop_pre_header
    _
  $region3: #{forward.9} parent=0 // loop_header
    %s9 = sphi 0, %s13
    %p10 = scmp.ge.s32.totalorder %s9, 4
    %s19 = sphi 0, %s21
    %s22 = sphi 0, %s19
    %s23 = sphi 0, %s22
    %s39 = sphi 0, %s23
    %s43 = sphi 0, %s43
    %s45 = sphi 0, %s43
    %s46 = sphi 0, %s45
    %s60 = sphi 0, %s46
    %s64 = sphi 0, %s64
    %s66 = sphi 0, %s64
    %s67 = sphi 0, %s66
    %s81 = sphi 0, %s67
    %s87 = sphi 0, %s89
    %s90 = sphi 0, %s87
    %s91 = sphi 0, %s90
    %s107 = sphi 0, %s91
  $region4: #{forward.9} parent=0 // loop_header_branch
    %12 = sbr.rel (%p10) target = $region8
  $region5: #{forward.9} parent=0 // loop_body
    %s14 = ssub.s32 %s9, 1
    %s15 = ssub.s32 %s9, 2
    %s16 = sadd.s32 %s9, 1
    %s17 = ssub.s32 %s9, %s16
    %p18 = scmp.eq.s32.totalorder %s17, 0
    %s20 = sadd.s32 %s19, 1
    %s21 = scalar_select %p18, %s19, %s20
    %p24 = pneg %p18
    %p25 = scmp.eq.s32.totalorder %s9, 1
    %p26 = por %p24, %p25
    %p27 = scmp.ne.s32.totalorder %s19, %s22
    %p28 = scmp.eq.s32.totalorder %s9, 0
    %p29 = por %p27, %p28
    %p30 = scmp.ne.s32.totalorder %s19, %s22
    %p31 = scmp.eq.s32.totalorder %s14, 1
    %p32 = por %p30, %p31
    %p33 = scmp.ne.s32.totalorder %s22, %s23
    %p34 = scmp.eq.s32.totalorder %s14, 0
    %p35 = por %p33, %p34
    %p36 = scmp.ne.s32.totalorder %s22, %s23
    %p37 = scmp.eq.s32.totalorder %s15, 1
    %p38 = por %p36, %p37
    %p40 = scmp.ne.s32.totalorder %s23, %s39
    %p41 = scmp.eq.s32.totalorder %s15, 0
    %p42 = por %p40, %p41
    %s44 = sadd.s32 %s43, 1
    %p47 = scmp.eq.s32.totalorder %s9, 1
    %p48 = scmp.ne.s32.totalorder %s43, %s45
    %p49 = scmp.eq.s32.totalorder %s9, 0
    %p50 = por %p48, %p49
    %p51 = scmp.ne.s32.totalorder %s43, %s45
    %p52 = scmp.eq.s32.totalorder %s14, 1
    %p53 = por %p51, %p52
    %p54 = scmp.ne.s32.totalorder %s45, %s46
    %p55 = scmp.eq.s32.totalorder %s14, 0
    %p56 = por %p54, %p55
    %p57 = scmp.ne.s32.totalorder %s45, %s46
    %p58 = scmp.eq.s32.totalorder %s15, 1
    %p59 = por %p57, %p58
    %p61 = scmp.ne.s32.totalorder %s46, %s60
    %p62 = scmp.eq.s32.totalorder %s15, 0
    %p63 = por %p61, %p62
    %s65 = sadd.s32 %s64, 1
    %p68 = scmp.eq.s32.totalorder %s9, 1
    %p69 = scmp.ne.s32.totalorder %s64, %s66
    %p70 = scmp.eq.s32.totalorder %s9, 0
    %p71 = por %p69, %p70
    %p72 = scmp.ne.s32.totalorder %s64, %s66
    %p73 = scmp.eq.s32.totalorder %s14, 1
    %p74 = por %p72, %p73
    %p75 = scmp.ne.s32.totalorder %s66, %s67
    %p76 = scmp.eq.s32.totalorder %s14, 0
    %p77 = por %p75, %p76
    %p78 = scmp.ne.s32.totalorder %s66, %s67
    %p79 = scmp.eq.s32.totalorder %s15, 1
    %p80 = por %p78, %p79
    %p82 = scmp.ne.s32.totalorder %s67, %s81
    %p83 = scmp.eq.s32.totalorder %s15, 0
    %p84 = por %p82, %p83
    %s85 = ssub.s32 %s9, %s16
    %p86 = scmp.eq.s32.totalorder %s85, 0
    %s88 = sadd.s32 %s87, 1
    %s89 = scalar_select %p86, %s87, %s88
    %p92 = pneg %p86
    %p93 = scmp.eq.s32.totalorder %s9, 1
    %p94 = por %p92, %p93
    %p95 = scmp.ne.s32.totalorder %s87, %s90
    %p96 = scmp.eq.s32.totalorder %s9, 0
    %p97 = por %p95, %p96
    %p98 = scmp.ne.s32.totalorder %s87, %s90
    %p99 = scmp.eq.s32.totalorder %s14, 1
    %p100 = por %p98, %p99
    %p101 = scmp.ne.s32.totalorder %s90, %s91
    %p102 = scmp.eq.s32.totalorder %s14, 0
    %p103 = por %p101, %p102
    %p104 = scmp.ne.s32.totalorder %s90, %s91
    %p105 = scmp.eq.s32.totalorder %s15, 1
    %p106 = por %p104, %p105
    %p108 = scmp.ne.s32.totalorder %s91, %s107
    %p109 = scmp.eq.s32.totalorder %s15, 0
    %p110 = por %p108, %p109
    %p111 = scmp.le.s32.totalorder 1, %s9
    %p112 = scmp.lt.s32.totalorder %s9, 3
    %p113 = pnand %p111, %p112
    %p114 = pneg %p113
    // Predicated region
    $region9: #{forward.9} parent=5 // pred_check
      _
    $region10: #{forward.9} parent=5 // pred_check_branch
      %116 = sbr.rel (%p113) target = $region12
    $region11: #{forward.9} parent=5 // pred_region
      %s117 = ssub.s32 %s9, 1
      // Predicated region
      $region13: #{forward.9} parent=11 // pred_check
        %p118 = pneg %p56
      $region14: #{forward.9} parent=11 // pred_check_branch
        %120 = sbr.rel (%p118) target = $region16
      $region15: #{forward.9} parent=11 // pred_region
        _
      $region16: #{forward.9} parent=11 // pred_fallthru
        _
      // Predicated region
      $region17: #{forward.9} parent=11 // pred_check
        %p121 = pneg %p77
      $region18: #{forward.9} parent=11 // pred_check_branch
        %123 = sbr.rel (%p121) target = $region20
      $region19: #{forward.9} parent=11 // pred_region
        _
      $region20: #{forward.9} parent=11 // pred_fallthru
        _
    $region12: #{forward.9} parent=5 // pred_fallthru
      _
    %p124 = scmp.lt.s32.totalorder %s9, 2
    // Predicated region
    $region21: #{forward.9} parent=5 // pred_check
      %p125 = pneg %p124
    $region22: #{forward.9} parent=5 // pred_check_branch
      %127 = sbr.rel (%p125) target = $region24
    $region23: #{forward.9} parent=5 // pred_region
      // Predicated region
      $region25: #{forward.9} parent=23 // pred_check
        %p128 = pneg %p29
      $region26: #{forward.9} parent=23 // pred_check_branch
        %130 = sbr.rel (%p128) target = $region28
      $region27: #{forward.9} parent=23 // pred_region
        %p131 = scmp.lt.s32.totalorder %s9, 1
        %s132 = scalar_select %p131, %s9, 1
        %s133 = smul.addr %s132, 3
        %s134 = smul.addr %s133, 2
        %s135 = scalar_lea.vmem %s0, %s134
      $region28: #{forward.9} parent=23 // pred_fallthru
        _
    $region24: #{forward.9} parent=5 // pred_fallthru
      _
    %p136 = scmp.le.s32.totalorder 1, %s9
    %p137 = scmp.lt.s32.totalorder %s9, 3
    %p138 = pnand %p136, %p137
    %p139 = pneg %p138
    // Predicated region
    $region29: #{forward.9} parent=5 // pred_check
      _
    $region30: #{forward.9} parent=5 // pred_check_branch
      %141 = sbr.rel (%p138) target = $region32
    $region31: #{forward.9} parent=5 // pred_region
      %s142 = ssub.s32 %s9, 1
      %p143 = scmp.lt.s32.totalorder %s14, 1
      %s144 = scalar_select %p143, %s14, 1
      %s145 = smul.addr %s144, 3
      %s146 = smul.addr %s145, 2
      %s147 = scalar_lea.vmem %s0, %s146
      %p148 = pneg %p35
      %p149 = pneg %p32
      %p150 = pneg %p56
      %p151 = pneg %p53
      %p152 = pneg %p77
      %p153 = pneg %p74
      %p154 = pneg %p103
      %p155 = pneg %p100
      %p156 = scmp.lt.s32.totalorder %s14, 1
      %s157 = scalar_select %p156, %s14, 1
      %s158 = smul.addr %s157, 4
      %s159 = scalar_lea.vmem %s3, %s158
      %p160 = scmp.lt.s32.totalorder %s14, 1
      %s161 = scalar_select %p160, %s14, 1
      %s162 = smul.addr %s161, 3
      %s163 = smul.addr %s162, 2
      %s164 = scalar_lea.vmem %s0, %s163
      %p165 = scmp.lt.s32.totalorder %s14, 1
      %s166 = scalar_select %p165, %s14, 1
      %s167 = smul.addr %s166, 4
      %s168 = scalar_lea.vmem %s3, %s167
      %v170 = vld [vmem:[%s164] sm:$0x3]
      %v171 = vld [vmem:[%s164 + $0x2] sm:$0x3]
      %v172 = vld [vmem:[%s164 + $0x4] sm:$0x3]
      %v173 = vld [vmem:[%s1] sm:$0xff]
      %v174 = vld [vmem:[%s1 + $0x8] sm:$0xff]
      %v175 = vld [vmem:[%s1 + $0x10] sm:$0xff]
      %v176 = vld [vmem:[%s1 + $0x18] sm:$0xff]
      %v177 = vld [vmem:[%s1 + $0x20] sm:$0xff]
      %v178 = vld [vmem:[%s1 + $0x28] sm:$0xff]
      %v179 = vld [vmem:[%s1 + $0x30] sm:$0xff]
      %v180 = vld [vmem:[%s1 + $0x38] sm:$0xff]
      %v181 = vld [vmem:[%s1 + $0x40] sm:$0xff]
      %v182 = vld [vmem:[%s1 + $0x48] sm:$0xff]
      %v183 = vld [vmem:[%s1 + $0x50] sm:$0xff]
      %v184 = vld [vmem:[%s1 + $0x58] sm:$0xff]
      %v185 = vld [vmem:[%s1 + $0x60] sm:$0xff]
      %v186 = vld [vmem:[%s1 + $0x68] sm:$0xff]
      %v187 = vld [vmem:[%s1 + $0x70] sm:$0xff]
      %v188 = vld [vmem:[%s1 + $0x78] sm:$0xff]
      %v189 = vld [vmem:[%s1 + $0x80] sm:$0xff]
      %v190 = vld [vmem:[%s1 + $0x88] sm:$0xff]
      %v191 = vld [vmem:[%s1 + $0x90] sm:$0xff]
      %v192 = vld [vmem:[%s1 + $0x98] sm:$0xff]
      %v193 = vld [vmem:[%s1 + $0xa0] sm:$0xff]
      %v194 = vld [vmem:[%s1 + $0xa8] sm:$0xff]
      %v195 = vld [vmem:[%s1 + $0xb0] sm:$0xff]
      %v196 = vld [vmem:[%s1 + $0xb8] sm:$0xff]
      %v197 = vld [vmem:[%s1 + $0xc0] sm:$0xff]
      %v198 = vld [vmem:[%s1 + $0xc8] sm:$0xff]
      %v199 = vld [vmem:[%s1 + $0xd0] sm:$0xff]
      %v200 = vld [vmem:[%s1 + $0xd8] sm:$0xff]
      %v201 = vld [vmem:[%s1 + $0xe0] sm:$0xff]
      %v202 = vld [vmem:[%s1 + $0xe8] sm:$0xff]
      %v203 = vld [vmem:[%s1 + $0xf0] sm:$0xff]
      %v204 = vld [vmem:[%s1 + $0xf8] sm:$0xff]
      %v205 = vld [vmem:[%s1 + $0x100] sm:$0xff]
      %v206 = vld [vmem:[%s1 + $0x108] sm:$0xff]
      %v207 = vld [vmem:[%s1 + $0x110] sm:$0xff]
      %v208 = vld [vmem:[%s1 + $0x118] sm:$0xff]
      %v209 = vld [vmem:[%s1 + $0x120] sm:$0xff]
      %v210 = vld [vmem:[%s1 + $0x128] sm:$0xff]
      %v211 = vld [vmem:[%s1 + $0x130] sm:$0xff]
      %v212 = vld [vmem:[%s1 + $0x138] sm:$0xff]
      %v213 = vld [vmem:[%s1 + $0x140] sm:$0xff]
      %v214 = vld [vmem:[%s1 + $0x148] sm:$0xff]
      %v215 = vld [vmem:[%s1 + $0x150] sm:$0xff]
      %v216 = vld [vmem:[%s1 + $0x158] sm:$0xff]
      %v217 = vld [vmem:[%s1 + $0x160] sm:$0xff]
      %v218 = vld [vmem:[%s1 + $0x168] sm:$0xff]
      %v219 = vld [vmem:[%s1 + $0x170] sm:$0xff]
      %v220 = vld [vmem:[%s1 + $0x178] sm:$0xff]
      %v221 = vld [vmem:[%s1 + $0x180] sm:$0xff]
      %v222 = vld [vmem:[%s1 + $0x188] sm:$0xff]
      %v223 = vld [vmem:[%s1 + $0x190] sm:$0xff]
      %v224 = vld [vmem:[%s1 + $0x198] sm:$0xff]
      %v225 = vld [vmem:[%s1 + $0x1a0] sm:$0xff]
      %v226 = vld [vmem:[%s1 + $0x1a8] sm:$0xff]
      %v227 = vld [vmem:[%s1 + $0x1b0] sm:$0xff]
      %v228 = vld [vmem:[%s1 + $0x1b8] sm:$0xff]
      %v229 = vld [vmem:[%s1 + $0x1c0] sm:$0xff]
      %v230 = vld [vmem:[%s1 + $0x1c8] sm:$0xff]
      %v231 = vld [vmem:[%s1 + $0x1d0] sm:$0xff]
      %v232 = vld [vmem:[%s1 + $0x1d8] sm:$0xff]
      %v233 = vld [vmem:[%s1 + $0x1e0] sm:$0xff]
      %v234 = vld [vmem:[%s1 + $0x1e8] sm:$0xff]
      %v235 = vld [vmem:[%s1 + $0x1f0] sm:$0xff]
      %v236 = vld [vmem:[%s1 + $0x1f8] sm:$0xff]
      %v240 = vunpack.c.l.s4 1966171168
      %v241 = vunpack.c.0.s8 %v240
      %v242 = vlaneseq
      %v243 = vshrl.u32 %v242, 7
      %v244 = vsub.s32 %v241, %v243
      %v245 = vrot.slane %v170, %v244
      %v246 = vcombine.high %v245, %v245
      %v248 = vunpack.c.l.s4 1966171168
      %v249 = vunpack.c.0.s8 %v248
      %v250 = vlaneseq
      %v251 = vshrl.u32 %v250, 7
      %v252 = vsub.s32 %v249, %v251
      %v253 = vrot.slane %v171, %v252
      %v254 = vcombine.high %v253, %v253
      %vm255 = vsmask.f32 256
      %vm256 = vsmask.f32 1284
      %vm257 = vmor %vm255, %vm256
      %vm258 = vsmask.f32 2312
      %vm259 = vmor %vm257, %vm258
      %vm260 = vsmask.f32 3340
      %vm261 = vmor %vm259, %vm260
      %vm262 = vsmask.f32 4368
      %vm263 = vmor %vm261, %vm262
      %vm264 = vsmask.f32 5396
      %vm265 = vmor %vm263, %vm264
      %vm266 = vsmask.f32 6424
      %vm267 = vmor %vm265, %vm266
      %vm268 = vsmask.f32 7452
      %vm269 = vmor %vm267, %vm268
      %v271 = vshrl.u32 %v245, 16
      %v273 = vrot.slane %v271, 7
      %v274 = vrot.slane %v273, 1
      %v276 = vshll.u32 %v246, 16
      %v278 = vsel %vm269, %v274, %v276
      %v280 = vshrl.u32 %v253, 16
      %v282 = vrot.slane %v280, 7
      %v283 = vrot.slane %v282, 1
      %v285 = vshll.u32 %v254, 16
      %v287 = vsel %vm269, %v283, %v285
      %v288 = vcombine.low %v278, %v287
      %v290 = vunpack.c.l.s4 1966171168
      %v291 = vunpack.c.0.s8 %v290
      %v292 = vlaneseq
      %v293 = vshrl.u32 %v292, 7
      %v294 = vsub.s32 %v291, %v293
      %v295 = vrot.slane %v288, %v294
      %v297 = vunpack.c.l.s4 1966171168
      %v298 = vunpack.c.0.s8 %v297
      %v299 = vlaneseq
      %v300 = vshrl.u32 %v299, 7
      %v301 = vsub.s32 %v298, %v300
      %v302 = vrot.slane %v295, %v301
      %v320 = vunpack.c.l.b16 %v189
      %v321 = vunpack.c.h.b16 %v189
      %v322 = vunpack.c.l.b16 %v190
      %v323 = vunpack.c.h.b16 %v190
      %v324 = vunpack.c.l.b16 %v191
      %v325 = vunpack.c.h.b16 %v191
      %v326 = vunpack.c.l.b16 %v192
      %v327 = vunpack.c.h.b16 %v192
      %v328 = vunpack.c.l.b16 %v193
      %v329 = vunpack.c.h.b16 %v193
      %v330 = vunpack.c.l.b16 %v194
      %v331 = vunpack.c.h.b16 %v194
      %v332 = vunpack.c.l.b16 %v195
      %v333 = vunpack.c.h.b16 %v195
      %v334 = vunpack.c.l.b16 %v196
      %v335 = vunpack.c.h.b16 %v196
      %v336 = vunpack.c.l.b16 %v197
      %v337 = vunpack.c.h.b16 %v197
      %v338 = vunpack.c.l.b16 %v198
      %v339 = vunpack.c.h.b16 %v198
      %v340 = vunpack.c.l.b16 %v199
      %v341 = vunpack.c.h.b16 %v199
      %v342 = vunpack.c.l.b16 %v200
      %v343 = vunpack.c.h.b16 %v200
      %v344 = vunpack.c.l.b16 %v201
      %v345 = vunpack.c.h.b16 %v201
      %v346 = vunpack.c.l.b16 %v202
      %v347 = vunpack.c.h.b16 %v202
      %v348 = vunpack.c.l.b16 %v203
      %v349 = vunpack.c.h.b16 %v203
      %v350 = vunpack.c.l.b16 %v204
      %v351 = vunpack.c.h.b16 %v204
      %v352 = vpack.c.b16 %v322, %v320
      %v353 = vpack.c.b16 %v323, %v321
      %v354 = vpack.c.b16 %v326, %v324
      %v355 = vpack.c.b16 %v327, %v325
      %v356 = vpack.c.b16 %v330, %v328
      %v357 = vpack.c.b16 %v331, %v329
      %v358 = vpack.c.b16 %v334, %v332
      %v359 = vpack.c.b16 %v335, %v333
      %v360 = vpack.c.b16 %v338, %v336
      %v361 = vpack.c.b16 %v339, %v337
      %v362 = vpack.c.b16 %v342, %v340
      %v363 = vpack.c.b16 %v343, %v341
      %v364 = vpack.c.b16 %v346, %v344
      %v365 = vpack.c.b16 %v347, %v345
      %v366 = vpack.c.b16 %v350, %v348
      %v367 = vpack.c.b16 %v351, %v349
      %384 = vmatprep.subr.bf16.mxu0 %v367
      %385 = vmatpush1.bf16.msra.mxu0 %v366
      %386 = vmatprep.subr.bf16.mxu0 %v365
      %387 = vmatpush1.bf16.msra.mxu0 %v364
      %388 = vmatprep.subr.bf16.mxu0 %v363
      %389 = vmatpush1.bf16.msra.mxu0 %v362
      %390 = vmatprep.subr.bf16.mxu0 %v361
      %391 = vmatpush1.bf16.msra.mxu0 %v360
      %392 = vmatprep.subr.bf16.mxu0 %v359
      %393 = vmatpush1.bf16.msra.mxu0 %v358
      %394 = vmatprep.subr.bf16.mxu0 %v357
      %395 = vmatpush1.bf16.msra.mxu0 %v356
      %396 = vmatprep.subr.bf16.mxu0 %v355
      %397 = vmatpush1.bf16.msra.mxu0 %v354
      %398 = vmatprep.subr.bf16.mxu0 %v353
      %399 = vmatpush1.bf16.msra.mxu0 %v352
      %400 = vmatprep.subr.bf16.mxu0 0
      %401 = vmatpush2.bf16.msra.mxu0 0
      %402 = vmatprep.subr.bf16.mxu0 0
      %403 = vmatpush2.bf16.msra.mxu0 0
      %404 = vmatprep.subr.bf16.mxu0 0
      %405 = vmatpush2.bf16.msra.mxu0 0
      %406 = vmatprep.subr.bf16.mxu0 0
      %407 = vmatpush2.bf16.msra.mxu0 0
      %408 = vmatprep.subr.bf16.mxu0 0
      %409 = vmatpush2.bf16.msra.mxu0 0
      %410 = vmatprep.subr.bf16.mxu0 0
      %411 = vmatpush2.bf16.msra.mxu0 0
      %412 = vmatprep.subr.bf16.mxu0 0
      %413 = vmatpush2.bf16.msra.mxu0 0
      %414 = vmatprep.subr.bf16.mxu0 0
      %415 = vmatpush2.bf16.msra.mxu0 0
      %416 = vmatprep.mubr.bf16.mxu0 0
      %417 = vmatmul.mubr.bf16.gmra.mxu0 %v302
      %v418 = vpop.f32.mrf.mxu0
      %v419 = vadd.f32 0.0, %v418
      %v420 = vpop.f32.mrf.mxu0
      %v421 = vadd.f32 0.0, %v420
      %v422 = vpop.f32.mrf.mxu0
      %v423 = vpop.f32.mrf.mxu0
      %424 = vdwg.mxu0
      %v425 = vcombine.low %v170, %v171
      %v427 = vunpack.c.l.s4 1966171168
      %v428 = vunpack.c.0.s8 %v427
      %v429 = vlaneseq
      %v430 = vshrl.u32 %v429, 7
      %v431 = vsub.s32 %v428, %v430
      %v432 = vrot.slane %v425, %v431
      %v434 = vunpack.c.l.s4 1966171168
      %v435 = vunpack.c.0.s8 %v434
      %v436 = vlaneseq
      %v437 = vshrl.u32 %v436, 7
      %v438 = vsub.s32 %v435, %v437
      %v439 = vrot.slane %v432, %v438
      %v457 = vunpack.c.l.b16 %v173
      %v458 = vunpack.c.h.b16 %v173
      %v459 = vunpack.c.l.b16 %v174
      %v460 = vunpack.c.h.b16 %v174
      %v461 = vunpack.c.l.b16 %v175
      %v462 = vunpack.c.h.b16 %v175
      %v463 = vunpack.c.l.b16 %v176
      %v464 = vunpack.c.h.b16 %v176
      %v465 = vunpack.c.l.b16 %v177
      %v466 = vunpack.c.h.b16 %v177
      %v467 = vunpack.c.l.b16 %v178
      %v468 = vunpack.c.h.b16 %v178
      %v469 = vunpack.c.l.b16 %v179
      %v470 = vunpack.c.h.b16 %v179
      %v471 = vunpack.c.l.b16 %v180
      %v472 = vunpack.c.h.b16 %v180
      %v473 = vunpack.c.l.b16 %v181
      %v474 = vunpack.c.h.b16 %v181
      %v475 = vunpack.c.l.b16 %v182
      %v476 = vunpack.c.h.b16 %v182
      %v477 = vunpack.c.l.b16 %v183
      %v478 = vunpack.c.h.b16 %v183
      %v479 = vunpack.c.l.b16 %v184
      %v480 = vunpack.c.h.b16 %v184
      %v481 = vunpack.c.l.b16 %v185
      %v482 = vunpack.c.h.b16 %v185
      %v483 = vunpack.c.l.b16 %v186
      %v484 = vunpack.c.h.b16 %v186
      %v485 = vunpack.c.l.b16 %v187
      %v486 = vunpack.c.h.b16 %v187
      %v487 = vunpack.c.l.b16 %v188
      %v488 = vunpack.c.h.b16 %v188
      %v489 = vpack.c.b16 %v459, %v457
      %v490 = vpack.c.b16 %v460, %v458
      %v491 = vpack.c.b16 %v463, %v461
      %v492 = vpack.c.b16 %v464, %v462
      %v493 = vpack.c.b16 %v467, %v465
      %v494 = vpack.c.b16 %v468, %v466
      %v495 = vpack.c.b16 %v471, %v469
      %v496 = vpack.c.b16 %v472, %v470
      %v497 = vpack.c.b16 %v475, %v473
      %v498 = vpack.c.b16 %v476, %v474
      %v499 = vpack.c.b16 %v479, %v477
      %v500 = vpack.c.b16 %v480, %v478
      %v501 = vpack.c.b16 %v483, %v481
      %v502 = vpack.c.b16 %v484, %v482
      %v503 = vpack.c.b16 %v487, %v485
      %v504 = vpack.c.b16 %v488, %v486
      %521 = vmatprep.subr.bf16.mxu0 %v504
      %522 = vmatpush1.bf16.msra.mxu0 %v503
      %523 = vmatprep.subr.bf16.mxu0 %v502
      %524 = vmatpush1.bf16.msra.mxu0 %v501
      %525 = vmatprep.subr.bf16.mxu0 %v500
      %526 = vmatpush1.bf16.msra.mxu0 %v499
      %527 = vmatprep.subr.bf16.mxu0 %v498
      %528 = vmatpush1.bf16.msra.mxu0 %v497
      %529 = vmatprep.subr.bf16.mxu0 %v496
      %530 = vmatpush1.bf16.msra.mxu0 %v495
      %531 = vmatprep.subr.bf16.mxu0 %v494
      %532 = vmatpush1.bf16.msra.mxu0 %v493
      %533 = vmatprep.subr.bf16.mxu0 %v492
      %534 = vmatpush1.bf16.msra.mxu0 %v491
      %535 = vmatprep.subr.bf16.mxu0 %v490
      %536 = vmatpush1.bf16.msra.mxu0 %v489
      %537 = vmatprep.subr.bf16.mxu0 0
      %538 = vmatpush2.bf16.msra.mxu0 0
      %539 = vmatprep.subr.bf16.mxu0 0
      %540 = vmatpush2.bf16.msra.mxu0 0
      %541 = vmatprep.subr.bf16.mxu0 0
      %542 = vmatpush2.bf16.msra.mxu0 0
      %543 = vmatprep.subr.bf16.mxu0 0
      %544 = vmatpush2.bf16.msra.mxu0 0
      %545 = vmatprep.subr.bf16.mxu0 0
      %546 = vmatpush2.bf16.msra.mxu0 0
      %547 = vmatprep.subr.bf16.mxu0 0
      %548 = vmatpush2.bf16.msra.mxu0 0
      %549 = vmatprep.subr.bf16.mxu0 0
      %550 = vmatpush2.bf16.msra.mxu0 0
      %551 = vmatprep.subr.bf16.mxu0 0
      %552 = vmatpush2.bf16.msra.mxu0 0
      %553 = vmatprep.mubr.bf16.mxu0 0
      %554 = vmatmul.mubr.bf16.gmra.mxu0 %v439
      %v555 = vpop.f32.mrf.mxu0
      %v556 = vadd.f32 %v419, %v555
      %v557 = vpop.f32.mrf.mxu0
      %v558 = vadd.f32 %v421, %v557
      %v559 = vpop.f32.mrf.mxu0
      %v560 = vpop.f32.mrf.mxu0
      %561 = vdwg.mxu0
      %v563 = vcombine.low %v171, %v172
      %v565 = vunpack.c.l.s4 1966171168
      %v566 = vunpack.c.0.s8 %v565
      %v567 = vlaneseq
      %v568 = vshrl.u32 %v567, 7
      %v569 = vsub.s32 %v566, %v568
      %v570 = vrot.slane %v563, %v569
      %v572 = vunpack.c.l.s4 1966171168
      %v573 = vunpack.c.0.s8 %v572
      %v574 = vlaneseq
      %v575 = vshrl.u32 %v574, 7
      %v576 = vsub.s32 %v573, %v575
      %v577 = vrot.slane %v570, %v576
      %v595 = vunpack.c.l.b16 %v205
      %v596 = vunpack.c.h.b16 %v205
      %v597 = vunpack.c.l.b16 %v206
      %v598 = vunpack.c.h.b16 %v206
      %v599 = vunpack.c.l.b16 %v207
      %v600 = vunpack.c.h.b16 %v207
      %v601 = vunpack.c.l.b16 %v208
      %v602 = vunpack.c.h.b16 %v208
      %v603 = vunpack.c.l.b16 %v209
      %v604 = vunpack.c.h.b16 %v209
      %v605 = vunpack.c.l.b16 %v210
      %v606 = vunpack.c.h.b16 %v210
      %v607 = vunpack.c.l.b16 %v211
      %v608 = vunpack.c.h.b16 %v211
      %v609 = vunpack.c.l.b16 %v212
      %v610 = vunpack.c.h.b16 %v212
      %v611 = vunpack.c.l.b16 %v213
      %v612 = vunpack.c.h.b16 %v213
      %v613 = vunpack.c.l.b16 %v214
      %v614 = vunpack.c.h.b16 %v214
      %v615 = vunpack.c.l.b16 %v215
      %v616 = vunpack.c.h.b16 %v215
      %v617 = vunpack.c.l.b16 %v216
      %v618 = vunpack.c.h.b16 %v216
      %v619 = vunpack.c.l.b16 %v217
      %v620 = vunpack.c.h.b16 %v217
      %v621 = vunpack.c.l.b16 %v218
      %v622 = vunpack.c.h.b16 %v218
      %v623 = vunpack.c.l.b16 %v219
      %v624 = vunpack.c.h.b16 %v219
      %v625 = vunpack.c.l.b16 %v220
      %v626 = vunpack.c.h.b16 %v220
      %v627 = vpack.c.b16 %v597, %v595
      %v628 = vpack.c.b16 %v598, %v596
      %v629 = vpack.c.b16 %v601, %v599
      %v630 = vpack.c.b16 %v602, %v600
      %v631 = vpack.c.b16 %v605, %v603
      %v632 = vpack.c.b16 %v606, %v604
      %v633 = vpack.c.b16 %v609, %v607
      %v634 = vpack.c.b16 %v610, %v608
      %v635 = vpack.c.b16 %v613, %v611
      %v636 = vpack.c.b16 %v614, %v612
      %v637 = vpack.c.b16 %v617, %v615
      %v638 = vpack.c.b16 %v618, %v616
      %v639 = vpack.c.b16 %v621, %v619
      %v640 = vpack.c.b16 %v622, %v620
      %v641 = vpack.c.b16 %v625, %v623
      %v642 = vpack.c.b16 %v626, %v624
      %659 = vmatprep.subr.bf16.mxu0 %v642
      %660 = vmatpush1.bf16.msra.mxu0 %v641
      %661 = vmatprep.subr.bf16.mxu0 %v640
      %662 = vmatpush1.bf16.msra.mxu0 %v639
      %663 = vmatprep.subr.bf16.mxu0 %v638
      %664 = vmatpush1.bf16.msra.mxu0 %v637
      %665 = vmatprep.subr.bf16.mxu0 %v636
      %666 = vmatpush1.bf16.msra.mxu0 %v635
      %667 = vmatprep.subr.bf16.mxu0 %v634
      %668 = vmatpush1.bf16.msra.mxu0 %v633
      %669 = vmatprep.subr.bf16.mxu0 %v632
      %670 = vmatpush1.bf16.msra.mxu0 %v631
      %671 = vmatprep.subr.bf16.mxu0 %v630
      %672 = vmatpush1.bf16.msra.mxu0 %v629
      %673 = vmatprep.subr.bf16.mxu0 %v628
      %674 = vmatpush1.bf16.msra.mxu0 %v627
      %675 = vmatprep.subr.bf16.mxu0 0
      %676 = vmatpush2.bf16.msra.mxu0 0
      %677 = vmatprep.subr.bf16.mxu0 0
      %678 = vmatpush2.bf16.msra.mxu0 0
      %679 = vmatprep.subr.bf16.mxu0 0
      %680 = vmatpush2.bf16.msra.mxu0 0
      %681 = vmatprep.subr.bf16.mxu0 0
      %682 = vmatpush2.bf16.msra.mxu0 0
      %683 = vmatprep.subr.bf16.mxu0 0
      %684 = vmatpush2.bf16.msra.mxu0 0
      %685 = vmatprep.subr.bf16.mxu0 0
      %686 = vmatpush2.bf16.msra.mxu0 0
      %687 = vmatprep.subr.bf16.mxu0 0
      %688 = vmatpush2.bf16.msra.mxu0 0
      %689 = vmatprep.subr.bf16.mxu0 0
      %690 = vmatpush2.bf16.msra.mxu0 0
      %691 = vmatprep.mubr.bf16.mxu0 0
      %692 = vmatmul.mubr.bf16.gmra.mxu0 %v577
      %v693 = vpop.f32.mrf.mxu0
      %v694 = vadd.f32 0.0, %v693
      %v695 = vpop.f32.mrf.mxu0
      %v696 = vadd.f32 0.0, %v695
      %v697 = vpop.f32.mrf.mxu0
      %v698 = vpop.f32.mrf.mxu0
      %699 = vdwg.mxu0
      %v700 = vadd.f32 %v556, %v694
      %v701 = vadd.f32 %v558, %v696
      %v703 = vunpack.c.l.s4 1966171168
      %v704 = vunpack.c.0.s8 %v703
      %v705 = vlaneseq
      %v706 = vshrl.u32 %v705, 7
      %v707 = vsub.s32 %v704, %v706
      %v708 = vrot.slane %v172, %v707
      %v709 = vcombine.high %v708, %v708
      %v711 = vshrl.u32 %v708, 16
      %v713 = vrot.slane %v711, 7
      %v714 = vrot.slane %v713, 1
      %v716 = vshll.u32 %v709, 16
      %v718 = vsel %vm269, %v714, %v716
      %v719 = vcombine.low %v287, %v718
      %v721 = vunpack.c.l.s4 1966171168
      %v722 = vunpack.c.0.s8 %v721
      %v723 = vlaneseq
      %v724 = vshrl.u32 %v723, 7
      %v725 = vsub.s32 %v722, %v724
      %v726 = vrot.slane %v719, %v725
      %v728 = vunpack.c.l.s4 1966171168
      %v729 = vunpack.c.0.s8 %v728
      %v730 = vlaneseq
      %v731 = vshrl.u32 %v730, 7
      %v732 = vsub.s32 %v729, %v731
      %v733 = vrot.slane %v726, %v732
      %v751 = vunpack.c.l.b16 %v221
      %v752 = vunpack.c.h.b16 %v221
      %v753 = vunpack.c.l.b16 %v222
      %v754 = vunpack.c.h.b16 %v222
      %v755 = vunpack.c.l.b16 %v223
      %v756 = vunpack.c.h.b16 %v223
      %v757 = vunpack.c.l.b16 %v224
      %v758 = vunpack.c.h.b16 %v224
      %v759 = vunpack.c.l.b16 %v225
      %v760 = vunpack.c.h.b16 %v225
      %v761 = vunpack.c.l.b16 %v226
      %v762 = vunpack.c.h.b16 %v226
      %v763 = vunpack.c.l.b16 %v227
      %v764 = vunpack.c.h.b16 %v227
      %v765 = vunpack.c.l.b16 %v228
      %v766 = vunpack.c.h.b16 %v228
      %v767 = vunpack.c.l.b16 %v229
      %v768 = vunpack.c.h.b16 %v229
      %v769 = vunpack.c.l.b16 %v230
      %v770 = vunpack.c.h.b16 %v230
      %v771 = vunpack.c.l.b16 %v231
      %v772 = vunpack.c.h.b16 %v231
      %v773 = vunpack.c.l.b16 %v232
      %v774 = vunpack.c.h.b16 %v232
      %v775 = vunpack.c.l.b16 %v233
      %v776 = vunpack.c.h.b16 %v233
      %v777 = vunpack.c.l.b16 %v234
      %v778 = vunpack.c.h.b16 %v234
      %v779 = vunpack.c.l.b16 %v235
      %v780 = vunpack.c.h.b16 %v235
      %v781 = vunpack.c.l.b16 %v236
      %v782 = vunpack.c.h.b16 %v236
      %v783 = vpack.c.b16 %v753, %v751
      %v784 = vpack.c.b16 %v754, %v752
      %v785 = vpack.c.b16 %v757, %v755
      %v786 = vpack.c.b16 %v758, %v756
      %v787 = vpack.c.b16 %v761, %v759
      %v788 = vpack.c.b16 %v762, %v760
      %v789 = vpack.c.b16 %v765, %v763
      %v790 = vpack.c.b16 %v766, %v764
      %v791 = vpack.c.b16 %v769, %v767
      %v792 = vpack.c.b16 %v770, %v768
      %v793 = vpack.c.b16 %v773, %v771
      %v794 = vpack.c.b16 %v774, %v772
      %v795 = vpack.c.b16 %v777, %v775
      %v796 = vpack.c.b16 %v778, %v776
      %v797 = vpack.c.b16 %v781, %v779
      %v798 = vpack.c.b16 %v782, %v780
      %815 = vmatprep.subr.bf16.mxu0 %v798
      %816 = vmatpush1.bf16.msra.mxu0 %v797
      %817 = vmatprep.subr.bf16.mxu0 %v796
      %818 = vmatpush1.bf16.msra.mxu0 %v795
      %819 = vmatprep.subr.bf16.mxu0 %v794
      %820 = vmatpush1.bf16.msra.mxu0 %v793
      %821 = vmatprep.subr.bf16.mxu0 %v792
      %822 = vmatpush1.bf16.msra.mxu0 %v791
      %823 = vmatprep.subr.bf16.mxu0 %v790
      %824 = vmatpush1.bf16.msra.mxu0 %v789
      %825 = vmatprep.subr.bf16.mxu0 %v788
      %826 = vmatpush1.bf16.msra.mxu0 %v787
      %827 = vmatprep.subr.bf16.mxu0 %v786
      %828 = vmatpush1.bf16.msra.mxu0 %v785
      %829 = vmatprep.subr.bf16.mxu0 %v784
      %830 = vmatpush1.bf16.msra.mxu0 %v783
      %831 = vmatprep.subr.bf16.mxu0 0
      %832 = vmatpush2.bf16.msra.mxu0 0
      %833 = vmatprep.subr.bf16.mxu0 0
      %834 = vmatpush2.bf16.msra.mxu0 0
      %835 = vmatprep.subr.bf16.mxu0 0
      %836 = vmatpush2.bf16.msra.mxu0 0
      %837 = vmatprep.subr.bf16.mxu0 0
      %838 = vmatpush2.bf16.msra.mxu0 0
      %839 = vmatprep.subr.bf16.mxu0 0
      %840 = vmatpush2.bf16.msra.mxu0 0
      %841 = vmatprep.subr.bf16.mxu0 0
      %842 = vmatpush2.bf16.msra.mxu0 0
      %843 = vmatprep.subr.bf16.mxu0 0
      %844 = vmatpush2.bf16.msra.mxu0 0
      %845 = vmatprep.subr.bf16.mxu0 0
      %846 = vmatpush2.bf16.msra.mxu0 0
      %847 = vmatprep.mubr.bf16.mxu0 0
      %848 = vmatmul.mubr.bf16.gmra.mxu0 %v733
      %v849 = vpop.f32.mrf.mxu0
      %v850 = vadd.f32 0.0, %v849
      %v851 = vpop.f32.mrf.mxu0
      %v852 = vadd.f32 0.0, %v851
      %v853 = vpop.f32.mrf.mxu0
      %v854 = vpop.f32.mrf.mxu0
      %855 = vdwg.mxu0
      %v856 = vadd.f32 %v700, %v850
      %v857 = vadd.f32 %v701, %v852
      %v858 = vld [vmem:[%s2] sm:$0x3]
      %v860 = vlaneseq
      %v861 = vshrl.u32 %v860, 7
      %v862 = vsub.s32 0, %v861
      %v863 = vrot.slane %v858, %v862
      %v864 = vlaneseq
      %v865 = vshrl.u32 %v864, 7
      %v866 = vsub.s32 1, %v865
      %v867 = vrot.slane %v858, %v866
      %v870 = vadd.f32 %v856, %v863
      %v871 = vadd.f32 %v857, %v867
      %v872 = vmax.f32 %v870, 0.0
      %v873 = vmax.f32 %v871, 0.0
      %v876 = vcombine.low %v872, %v873
      %v878 = vunpack.c.l.s4 1983009808
      %v879 = vunpack.c.0.s8 %v878
      %v880 = vlaneseq
      %v881 = vshrl.u32 %v880, 7
      %v882 = vsub.s32 %v879, %v881
      %v883 = vrot.slane %v876, %v882
      %v884 = vcombine.high %v883, %v883
      %v886 = vunpack.c.l.s4 1983009808
      %v887 = vunpack.c.0.s8 %v886
      %v888 = vlaneseq
      %v889 = vshrl.u32 %v888, 7
      %v890 = vsub.s32 %v887, %v889
      %v891 = vrot.slane %v883, %v890
      %v892 = vcombine.high %v891, %v891
      %v894 = vunpack.c.l.s4 1983009808
      %v895 = vunpack.c.0.s8 %v894
      %v896 = vlaneseq
      %v897 = vshrl.u32 %v896, 7
      %v898 = vsub.s32 %v895, %v897
      %v899 = vrot.slane %v884, %v898
      %v900 = vcombine.high %v899, %v899
      %v905 = vpack.c.bf16 %v891, %v891
      %v906 = vpack.c.bf16 %v892, %v892
      %v907 = vpack.c.bf16 %v899, %v899
      %v908 = vpack.c.bf16 %v900, %v900
      %v913 = vcombine.low %v905, %v906
      %v915 = vunpack.c.l.s4 1966171168
      %v916 = vunpack.c.0.s8 %v915
      %v917 = vlaneseq
      %v918 = vshrl.u32 %v917, 7
      %v919 = vsub.s32 %v916, %v918
      %v920 = vrot.slane %v913, %v919
      %v922 = vunpack.c.l.s4 1966171168
      %v923 = vunpack.c.0.s8 %v922
      %v924 = vlaneseq
      %v925 = vshrl.u32 %v924, 7
      %v926 = vsub.s32 %v923, %v925
      %v927 = vrot.slane %v920, %v926
      %v928 = vcombine.low %v907, %v908
      %v930 = vunpack.c.l.s4 1966171168
      %v931 = vunpack.c.0.s8 %v930
      %v932 = vlaneseq
      %v933 = vshrl.u32 %v932, 7
      %v934 = vsub.s32 %v931, %v933
      %v935 = vrot.slane %v928, %v934
      %v937 = vunpack.c.l.s4 1966171168
      %v938 = vunpack.c.0.s8 %v937
      %v939 = vlaneseq
      %v940 = vshrl.u32 %v939, 7
      %v941 = vsub.s32 %v938, %v940
      %v942 = vrot.slane %v935, %v941
      %945 = vst [vmem:[%s168] sm:$0x3] %v927
      %946 = vst [vmem:[%s168 + $0x2] sm:$0x3] %v942
      %p947 = scmp.lt.s32.totalorder %s14, 1
      %s948 = scalar_select %p947, %s14, 1
      %s949 = smul.addr %s948, 4
      %s950 = scalar_lea.vmem %s3, %s949
      // Predicated region
      $region33: #{forward.9} parent=31 // pred_check
        %p951 = pneg %p100
      $region34: #{forward.9} parent=31 // pred_check_branch
        %953 = sbr.rel (%p951) target = $region36
      $region35: #{forward.9} parent=31 // pred_region
        _
      $region36: #{forward.9} parent=31 // pred_fallthru
        _
    $region32: #{forward.9} parent=5 // pred_fallthru
      _
    %p954 = scmp.le.s32.totalorder 2, %s9
    // Predicated region
    $region37: #{forward.9} parent=5 // pred_check
      %p955 = pneg %p954
    $region38: #{forward.9} parent=5 // pred_check_branch
      %957 = sbr.rel (%p955) target = $region40
    $region39: #{forward.9} parent=5 // pred_region
      %s958 = ssub.s32 %s9, 2
      // Predicated region
      $region41: #{forward.9} parent=39 // pred_check
        %p959 = pneg %p106
      $region42: #{forward.9} parent=39 // pred_check_branch
        %961 = sbr.rel (%p959) target = $region44
      $region43: #{forward.9} parent=39 // pred_region
        %p962 = scmp.lt.s32.totalorder %s15, 1
        %s963 = scalar_select %p962, %s15, 1
        %s964 = smul.addr %s963, 4
        %s965 = scalar_lea.vmem %s3, %s964
      $region44: #{forward.9} parent=39 // pred_fallthru
        _
    $region40: #{forward.9} parent=5 // pred_fallthru
      _
  $region6: #{forward.9} parent=0 // loop_footer
    %s13 = sadd.s32 1, %s9
  $region7: #{forward.9} parent=0 // loop_footer_branch
    %8 = sbr.rel target = $region3
  $region8: #{forward.9} parent=0 // loop_exit
    _

// kernel: forward.11
$region0: #{forward.11}
  #allocation0 [shape = 'u32[]', space=smem, size = 0x4, offset = 0x4, fixed_abs, tag = 'smem constant byte address 0x4 - core index']
  #allocation1 [shape = 'u32[144,128]{1,0:T(1,128)}', space=vmem, size = 0x12000, scoped, tag = 'internal scratch']
  %s0 = inlined_call_operand.vmem [shape: bf16[2,9,9,32], index: 0, kind: input, shape index: {}]
  %s1 = inlined_call_operand.vmem [shape: bf16[4,32,12], index: 1, kind: input, shape index: {}]
  %s2 = inlined_call_operand.vmem [shape: f32[1,12], index: 2, kind: input, shape index: {}]
  %s3 = inlined_call_operand.vmem [shape: f32[2,8,8,12], index: 3, kind: output, shape index: {}]
  %s4 = sld [smem:[#allocation0]]
  $region45: #{forward.11} parent=0
    _
  %s6 = ssub.s32 1, %s4
  %s7 = scalar_select 0, %s6, %s4
  loop: start=0, step=1, limit=4
  $region2: #{forward.11} parent=0 // loop_pre_header
    _
  $region3: #{forward.11} parent=0 // loop_header
    %s9 = sphi 0, %s13
    %p10 = scmp.ge.s32.totalorder %s9, 4
    %s19 = sphi 0, %s21
    %s22 = sphi 0, %s19
    %s23 = sphi 0, %s22
    %s39 = sphi 0, %s23
    %s43 = sphi 0, %s43
    %s45 = sphi 0, %s43
    %s46 = sphi 0, %s45
    %s60 = sphi 0, %s46
    %s64 = sphi 0, %s64
    %s66 = sphi 0, %s64
    %s67 = sphi 0, %s66
    %s81 = sphi 0, %s67
    %s87 = sphi 0, %s89
    %s90 = sphi 0, %s87
    %s91 = sphi 0, %s90
    %s107 = sphi 0, %s91
  $region4: #{forward.11} parent=0 // loop_header_branch
    %12 = sbr.rel (%p10) target = $region8
  $region5: #{forward.11} parent=0 // loop_body
    %s14 = ssub.s32 %s9, 1
    %s15 = ssub.s32 %s9, 2
    %s16 = sadd.s32 %s9, 1
    %s17 = ssub.s32 %s9, %s16
    %p18 = scmp.eq.s32.totalorder %s17, 0
    %s20 = sadd.s32 %s19, 1
    %s21 = scalar_select %p18, %s19, %s20
    %p24 = pneg %p18
    %p25 = scmp.eq.s32.totalorder %s9, 1
    %p26 = por %p24, %p25
    %p27 = scmp.ne.s32.totalorder %s19, %s22
    %p28 = scmp.eq.s32.totalorder %s9, 0
    %p29 = por %p27, %p28
    %p30 = scmp.ne.s32.totalorder %s19, %s22
    %p31 = scmp.eq.s32.totalorder %s14, 1
    %p32 = por %p30, %p31
    %p33 = scmp.ne.s32.totalorder %s22, %s23
    %p34 = scmp.eq.s32.totalorder %s14, 0
    %p35 = por %p33, %p34
    %p36 = scmp.ne.s32.totalorder %s22, %s23
    %p37 = scmp.eq.s32.totalorder %s15, 1
    %p38 = por %p36, %p37
    %p40 = scmp.ne.s32.totalorder %s23, %s39
    %p41 = scmp.eq.s32.totalorder %s15, 0
    %p42 = por %p40, %p41
    %s44 = sadd.s32 %s43, 1
    %p47 = scmp.eq.s32.totalorder %s9, 1
    %p48 = scmp.ne.s32.totalorder %s43, %s45
    %p49 = scmp.eq.s32.totalorder %s9, 0
    %p50 = por %p48, %p49
    %p51 = scmp.ne.s32.totalorder %s43, %s45
    %p52 = scmp.eq.s32.totalorder %s14, 1
    %p53 = por %p51, %p52
    %p54 = scmp.ne.s32.totalorder %s45, %s46
    %p55 = scmp.eq.s32.totalorder %s14, 0
    %p56 = por %p54, %p55
    %p57 = scmp.ne.s32.totalorder %s45, %s46
    %p58 = scmp.eq.s32.totalorder %s15, 1
    %p59 = por %p57, %p58
    %p61 = scmp.ne.s32.totalorder %s46, %s60
    %p62 = scmp.eq.s32.totalorder %s15, 0
    %p63 = por %p61, %p62
    %s65 = sadd.s32 %s64, 1
    %p68 = scmp.eq.s32.totalorder %s9, 1
    %p69 = scmp.ne.s32.totalorder %s64, %s66
    %p70 = scmp.eq.s32.totalorder %s9, 0
    %p71 = por %p69, %p70
    %p72 = scmp.ne.s32.totalorder %s64, %s66
    %p73 = scmp.eq.s32.totalorder %s14, 1
    %p74 = por %p72, %p73
    %p75 = scmp.ne.s32.totalorder %s66, %s67
    %p76 = scmp.eq.s32.totalorder %s14, 0
    %p77 = por %p75, %p76
    %p78 = scmp.ne.s32.totalorder %s66, %s67
    %p79 = scmp.eq.s32.totalorder %s15, 1
    %p80 = por %p78, %p79
    %p82 = scmp.ne.s32.totalorder %s67, %s81
    %p83 = scmp.eq.s32.totalorder %s15, 0
    %p84 = por %p82, %p83
    %s85 = ssub.s32 %s9, %s16
    %p86 = scmp.eq.s32.totalorder %s85, 0
    %s88 = sadd.s32 %s87, 1
    %s89 = scalar_select %p86, %s87, %s88
    %p92 = pneg %p86
    %p93 = scmp.eq.s32.totalorder %s9, 1
    %p94 = por %p92, %p93
    %p95 = scmp.ne.s32.totalorder %s87, %s90
    %p96 = scmp.eq.s32.totalorder %s9, 0
    %p97 = por %p95, %p96
    %p98 = scmp.ne.s32.totalorder %s87, %s90
    %p99 = scmp.eq.s32.totalorder %s14, 1
    %p100 = por %p98, %p99
    %p101 = scmp.ne.s32.totalorder %s90, %s91
    %p102 = scmp.eq.s32.totalorder %s14, 0
    %p103 = por %p101, %p102
    %p104 = scmp.ne.s32.totalorder %s90, %s91
    %p105 = scmp.eq.s32.totalorder %s15, 1
    %p106 = por %p104, %p105
    %p108 = scmp.ne.s32.totalorder %s91, %s107
    %p109 = scmp.eq.s32.totalorder %s15, 0
    %p110 = por %p108, %p109
    %p111 = scmp.le.s32.totalorder 1, %s9
    %p112 = scmp.lt.s32.totalorder %s9, 3
    %p113 = pnand %p111, %p112
    %p114 = pneg %p113
    // Predicated region
    $region9: #{forward.11} parent=5 // pred_check
      _
    $region10: #{forward.11} parent=5 // pred_check_branch
      %116 = sbr.rel (%p113) target = $region12
    $region11: #{forward.11} parent=5 // pred_region
      %s117 = ssub.s32 %s9, 1
      // Predicated region
      $region13: #{forward.11} parent=11 // pred_check
        %p118 = pneg %p56
      $region14: #{forward.11} parent=11 // pred_check_branch
        %120 = sbr.rel (%p118) target = $region16
      $region15: #{forward.11} parent=11 // pred_region
        _
      $region16: #{forward.11} parent=11 // pred_fallthru
        _
      // Predicated region
      $region17: #{forward.11} parent=11 // pred_check
        %p121 = pneg %p77
      $region18: #{forward.11} parent=11 // pred_check_branch
        %123 = sbr.rel (%p121) target = $region20
      $region19: #{forward.11} parent=11 // pred_region
        _
      $region20: #{forward.11} parent=11 // pred_fallthru
        _
    $region12: #{forward.11} parent=5 // pred_fallthru
      _
    %p124 = scmp.lt.s32.totalorder %s9, 2
    // Predicated region
    $region21: #{forward.11} parent=5 // pred_check
      %p125 = pneg %p124
    $region22: #{forward.11} parent=5 // pred_check_branch
      %127 = sbr.rel (%p125) target = $region24
    $region23: #{forward.11} parent=5 // pred_region
      // Predicated region
      $region25: #{forward.11} parent=23 // pred_check
        %p128 = pneg %p29
      $region26: #{forward.11} parent=23 // pred_check_branch
        %130 = sbr.rel (%p128) target = $region28
      $region27: #{forward.11} parent=23 // pred_region
        %p131 = scmp.lt.s32.totalorder %s9, 1
        %s132 = scalar_select %p131, %s9, 1
        %s133 = smul.addr %s132, 18
        %s134 = smul.addr %s133, 4
        %s135 = scalar_lea.vmem %s0, %s134
      $region28: #{forward.11} parent=23 // pred_fallthru
        _
    $region24: #{forward.11} parent=5 // pred_fallthru
      _
    %p136 = scmp.le.s32.totalorder 1, %s9
    %p137 = scmp.lt.s32.totalorder %s9, 3
    %p138 = pnand %p136, %p137
    %p139 = pneg %p138
    // Predicated region
    $region29: #{forward.11} parent=5 // pred_check
      _
    $region30: #{forward.11} parent=5 // pred_check_branch
      %141 = sbr.rel (%p138) target = $region32
    $region31: #{forward.11} parent=5 // pred_region
      %s142 = ssub.s32 %s9, 1
      %p143 = scmp.lt.s32.totalorder %s14, 1
      %s144 = scalar_select %p143, %s14, 1
      %s145 = smul.addr %s144, 18
      %s146 = smul.addr %s145, 4
      %s147 = scalar_lea.vmem %s0, %s146
      %p148 = pneg %p35
      %p149 = pneg %p32
      %p150 = pneg %p56
      %p151 = pneg %p53
      %p152 = pneg %p77
      %p153 = pneg %p74
      %p154 = pneg %p103
      %p155 = pneg %p100
      %p156 = scmp.lt.s32.totalorder %s14, 1
      %s157 = scalar_select %p156, %s14, 1
      %s158 = smul.addr %s157, 8
      %s159 = smul.addr %s158, 8
      %s160 = scalar_lea.vmem %s3, %s159
      %p161 = scmp.lt.s32.totalorder %s14, 1
      %s162 = scalar_select %p161, %s14, 1
      %s163 = smul.addr %s162, 18
      %s164 = smul.addr %s163, 4
      %s165 = scalar_lea.vmem %s0, %s164
      %p166 = scmp.lt.s32.totalorder %s14, 1
      %s167 = scalar_select %p166, %s14, 1
      %s168 = smul.addr %s167, 8
      %s169 = smul.addr %s168, 8
      %s170 = scalar_lea.vmem %s3, %s169
      %v172 = vld [vmem:[%s165] sm:$0xf]
      %v173 = vld [vmem:[%s165 + $0x4] sm:$0x1]
      %v174 = vld [vmem:[%s165 + $0x8] sm:$0xf]
      %v175 = vld [vmem:[%s165 + $0xc] sm:$0x1]
      %v176 = vld [vmem:[%s165 + $0x10] sm:$0xf]
      %v177 = vld [vmem:[%s165 + $0x14] sm:$0x1]
      %v178 = vld [vmem:[%s165 + $0x18] sm:$0xf]
      %v179 = vld [vmem:[%s165 + $0x1c] sm:$0x1]
      %v180 = vld [vmem:[%s165 + $0x20] sm:$0xf]
      %v181 = vld [vmem:[%s165 + $0x24] sm:$0x1]
      %v182 = vld [vmem:[%s165 + $0x28] sm:$0xf]
      %v183 = vld [vmem:[%s165 + $0x2c] sm:$0x1]
      %v184 = vld [vmem:[%s165 + $0x30] sm:$0xf]
      %v185 = vld [vmem:[%s165 + $0x34] sm:$0x1]
      %v186 = vld [vmem:[%s165 + $0x38] sm:$0xf]
      %v187 = vld [vmem:[%s165 + $0x3c] sm:$0x1]
      %v188 = vld [vmem:[%s165 + $0x40] sm:$0xf]
      %v189 = vld [vmem:[%s165 + $0x44] sm:$0x1]
      %v190 = vld [vmem:[%s1] sm:$0xf]
      %v191 = vld [vmem:[%s1 + $0x4] sm:$0xf]
      %v192 = vld [vmem:[%s1 + $0x8] sm:$0xf]
      %v193 = vld [vmem:[%s1 + $0xc] sm:$0xf]
      %v194 = vld [vmem:[%s1 + $0x10] sm:$0xf]
      %v195 = vld [vmem:[%s1 + $0x14] sm:$0xf]
      %v196 = vld [vmem:[%s1 + $0x18] sm:$0xf]
      %v197 = vld [vmem:[%s1 + $0x1c] sm:$0xf]
      %v198 = vld [vmem:[%s1 + $0x20] sm:$0xf]
      %v199 = vld [vmem:[%s1 + $0x24] sm:$0xf]
      %v200 = vld [vmem:[%s1 + $0x28] sm:$0xf]
      %v201 = vld [vmem:[%s1 + $0x2c] sm:$0xf]
      %v202 = vld [vmem:[%s1 + $0x30] sm:$0xf]
      %v203 = vld [vmem:[%s1 + $0x34] sm:$0xf]
      %v204 = vld [vmem:[%s1 + $0x38] sm:$0xf]
      %v205 = vld [vmem:[%s1 + $0x3c] sm:$0xf]
      %vm206 = vsmask.f32 3328
      %vm207 = vsmask.f32 7440
      %vm208 = vmor %vm206, %vm207
      %v210 = vshrl.u32 %v172, 16
      %v212 = vrot.slane %v210, 4
      %v213 = vshll.u32 %v172, 16
      %v215 = vrot.slane %v213, 5
      %v216 = vor.u32 %v212, %v215
      %v217 = vrot.slane %v216, 4
      %v219 = vshll.u32 %v173, 16
      %v221 = vrot.slane %v219, 5
      %v222 = vsel %vm208, %v217, %v221
      %v224 = vshrl.u32 %v174, 16
      %v226 = vrot.slane %v224, 4
      %v227 = vshll.u32 %v174, 16
      %v229 = vrot.slane %v227, 5
      %v230 = vor.u32 %v226, %v229
      %v231 = vrot.slane %v230, 4
      %v233 = vshll.u32 %v175, 16
      %v235 = vrot.slane %v233, 5
      %v236 = vsel %vm208, %v231, %v235
      %v238 = vshrl.u32 %v176, 16
      %v240 = vrot.slane %v238, 4
      %v241 = vshll.u32 %v176, 16
      %v243 = vrot.slane %v241, 5
      %v244 = vor.u32 %v240, %v243
      %v245 = vrot.slane %v244, 4
      %v247 = vshll.u32 %v177, 16
      %v249 = vrot.slane %v247, 5
      %v250 = vsel %vm208, %v245, %v249
      %v252 = vshrl.u32 %v178, 16
      %v254 = vrot.slane %v252, 4
      %v255 = vshll.u32 %v178, 16
      %v257 = vrot.slane %v255, 5
      %v258 = vor.u32 %v254, %v257
      %v259 = vrot.slane %v258, 4
      %v261 = vshll.u32 %v179, 16
      %v263 = vrot.slane %v261, 5
      %v264 = vsel %vm208, %v259, %v263
      %v266 = vshrl.u32 %v180, 16
      %v268 = vrot.slane %v266, 4
      %v269 = vshll.u32 %v180, 16
      %v271 = vrot.slane %v269, 5
      %v272 = vor.u32 %v268, %v271
      %v273 = vrot.slane %v272, 4
      %v275 = vshll.u32 %v181, 16
      %v277 = vrot.slane %v275, 5
      %v278 = vsel %vm208, %v273, %v277
      %v280 = vshrl.u32 %v182, 16
      %v282 = vrot.slane %v280, 4
      %v283 = vshll.u32 %v182, 16
      %v285 = vrot.slane %v283, 5
      %v286 = vor.u32 %v282, %v285
      %v287 = vrot.slane %v286, 4
      %v289 = vshll.u32 %v183, 16
      %v291 = vrot.slane %v289, 5
      %v292 = vsel %vm208, %v287, %v291
      %v294 = vshrl.u32 %v184, 16
      %v296 = vrot.slane %v294, 4
      %v297 = vshll.u32 %v184, 16
      %v299 = vrot.slane %v297, 5
      %v300 = vor.u32 %v296, %v299
      %v301 = vrot.slane %v300, 4
      %v303 = vshll.u32 %v185, 16
      %v305 = vrot.slane %v303, 5
      %v306 = vsel %vm208, %v301, %v305
      %v308 = vshrl.u32 %v186, 16
      %v310 = vrot.slane %v308, 4
      %v311 = vshll.u32 %v186, 16
      %v313 = vrot.slane %v311, 5
      %v314 = vor.u32 %v310, %v313
      %v315 = vrot.slane %v314, 4
      %v317 = vshll.u32 %v187, 16
      %v319 = vrot.slane %v317, 5
      %v320 = vsel %vm208, %v315, %v319
      %v321 = vunpack.c.l.b16 %v222
      %v322 = vunpack.c.l.b16 %v236
      %v323 = vunpack.c.l.b16 %v250
      %v324 = vunpack.c.l.b16 %v264
      %v325 = vunpack.c.l.b16 %v278
      %v326 = vunpack.c.l.b16 %v292
      %v327 = vunpack.c.l.b16 %v306
      %v328 = vunpack.c.l.b16 %v320
      %v329 = vpack.c.b16 %v322, %v321
      %v330 = vpack.c.b16 %v324, %v323
      %v331 = vpack.c.b16 %v326, %v325
      %v332 = vpack.c.b16 %v328, %v327
      %v337 = vunpack.c.l.b16 %v194
      %v338 = vunpack.c.l.b16 %v195
      %v339 = vunpack.c.l.b16 %v196
      %v340 = vunpack.c.l.b16 %v197
      %v341 = vpack.c.b16 %v338, %v337
      %v342 = vpack.c.b16 %v340, %v339
      %vm345 = vcmask 261120
      %v347 = vsel %vm345, %v329, 0
      %v350 = vsel %vm345, %v330, 0
      %v353 = vsel %vm345, %v331, 0
      %v356 = vsel %vm345, %v332, 0
      %358 = vmatprep.subr.bf16.mxu0 0
      %359 = vmatpush1.bf16.msra.mxu0 0
      %360 = vmatprep.subr.bf16.mxu0 0
      %361 = vmatpush1.bf16.msra.mxu0 0
      %362 = vmatprep.subr.bf16.mxu0 0
      %363 = vmatpush1.bf16.msra.mxu0 0
      %364 = vmatprep.subr.bf16.mxu0 0
      %365 = vmatpush1.bf16.msra.mxu0 0
      %366 = vmatprep.subr.bf16.mxu0 0
      %367 = vmatpush1.bf16.msra.mxu0 0
      %368 = vmatprep.subr.bf16.mxu0 0
      %369 = vmatpush1.bf16.msra.mxu0 0
      %370 = vmatprep.subr.bf16.mxu0 0
      %371 = vmatpush1.bf16.msra.mxu0 %v342
      %372 = vmatprep.subr.bf16.mxu0 0
      %373 = vmatpush1.bf16.msra.mxu0 %v341
      %374 = vmatprep.subr.bf16.mxu0 0
      %375 = vmatpush2.bf16.msra.mxu0 0
      %376 = vmatprep.subr.bf16.mxu0 0
      %377 = vmatpush2.bf16.msra.mxu0 0
      %378 = vmatprep.subr.bf16.mxu0 0
      %379 = vmatpush2.bf16.msra.mxu0 0
      %380 = vmatprep.subr.bf16.mxu0 0
      %381 = vmatpush2.bf16.msra.mxu0 0
      %382 = vmatprep.subr.bf16.mxu0 0
      %383 = vmatpush2.bf16.msra.mxu0 0
      %384 = vmatprep.subr.bf16.mxu0 0
      %385 = vmatpush2.bf16.msra.mxu0 0
      %386 = vmatprep.subr.bf16.mxu0 0
      %387 = vmatpush2.bf16.msra.mxu0 0
      %388 = vmatprep.subr.bf16.mxu0 0
      %389 = vmatpush2.bf16.msra.mxu0 0
      %390 = vmatprep.mubr.bf16.mxu0 0
      %391 = vmatmul.mubr.bf16.gmra.mxu0 %v347
      %v392 = vpop.f32.mrf.mxu0
      %v393 = vadd.f32 0.0, %v392
      %v394 = vpop.f32.mrf.mxu0
      %v395 = vpop.f32.mrf.mxu0
      %v396 = vadd.f32 0.0, %v395
      %v397 = vpop.f32.mrf.mxu0
      %398 = vmatprep.mubr.bf16.mxu0 0
      %399 = vmatmul.mubr.bf16.gmra.mxu0 %v350
      %v400 = vpop.f32.mrf.mxu0
      %v401 = vadd.f32 0.0, %v400
      %v402 = vpop.f32.mrf.mxu0
      %v403 = vpop.f32.mrf.mxu0
      %v404 = vadd.f32 0.0, %v403
      %v405 = vpop.f32.mrf.mxu0
      %406 = vmatprep.mubr.bf16.mxu0 0
      %407 = vmatmul.mubr.bf16.gmra.mxu0 %v353
      %v408 = vpop.f32.mrf.mxu0
      %v409 = vadd.f32 0.0, %v408
      %v410 = vpop.f32.mrf.mxu0
      %v411 = vpop.f32.mrf.mxu0
      %v412 = vadd.f32 0.0, %v411
      %v413 = vpop.f32.mrf.mxu0
      %414 = vmatprep.mubr.bf16.mxu0 0
      %415 = vmatmul.mubr.bf16.gmra.mxu0 %v356
      %v416 = vpop.f32.mrf.mxu0
      %v417 = vadd.f32 0.0, %v416
      %v418 = vpop.f32.mrf.mxu0
      %v419 = vpop.f32.mrf.mxu0
      %v420 = vadd.f32 0.0, %v419
      %v421 = vpop.f32.mrf.mxu0
      %422 = vdwg.mxu0
      %v431 = vunpack.c.l.b16 %v172
      %v432 = vunpack.c.l.b16 %v174
      %v433 = vunpack.c.l.b16 %v176
      %v434 = vunpack.c.l.b16 %v178
      %v435 = vunpack.c.l.b16 %v180
      %v436 = vunpack.c.l.b16 %v182
      %v437 = vunpack.c.l.b16 %v184
      %v438 = vunpack.c.l.b16 %v186
      %v439 = vpack.c.b16 %v432, %v431
      %v440 = vpack.c.b16 %v434, %v433
      %v441 = vpack.c.b16 %v436, %v435
      %v442 = vpack.c.b16 %v438, %v437
      %v447 = vunpack.c.l.b16 %v190
      %v448 = vunpack.c.l.b16 %v191
      %v449 = vunpack.c.l.b16 %v192
      %v450 = vunpack.c.l.b16 %v193
      %v451 = vpack.c.b16 %v448, %v447
      %v452 = vpack.c.b16 %v450, %v449
      %v456 = vsel %vm345, %v439, 0
      %v459 = vsel %vm345, %v440, 0
      %v462 = vsel %vm345, %v441, 0
      %v465 = vsel %vm345, %v442, 0
      %467 = vmatprep.subr.bf16.mxu0 0
      %468 = vmatpush1.bf16.msra.mxu0 0
      %469 = vmatprep.subr.bf16.mxu0 0
      %470 = vmatpush1.bf16.msra.mxu0 0
      %471 = vmatprep.subr.bf16.mxu0 0
      %472 = vmatpush1.bf16.msra.mxu0 0
      %473 = vmatprep.subr.bf16.mxu0 0
      %474 = vmatpush1.bf16.msra.mxu0 0
      %475 = vmatprep.subr.bf16.mxu0 0
      %476 = vmatpush1.bf16.msra.mxu0 0
      %477 = vmatprep.subr.bf16.mxu0 0
      %478 = vmatpush1.bf16.msra.mxu0 0
      %479 = vmatprep.subr.bf16.mxu0 0
      %480 = vmatpush1.bf16.msra.mxu0 %v452
      %481 = vmatprep.subr.bf16.mxu0 0
      %482 = vmatpush1.bf16.msra.mxu0 %v451
      %483 = vmatprep.subr.bf16.mxu0 0
      %484 = vmatpush2.bf16.msra.mxu0 0
      %485 = vmatprep.subr.bf16.mxu0 0
      %486 = vmatpush2.bf16.msra.mxu0 0
      %487 = vmatprep.subr.bf16.mxu0 0
      %488 = vmatpush2.bf16.msra.mxu0 0
      %489 = vmatprep.subr.bf16.mxu0 0
      %490 = vmatpush2.bf16.msra.mxu0 0
      %491 = vmatprep.subr.bf16.mxu0 0
      %492 = vmatpush2.bf16.msra.mxu0 0
      %493 = vmatprep.subr.bf16.mxu0 0
      %494 = vmatpush2.bf16.msra.mxu0 0
      %495 = vmatprep.subr.bf16.mxu0 0
      %496 = vmatpush2.bf16.msra.mxu0 0
      %497 = vmatprep.subr.bf16.mxu0 0
      %498 = vmatpush2.bf16.msra.mxu0 0
      %499 = vmatprep.mubr.bf16.mxu0 0
      %500 = vmatmul.mubr.bf16.gmra.mxu0 %v456
      %v501 = vpop.f32.mrf.mxu0
      %v502 = vadd.f32 %v393, %v501
      %v503 = vpop.f32.mrf.mxu0
      %v504 = vpop.f32.mrf.mxu0
      %v505 = vadd.f32 %v396, %v504
      %v506 = vpop.f32.mrf.mxu0
      %507 = vmatprep.mubr.bf16.mxu0 0
      %508 = vmatmul.mubr.bf16.gmra.mxu0 %v459
      %v509 = vpop.f32.mrf.mxu0
      %v510 = vadd.f32 %v401, %v509
      %v511 = vpop.f32.mrf.mxu0
      %v512 = vpop.f32.mrf.mxu0
      %v513 = vadd.f32 %v404, %v512
      %v514 = vpop.f32.mrf.mxu0
      %515 = vmatprep.mubr.bf16.mxu0 0
      %516 = vmatmul.mubr.bf16.gmra.mxu0 %v462
      %v517 = vpop.f32.mrf.mxu0
      %v518 = vadd.f32 %v409, %v517
      %v519 = vpop.f32.mrf.mxu0
      %v520 = vpop.f32.mrf.mxu0
      %v521 = vadd.f32 %v412, %v520
      %v522 = vpop.f32.mrf.mxu0
      %523 = vmatprep.mubr.bf16.mxu0 0
      %524 = vmatmul.mubr.bf16.gmra.mxu0 %v465
      %v525 = vpop.f32.mrf.mxu0
      %v526 = vadd.f32 %v417, %v525
      %v527 = vpop.f32.mrf.mxu0
      %v528 = vpop.f32.mrf.mxu0
      %v529 = vadd.f32 %v420, %v528
      %v530 = vpop.f32.mrf.mxu0
      %531 = vdwg.mxu0
      %v533 = vunpack.c.l.b16 %v188
      %v534 = vpack.c.b16 %v433, %v432
      %v535 = vpack.c.b16 %v435, %v434
      %v536 = vpack.c.b16 %v437, %v436
      %v537 = vpack.c.b16 %v533, %v438
      %v542 = vunpack.c.l.b16 %v198
      %v543 = vunpack.c.l.b16 %v199
      %v544 = vunpack.c.l.b16 %v200
      %v545 = vunpack.c.l.b16 %v201
      %v546 = vpack.c.b16 %v543, %v542
      %v547 = vpack.c.b16 %v545, %v544
      %v551 = vsel %vm345, %v534, 0
      %v554 = vsel %vm345, %v535, 0
      %v557 = vsel %vm345, %v536, 0
      %v560 = vsel %vm345, %v537, 0
      %562 = vmatprep.subr.bf16.mxu0 0
      %563 = vmatpush1.bf16.msra.mxu0 0
      %564 = vmatprep.subr.bf16.mxu0 0
      %565 = vmatpush1.bf16.msra.mxu0 0
      %566 = vmatprep.subr.bf16.mxu0 0
      %567 = vmatpush1.bf16.msra.mxu0 0
      %568 = vmatprep.subr.bf16.mxu0 0
      %569 = vmatpush1.bf16.msra.mxu0 0
      %570 = vmatprep.subr.bf16.mxu0 0
      %571 = vmatpush1.bf16.msra.mxu0 0
      %572 = vmatprep.subr.bf16.mxu0 0
      %573 = vmatpush1.bf16.msra.mxu0 0
      %574 = vmatprep.subr.bf16.mxu0 0
      %575 = vmatpush1.bf16.msra.mxu0 %v547
      %576 = vmatprep.subr.bf16.mxu0 0
      %577 = vmatpush1.bf16.msra.mxu0 %v546
      %578 = vmatprep.subr.bf16.mxu0 0
      %579 = vmatpush2.bf16.msra.mxu0 0
      %580 = vmatprep.subr.bf16.mxu0 0
      %581 = vmatpush2.bf16.msra.mxu0 0
      %582 = vmatprep.subr.bf16.mxu0 0
      %583 = vmatpush2.bf16.msra.mxu0 0
      %584 = vmatprep.subr.bf16.mxu0 0
      %585 = vmatpush2.bf16.msra.mxu0 0
      %586 = vmatprep.subr.bf16.mxu0 0
      %587 = vmatpush2.bf16.msra.mxu0 0
      %588 = vmatprep.subr.bf16.mxu0 0
      %589 = vmatpush2.bf16.msra.mxu0 0
      %590 = vmatprep.subr.bf16.mxu0 0
      %591 = vmatpush2.bf16.msra.mxu0 0
      %592 = vmatprep.subr.bf16.mxu0 0
      %593 = vmatpush2.bf16.msra.mxu0 0
      %594 = vmatprep.mubr.bf16.mxu0 0
      %595 = vmatmul.mubr.bf16.gmra.mxu0 %v551
      %v596 = vpop.f32.mrf.mxu0
      %v597 = vadd.f32 0.0, %v596
      %v598 = vpop.f32.mrf.mxu0
      %v599 = vpop.f32.mrf.mxu0
      %v600 = vadd.f32 0.0, %v599
      %v601 = vpop.f32.mrf.mxu0
      %602 = vmatprep.mubr.bf16.mxu0 0
      %603 = vmatmul.mubr.bf16.gmra.mxu0 %v554
      %v604 = vpop.f32.mrf.mxu0
      %v605 = vadd.f32 0.0, %v604
      %v606 = vpop.f32.mrf.mxu0
      %v607 = vpop.f32.mrf.mxu0
      %v608 = vadd.f32 0.0, %v607
      %v609 = vpop.f32.mrf.mxu0
      %610 = vmatprep.mubr.bf16.mxu0 0
      %611 = vmatmul.mubr.bf16.gmra.mxu0 %v557
      %v612 = vpop.f32.mrf.mxu0
      %v613 = vadd.f32 0.0, %v612
      %v614 = vpop.f32.mrf.mxu0
      %v615 = vpop.f32.mrf.mxu0
      %v616 = vadd.f32 0.0, %v615
      %v617 = vpop.f32.mrf.mxu0
      %618 = vmatprep.mubr.bf16.mxu0 0
      %619 = vmatmul.mubr.bf16.gmra.mxu0 %v560
      %v620 = vpop.f32.mrf.mxu0
      %v621 = vadd.f32 0.0, %v620
      %v622 = vpop.f32.mrf.mxu0
      %v623 = vpop.f32.mrf.mxu0
      %v624 = vadd.f32 0.0, %v623
      %v625 = vpop.f32.mrf.mxu0
      %626 = vdwg.mxu0
      %v627 = vadd.f32 %v502, %v597
      %v628 = vadd.f32 %v505, %v600
      %v629 = vadd.f32 %v510, %v605
      %v630 = vadd.f32 %v513, %v608
      %v631 = vadd.f32 %v518, %v613
      %v632 = vadd.f32 %v521, %v616
      %v633 = vadd.f32 %v526, %v621
      %v634 = vadd.f32 %v529, %v624
      %v636 = vshrl.u32 %v188, 16
      %v638 = vrot.slane %v636, 4
      %v639 = vshll.u32 %v188, 16
      %v641 = vrot.slane %v639, 5
      %v642 = vor.u32 %v638, %v641
      %v643 = vrot.slane %v642, 4
      %v645 = vshll.u32 %v189, 16
      %v647 = vrot.slane %v645, 5
      %v648 = vsel %vm208, %v643, %v647
      %v649 = vunpack.c.l.b16 %v648
      %v650 = vpack.c.b16 %v323, %v322
      %v651 = vpack.c.b16 %v325, %v324
      %v652 = vpack.c.b16 %v327, %v326
      %v653 = vpack.c.b16 %v649, %v328
      %v658 = vunpack.c.l.b16 %v202
      %v659 = vunpack.c.l.b16 %v203
      %v660 = vunpack.c.l.b16 %v204
      %v661 = vunpack.c.l.b16 %v205
      %v662 = vpack.c.b16 %v659, %v658
      %v663 = vpack.c.b16 %v661, %v660
      %v667 = vsel %vm345, %v650, 0
      %v670 = vsel %vm345, %v651, 0
      %v673 = vsel %vm345, %v652, 0
      %v676 = vsel %vm345, %v653, 0
      %678 = vmatprep.subr.bf16.mxu0 0
      %679 = vmatpush1.bf16.msra.mxu0 0
      %680 = vmatprep.subr.bf16.mxu0 0
      %681 = vmatpush1.bf16.msra.mxu0 0
      %682 = vmatprep.subr.bf16.mxu0 0
      %683 = vmatpush1.bf16.msra.mxu0 0
      %684 = vmatprep.subr.bf16.mxu0 0
      %685 = vmatpush1.bf16.msra.mxu0 0
      %686 = vmatprep.subr.bf16.mxu0 0
      %687 = vmatpush1.bf16.msra.mxu0 0
      %688 = vmatprep.subr.bf16.mxu0 0
      %689 = vmatpush1.bf16.msra.mxu0 0
      %690 = vmatprep.subr.bf16.mxu0 0
      %691 = vmatpush1.bf16.msra.mxu0 %v663
      %692 = vmatprep.subr.bf16.mxu0 0
      %693 = vmatpush1.bf16.msra.mxu0 %v662
      %694 = vmatprep.subr.bf16.mxu0 0
      %695 = vmatpush2.bf16.msra.mxu0 0
      %696 = vmatprep.subr.bf16.mxu0 0
      %697 = vmatpush2.bf16.msra.mxu0 0
      %698 = vmatprep.subr.bf16.mxu0 0
      %699 = vmatpush2.bf16.msra.mxu0 0
      %700 = vmatprep.subr.bf16.mxu0 0
      %701 = vmatpush2.bf16.msra.mxu0 0
      %702 = vmatprep.subr.bf16.mxu0 0
      %703 = vmatpush2.bf16.msra.mxu0 0
      %704 = vmatprep.subr.bf16.mxu0 0
      %705 = vmatpush2.bf16.msra.mxu0 0
      %706 = vmatprep.subr.bf16.mxu0 0
      %707 = vmatpush2.bf16.msra.mxu0 0
      %708 = vmatprep.subr.bf16.mxu0 0
      %709 = vmatpush2.bf16.msra.mxu0 0
      %710 = vmatprep.mubr.bf16.mxu0 0
      %711 = vmatmul.mubr.bf16.gmra.mxu0 %v667
      %v712 = vpop.f32.mrf.mxu0
      %v713 = vadd.f32 0.0, %v712
      %v714 = vpop.f32.mrf.mxu0
      %v715 = vpop.f32.mrf.mxu0
      %v716 = vadd.f32 0.0, %v715
      %v717 = vpop.f32.mrf.mxu0
      %718 = vmatprep.mubr.bf16.mxu0 0
      %719 = vmatmul.mubr.bf16.gmra.mxu0 %v670
      %v720 = vpop.f32.mrf.mxu0
      %v721 = vadd.f32 0.0, %v720
      %v722 = vpop.f32.mrf.mxu0
      %v723 = vpop.f32.mrf.mxu0
      %v724 = vadd.f32 0.0, %v723
      %v725 = vpop.f32.mrf.mxu0
      %726 = vmatprep.mubr.bf16.mxu0 0
      %727 = vmatmul.mubr.bf16.gmra.mxu0 %v673
      %v728 = vpop.f32.mrf.mxu0
      %v729 = vadd.f32 0.0, %v728
      %v730 = vpop.f32.mrf.mxu0
      %v731 = vpop.f32.mrf.mxu0
      %v732 = vadd.f32 0.0, %v731
      %v733 = vpop.f32.mrf.mxu0
      %734 = vmatprep.mubr.bf16.mxu0 0
      %735 = vmatmul.mubr.bf16.gmra.mxu0 %v676
      %v736 = vpop.f32.mrf.mxu0
      %v737 = vadd.f32 0.0, %v736
      %v738 = vpop.f32.mrf.mxu0
      %v739 = vpop.f32.mrf.mxu0
      %v740 = vadd.f32 0.0, %v739
      %v741 = vpop.f32.mrf.mxu0
      %742 = vdwg.mxu0
      %v743 = vadd.f32 %v627, %v713
      %v744 = vadd.f32 %v628, %v716
      %v745 = vadd.f32 %v629, %v721
      %v746 = vadd.f32 %v630, %v724
      %v747 = vadd.f32 %v631, %v729
      %v748 = vadd.f32 %v632, %v732
      %v749 = vadd.f32 %v633, %v737
      %v750 = vadd.f32 %v634, %v740
      %v751 = vld [vmem:[%s2] sm:$0x1]
      %v753 = vlaneseq
      %v754 = vshrl.u32 %v753, 7
      %v755 = vsub.s32 0, %v754
      %v756 = vrot.slane %v751, %v755
      %v758 = vadd.f32 %v743, %v756
      %v759 = vadd.f32 %v744, %v756
      %v760 = vadd.f32 %v745, %v756
      %v761 = vadd.f32 %v746, %v756
      %v762 = vadd.f32 %v747, %v756
      %v763 = vadd.f32 %v748, %v756
      %v764 = vadd.f32 %v749, %v756
      %v765 = vadd.f32 %v750, %v756
      %v766 = vsub.f32 0.0, %v758
      %v767 = vsub.f32 0.0, %v759
      %v768 = vsub.f32 0.0, %v760
      %v769 = vsub.f32 0.0, %v761
      %v770 = vsub.f32 0.0, %v762
      %v771 = vsub.f32 0.0, %v763
      %v772 = vsub.f32 0.0, %v764
      %v773 = vsub.f32 0.0, %v765
      %v774 = vmul.f32 %v766, 1.442695
      %v775 = vpow.pop %v774
      %v776 = vmul.f32 %v767, 1.442695
      %v777 = vpow.pop %v776
      %v778 = vmul.f32 %v768, 1.442695
      %v779 = vpow.pop %v778
      %v780 = vmul.f32 %v769, 1.442695
      %v781 = vpow.pop %v780
      %v782 = vmul.f32 %v770, 1.442695
      %v783 = vpow.pop %v782
      %v784 = vmul.f32 %v771, 1.442695
      %v785 = vpow.pop %v784
      %v786 = vmul.f32 %v772, 1.442695
      %v787 = vpow.pop %v786
      %v788 = vmul.f32 %v773, 1.442695
      %v789 = vpow.pop %v788
      %v790 = vadd.f32 %v775, 1.0
      %v791 = vadd.f32 %v777, 1.0
      %v792 = vadd.f32 %v779, 1.0
      %v793 = vadd.f32 %v781, 1.0
      %v794 = vadd.f32 %v783, 1.0
      %v795 = vadd.f32 %v785, 1.0
      %v796 = vadd.f32 %v787, 1.0
      %v797 = vadd.f32 %v789, 1.0
      %v798 = vrcp.pop %v790
      %v799 = vmul.f32 1.0, %v798
      %v800 = vrcp.pop %v791
      %v801 = vmul.f32 1.0, %v800
      %v802 = vrcp.pop %v792
      %v803 = vmul.f32 1.0, %v802
      %v804 = vrcp.pop %v793
      %v805 = vmul.f32 1.0, %v804
      %v806 = vrcp.pop %v794
      %v807 = vmul.f32 1.0, %v806
      %v808 = vrcp.pop %v795
      %v809 = vmul.f32 1.0, %v808
      %v810 = vrcp.pop %v796
      %v811 = vmul.f32 1.0, %v810
      %v812 = vrcp.pop %v797
      %v813 = vmul.f32 1.0, %v812
      %vm814 = vcmask 97280
      %815 = vst.msk [vmem:[%s170] sm:$0xff] %vm814, %v799
      %816 = vst.msk [vmem:[%s170 + $0x8] sm:$0xff] %vm814, %v801
      %817 = vst.msk [vmem:[%s170 + $0x10] sm:$0xff] %vm814, %v803
      %818 = vst.msk [vmem:[%s170 + $0x18] sm:$0xff] %vm814, %v805
      %819 = vst.msk [vmem:[%s170 + $0x20] sm:$0xff] %vm814, %v807
      %820 = vst.msk [vmem:[%s170 + $0x28] sm:$0xff] %vm814, %v809
      %821 = vst.msk [vmem:[%s170 + $0x30] sm:$0xff] %vm814, %v811
      %822 = vst.msk [vmem:[%s170 + $0x38] sm:$0xff] %vm814, %v813
      %p823 = scmp.lt.s32.totalorder %s14, 1
      %s824 = scalar_select %p823, %s14, 1
      %s825 = smul.addr %s824, 8
      %s826 = smul.addr %s825, 8
      %s827 = scalar_lea.vmem %s3, %s826
      // Predicated region
      $region33: #{forward.11} parent=31 // pred_check
        %p828 = pneg %p100
      $region34: #{forward.11} parent=31 // pred_check_branch
        %830 = sbr.rel (%p828) target = $region36
      $region35: #{forward.11} parent=31 // pred_region
        _
      $region36: #{forward.11} parent=31 // pred_fallthru
        _
    $region32: #{forward.11} parent=5 // pred_fallthru
      _
    %p831 = scmp.le.s32.totalorder 2, %s9
    // Predicated region
    $region37: #{forward.11} parent=5 // pred_check
      %p832 = pneg %p831
    $region38: #{forward.11} parent=5 // pred_check_branch
      %834 = sbr.rel (%p832) target = $region40
    $region39: #{forward.11} parent=5 // pred_region
      %s835 = ssub.s32 %s9, 2
      // Predicated region
      $region41: #{forward.11} parent=39 // pred_check
        %p836 = pneg %p106
      $region42: #{forward.11} parent=39 // pred_check_branch
        %838 = sbr.rel (%p836) target = $region44
      $region43: #{forward.11} parent=39 // pred_region
        %p839 = scmp.lt.s32.totalorder %s15, 1
        %s840 = scalar_select %p839, %s15, 1
        %s841 = smul.addr %s840, 8
        %s842 = smul.addr %s841, 8
        %s843 = scalar_lea.vmem %s3, %s842
      $region44: #{forward.11} parent=39 // pred_fallthru
        _
    $region40: #{forward.11} parent=5 // pred_fallthru
      _
  $region6: #{forward.11} parent=0 // loop_footer
    %s13 = sadd.s32 1, %s9
  $region7: #{forward.11} parent=0 // loop_footer_branch
    %8 = sbr.rel target = $region3
  $region8: #{forward.11} parent=0 // loop_exit
    _

</llo_original>
